<compile_context>
chip_gen: v6e
topology: v6e:2x2x1
jax: 0.10.0
libtpu: 0.0.40
codegen_flags: <defaults>
</compile_context>

<pallas_src>
import math
from functools import partial

import jax
import jax.numpy as jnp
from jax.experimental import pallas as pl
from jax.experimental.pallas import tpu as pltpu


_EPS = 1e-6
_NEG_INF = -1e9


def _detect_v7():
    try:
        return "v7" in jax.devices()[0].device_kind.lower()
    except Exception:
        return False


_IS_V7 = _detect_v7()
# v7x: 64 MiB physical VMEM per TC -> tighter scoped cap + smaller row tiles.
# v5e/v6e: 128 MiB physical -> 64 MiB scoped limit, 512-row tiles.
_VMEM_LIMIT = (44 if _IS_V7 else 64) * 1024 * 1024
_ROW_TARGET = 256 if _IS_V7 else 512


def _cparams(n_axes):
    return pltpu.CompilerParams(
        dimension_semantics=("parallel",) * n_axes,
        vmem_limit_bytes=_VMEM_LIMIT)


def _row_tile(m, target):
    """Largest row tile <= target that divides m and is a multiple of 8."""
    for t in (target, 256, 128, 64, 32, 16, 8):
        if t <= m and m % t == 0:
            return t
    return m


def _col_tile(n):
    """Lane-dense column tile for the vocab projection."""
    for t in (1024, 512, 256, 128):
        if n % t == 0:
            return t
    return n


def _q_tile(l):
    for t in (256, 128, 64, 32, 16, 8):
        if t <= l and l % t == 0:
            return t
    return l


# ------------------------- Pallas kernels -------------------------

def _ln_rows(x, w_ref, b_ref, eps):
    mu = jnp.mean(x, axis=-1, keepdims=True)
    var = jnp.mean((x - mu) * (x - mu), axis=-1, keepdims=True)
    return (x - mu) * jax.lax.rsqrt(var + eps) * w_ref[...] + b_ref[...]


def _matmul_bias_kernel(x_ref, w_ref, b_ref, o_ref):
    o_ref[...] = (jnp.dot(x_ref[...], w_ref[...],
                          preferred_element_type=jnp.float32) + b_ref[...])


def matmul_bias(x, w, b):
    """x: (M, K) bf16, w: (K, N) bf16, b: (N,) f32 -> (M, N) f32 logits.
    Tiled over both rows and the (possibly large) vocab dimension."""
    M, K = x.shape
    N = w.shape[1]
    tm = _row_tile(M, _ROW_TARGET)
    tn = _col_tile(N)
    return pl.pallas_call(
        _matmul_bias_kernel,
        grid=(M // tm, N // tn),
        in_specs=[pl.BlockSpec((tm, K), lambda i, j: (i, 0)),
                  pl.BlockSpec((K, tn), lambda i, j: (0, j)),
                  pl.BlockSpec((1, tn), lambda i, j: (0, j))],
        out_specs=pl.BlockSpec((tm, tn), lambda i, j: (i, j)),
        out_shape=jax.ShapeDtypeStruct((M, N), jnp.float32),
        compiler_params=_cparams(2),
    )(x, w, b.reshape(1, N))


def _ffn_kernel(x_ref, npad_ref, w1_ref, b1_ref, w2_ref, b2_ref,
                lnw_ref, lnb_ref, o_ref, *, eps):
    """Fused: LayerNorm(relu(x@w1+b1)@w2+b2 + x) * non_pad, bf16 in/out."""
    xb = x_ref[...]                                      # (tm, D) bf16
    x32 = xb.astype(jnp.float32)
    h = jnp.dot(xb, w1_ref[...], preferred_element_type=jnp.float32) + b1_ref[...]
    h = jnp.maximum(h, 0.0)
    y = jnp.dot(h.astype(jnp.bfloat16), w2_ref[...],
                preferred_element_type=jnp.float32) + b2_ref[...]
    res = y + x32
    out = _ln_rows(res, lnw_ref, lnb_ref, eps)
    o_ref[...] = (out * npad_ref[...]).astype(o_ref.dtype)


def ffn_block(p, x, npad):
    """x: (M, D) bf16 (flattened B*L rows), npad: (M, 1) f32 -> (M, D) bf16."""
    M, D = x.shape
    dff = p["w1"].shape[1]
    tm = _row_tile(M, _ROW_TARGET)
    return pl.pallas_call(
        partial(_ffn_kernel, eps=_EPS),
        grid=(M // tm,),
        in_specs=[pl.BlockSpec((tm, D), lambda i: (i, 0)),
                  pl.BlockSpec((tm, 1), lambda i: (i, 0)),
                  pl.BlockSpec((D, dff), lambda i: (0, 0)),
                  pl.BlockSpec((1, dff), lambda i: (0, 0)),
                  pl.BlockSpec((dff, D), lambda i: (0, 0)),
                  pl.BlockSpec((1, D), lambda i: (0, 0)),
                  pl.BlockSpec((1, D), lambda i: (0, 0)),
                  pl.BlockSpec((1, D), lambda i: (0, 0))],
        out_specs=pl.BlockSpec((tm, D), lambda i: (i, 0)),
        out_shape=jax.ShapeDtypeStruct((M, D), jnp.bfloat16),
        compiler_params=_cparams(1),
    )(x, npad, p["w1"], p["b1"].reshape(1, -1), p["w2"], p["b2"].reshape(1, -1),
      p["ln_w"].reshape(1, -1), p["ln_b"].reshape(1, -1))


def _attn_kernel(ktok_ref, x_ref, *rest, n_head, d_k, d_v, causal, pad, eps,
                 tq, single_q_tile, self_attn, pre_ln, mem_ln):
    """One fused MHA sub-layer block for one (batch, query-tile) grid point:
    Q / packed-KV projections (scale folded into W_q), per-head masked-softmax
    attention with the output projection accumulated head-by-head (static Ref
    slices of head-major Wo -> no concatenate / lane re-pack), residual,
    LayerNorm, non-pad multiply.  Key-pad and causal masks are built in-kernel
    from the int32 token ids; no (B, L, L) mask arrays ever touch HBM."""
    rest = list(rest)
    idx = 0
    mem_ref = None
    if not self_attn:
        mem_ref = rest[idx]; idx += 1
    npad_ref = rest[idx]; idx += 1
    wq_ref, bq_ref, wkv_ref, bkv_ref, wo_ref, bo_ref = rest[idx:idx + 6]
    idx += 6
    if pre_ln:
        plnw_ref, plnb_ref = rest[idx:idx + 2]; idx += 2
    if mem_ln:
        mlnw_ref, mlnb_ref = rest[idx:idx + 2]; idx += 2
    lnw_ref, lnb_ref, o_ref = rest[idx:idx + 3]

    qi = pl.program_id(1)
    row0 = pl.multiple_of(qi * tq, tq)
    n_qk = n_head * d_k

    # ---- query rows (tq, D) and key/value source rows (Lk, D) ----
    if self_attn:
        src = x_ref[0].astype(jnp.float32)
        if pre_ln:  # encoder's top-level LayerNorm fused here (feeds Q, K/V and residual)
            src = _ln_rows(src, plnw_ref, plnb_ref, eps)
        if single_q_tile:
            xq = src
        else:
            xq = x_ref[0, pl.ds(row0, tq), :].astype(jnp.float32)
            if pre_ln:
                xq = _ln_rows(xq, plnw_ref, plnb_ref, eps)
    else:
        xq = x_ref[0].astype(jnp.float32)                 # (tq, D) query block
        src = mem_ref[0].astype(jnp.float32)              # (Lk, D) encoder memory
        if mem_ln:  # decoder's LayerNorm of the encoder output, fused here
            src = _ln_rows(src, mlnw_ref, mlnb_ref, eps)

    d_model = xq.shape[-1]
    lk = src.shape[0]

    # Projections (1/sqrt(d_k) already folded into w_q / b_q at init).
    q = jnp.dot(xq.astype(jnp.bfloat16), wq_ref[...],
                preferred_element_type=jnp.float32) + bq_ref[...]     # (tq, H*dk)
    kv = jnp.dot(src.astype(jnp.bfloat16), wkv_ref[...],
                 preferred_element_type=jnp.float32) + bkv_ref[...]   # (lk, H*(dk+dv))
    qb = q.astype(jnp.bfloat16)     # cast once, not per head
    kvb = kv.astype(jnp.bfloat16)

    # Additive attention-mask bias built in-kernel from int token ids.
    kt = ktok_ref[0]                                                  # (1, lk) int32
    bias = jnp.where(kt == pad, _NEG_INF, 0.0).astype(jnp.float32)    # (1, lk)
    if causal:
        rows = jax.lax.broadcasted_iota(jnp.int32, (tq, lk), 0) + row0
        cols = jax.lax.broadcasted_iota(jnp.int32, (tq, lk), 1)
        bias = bias + jnp.where(cols > rows, _NEG_INF, 0.0)

    acc = jnp.zeros((tq, d_model), jnp.float32)
    for h in range(n_head):
        qh = qb[:, h * d_k:(h + 1) * d_k]                       # (tq, dk) bf16
        kh = kvb[:, h * d_k:(h + 1) * d_k]                      # (lk, dk) bf16
        vh = kvb[:, n_qk + h * d_v:n_qk + (h + 1) * d_v]        # (lk, dv) bf16
        # q @ k^T without an explicit transpose (contract last dims).
        s = jax.lax.dot_general(qh, kh, (((1,), (1,)), ((), ())),
                                preferred_element_type=jnp.float32) + bias
        s = s - jnp.max(s, axis=-1, keepdims=True)
        p_att = jnp.exp(s)
        p_att = p_att * pl.reciprocal(jnp.sum(p_att, axis=-1, keepdims=True),
                                      approx=False)
        ctx = jnp.dot(p_att.astype(jnp.bfloat16), vh,
                      preferred_element_type=jnp.float32)       # (tq, dv)
        # Accumulate straight into the output projection; wo_ref[h] is a free
        # static Ref slice of the head-major (H, dv, D) weight -> no concat.
        acc = acc + jnp.dot(ctx.astype(jnp.bfloat16), wo_ref[h],
                            preferred_element_type=jnp.float32)

    res = acc + bo_ref[...] + xq
    out = _ln_rows(res, lnw_ref, lnb_ref, eps) * npad_ref[0]
    o_ref[0] = out.astype(o_ref.dtype)


def attn_block(p, x, mem, ktok, non_pad, cfg, *, causal, self_attn,
               pre_ln_params=None, mem_ln_params=None):
    """x: (B, Lq, D) bf16 queries (and K/V source when self_attn),
       mem: (B, Lk, D) bf16 encoder memory (cross-attn only, else None),
       ktok: (B, 1, Lk) int32 key token ids, non_pad: (B, Lq, 1) f32
       -> (B, Lq, D) bf16."""
    B, Lq, D = x.shape
    Lk = Lq if self_attn else mem.shape[1]
    H, dk, dv = cfg["n_head"], cfg["d_k"], cfg["d_v"]
    n_kv = H * (dk + dv)
    tq = _q_tile(Lq)
    nq = Lq // tq

    kern = partial(_attn_kernel, n_head=H, d_k=dk, d_v=dv, causal=causal,
                   pad=cfg["pad"], eps=_EPS, tq=tq, single_q_tile=(nq == 1),
                   self_attn=self_attn,
                   pre_ln=pre_ln_params is not None,
                   mem_ln=mem_ln_params is not None)

    in_specs = [
        pl.BlockSpec((1, 1, Lk), lambda b, q: (b, 0, 0)),             # key token ids
        (pl.BlockSpec((1, Lq, D), lambda b, q: (b, 0, 0)) if self_attn
         else pl.BlockSpec((1, tq, D), lambda b, q: (b, q, 0))),      # queries
    ]
    args = [ktok, x]
    if not self_attn:
        # Memory block index is constant over the q axis -> DMA'd once per b.
        in_specs.append(pl.BlockSpec((1, Lk, D), lambda b, q: (b, 0, 0)))
        args.append(mem)
    in_specs.append(pl.BlockSpec((1, tq, 1), lambda b, q: (b, q, 0)))
    args.append(non_pad)
    in_specs += [pl.BlockSpec((D, H * dk), lambda b, q: (0, 0)),
                 pl.BlockSpec((1, H * dk), lambda b, q: (0, 0)),
                 pl.BlockSpec((D, n_kv), lambda b, q: (0, 0)),
                 pl.BlockSpec((1, n_kv), lambda b, q: (0, 0)),
                 pl.BlockSpec((H, dv, D), lambda b, q: (0, 0, 0)),
                 pl.BlockSpec((1, D), lambda b, q: (0, 0))]
    args += [p["w_q"], p["b_q"].reshape(1, -1), p["w_kv"], p["b_kv"].reshape(1, -1),
             p["wo"], p["bo"].reshape(1, -1)]
    for lnp in (pre_ln_params, mem_ln_params):
        if lnp is not None:
            in_specs += [pl.BlockSpec((1, D), lambda b, q: (0, 0)),
                         pl.BlockSpec((1, D), lambda b, q: (0, 0))]
            args += [lnp[0].reshape(1, -1), lnp[1].reshape(1, -1)]
    in_specs += [pl.BlockSpec((1, D), lambda b, q: (0, 0)),
                 pl.BlockSpec((1, D), lambda b, q: (0, 0))]
    args += [p["ln_w"].reshape(1, -1), p["ln_b"].reshape(1, -1)]

    return pl.pallas_call(
        kern,
        grid=(B, nq),
        in_specs=in_specs,
        out_specs=pl.BlockSpec((1, tq, D), lambda b, q: (b, q, 0)),
        out_shape=jax.ShapeDtypeStruct((B, Lq, D), jnp.bfloat16),
        compiler_params=_cparams(2),
    )(*args)


# ------------------------- Model glue (plain JAX) -------------------------

def positional_encoding(length, model_size):
    position = jnp.arange(0.0, length, dtype=jnp.float32)[:, None]
    div_term = jnp.exp(jnp.arange(0.0, model_size, 2, dtype=jnp.float32)
                       * (-math.log(10000.0) / model_size))
    pe = jnp.zeros((length, model_size), jnp.float32)
    pe = pe.at[:, 0::2].set(jnp.sin(position * div_term))
    pe = pe.at[:, 1::2].set(jnp.cos(position * div_term))
    return pe


def encoder_forward(p, x, pos, cfg):
    B, L = x.shape
    D = cfg["model_size"]
    non_pad = (x != cfg["pad"]).astype(jnp.float32)[:, :, None]      # (B, L, 1)
    ktok = x.astype(jnp.int32).reshape(B, 1, L)
    # embedding gather + positional add in plain JAX (tiny); dropout = identity.
    h = (p["embedding"][x] * math.sqrt(D) + p["pos_table"][pos]).astype(jnp.bfloat16)
    for li, lp in enumerate(p["layers"]):
        # The encoder's top-level LayerNorm (on the embedding) is fused into the
        # first self-attention kernel -> no standalone LN pass over HBM.
        h = attn_block(lp["slf"], h, None, ktok, non_pad, cfg,
                       causal=False, self_attn=True,
                       pre_ln_params=(p["ln_w"], p["ln_b"]) if li == 0 else None)
        h = ffn_block(lp["ffn"], h.reshape(-1, D),
                      non_pad.reshape(-1, 1)).reshape(B, L, D)
    return h                                                          # bf16


def decoder_forward(p, x, y, pos, enc_output, cfg):
    B, Ly = y.shape
    Lx = x.shape[1]
    D = cfg["model_size"]
    non_pad = (y != cfg["pad"]).astype(jnp.float32)[:, :, None]       # (B, Ly, 1)
    ytok = y.astype(jnp.int32).reshape(B, 1, Ly)
    xtok = x.astype(jnp.int32).reshape(B, 1, Lx)
    h = (p["embedding"][y] * math.sqrt(D) + p["pos_table"][pos]).astype(jnp.bfloat16)
    for lp in p["layers"]:
        h = attn_block(lp["slf"], h, None, ytok, non_pad, cfg,
                       causal=True, self_attn=True)
        # decoder.layer_norm(enc_output) is fused into the cross-attn kernel
        # (recomputed per layer; cheap VPU work vs. an extra HBM round trip).
        h = attn_block(lp["enc"], h, enc_output, xtok, non_pad, cfg,
                       causal=False, self_attn=False,
                       mem_ln_params=(p["ln_w"], p["ln_b"]))
        h = ffn_block(lp["ffn"], h.reshape(-1, D),
                      non_pad.reshape(-1, 1)).reshape(B, Ly, D)
    return h                                                          # bf16


def transformer_forward(params, x, x_pos, y, y_pos, cfg):
    enc_output = encoder_forward(params["encoder"], x, x_pos, cfg)
    # convert(): prepend <bos>, drop last token
    B = y.shape[0]
    start = jnp.full((B, 1), cfg["bos"], dtype=y.dtype)
    y = jnp.concatenate([start, y], axis=1)[:, :-1]
    y_pos = jnp.where(y == cfg["pad"], 0, y_pos)
    dec_output = decoder_forward(params["decoder"], x, y, y_pos, enc_output, cfg)
    D = cfg["model_size"]
    out = matmul_bias(dec_output.reshape(-1, D), params["wout"], params["bout"])
    return out.reshape(B, -1, cfg["tgt_vocab_size"])


# ------------------------- Deterministic parameter init -------------------------

def init_params(key, cfg):
    D, H, dk, dv, dff = (cfg["model_size"], cfg["n_head"], cfg["d_k"],
                         cfg["d_v"], cfg["d_ff"])
    keys = iter(jax.random.split(key, 256))

    def dense(din, dout):
        return jax.random.normal(next(keys), (din, dout), jnp.float32) * 0.02

    def mha():
        scale = 1.0 / math.sqrt(dk)
        wq = dense(D, H * dk) * scale      # fold 1/sqrt(d_k) into W_q (and b_q)
        wk, wv = dense(D, H * dk), dense(D, H * dv)
        wo = dense(H * dv, D)
        return {"w_q": wq.astype(jnp.bfloat16),
                "b_q": jnp.zeros((H * dk,), jnp.float32) * scale,
                "w_kv": jnp.concatenate([wk, wv], axis=1).astype(jnp.bfloat16),
                "b_kv": jnp.zeros((H * (dk + dv),), jnp.float32),
                # head-major so the kernel takes free static Ref slices per head
                "wo": wo.reshape(H, dv, D).astype(jnp.bfloat16),
                "bo": jnp.zeros((D,), jnp.float32),
                "ln_w": jnp.ones((D,), jnp.float32),
                "ln_b": jnp.zeros((D,), jnp.float32)}

    def pwffn():
        return {"w1": dense(D, dff).astype(jnp.bfloat16),
                "b1": jnp.zeros((dff,), jnp.float32),
                "w2": dense(dff, D).astype(jnp.bfloat16),
                "b2": jnp.zeros((D,), jnp.float32),
                "ln_w": jnp.ones((D,), jnp.float32),
                "ln_b": jnp.zeros((D,), jnp.float32)}

    enc_layers = [{"slf": mha(), "ffn": pwffn()} for _ in range(cfg["n_layer"])]
    dec_layers = [{"slf": mha(), "enc": mha(), "ffn": pwffn()}
                  for _ in range(cfg["n_layer"])]

    dec_emb = jax.random.normal(next(keys), (cfg["tgt_vocab_size"], D), jnp.float32) * 0.02
    if cfg["share_vocab"]:
        enc_emb = dec_emb
    else:
        enc_emb = jax.random.normal(next(keys), (cfg["src_vocab_size"], D), jnp.float32) * 0.02

    return {
        "encoder": {"embedding": enc_emb,
                    "pos_table": positional_encoding(cfg["t_len"] + 1, D),
                    "ln_w": jnp.ones((D,), jnp.float32),
                    "ln_b": jnp.zeros((D,), jnp.float32),
                    "layers": enc_layers},
        "decoder": {"embedding": dec_emb,
                    "pos_table": positional_encoding(cfg["s_len"] + 1, D),
                    "ln_w": jnp.ones((D,), jnp.float32),
                    "ln_b": jnp.zeros((D,), jnp.float32),
                    "layers": dec_layers},
        "wout": dense(D, cfg["tgt_vocab_size"]).astype(jnp.bfloat16),
        "bout": jnp.zeros((cfg["tgt_vocab_size"],), jnp.float32),
    }


# ------------------------- main -------------------------

if __name__ == "__main__":
    cfg = dict(model_size=32, n_head=4, d_k=8, d_v=8, d_ff=64, n_layer=2,
               src_vocab_size=50, tgt_vocab_size=50, t_len=8, s_len=8,
               pad=0, bos=1, ls=0.1, dropout=0.1, share_vocab=False)

    key = jax.random.PRNGKey(0)
    pkey, xkey, ykey = jax.random.split(key, 3)
    params = init_params(pkey, cfg)

    B = 2
    # token ids in [2, vocab) so nothing collides with pad=0 / bos=1
    x = jax.random.randint(xkey, (B, cfg["t_len"]), 2, cfg["src_vocab_size"], dtype=jnp.int32)
    y = jax.random.randint(ykey, (B, cfg["s_len"]), 2, cfg["tgt_vocab_size"], dtype=jnp.int32)
    x_pos = jnp.broadcast_to(jnp.arange(1, cfg["t_len"] + 1, dtype=jnp.int32), (B, cfg["t_len"]))
    y_pos = jnp.broadcast_to(jnp.arange(1, cfg["s_len"] + 1, dtype=jnp.int32), (B, cfg["s_len"]))

    fwd = jax.jit(lambda p, a, ap, b, bp: transformer_forward(p, a, ap, b, bp, cfg))
    out = fwd(params, x, x_pos, y, y_pos)
    out = jax.block_until_ready(out)
    assert out.shape == (B, cfg["s_len"], cfg["tgt_vocab_size"])
    assert bool(jnp.all(jnp.isfinite(out)))
    print("KERNEL_OK")
</pallas_src>

<mosaic_0001>
module attributes {stable_mosaic.version = 11 : i64} {
  func.func @_ffn_kernel(%arg0: i32, %arg1: memref<16x32xbf16, #tpu.memory_space<vmem>>, %arg2: memref<16x1xf32, #tpu.memory_space<vmem>>, %arg3: memref<32x64xbf16, #tpu.memory_space<vmem>>, %arg4: memref<1x64xf32, #tpu.memory_space<vmem>>, %arg5: memref<64x32xbf16, #tpu.memory_space<vmem>>, %arg6: memref<1x32xf32, #tpu.memory_space<vmem>>, %arg7: memref<1x32xf32, #tpu.memory_space<vmem>>, %arg8: memref<1x32xf32, #tpu.memory_space<vmem>>, %arg9: memref<16x32xbf16, #tpu.memory_space<vmem>>) attributes {dimension_semantics = [#tpu.dimension_semantics<parallel>], iteration_bounds = array<i64: 1>, scalar_prefetch = 0 : i64, scratch_operands = 0 : i64, tpu.core_type = #tpu.core_type<tc>, window_params = [{transform_indices = @transform_0, window_bounds = array<i64: 16, 32>}, {transform_indices = @transform_1, window_bounds = array<i64: 16, 1>}, {pipeline_mode = #tpu.pipeline_mode<synchronous>, transform_indices = @transform_2, window_bounds = array<i64: 32, 64>}, {pipeline_mode = #tpu.pipeline_mode<synchronous>, transform_indices = @transform_3, window_bounds = array<i64: 1, 64>}, {pipeline_mode = #tpu.pipeline_mode<synchronous>, transform_indices = @transform_4, window_bounds = array<i64: 64, 32>}, {pipeline_mode = #tpu.pipeline_mode<synchronous>, transform_indices = @transform_5, window_bounds = array<i64: 1, 32>}, {pipeline_mode = #tpu.pipeline_mode<synchronous>, transform_indices = @transform_6, window_bounds = array<i64: 1, 32>}, {pipeline_mode = #tpu.pipeline_mode<synchronous>, transform_indices = @transform_7, window_bounds = array<i64: 1, 32>}, {transform_indices = @transform_8, window_bounds = array<i64: 16, 32>}]} {
    %c0 = arith.constant 0 : index
    %c0_0 = arith.constant 0 : index
    %0 = vector.load %arg1[%c0, %c0_0] : memref<16x32xbf16, #tpu.memory_space<vmem>>, vector<16x32xbf16>
    %1 = arith.extf %0 : vector<16x32xbf16> to vector<16x32xf32>
    %c0_1 = arith.constant 0 : index
    %c0_2 = arith.constant 0 : index
    %2 = vector.load %arg3[%c0_1, %c0_2] : memref<32x64xbf16, #tpu.memory_space<vmem>>, vector<32x64xbf16>
    %cst = arith.constant dense<0.000000e+00> : vector<16x64xf32>
    %3 = tpu.matmul %0, %2, %cst {dimension_numbers = #tpu.dot_dimension_numbers<[1], [0], [0], [1], [0, 0, 1, 1], [], []>} : vector<16x32xbf16>, vector<32x64xbf16>, vector<16x64xf32> -> vector<16x64xf32>
    %c0_3 = arith.constant 0 : index
    %c0_4 = arith.constant 0 : index
    %4 = vector.load %arg4[%c0_3, %c0_4] : memref<1x64xf32, #tpu.memory_space<vmem>>, vector<1x64xf32>
    %5 = vector.broadcast %4 : vector<1x64xf32> to vector<16x64xf32>
    %6 = arith.addf %3, %5 : vector<16x64xf32>
    %cst_5 = arith.constant 0.000000e+00 : f32
    %7 = vector.broadcast %cst_5 : f32 to vector<16x64xf32>
    %8 = arith.maximumf %6, %7 : vector<16x64xf32>
    %9 = arith.truncf %8 : vector<16x64xf32> to vector<16x64xbf16>
    %c0_6 = arith.constant 0 : index
    %c0_7 = arith.constant 0 : index
    %10 = vector.load %arg5[%c0_6, %c0_7] : memref<64x32xbf16, #tpu.memory_space<vmem>>, vector<64x32xbf16>
    %cst_8 = arith.constant dense<0.000000e+00> : vector<16x32xf32>
    %11 = tpu.matmul %9, %10, %cst_8 {dimension_numbers = #tpu.dot_dimension_numbers<[1], [0], [0], [1], [0, 0, 1, 1], [], []>} : vector<16x64xbf16>, vector<64x32xbf16>, vector<16x32xf32> -> vector<16x32xf32>
    %c0_9 = arith.constant 0 : index
    %c0_10 = arith.constant 0 : index
    %12 = vector.load %arg6[%c0_9, %c0_10] : memref<1x32xf32, #tpu.memory_space<vmem>>, vector<1x32xf32>
    %13 = vector.broadcast %12 : vector<1x32xf32> to vector<16x32xf32>
    %14 = arith.addf %11, %13 : vector<16x32xf32>
    %15 = arith.addf %14, %1 : vector<16x32xf32>
    %cst_11 = arith.constant dense<0.000000e+00> : vector<16xf32>
    %16 = vector.multi_reduction <add>, %15, %cst_11 [1] : vector<16x32xf32> to vector<16xf32>
    %17 = vector.shape_cast %16 : vector<16xf32> to vector<16x1xf32>
    %cst_12 = arith.constant 3.200000e+01 : f32
    %18 = vector.broadcast %cst_12 : f32 to vector<16x1xf32>
    %19 = arith.divf %17, %18 : vector<16x1xf32>
    %20 = vector.broadcast %19 : vector<16x1xf32> to vector<16x32xf32>
    %21 = arith.subf %15, %20 : vector<16x32xf32>
    %22 = vector.broadcast %19 : vector<16x1xf32> to vector<16x32xf32>
    %23 = arith.subf %15, %22 : vector<16x32xf32>
    %24 = arith.mulf %21, %23 : vector<16x32xf32>
    %cst_13 = arith.constant dense<0.000000e+00> : vector<16xf32>
    %25 = vector.multi_reduction <add>, %24, %cst_13 [1] : vector<16x32xf32> to vector<16xf32>
    %26 = vector.shape_cast %25 : vector<16xf32> to vector<16x1xf32>
    %cst_14 = arith.constant 3.200000e+01 : f32
    %27 = vector.broadcast %cst_14 : f32 to vector<16x1xf32>
    %28 = arith.divf %26, %27 : vector<16x1xf32>
    %29 = vector.broadcast %19 : vector<16x1xf32> to vector<16x32xf32>
    %30 = arith.subf %15, %29 : vector<16x32xf32>
    %cst_15 = arith.constant 9.99999997E-7 : f32
    %31 = vector.broadcast %cst_15 : f32 to vector<16x1xf32>
    %32 = arith.addf %28, %31 : vector<16x1xf32>
    %33 = math.rsqrt %32 : vector<16x1xf32>
    %34 = vector.broadcast %33 : vector<16x1xf32> to vector<16x32xf32>
    %35 = arith.mulf %30, %34 : vector<16x32xf32>
    %c0_16 = arith.constant 0 : index
    %c0_17 = arith.constant 0 : index
    %36 = vector.load %arg7[%c0_16, %c0_17] : memref<1x32xf32, #tpu.memory_space<vmem>>, vector<1x32xf32>
    %37 = vector.broadcast %36 : vector<1x32xf32> to vector<16x32xf32>
    %38 = arith.mulf %35, %37 : vector<16x32xf32>
    %c0_18 = arith.constant 0 : index
    %c0_19 = arith.constant 0 : index
    %39 = vector.load %arg8[%c0_18, %c0_19] : memref<1x32xf32, #tpu.memory_space<vmem>>, vector<1x32xf32>
    %40 = vector.broadcast %39 : vector<1x32xf32> to vector<16x32xf32>
    %41 = arith.addf %38, %40 : vector<16x32xf32>
    %c0_20 = arith.constant 0 : index
    %c0_21 = arith.constant 0 : index
    %42 = vector.load %arg2[%c0_20, %c0_21] : memref<16x1xf32, #tpu.memory_space<vmem>>, vector<16x1xf32>
    %43 = vector.broadcast %42 : vector<16x1xf32> to vector<16x32xf32>
    %44 = arith.mulf %41, %43 : vector<16x32xf32>
    %45 = arith.truncf %44 : vector<16x32xf32> to vector<16x32xbf16>
    %c0_22 = arith.constant 0 : index
    %c0_23 = arith.constant 0 : index
    %46 = vector.load %arg9[%c0_22, %c0_23] : memref<16x32xbf16, #tpu.memory_space<vmem>>, vector<16x32xbf16>
    tpu.vector_store %arg9[%c0_22, %c0_23], %45 {strides = array<i32>} : memref<16x32xbf16, #tpu.memory_space<vmem>>, vector<16x32xbf16>,
    return
  }
  func.func @transform_0(%arg0: i32) -> (i32, i32) {
    %c0_i32 = arith.constant 0 : i32
    %c0_i32_0 = arith.constant 0 : i32
    return %arg0, %c0_i32 : i32, i32
  }
  func.func @transform_1(%arg0: i32) -> (i32, i32) {
    %c0_i32 = arith.constant 0 : i32
    %c0_i32_0 = arith.constant 0 : i32
    return %arg0, %c0_i32 : i32, i32
  }
  func.func @transform_2(%arg0: i32) -> (i32, i32) {
    %c0_i32 = arith.constant 0 : i32
    %c0_i32_0 = arith.constant 0 : i32
    %c0_i32_1 = arith.constant 0 : i32
    return %c0_i32, %c0_i32_0 : i32, i32
  }
  func.func @transform_3(%arg0: i32) -> (i32, i32) {
    %c0_i32 = arith.constant 0 : i32
    %c0_i32_0 = arith.constant 0 : i32
    %c0_i32_1 = arith.constant 0 : i32
    return %c0_i32, %c0_i32_0 : i32, i32
  }
  func.func @transform_4(%arg0: i32) -> (i32, i32) {
    %c0_i32 = arith.constant 0 : i32
    %c0_i32_0 = arith.constant 0 : i32
    %c0_i32_1 = arith.constant 0 : i32
    return %c0_i32, %c0_i32_0 : i32, i32
  }
  func.func @transform_5(%arg0: i32) -> (i32, i32) {
    %c0_i32 = arith.constant 0 : i32
    %c0_i32_0 = arith.constant 0 : i32
    %c0_i32_1 = arith.constant 0 : i32
    return %c0_i32, %c0_i32_0 : i32, i32
  }
  func.func @transform_6(%arg0: i32) -> (i32, i32) {
    %c0_i32 = arith.constant 0 : i32
    %c0_i32_0 = arith.constant 0 : i32
    %c0_i32_1 = arith.constant 0 : i32
    return %c0_i32, %c0_i32_0 : i32, i32
  }
  func.func @transform_7(%arg0: i32) -> (i32, i32) {
    %c0_i32 = arith.constant 0 : i32
    %c0_i32_0 = arith.constant 0 : i32
    %c0_i32_1 = arith.constant 0 : i32
    return %c0_i32, %c0_i32_0 : i32, i32
  }
  func.func @transform_8(%arg0: i32) -> (i32, i32) {
    %c0_i32 = arith.constant 0 : i32
    %c0_i32_0 = arith.constant 0 : i32
    return %arg0, %c0_i32 : i32, i32
  }
}

module attributes {stable_mosaic.version = 11 : i64} {
  func.func @_attn_kernel(%arg0: i32, %arg1: i32, %arg2: memref<1x1x8xi32, #tpu.memory_space<vmem>>, %arg3: memref<1x8x32xbf16, #tpu.memory_space<vmem>>, %arg4: memref<1x8x1xf32, #tpu.memory_space<vmem>>, %arg5: memref<32x32xbf16, #tpu.memory_space<vmem>>, %arg6: memref<1x32xf32, #tpu.memory_space<vmem>>, %arg7: memref<32x64xbf16, #tpu.memory_space<vmem>>, %arg8: memref<1x64xf32, #tpu.memory_space<vmem>>, %arg9: memref<4x8x32xbf16, #tpu.memory_space<vmem>>, %arg10: memref<1x32xf32, #tpu.memory_space<vmem>>, %arg11: memref<1x32xf32, #tpu.memory_space<vmem>>, %arg12: memref<1x32xf32, #tpu.memory_space<vmem>>, %arg13: memref<1x32xf32, #tpu.memory_space<vmem>>, %arg14: memref<1x32xf32, #tpu.memory_space<vmem>>, %arg15: memref<1x8x32xbf16, #tpu.memory_space<vmem>>) attributes {dimension_semantics = [#tpu.dimension_semantics<parallel>, #tpu.dimension_semantics<parallel>], iteration_bounds = array<i64: 2, 1>, scalar_prefetch = 0 : i64, scratch_operands = 0 : i64, tpu.core_type = #tpu.core_type<tc>, window_params = [{transform_indices = @transform_0, window_bounds = array<i64: 1, 1, 8>}, {transform_indices = @transform_1, window_bounds = array<i64: 1, 8, 32>}, {transform_indices = @transform_2, window_bounds = array<i64: 1, 8, 1>}, {pipeline_mode = #tpu.pipeline_mode<synchronous>, transform_indices = @transform_3, window_bounds = array<i64: 32, 32>}, {pipeline_mode = #tpu.pipeline_mode<synchronous>, transform_indices = @transform_4, window_bounds = array<i64: 1, 32>}, {pipeline_mode = #tpu.pipeline_mode<synchronous>, transform_indices = @transform_5, window_bounds = array<i64: 32, 64>}, {pipeline_mode = #tpu.pipeline_mode<synchronous>, transform_indices = @transform_6, window_bounds = array<i64: 1, 64>}, {pipeline_mode = #tpu.pipeline_mode<synchronous>, transform_indices = @transform_7, window_bounds = array<i64: 4, 8, 32>}, {pipeline_mode = #tpu.pipeline_mode<synchronous>, transform_indices = @transform_8, window_bounds = array<i64: 1, 32>}, {pipeline_mode = #tpu.pipeline_mode<synchronous>, transform_indices = @transform_9, window_bounds = array<i64: 1, 32>}, {pipeline_mode = #tpu.pipeline_mode<synchronous>, transform_indices = @transform_10, window_bounds = array<i64: 1, 32>}, {pipeline_mode = #tpu.pipeline_mode<synchronous>, transform_indices = @transform_11, window_bounds = array<i64: 1, 32>}, {pipeline_mode = #tpu.pipeline_mode<synchronous>, transform_indices = @transform_12, window_bounds = array<i64: 1, 32>}, {transform_indices = @transform_13, window_bounds = array<i64: 1, 8, 32>}]} {
    %c0 = arith.constant 0 : index
    %c0_0 = arith.constant 0 : index
    %c0_1 = arith.constant 0 : index
    %0 = vector.load %arg3[%c0, %c0_0, %c0_1] : memref<1x8x32xbf16, #tpu.memory_space<vmem>>, vector<1x8x32xbf16>
    %1 = vector.shape_cast %0 : vector<1x8x32xbf16> to vector<8x32xbf16>
    %2 = arith.extf %1 : vector<8x32xbf16> to vector<8x32xf32>
    %cst = arith.constant dense<0.000000e+00> : vector<8xf32>
    %3 = vector.multi_reduction <add>, %2, %cst [1] : vector<8x32xf32> to vector<8xf32>
    %4 = vector.shape_cast %3 : vector<8xf32> to vector<8x1xf32>
    %cst_2 = arith.constant 3.200000e+01 : f32
    %5 = vector.broadcast %cst_2 : f32 to vector<8x1xf32>
    %6 = arith.divf %4, %5 : vector<8x1xf32>
    %7 = vector.broadcast %6 : vector<8x1xf32> to vector<8x32xf32>
    %8 = arith.subf %2, %7 : vector<8x32xf32>
    %9 = vector.broadcast %6 : vector<8x1xf32> to vector<8x32xf32>
    %10 = arith.subf %2, %9 : vector<8x32xf32>
    %11 = arith.mulf %8, %10 : vector<8x32xf32>
    %cst_3 = arith.constant dense<0.000000e+00> : vector<8xf32>
    %12 = vector.multi_reduction <add>, %11, %cst_3 [1] : vector<8x32xf32> to vector<8xf32>
    %13 = vector.shape_cast %12 : vector<8xf32> to vector<8x1xf32>
    %cst_4 = arith.constant 3.200000e+01 : f32
    %14 = vector.broadcast %cst_4 : f32 to vector<8x1xf32>
    %15 = arith.divf %13, %14 : vector<8x1xf32>
    %16 = vector.broadcast %6 : vector<8x1xf32> to vector<8x32xf32>
    %17 = arith.subf %2, %16 : vector<8x32xf32>
    %cst_5 = arith.constant 9.99999997E-7 : f32
    %18 = vector.broadcast %cst_5 : f32 to vector<8x1xf32>
    %19 = arith.addf %15, %18 : vector<8x1xf32>
    %20 = math.rsqrt %19 : vector<8x1xf32>
    %21 = vector.broadcast %20 : vector<8x1xf32> to vector<8x32xf32>
    %22 = arith.mulf %17, %21 : vector<8x32xf32>
    %c0_6 = arith.constant 0 : index
    %c0_7 = arith.constant 0 : index
    %23 = vector.load %arg11[%c0_6, %c0_7] : memref<1x32xf32, #tpu.memory_space<vmem>>, vector<1x32xf32>
    %24 = vector.broadcast %23 : vector<1x32xf32> to vector<8x32xf32>
    %25 = arith.mulf %22, %24 : vector<8x32xf32>
    %c0_8 = arith.constant 0 : index
    %c0_9 = arith.constant 0 : index
    %26 = vector.load %arg12[%c0_8, %c0_9] : memref<1x32xf32, #tpu.memory_space<vmem>>, vector<1x32xf32>
    %27 = vector.broadcast %26 : vector<1x32xf32> to vector<8x32xf32>
    %28 = arith.addf %25, %27 : vector<8x32xf32>
    %29 = arith.truncf %28 : vector<8x32xf32> to vector<8x32xbf16>
    %c0_10 = arith.constant 0 : index
    %c0_11 = arith.constant 0 : index
    %30 = vector.load %arg5[%c0_10, %c0_11] : memref<32x32xbf16, #tpu.memory_space<vmem>>, vector<32x32xbf16>
    %cst_12 = arith.constant dense<0.000000e+00> : vector<8x32xf32>
    %31 = tpu.matmul %29, %30, %cst_12 {dimension_numbers = #tpu.dot_dimension_numbers<[1], [0], [0], [1], [0, 0, 1, 1], [], []>} : vector<8x32xbf16>, vector<32x32xbf16>, vector<8x32xf32> -> vector<8x32xf32>
    %c0_13 = arith.constant 0 : index
    %c0_14 = arith.constant 0 : index
    %32 = vector.load %arg6[%c0_13, %c0_14] : memref<1x32xf32, #tpu.memory_space<vmem>>, vector<1x32xf32>
    %33 = vector.broadcast %32 : vector<1x32xf32> to vector<8x32xf32>
    %34 = arith.addf %31, %33 : vector<8x32xf32>
    %35 = arith.truncf %28 : vector<8x32xf32> to vector<8x32xbf16>
    %c0_15 = arith.constant 0 : index
    %c0_16 = arith.constant 0 : index
    %36 = vector.load %arg7[%c0_15, %c0_16] : memref<32x64xbf16, #tpu.memory_space<vmem>>, vector<32x64xbf16>
    %cst_17 = arith.constant dense<0.000000e+00> : vector<8x64xf32>
    %37 = tpu.matmul %35, %36, %cst_17 {dimension_numbers = #tpu.dot_dimension_numbers<[1], [0], [0], [1], [0, 0, 1, 1], [], []>} : vector<8x32xbf16>, vector<32x64xbf16>, vector<8x64xf32> -> vector<8x64xf32>
    %c0_18 = arith.constant 0 : index
    %c0_19 = arith.constant 0 : index
    %38 = vector.load %arg8[%c0_18, %c0_19] : memref<1x64xf32, #tpu.memory_space<vmem>>, vector<1x64xf32>
    %39 = vector.broadcast %38 : vector<1x64xf32> to vector<8x64xf32>
    %40 = arith.addf %37, %39 : vector<8x64xf32>
    %41 = arith.truncf %34 : vector<8x32xf32> to vector<8x32xbf16>
    %42 = arith.truncf %40 : vector<8x64xf32> to vector<8x64xbf16>
    %c0_20 = arith.constant 0 : index
    %c0_21 = arith.constant 0 : index
    %c0_22 = arith.constant 0 : index
    %43 = vector.load %arg2[%c0_20, %c0_21, %c0_22] : memref<1x1x8xi32, #tpu.memory_space<vmem>>, vector<1x1x8xi32>
    %44 = vector.shape_cast %43 : vector<1x1x8xi32> to vector<1x8xi32>
    %c0_i32 = arith.constant 0 : i32
    %45 = vector.broadcast %c0_i32 : i32 to vector<1x8xi32>
    %46 = arith.cmpi eq, %44, %45 : vector<1x8xi32>
    %cst_23 = arith.constant -1.000000e+09 : f32
    %cst_24 = arith.constant 0.000000e+00 : f32
    %47 = vector.broadcast %cst_23 : f32 to vector<1x8xf32>
    %48 = vector.broadcast %cst_24 : f32 to vector<1x8xf32>
    %49 = arith.select %46, %47, %48 : vector<1x8xi1>, vector<1x8xf32>
    %cst_25 = arith.constant 0.000000e+00 : f32
    %50 = vector.broadcast %cst_25 : f32 to vector<8x32xf32>
    %51 = vector.extract_strided_slice %41 {offsets = [0, 0], sizes = [8, 8], strides = [1, 1]} : vector<8x32xbf16> to vector<8x8xbf16>
    %52 = vector.extract_strided_slice %42 {offsets = [0, 0], sizes = [8, 8], strides = [1, 1]} : vector<8x64xbf16> to vector<8x8xbf16>
    %53 = vector.extract_strided_slice %42 {offsets = [0, 32], sizes = [8, 8], strides = [1, 1]} : vector<8x64xbf16> to vector<8x8xbf16>
    %cst_26 = arith.constant dense<0.000000e+00> : vector<8x8xf32>
    %54 = tpu.matmul %51, %52, %cst_26 {dimension_numbers = #tpu.dot_dimension_numbers<[1], [1], [0], [0], [0, 0, 1, 0], [], []>} : vector<8x8xbf16>, vector<8x8xbf16>, vector<8x8xf32> -> vector<8x8xf32>
    %55 = vector.broadcast %49 : vector<1x8xf32> to vector<8x8xf32>
    %56 = arith.addf %54, %55 : vector<8x8xf32>
    %cst_27 = arith.constant dense<0xFF800000> : vector<8xf32>
    %57 = vector.multi_reduction <maximumf>, %56, %cst_27 [1] : vector<8x8xf32> to vector<8xf32>
    %58 = vector.shape_cast %57 : vector<8xf32> to vector<8x1xf32>
    %59 = vector.broadcast %58 : vector<8x1xf32> to vector<8x8xf32>
    %60 = arith.subf %56, %59 : vector<8x8xf32>
    %61 = math.exp %60 : vector<8x8xf32>
    %cst_28 = arith.constant dense<0.000000e+00> : vector<8xf32>
    %62 = vector.multi_reduction <add>, %61, %cst_28 [1] : vector<8x8xf32> to vector<8xf32>
    %63 = vector.shape_cast %62 : vector<8xf32> to vector<8x1xf32>
    %64 = tpu.reciprocal %63 : vector<8x1xf32> -> vector<8x1xf32>
    %65 = vector.broadcast %64 : vector<8x1xf32> to vector<8x8xf32>
    %66 = arith.mulf %61, %65 : vector<8x8xf32>
    %67 = arith.truncf %66 : vector<8x8xf32> to vector<8x8xbf16>
    %cst_29 = arith.constant dense<0.000000e+00> : vector<8x8xf32>
    %68 = tpu.matmul %67, %53, %cst_29 {dimension_numbers = #tpu.dot_dimension_numbers<[1], [0], [0], [1], [0, 0, 1, 1], [], []>} : vector<8x8xbf16>, vector<8x8xbf16>, vector<8x8xf32> -> vector<8x8xf32>
    %69 = arith.truncf %68 : vector<8x8xf32> to vector<8x8xbf16>
    %c0_30 = arith.constant 0 : index
    %c0_31 = arith.constant 0 : index
    %c0_32 = arith.constant 0 : index
    %70 = vector.load %arg9[%c0_30, %c0_31, %c0_32] : memref<4x8x32xbf16, #tpu.memory_space<vmem>>, vector<1x8x32xbf16>
    %71 = vector.shape_cast %70 : vector<1x8x32xbf16> to vector<8x32xbf16>
    %cst_33 = arith.constant dense<0.000000e+00> : vector<8x32xf32>
    %72 = tpu.matmul %69, %71, %cst_33 {dimension_numbers = #tpu.dot_dimension_numbers<[1], [0], [0], [1], [0, 0, 1, 1], [], []>} : vector<8x8xbf16>, vector<8x32xbf16>, vector<8x32xf32> -> vector<8x32xf32>
    %73 = arith.addf %50, %72 : vector<8x32xf32>
    %74 = vector.extract_strided_slice %41 {offsets = [0, 8], sizes = [8, 8], strides = [1, 1]} : vector<8x32xbf16> to vector<8x8xbf16>
    %75 = vector.extract_strided_slice %42 {offsets = [0, 8], sizes = [8, 8], strides = [1, 1]} : vector<8x64xbf16> to vector<8x8xbf16>
    %76 = vector.extract_strided_slice %42 {offsets = [0, 40], sizes = [8, 8], strides = [1, 1]} : vector<8x64xbf16> to vector<8x8xbf16>
    %cst_34 = arith.constant dense<0.000000e+00> : vector<8x8xf32>
    %77 = tpu.matmul %74, %75, %cst_34 {dimension_numbers = #tpu.dot_dimension_numbers<[1], [1], [0], [0], [0, 0, 1, 0], [], []>} : vector<8x8xbf16>, vector<8x8xbf16>, vector<8x8xf32> -> vector<8x8xf32>
    %78 = vector.broadcast %49 : vector<1x8xf32> to vector<8x8xf32>
    %79 = arith.addf %77, %78 : vector<8x8xf32>
    %cst_35 = arith.constant dense<0xFF800000> : vector<8xf32>
    %80 = vector.multi_reduction <maximumf>, %79, %cst_35 [1] : vector<8x8xf32> to vector<8xf32>
    %81 = vector.shape_cast %80 : vector<8xf32> to vector<8x1xf32>
    %82 = vector.broadcast %81 : vector<8x1xf32> to vector<8x8xf32>
    %83 = arith.subf %79, %82 : vector<8x8xf32>
    %84 = math.exp %83 : vector<8x8xf32>
    %cst_36 = arith.constant dense<0.000000e+00> : vector<8xf32>
    %85 = vector.multi_reduction <add>, %84, %cst_36 [1] : vector<8x8xf32> to vector<8xf32>
    %86 = vector.shape_cast %85 : vector<8xf32> to vector<8x1xf32>
    %87 = tpu.reciprocal %86 : vector<8x1xf32> -> vector<8x1xf32>
    %88 = vector.broadcast %87 : vector<8x1xf32> to vector<8x8xf32>
    %89 = arith.mulf %84, %88 : vector<8x8xf32>
    %90 = arith.truncf %89 : vector<8x8xf32> to vector<8x8xbf16>
    %cst_37 = arith.constant dense<0.000000e+00> : vector<8x8xf32>
    %91 = tpu.matmul %90, %76, %cst_37 {dimension_numbers = #tpu.dot_dimension_numbers<[1], [0], [0], [1], [0, 0, 1, 1], [], []>} : vector<8x8xbf16>, vector<8x8xbf16>, vector<8x8xf32> -> vector<8x8xf32>
    %92 = arith.truncf %91 : vector<8x8xf32> to vector<8x8xbf16>
    %c1 = arith.constant 1 : index
    %c0_38 = arith.constant 0 : index
    %c0_39 = arith.constant 0 : index
    %93 = vector.load %arg9[%c1, %c0_38, %c0_39] : memref<4x8x32xbf16, #tpu.memory_space<vmem>>, vector<1x8x32xbf16>
    %94 = vector.shape_cast %93 : vector<1x8x32xbf16> to vector<8x32xbf16>
    %cst_40 = arith.constant dense<0.000000e+00> : vector<8x32xf32>
    %95 = tpu.matmul %92, %94, %cst_40 {dimension_numbers = #tpu.dot_dimension_numbers<[1], [0], [0], [1], [0, 0, 1, 1], [], []>} : vector<8x8xbf16>, vector<8x32xbf16>, vector<8x32xf32> -> vector<8x32xf32>
    %96 = arith.addf %73, %95 : vector<8x32xf32>
    %97 = vector.extract_strided_slice %41 {offsets = [0, 16], sizes = [8, 8], strides = [1, 1]} : vector<8x32xbf16> to vector<8x8xbf16>
    %98 = vector.extract_strided_slice %42 {offsets = [0, 16], sizes = [8, 8], strides = [1, 1]} : vector<8x64xbf16> to vector<8x8xbf16>
    %99 = vector.extract_strided_slice %42 {offsets = [0, 48], sizes = [8, 8], strides = [1, 1]} : vector<8x64xbf16> to vector<8x8xbf16>
    %cst_41 = arith.constant dense<0.000000e+00> : vector<8x8xf32>
    %100 = tpu.matmul %97, %98, %cst_41 {dimension_numbers = #tpu.dot_dimension_numbers<[1], [1], [0], [0], [0, 0, 1, 0], [], []>} : vector<8x8xbf16>, vector<8x8xbf16>, vector<8x8xf32> -> vector<8x8xf32>
    %101 = vector.broadcast %49 : vector<1x8xf32> to vector<8x8xf32>
    %102 = arith.addf %100, %101 : vector<8x8xf32>
    %cst_42 = arith.constant dense<0xFF800000> : vector<8xf32>
    %103 = vector.multi_reduction <maximumf>, %102, %cst_42 [1] : vector<8x8xf32> to vector<8xf32>
    %104 = vector.shape_cast %103 : vector<8xf32> to vector<8x1xf32>
    %105 = vector.broadcast %104 : vector<8x1xf32> to vector<8x8xf32>
    %106 = arith.subf %102, %105 : vector<8x8xf32>
    %107 = math.exp %106 : vector<8x8xf32>
    %cst_43 = arith.constant dense<0.000000e+00> : vector<8xf32>
    %108 = vector.multi_reduction <add>, %107, %cst_43 [1] : vector<8x8xf32> to vector<8xf32>
    %109 = vector.shape_cast %108 : vector<8xf32> to vector<8x1xf32>
    %110 = tpu.reciprocal %109 : vector<8x1xf32> -> vector<8x1xf32>
    %111 = vector.broadcast %110 : vector<8x1xf32> to vector<8x8xf32>
    %112 = arith.mulf %107, %111 : vector<8x8xf32>
    %113 = arith.truncf %112 : vector<8x8xf32> to vector<8x8xbf16>
    %cst_44 = arith.constant dense<0.000000e+00> : vector<8x8xf32>
    %114 = tpu.matmul %113, %99, %cst_44 {dimension_numbers = #tpu.dot_dimension_numbers<[1], [0], [0], [1], [0, 0, 1, 1], [], []>} : vector<8x8xbf16>, vector<8x8xbf16>, vector<8x8xf32> -> vector<8x8xf32>
    %115 = arith.truncf %114 : vector<8x8xf32> to vector<8x8xbf16>
    %c2 = arith.constant 2 : index
    %c0_45 = arith.constant 0 : index
    %c0_46 = arith.constant 0 : index
    %116 = vector.load %arg9[%c2, %c0_45, %c0_46] : memref<4x8x32xbf16, #tpu.memory_space<vmem>>, vector<1x8x32xbf16>
    %117 = vector.shape_cast %116 : vector<1x8x32xbf16> to vector<8x32xbf16>
    %cst_47 = arith.constant dense<0.000000e+00> : vector<8x32xf32>
    %118 = tpu.matmul %115, %117, %cst_47 {dimension_numbers = #tpu.dot_dimension_numbers<[1], [0], [0], [1], [0, 0, 1, 1], [], []>} : vector<8x8xbf16>, vector<8x32xbf16>, vector<8x32xf32> -> vector<8x32xf32>
    %119 = arith.addf %96, %118 : vector<8x32xf32>
    %120 = vector.extract_strided_slice %41 {offsets = [0, 24], sizes = [8, 8], strides = [1, 1]} : vector<8x32xbf16> to vector<8x8xbf16>
    %121 = vector.extract_strided_slice %42 {offsets = [0, 24], sizes = [8, 8], strides = [1, 1]} : vector<8x64xbf16> to vector<8x8xbf16>
    %122 = vector.extract_strided_slice %42 {offsets = [0, 56], sizes = [8, 8], strides = [1, 1]} : vector<8x64xbf16> to vector<8x8xbf16>
    %cst_48 = arith.constant dense<0.000000e+00> : vector<8x8xf32>
    %123 = tpu.matmul %120, %121, %cst_48 {dimension_numbers = #tpu.dot_dimension_numbers<[1], [1], [0], [0], [0, 0, 1, 0], [], []>} : vector<8x8xbf16>, vector<8x8xbf16>, vector<8x8xf32> -> vector<8x8xf32>
    %124 = vector.broadcast %49 : vector<1x8xf32> to vector<8x8xf32>
    %125 = arith.addf %123, %124 : vector<8x8xf32>
    %cst_49 = arith.constant dense<0xFF800000> : vector<8xf32>
    %126 = vector.multi_reduction <maximumf>, %125, %cst_49 [1] : vector<8x8xf32> to vector<8xf32>
    %127 = vector.shape_cast %126 : vector<8xf32> to vector<8x1xf32>
    %128 = vector.broadcast %127 : vector<8x1xf32> to vector<8x8xf32>
    %129 = arith.subf %125, %128 : vector<8x8xf32>
    %130 = math.exp %129 : vector<8x8xf32>
    %cst_50 = arith.constant dense<0.000000e+00> : vector<8xf32>
    %131 = vector.multi_reduction <add>, %130, %cst_50 [1] : vector<8x8xf32> to vector<8xf32>
    %132 = vector.shape_cast %131 : vector<8xf32> to vector<8x1xf32>
    %133 = tpu.reciprocal %132 : vector<8x1xf32> -> vector<8x1xf32>
    %134 = vector.broadcast %133 : vector<8x1xf32> to vector<8x8xf32>
    %135 = arith.mulf %130, %134 : vector<8x8xf32>
    %136 = arith.truncf %135 : vector<8x8xf32> to vector<8x8xbf16>
    %cst_51 = arith.constant dense<0.000000e+00> : vector<8x8xf32>
    %137 = tpu.matmul %136, %122, %cst_51 {dimension_numbers = #tpu.dot_dimension_numbers<[1], [0], [0], [1], [0, 0, 1, 1], [], []>} : vector<8x8xbf16>, vector<8x8xbf16>, vector<8x8xf32> -> vector<8x8xf32>
    %138 = arith.truncf %137 : vector<8x8xf32> to vector<8x8xbf16>
    %c3 = arith.constant 3 : index
    %c0_52 = arith.constant 0 : index
    %c0_53 = arith.constant 0 : index
    %139 = vector.load %arg9[%c3, %c0_52, %c0_53] : memref<4x8x32xbf16, #tpu.memory_space<vmem>>, vector<1x8x32xbf16>
    %140 = vector.shape_cast %139 : vector<1x8x32xbf16> to vector<8x32xbf16>
    %cst_54 = arith.constant dense<0.000000e+00> : vector<8x32xf32>
    %141 = tpu.matmul %138, %140, %cst_54 {dimension_numbers = #tpu.dot_dimension_numbers<[1], [0], [0], [1], [0, 0, 1, 1], [], []>} : vector<8x8xbf16>, vector<8x32xbf16>, vector<8x32xf32> -> vector<8x32xf32>
    %142 = arith.addf %119, %141 : vector<8x32xf32>
    %c0_55 = arith.constant 0 : index
    %c0_56 = arith.constant 0 : index
    %143 = vector.load %arg10[%c0_55, %c0_56] : memref<1x32xf32, #tpu.memory_space<vmem>>, vector<1x32xf32>
    %144 = vector.broadcast %143 : vector<1x32xf32> to vector<8x32xf32>
    %145 = arith.addf %142, %144 : vector<8x32xf32>
    %146 = arith.addf %145, %28 : vector<8x32xf32>
    %cst_57 = arith.constant dense<0.000000e+00> : vector<8xf32>
    %147 = vector.multi_reduction <add>, %146, %cst_57 [1] : vector<8x32xf32> to vector<8xf32>
    %148 = vector.shape_cast %147 : vector<8xf32> to vector<8x1xf32>
    %cst_58 = arith.constant 3.200000e+01 : f32
    %149 = vector.broadcast %cst_58 : f32 to vector<8x1xf32>
    %150 = arith.divf %148, %149 : vector<8x1xf32>
    %151 = vector.broadcast %150 : vector<8x1xf32> to vector<8x32xf32>
    %152 = arith.subf %146, %151 : vector<8x32xf32>
    %153 = vector.broadcast %150 : vector<8x1xf32> to vector<8x32xf32>
    %154 = arith.subf %146, %153 : vector<8x32xf32>
    %155 = arith.mulf %152, %154 : vector<8x32xf32>
    %cst_59 = arith.constant dense<0.000000e+00> : vector<8xf32>
    %156 = vector.multi_reduction <add>, %155, %cst_59 [1] : vector<8x32xf32> to vector<8xf32>
    %157 = vector.shape_cast %156 : vector<8xf32> to vector<8x1xf32>
    %cst_60 = arith.constant 3.200000e+01 : f32
    %158 = vector.broadcast %cst_60 : f32 to vector<8x1xf32>
    %159 = arith.divf %157, %158 : vector<8x1xf32>
    %160 = vector.broadcast %150 : vector<8x1xf32> to vector<8x32xf32>
    %161 = arith.subf %146, %160 : vector<8x32xf32>
    %cst_61 = arith.constant 9.99999997E-7 : f32
    %162 = vector.broadcast %cst_61 : f32 to vector<8x1xf32>
    %163 = arith.addf %159, %162 : vector<8x1xf32>
    %164 = math.rsqrt %163 : vector<8x1xf32>
    %165 = vector.broadcast %164 : vector<8x1xf32> to vector<8x32xf32>
    %166 = arith.mulf %161, %165 : vector<8x32xf32>
    %c0_62 = arith.constant 0 : index
    %c0_63 = arith.constant 0 : index
    %167 = vector.load %arg13[%c0_62, %c0_63] : memref<1x32xf32, #tpu.memory_space<vmem>>, vector<1x32xf32>
    %168 = vector.broadcast %167 : vector<1x32xf32> to vector<8x32xf32>
    %169 = arith.mulf %166, %168 : vector<8x32xf32>
    %c0_64 = arith.constant 0 : index
    %c0_65 = arith.constant 0 : index
    %170 = vector.load %arg14[%c0_64, %c0_65] : memref<1x32xf32, #tpu.memory_space<vmem>>, vector<1x32xf32>
    %171 = vector.broadcast %170 : vector<1x32xf32> to vector<8x32xf32>
    %172 = arith.addf %169, %171 : vector<8x32xf32>
    %c0_66 = arith.constant 0 : index
    %c0_67 = arith.constant 0 : index
    %c0_68 = arith.constant 0 : index
    %173 = vector.load %arg4[%c0_66, %c0_67, %c0_68] : memref<1x8x1xf32, #tpu.memory_space<vmem>>, vector<1x8x1xf32>
    %174 = vector.shape_cast %173 : vector<1x8x1xf32> to vector<8x1xf32>
    %175 = vector.broadcast %174 : vector<8x1xf32> to vector<8x32xf32>
    %176 = arith.mulf %172, %175 : vector<8x32xf32>
    %177 = arith.truncf %176 : vector<8x32xf32> to vector<8x32xbf16>
    %c0_69 = arith.constant 0 : index
    %c0_70 = arith.constant 0 : index
    %c0_71 = arith.constant 0 : index
    %178 = vector.load %arg15[%c0_69, %c0_70, %c0_71] : memref<1x8x32xbf16, #tpu.memory_space<vmem>>, vector<1x8x32xbf16>
    %179 = vector.shape_cast %178 : vector<1x8x32xbf16> to vector<8x32xbf16>
    %180 = vector.shape_cast %177 : vector<8x32xbf16> to vector<1x8x32xbf16>
    tpu.vector_store %arg15[%c0_69, %c0_70, %c0_71], %180 {strides = array<i32>} : memref<1x8x32xbf16, #tpu.memory_space<vmem>>, vector<1x8x32xbf16>,
    return
  }
  func.func @transform_0(%arg0: i32, %arg1: i32) -> (i32, i32, i32) {
    %c0_i32 = arith.constant 0 : i32
    %c0_i32_0 = arith.constant 0 : i32
    %c0_i32_1 = arith.constant 0 : i32
    return %arg0, %c0_i32, %c0_i32_0 : i32, i32, i32
  }
  func.func @transform_1(%arg0: i32, %arg1: i32) -> (i32, i32, i32) {
    %c0_i32 = arith.constant 0 : i32
    %c0_i32_0 = arith.constant 0 : i32
    %c0_i32_1 = arith.constant 0 : i32
    return %arg0, %c0_i32, %c0_i32_0 : i32, i32, i32
  }
  func.func @transform_2(%arg0: i32, %arg1: i32) -> (i32, i32, i32) {
    %c0_i32 = arith.constant 0 : i32
    %c0_i32_0 = arith.constant 0 : i32
    return %arg0, %arg1, %c0_i32 : i32, i32, i32
  }
  func.func @transform_3(%arg0: i32, %arg1: i32) -> (i32, i32) {
    %c0_i32 = arith.constant 0 : i32
    %c0_i32_0 = arith.constant 0 : i32
    %c0_i32_1 = arith.constant 0 : i32
    return %c0_i32, %c0_i32_0 : i32, i32
  }
  func.func @transform_4(%arg0: i32, %arg1: i32) -> (i32, i32) {
    %c0_i32 = arith.constant 0 : i32
    %c0_i32_0 = arith.constant 0 : i32
    %c0_i32_1 = arith.constant 0 : i32
    return %c0_i32, %c0_i32_0 : i32, i32
  }
  func.func @transform_5(%arg0: i32, %arg1: i32) -> (i32, i32) {
    %c0_i32 = arith.constant 0 : i32
    %c0_i32_0 = arith.constant 0 : i32
    %c0_i32_1 = arith.constant 0 : i32
    return %c0_i32, %c0_i32_0 : i32, i32
  }
  func.func @transform_6(%arg0: i32, %arg1: i32) -> (i32, i32) {
    %c0_i32 = arith.constant 0 : i32
    %c0_i32_0 = arith.constant 0 : i32
    %c0_i32_1 = arith.constant 0 : i32
    return %c0_i32, %c0_i32_0 : i32, i32
  }
  func.func @transform_7(%arg0: i32, %arg1: i32) -> (i32, i32, i32) {
    %c0_i32 = arith.constant 0 : i32
    %c0_i32_0 = arith.constant 0 : i32
    %c0_i32_1 = arith.constant 0 : i32
    %c0_i32_2 = arith.constant 0 : i32
    return %c0_i32, %c0_i32_0, %c0_i32_1 : i32, i32, i32
  }
  func.func @transform_8(%arg0: i32, %arg1: i32) -> (i32, i32) {
    %c0_i32 = arith.constant 0 : i32
    %c0_i32_0 = arith.constant 0 : i32
    %c0_i32_1 = arith.constant 0 : i32
    return %c0_i32, %c0_i32_0 : i32, i32
  }
  func.func @transform_9(%arg0: i32, %arg1: i32) -> (i32, i32) {
    %c0_i32 = arith.constant 0 : i32
    %c0_i32_0 = arith.constant 0 : i32
    %c0_i32_1 = arith.constant 0 : i32
    return %c0_i32, %c0_i32_0 : i32, i32
  }
  func.func @transform_10(%arg0: i32, %arg1: i32) -> (i32, i32) {
    %c0_i32 = arith.constant 0 : i32
    %c0_i32_0 = arith.constant 0 : i32
    %c0_i32_1 = arith.constant 0 : i32
    return %c0_i32, %c0_i32_0 : i32, i32
  }
  func.func @transform_11(%arg0: i32, %arg1: i32) -> (i32, i32) {
    %c0_i32 = arith.constant 0 : i32
    %c0_i32_0 = arith.constant 0 : i32
    %c0_i32_1 = arith.constant 0 : i32
    return %c0_i32, %c0_i32_0 : i32, i32
  }
  func.func @transform_12(%arg0: i32, %arg1: i32) -> (i32, i32) {
    %c0_i32 = arith.constant 0 : i32
    %c0_i32_0 = arith.constant 0 : i32
    %c0_i32_1 = arith.constant 0 : i32
    return %c0_i32, %c0_i32_0 : i32, i32
  }
  func.func @transform_13(%arg0: i32, %arg1: i32) -> (i32, i32, i32) {
    %c0_i32 = arith.constant 0 : i32
    %c0_i32_0 = arith.constant 0 : i32
    return %arg0, %arg1, %c0_i32 : i32, i32, i32
  }
}

module attributes {stable_mosaic.version = 11 : i64} {
  func.func @_attn_kernel(%arg0: i32, %arg1: i32, %arg2: memref<1x1x8xi32, #tpu.memory_space<vmem>>, %arg3: memref<1x8x32xbf16, #tpu.memory_space<vmem>>, %arg4: memref<1x8x1xf32, #tpu.memory_space<vmem>>, %arg5: memref<32x32xbf16, #tpu.memory_space<vmem>>, %arg6: memref<1x32xf32, #tpu.memory_space<vmem>>, %arg7: memref<32x64xbf16, #tpu.memory_space<vmem>>, %arg8: memref<1x64xf32, #tpu.memory_space<vmem>>, %arg9: memref<4x8x32xbf16, #tpu.memory_space<vmem>>, %arg10: memref<1x32xf32, #tpu.memory_space<vmem>>, %arg11: memref<1x32xf32, #tpu.memory_space<vmem>>, %arg12: memref<1x32xf32, #tpu.memory_space<vmem>>, %arg13: memref<1x8x32xbf16, #tpu.memory_space<vmem>>) attributes {dimension_semantics = [#tpu.dimension_semantics<parallel>, #tpu.dimension_semantics<parallel>], iteration_bounds = array<i64: 2, 1>, scalar_prefetch = 0 : i64, scratch_operands = 0 : i64, tpu.core_type = #tpu.core_type<tc>, window_params = [{transform_indices = @transform_0, window_bounds = array<i64: 1, 1, 8>}, {transform_indices = @transform_1, window_bounds = array<i64: 1, 8, 32>}, {transform_indices = @transform_2, window_bounds = array<i64: 1, 8, 1>}, {pipeline_mode = #tpu.pipeline_mode<synchronous>, transform_indices = @transform_3, window_bounds = array<i64: 32, 32>}, {pipeline_mode = #tpu.pipeline_mode<synchronous>, transform_indices = @transform_4, window_bounds = array<i64: 1, 32>}, {pipeline_mode = #tpu.pipeline_mode<synchronous>, transform_indices = @transform_5, window_bounds = array<i64: 32, 64>}, {pipeline_mode = #tpu.pipeline_mode<synchronous>, transform_indices = @transform_6, window_bounds = array<i64: 1, 64>}, {pipeline_mode = #tpu.pipeline_mode<synchronous>, transform_indices = @transform_7, window_bounds = array<i64: 4, 8, 32>}, {pipeline_mode = #tpu.pipeline_mode<synchronous>, transform_indices = @transform_8, window_bounds = array<i64: 1, 32>}, {pipeline_mode = #tpu.pipeline_mode<synchronous>, transform_indices = @transform_9, window_bounds = array<i64: 1, 32>}, {pipeline_mode = #tpu.pipeline_mode<synchronous>, transform_indices = @transform_10, window_bounds = array<i64: 1, 32>}, {transform_indices = @transform_11, window_bounds = array<i64: 1, 8, 32>}]} {
    %c0 = arith.constant 0 : index
    %c0_0 = arith.constant 0 : index
    %c0_1 = arith.constant 0 : index
    %0 = vector.load %arg3[%c0, %c0_0, %c0_1] : memref<1x8x32xbf16, #tpu.memory_space<vmem>>, vector<1x8x32xbf16>
    %1 = vector.shape_cast %0 : vector<1x8x32xbf16> to vector<8x32xbf16>
    %2 = arith.extf %1 : vector<8x32xbf16> to vector<8x32xf32>
    %3 = arith.truncf %2 : vector<8x32xf32> to vector<8x32xbf16>
    %c0_2 = arith.constant 0 : index
    %c0_3 = arith.constant 0 : index
    %4 = vector.load %arg5[%c0_2, %c0_3] : memref<32x32xbf16, #tpu.memory_space<vmem>>, vector<32x32xbf16>
    %cst = arith.constant dense<0.000000e+00> : vector<8x32xf32>
    %5 = tpu.matmul %3, %4, %cst {dimension_numbers = #tpu.dot_dimension_numbers<[1], [0], [0], [1], [0, 0, 1, 1], [], []>} : vector<8x32xbf16>, vector<32x32xbf16>, vector<8x32xf32> -> vector<8x32xf32>
    %c0_4 = arith.constant 0 : index
    %c0_5 = arith.constant 0 : index
    %6 = vector.load %arg6[%c0_4, %c0_5] : memref<1x32xf32, #tpu.memory_space<vmem>>, vector<1x32xf32>
    %7 = vector.broadcast %6 : vector<1x32xf32> to vector<8x32xf32>
    %8 = arith.addf %5, %7 : vector<8x32xf32>
    %9 = arith.truncf %2 : vector<8x32xf32> to vector<8x32xbf16>
    %c0_6 = arith.constant 0 : index
    %c0_7 = arith.constant 0 : index
    %10 = vector.load %arg7[%c0_6, %c0_7] : memref<32x64xbf16, #tpu.memory_space<vmem>>, vector<32x64xbf16>
    %cst_8 = arith.constant dense<0.000000e+00> : vector<8x64xf32>
    %11 = tpu.matmul %9, %10, %cst_8 {dimension_numbers = #tpu.dot_dimension_numbers<[1], [0], [0], [1], [0, 0, 1, 1], [], []>} : vector<8x32xbf16>, vector<32x64xbf16>, vector<8x64xf32> -> vector<8x64xf32>
    %c0_9 = arith.constant 0 : index
    %c0_10 = arith.constant 0 : index
    %12 = vector.load %arg8[%c0_9, %c0_10] : memref<1x64xf32, #tpu.memory_space<vmem>>, vector<1x64xf32>
    %13 = vector.broadcast %12 : vector<1x64xf32> to vector<8x64xf32>
    %14 = arith.addf %11, %13 : vector<8x64xf32>
    %15 = arith.truncf %8 : vector<8x32xf32> to vector<8x32xbf16>
    %16 = arith.truncf %14 : vector<8x64xf32> to vector<8x64xbf16>
    %c0_11 = arith.constant 0 : index
    %c0_12 = arith.constant 0 : index
    %c0_13 = arith.constant 0 : index
    %17 = vector.load %arg2[%c0_11, %c0_12, %c0_13] : memref<1x1x8xi32, #tpu.memory_space<vmem>>, vector<1x1x8xi32>
    %18 = vector.shape_cast %17 : vector<1x1x8xi32> to vector<1x8xi32>
    %c0_i32 = arith.constant 0 : i32
    %19 = vector.broadcast %c0_i32 : i32 to vector<1x8xi32>
    %20 = arith.cmpi eq, %18, %19 : vector<1x8xi32>
    %cst_14 = arith.constant -1.000000e+09 : f32
    %cst_15 = arith.constant 0.000000e+00 : f32
    %21 = vector.broadcast %cst_14 : f32 to vector<1x8xf32>
    %22 = vector.broadcast %cst_15 : f32 to vector<1x8xf32>
    %23 = arith.select %20, %21, %22 : vector<1x8xi1>, vector<1x8xf32>
    %cst_16 = arith.constant 0.000000e+00 : f32
    %24 = vector.broadcast %cst_16 : f32 to vector<8x32xf32>
    %25 = vector.extract_strided_slice %15 {offsets = [0, 0], sizes = [8, 8], strides = [1, 1]} : vector<8x32xbf16> to vector<8x8xbf16>
    %26 = vector.extract_strided_slice %16 {offsets = [0, 0], sizes = [8, 8], strides = [1, 1]} : vector<8x64xbf16> to vector<8x8xbf16>
    %27 = vector.extract_strided_slice %16 {offsets = [0, 32], sizes = [8, 8], strides = [1, 1]} : vector<8x64xbf16> to vector<8x8xbf16>
    %cst_17 = arith.constant dense<0.000000e+00> : vector<8x8xf32>
    %28 = tpu.matmul %25, %26, %cst_17 {dimension_numbers = #tpu.dot_dimension_numbers<[1], [1], [0], [0], [0, 0, 1, 0], [], []>} : vector<8x8xbf16>, vector<8x8xbf16>, vector<8x8xf32> -> vector<8x8xf32>
    %29 = vector.broadcast %23 : vector<1x8xf32> to vector<8x8xf32>
    %30 = arith.addf %28, %29 : vector<8x8xf32>
    %cst_18 = arith.constant dense<0xFF800000> : vector<8xf32>
    %31 = vector.multi_reduction <maximumf>, %30, %cst_18 [1] : vector<8x8xf32> to vector<8xf32>
    %32 = vector.shape_cast %31 : vector<8xf32> to vector<8x1xf32>
    %33 = vector.broadcast %32 : vector<8x1xf32> to vector<8x8xf32>
    %34 = arith.subf %30, %33 : vector<8x8xf32>
    %35 = math.exp %34 : vector<8x8xf32>
    %cst_19 = arith.constant dense<0.000000e+00> : vector<8xf32>
    %36 = vector.multi_reduction <add>, %35, %cst_19 [1] : vector<8x8xf32> to vector<8xf32>
    %37 = vector.shape_cast %36 : vector<8xf32> to vector<8x1xf32>
    %38 = tpu.reciprocal %37 : vector<8x1xf32> -> vector<8x1xf32>
    %39 = vector.broadcast %38 : vector<8x1xf32> to vector<8x8xf32>
    %40 = arith.mulf %35, %39 : vector<8x8xf32>
    %41 = arith.truncf %40 : vector<8x8xf32> to vector<8x8xbf16>
    %cst_20 = arith.constant dense<0.000000e+00> : vector<8x8xf32>
    %42 = tpu.matmul %41, %27, %cst_20 {dimension_numbers = #tpu.dot_dimension_numbers<[1], [0], [0], [1], [0, 0, 1, 1], [], []>} : vector<8x8xbf16>, vector<8x8xbf16>, vector<8x8xf32> -> vector<8x8xf32>
    %43 = arith.truncf %42 : vector<8x8xf32> to vector<8x8xbf16>
    %c0_21 = arith.constant 0 : index
    %c0_22 = arith.constant 0 : index
    %c0_23 = arith.constant 0 : index
    %44 = vector.load %arg9[%c0_21, %c0_22, %c0_23] : memref<4x8x32xbf16, #tpu.memory_space<vmem>>, vector<1x8x32xbf16>
    %45 = vector.shape_cast %44 : vector<1x8x32xbf16> to vector<8x32xbf16>
    %cst_24 = arith.constant dense<0.000000e+00> : vector<8x32xf32>
    %46 = tpu.matmul %43, %45, %cst_24 {dimension_numbers = #tpu.dot_dimension_numbers<[1], [0], [0], [1], [0, 0, 1, 1], [], []>} : vector<8x8xbf16>, vector<8x32xbf16>, vector<8x32xf32> -> vector<8x32xf32>
    %47 = arith.addf %24, %46 : vector<8x32xf32>
    %48 = vector.extract_strided_slice %15 {offsets = [0, 8], sizes = [8, 8], strides = [1, 1]} : vector<8x32xbf16> to vector<8x8xbf16>
    %49 = vector.extract_strided_slice %16 {offsets = [0, 8], sizes = [8, 8], strides = [1, 1]} : vector<8x64xbf16> to vector<8x8xbf16>
    %50 = vector.extract_strided_slice %16 {offsets = [0, 40], sizes = [8, 8], strides = [1, 1]} : vector<8x64xbf16> to vector<8x8xbf16>
    %cst_25 = arith.constant dense<0.000000e+00> : vector<8x8xf32>
    %51 = tpu.matmul %48, %49, %cst_25 {dimension_numbers = #tpu.dot_dimension_numbers<[1], [1], [0], [0], [0, 0, 1, 0], [], []>} : vector<8x8xbf16>, vector<8x8xbf16>, vector<8x8xf32> -> vector<8x8xf32>
    %52 = vector.broadcast %23 : vector<1x8xf32> to vector<8x8xf32>
    %53 = arith.addf %51, %52 : vector<8x8xf32>
    %cst_26 = arith.constant dense<0xFF800000> : vector<8xf32>
    %54 = vector.multi_reduction <maximumf>, %53, %cst_26 [1] : vector<8x8xf32> to vector<8xf32>
    %55 = vector.shape_cast %54 : vector<8xf32> to vector<8x1xf32>
    %56 = vector.broadcast %55 : vector<8x1xf32> to vector<8x8xf32>
    %57 = arith.subf %53, %56 : vector<8x8xf32>
    %58 = math.exp %57 : vector<8x8xf32>
    %cst_27 = arith.constant dense<0.000000e+00> : vector<8xf32>
    %59 = vector.multi_reduction <add>, %58, %cst_27 [1] : vector<8x8xf32> to vector<8xf32>
    %60 = vector.shape_cast %59 : vector<8xf32> to vector<8x1xf32>
    %61 = tpu.reciprocal %60 : vector<8x1xf32> -> vector<8x1xf32>
    %62 = vector.broadcast %61 : vector<8x1xf32> to vector<8x8xf32>
    %63 = arith.mulf %58, %62 : vector<8x8xf32>
    %64 = arith.truncf %63 : vector<8x8xf32> to vector<8x8xbf16>
    %cst_28 = arith.constant dense<0.000000e+00> : vector<8x8xf32>
    %65 = tpu.matmul %64, %50, %cst_28 {dimension_numbers = #tpu.dot_dimension_numbers<[1], [0], [0], [1], [0, 0, 1, 1], [], []>} : vector<8x8xbf16>, vector<8x8xbf16>, vector<8x8xf32> -> vector<8x8xf32>
    %66 = arith.truncf %65 : vector<8x8xf32> to vector<8x8xbf16>
    %c1 = arith.constant 1 : index
    %c0_29 = arith.constant 0 : index
    %c0_30 = arith.constant 0 : index
    %67 = vector.load %arg9[%c1, %c0_29, %c0_30] : memref<4x8x32xbf16, #tpu.memory_space<vmem>>, vector<1x8x32xbf16>
    %68 = vector.shape_cast %67 : vector<1x8x32xbf16> to vector<8x32xbf16>
    %cst_31 = arith.constant dense<0.000000e+00> : vector<8x32xf32>
    %69 = tpu.matmul %66, %68, %cst_31 {dimension_numbers = #tpu.dot_dimension_numbers<[1], [0], [0], [1], [0, 0, 1, 1], [], []>} : vector<8x8xbf16>, vector<8x32xbf16>, vector<8x32xf32> -> vector<8x32xf32>
    %70 = arith.addf %47, %69 : vector<8x32xf32>
    %71 = vector.extract_strided_slice %15 {offsets = [0, 16], sizes = [8, 8], strides = [1, 1]} : vector<8x32xbf16> to vector<8x8xbf16>
    %72 = vector.extract_strided_slice %16 {offsets = [0, 16], sizes = [8, 8], strides = [1, 1]} : vector<8x64xbf16> to vector<8x8xbf16>
    %73 = vector.extract_strided_slice %16 {offsets = [0, 48], sizes = [8, 8], strides = [1, 1]} : vector<8x64xbf16> to vector<8x8xbf16>
    %cst_32 = arith.constant dense<0.000000e+00> : vector<8x8xf32>
    %74 = tpu.matmul %71, %72, %cst_32 {dimension_numbers = #tpu.dot_dimension_numbers<[1], [1], [0], [0], [0, 0, 1, 0], [], []>} : vector<8x8xbf16>, vector<8x8xbf16>, vector<8x8xf32> -> vector<8x8xf32>
    %75 = vector.broadcast %23 : vector<1x8xf32> to vector<8x8xf32>
    %76 = arith.addf %74, %75 : vector<8x8xf32>
    %cst_33 = arith.constant dense<0xFF800000> : vector<8xf32>
    %77 = vector.multi_reduction <maximumf>, %76, %cst_33 [1] : vector<8x8xf32> to vector<8xf32>
    %78 = vector.shape_cast %77 : vector<8xf32> to vector<8x1xf32>
    %79 = vector.broadcast %78 : vector<8x1xf32> to vector<8x8xf32>
    %80 = arith.subf %76, %79 : vector<8x8xf32>
    %81 = math.exp %80 : vector<8x8xf32>
    %cst_34 = arith.constant dense<0.000000e+00> : vector<8xf32>
    %82 = vector.multi_reduction <add>, %81, %cst_34 [1] : vector<8x8xf32> to vector<8xf32>
    %83 = vector.shape_cast %82 : vector<8xf32> to vector<8x1xf32>
    %84 = tpu.reciprocal %83 : vector<8x1xf32> -> vector<8x1xf32>
    %85 = vector.broadcast %84 : vector<8x1xf32> to vector<8x8xf32>
    %86 = arith.mulf %81, %85 : vector<8x8xf32>
    %87 = arith.truncf %86 : vector<8x8xf32> to vector<8x8xbf16>
    %cst_35 = arith.constant dense<0.000000e+00> : vector<8x8xf32>
    %88 = tpu.matmul %87, %73, %cst_35 {dimension_numbers = #tpu.dot_dimension_numbers<[1], [0], [0], [1], [0, 0, 1, 1], [], []>} : vector<8x8xbf16>, vector<8x8xbf16>, vector<8x8xf32> -> vector<8x8xf32>
    %89 = arith.truncf %88 : vector<8x8xf32> to vector<8x8xbf16>
    %c2 = arith.constant 2 : index
    %c0_36 = arith.constant 0 : index
    %c0_37 = arith.constant 0 : index
    %90 = vector.load %arg9[%c2, %c0_36, %c0_37] : memref<4x8x32xbf16, #tpu.memory_space<vmem>>, vector<1x8x32xbf16>
    %91 = vector.shape_cast %90 : vector<1x8x32xbf16> to vector<8x32xbf16>
    %cst_38 = arith.constant dense<0.000000e+00> : vector<8x32xf32>
    %92 = tpu.matmul %89, %91, %cst_38 {dimension_numbers = #tpu.dot_dimension_numbers<[1], [0], [0], [1], [0, 0, 1, 1], [], []>} : vector<8x8xbf16>, vector<8x32xbf16>, vector<8x32xf32> -> vector<8x32xf32>
    %93 = arith.addf %70, %92 : vector<8x32xf32>
    %94 = vector.extract_strided_slice %15 {offsets = [0, 24], sizes = [8, 8], strides = [1, 1]} : vector<8x32xbf16> to vector<8x8xbf16>
    %95 = vector.extract_strided_slice %16 {offsets = [0, 24], sizes = [8, 8], strides = [1, 1]} : vector<8x64xbf16> to vector<8x8xbf16>
    %96 = vector.extract_strided_slice %16 {offsets = [0, 56], sizes = [8, 8], strides = [1, 1]} : vector<8x64xbf16> to vector<8x8xbf16>
    %cst_39 = arith.constant dense<0.000000e+00> : vector<8x8xf32>
    %97 = tpu.matmul %94, %95, %cst_39 {dimension_numbers = #tpu.dot_dimension_numbers<[1], [1], [0], [0], [0, 0, 1, 0], [], []>} : vector<8x8xbf16>, vector<8x8xbf16>, vector<8x8xf32> -> vector<8x8xf32>
    %98 = vector.broadcast %23 : vector<1x8xf32> to vector<8x8xf32>
    %99 = arith.addf %97, %98 : vector<8x8xf32>
    %cst_40 = arith.constant dense<0xFF800000> : vector<8xf32>
    %100 = vector.multi_reduction <maximumf>, %99, %cst_40 [1] : vector<8x8xf32> to vector<8xf32>
    %101 = vector.shape_cast %100 : vector<8xf32> to vector<8x1xf32>
    %102 = vector.broadcast %101 : vector<8x1xf32> to vector<8x8xf32>
    %103 = arith.subf %99, %102 : vector<8x8xf32>
    %104 = math.exp %103 : vector<8x8xf32>
    %cst_41 = arith.constant dense<0.000000e+00> : vector<8xf32>
    %105 = vector.multi_reduction <add>, %104, %cst_41 [1] : vector<8x8xf32> to vector<8xf32>
    %106 = vector.shape_cast %105 : vector<8xf32> to vector<8x1xf32>
    %107 = tpu.reciprocal %106 : vector<8x1xf32> -> vector<8x1xf32>
    %108 = vector.broadcast %107 : vector<8x1xf32> to vector<8x8xf32>
    %109 = arith.mulf %104, %108 : vector<8x8xf32>
    %110 = arith.truncf %109 : vector<8x8xf32> to vector<8x8xbf16>
    %cst_42 = arith.constant dense<0.000000e+00> : vector<8x8xf32>
    %111 = tpu.matmul %110, %96, %cst_42 {dimension_numbers = #tpu.dot_dimension_numbers<[1], [0], [0], [1], [0, 0, 1, 1], [], []>} : vector<8x8xbf16>, vector<8x8xbf16>, vector<8x8xf32> -> vector<8x8xf32>
    %112 = arith.truncf %111 : vector<8x8xf32> to vector<8x8xbf16>
    %c3 = arith.constant 3 : index
    %c0_43 = arith.constant 0 : index
    %c0_44 = arith.constant 0 : index
    %113 = vector.load %arg9[%c3, %c0_43, %c0_44] : memref<4x8x32xbf16, #tpu.memory_space<vmem>>, vector<1x8x32xbf16>
    %114 = vector.shape_cast %113 : vector<1x8x32xbf16> to vector<8x32xbf16>
    %cst_45 = arith.constant dense<0.000000e+00> : vector<8x32xf32>
    %115 = tpu.matmul %112, %114, %cst_45 {dimension_numbers = #tpu.dot_dimension_numbers<[1], [0], [0], [1], [0, 0, 1, 1], [], []>} : vector<8x8xbf16>, vector<8x32xbf16>, vector<8x32xf32> -> vector<8x32xf32>
    %116 = arith.addf %93, %115 : vector<8x32xf32>
    %c0_46 = arith.constant 0 : index
    %c0_47 = arith.constant 0 : index
    %117 = vector.load %arg10[%c0_46, %c0_47] : memref<1x32xf32, #tpu.memory_space<vmem>>, vector<1x32xf32>
    %118 = vector.broadcast %117 : vector<1x32xf32> to vector<8x32xf32>
    %119 = arith.addf %116, %118 : vector<8x32xf32>
    %120 = arith.addf %119, %2 : vector<8x32xf32>
    %cst_48 = arith.constant dense<0.000000e+00> : vector<8xf32>
    %121 = vector.multi_reduction <add>, %120, %cst_48 [1] : vector<8x32xf32> to vector<8xf32>
    %122 = vector.shape_cast %121 : vector<8xf32> to vector<8x1xf32>
    %cst_49 = arith.constant 3.200000e+01 : f32
    %123 = vector.broadcast %cst_49 : f32 to vector<8x1xf32>
    %124 = arith.divf %122, %123 : vector<8x1xf32>
    %125 = vector.broadcast %124 : vector<8x1xf32> to vector<8x32xf32>
    %126 = arith.subf %120, %125 : vector<8x32xf32>
    %127 = vector.broadcast %124 : vector<8x1xf32> to vector<8x32xf32>
    %128 = arith.subf %120, %127 : vector<8x32xf32>
    %129 = arith.mulf %126, %128 : vector<8x32xf32>
    %cst_50 = arith.constant dense<0.000000e+00> : vector<8xf32>
    %130 = vector.multi_reduction <add>, %129, %cst_50 [1] : vector<8x32xf32> to vector<8xf32>
    %131 = vector.shape_cast %130 : vector<8xf32> to vector<8x1xf32>
    %cst_51 = arith.constant 3.200000e+01 : f32
    %132 = vector.broadcast %cst_51 : f32 to vector<8x1xf32>
    %133 = arith.divf %131, %132 : vector<8x1xf32>
    %134 = vector.broadcast %124 : vector<8x1xf32> to vector<8x32xf32>
    %135 = arith.subf %120, %134 : vector<8x32xf32>
    %cst_52 = arith.constant 9.99999997E-7 : f32
    %136 = vector.broadcast %cst_52 : f32 to vector<8x1xf32>
    %137 = arith.addf %133, %136 : vector<8x1xf32>
    %138 = math.rsqrt %137 : vector<8x1xf32>
    %139 = vector.broadcast %138 : vector<8x1xf32> to vector<8x32xf32>
    %140 = arith.mulf %135, %139 : vector<8x32xf32>
    %c0_53 = arith.constant 0 : index
    %c0_54 = arith.constant 0 : index
    %141 = vector.load %arg11[%c0_53, %c0_54] : memref<1x32xf32, #tpu.memory_space<vmem>>, vector<1x32xf32>
    %142 = vector.broadcast %141 : vector<1x32xf32> to vector<8x32xf32>
    %143 = arith.mulf %140, %142 : vector<8x32xf32>
    %c0_55 = arith.constant 0 : index
    %c0_56 = arith.constant 0 : index
    %144 = vector.load %arg12[%c0_55, %c0_56] : memref<1x32xf32, #tpu.memory_space<vmem>>, vector<1x32xf32>
    %145 = vector.broadcast %144 : vector<1x32xf32> to vector<8x32xf32>
    %146 = arith.addf %143, %145 : vector<8x32xf32>
    %c0_57 = arith.constant 0 : index
    %c0_58 = arith.constant 0 : index
    %c0_59 = arith.constant 0 : index
    %147 = vector.load %arg4[%c0_57, %c0_58, %c0_59] : memref<1x8x1xf32, #tpu.memory_space<vmem>>, vector<1x8x1xf32>
    %148 = vector.shape_cast %147 : vector<1x8x1xf32> to vector<8x1xf32>
    %149 = vector.broadcast %148 : vector<8x1xf32> to vector<8x32xf32>
    %150 = arith.mulf %146, %149 : vector<8x32xf32>
    %151 = arith.truncf %150 : vector<8x32xf32> to vector<8x32xbf16>
    %c0_60 = arith.constant 0 : index
    %c0_61 = arith.constant 0 : index
    %c0_62 = arith.constant 0 : index
    %152 = vector.load %arg13[%c0_60, %c0_61, %c0_62] : memref<1x8x32xbf16, #tpu.memory_space<vmem>>, vector<1x8x32xbf16>
    %153 = vector.shape_cast %152 : vector<1x8x32xbf16> to vector<8x32xbf16>
    %154 = vector.shape_cast %151 : vector<8x32xbf16> to vector<1x8x32xbf16>
    tpu.vector_store %arg13[%c0_60, %c0_61, %c0_62], %154 {strides = array<i32>} : memref<1x8x32xbf16, #tpu.memory_space<vmem>>, vector<1x8x32xbf16>,
    return
  }
  func.func @transform_0(%arg0: i32, %arg1: i32) -> (i32, i32, i32) {
    %c0_i32 = arith.constant 0 : i32
    %c0_i32_0 = arith.constant 0 : i32
    %c0_i32_1 = arith.constant 0 : i32
    return %arg0, %c0_i32, %c0_i32_0 : i32, i32, i32
  }
  func.func @transform_1(%arg0: i32, %arg1: i32) -> (i32, i32, i32) {
    %c0_i32 = arith.constant 0 : i32
    %c0_i32_0 = arith.constant 0 : i32
    %c0_i32_1 = arith.constant 0 : i32
    return %arg0, %c0_i32, %c0_i32_0 : i32, i32, i32
  }
  func.func @transform_2(%arg0: i32, %arg1: i32) -> (i32, i32, i32) {
    %c0_i32 = arith.constant 0 : i32
    %c0_i32_0 = arith.constant 0 : i32
    return %arg0, %arg1, %c0_i32 : i32, i32, i32
  }
  func.func @transform_3(%arg0: i32, %arg1: i32) -> (i32, i32) {
    %c0_i32 = arith.constant 0 : i32
    %c0_i32_0 = arith.constant 0 : i32
    %c0_i32_1 = arith.constant 0 : i32
    return %c0_i32, %c0_i32_0 : i32, i32
  }
  func.func @transform_4(%arg0: i32, %arg1: i32) -> (i32, i32) {
    %c0_i32 = arith.constant 0 : i32
    %c0_i32_0 = arith.constant 0 : i32
    %c0_i32_1 = arith.constant 0 : i32
    return %c0_i32, %c0_i32_0 : i32, i32
  }
  func.func @transform_5(%arg0: i32, %arg1: i32) -> (i32, i32) {
    %c0_i32 = arith.constant 0 : i32
    %c0_i32_0 = arith.constant 0 : i32
    %c0_i32_1 = arith.constant 0 : i32
    return %c0_i32, %c0_i32_0 : i32, i32
  }
  func.func @transform_6(%arg0: i32, %arg1: i32) -> (i32, i32) {
    %c0_i32 = arith.constant 0 : i32
    %c0_i32_0 = arith.constant 0 : i32
    %c0_i32_1 = arith.constant 0 : i32
    return %c0_i32, %c0_i32_0 : i32, i32
  }
  func.func @transform_7(%arg0: i32, %arg1: i32) -> (i32, i32, i32) {
    %c0_i32 = arith.constant 0 : i32
    %c0_i32_0 = arith.constant 0 : i32
    %c0_i32_1 = arith.constant 0 : i32
    %c0_i32_2 = arith.constant 0 : i32
    return %c0_i32, %c0_i32_0, %c0_i32_1 : i32, i32, i32
  }
  func.func @transform_8(%arg0: i32, %arg1: i32) -> (i32, i32) {
    %c0_i32 = arith.constant 0 : i32
    %c0_i32_0 = arith.constant 0 : i32
    %c0_i32_1 = arith.constant 0 : i32
    return %c0_i32, %c0_i32_0 : i32, i32
  }
  func.func @transform_9(%arg0: i32, %arg1: i32) -> (i32, i32) {
    %c0_i32 = arith.constant 0 : i32
    %c0_i32_0 = arith.constant 0 : i32
    %c0_i32_1 = arith.constant 0 : i32
    return %c0_i32, %c0_i32_0 : i32, i32
  }
  func.func @transform_10(%arg0: i32, %arg1: i32) -> (i32, i32) {
    %c0_i32 = arith.constant 0 : i32
    %c0_i32_0 = arith.constant 0 : i32
    %c0_i32_1 = arith.constant 0 : i32
    return %c0_i32, %c0_i32_0 : i32, i32
  }
  func.func @transform_11(%arg0: i32, %arg1: i32) -> (i32, i32, i32) {
    %c0_i32 = arith.constant 0 : i32
    %c0_i32_0 = arith.constant 0 : i32
    return %arg0, %arg1, %c0_i32 : i32, i32, i32
  }
}

module attributes {stable_mosaic.version = 11 : i64} {
  func.func @_attn_kernel(%arg0: i32, %arg1: i32, %arg2: memref<1x1x8xi32, #tpu.memory_space<vmem>>, %arg3: memref<1x8x32xbf16, #tpu.memory_space<vmem>>, %arg4: memref<1x8x1xf32, #tpu.memory_space<vmem>>, %arg5: memref<32x32xbf16, #tpu.memory_space<vmem>>, %arg6: memref<1x32xf32, #tpu.memory_space<vmem>>, %arg7: memref<32x64xbf16, #tpu.memory_space<vmem>>, %arg8: memref<1x64xf32, #tpu.memory_space<vmem>>, %arg9: memref<4x8x32xbf16, #tpu.memory_space<vmem>>, %arg10: memref<1x32xf32, #tpu.memory_space<vmem>>, %arg11: memref<1x32xf32, #tpu.memory_space<vmem>>, %arg12: memref<1x32xf32, #tpu.memory_space<vmem>>, %arg13: memref<1x8x32xbf16, #tpu.memory_space<vmem>>) attributes {dimension_semantics = [#tpu.dimension_semantics<parallel>, #tpu.dimension_semantics<parallel>], iteration_bounds = array<i64: 2, 1>, scalar_prefetch = 0 : i64, scratch_operands = 0 : i64, tpu.core_type = #tpu.core_type<tc>, window_params = [{transform_indices = @transform_0, window_bounds = array<i64: 1, 1, 8>}, {transform_indices = @transform_1, window_bounds = array<i64: 1, 8, 32>}, {transform_indices = @transform_2, window_bounds = array<i64: 1, 8, 1>}, {pipeline_mode = #tpu.pipeline_mode<synchronous>, transform_indices = @transform_3, window_bounds = array<i64: 32, 32>}, {pipeline_mode = #tpu.pipeline_mode<synchronous>, transform_indices = @transform_4, window_bounds = array<i64: 1, 32>}, {pipeline_mode = #tpu.pipeline_mode<synchronous>, transform_indices = @transform_5, window_bounds = array<i64: 32, 64>}, {pipeline_mode = #tpu.pipeline_mode<synchronous>, transform_indices = @transform_6, window_bounds = array<i64: 1, 64>}, {pipeline_mode = #tpu.pipeline_mode<synchronous>, transform_indices = @transform_7, window_bounds = array<i64: 4, 8, 32>}, {pipeline_mode = #tpu.pipeline_mode<synchronous>, transform_indices = @transform_8, window_bounds = array<i64: 1, 32>}, {pipeline_mode = #tpu.pipeline_mode<synchronous>, transform_indices = @transform_9, window_bounds = array<i64: 1, 32>}, {pipeline_mode = #tpu.pipeline_mode<synchronous>, transform_indices = @transform_10, window_bounds = array<i64: 1, 32>}, {transform_indices = @transform_11, window_bounds = array<i64: 1, 8, 32>}]} {
    %c8_i32 = arith.constant 8 : i32
    %0 = arith.muli %arg1, %c8_i32 : i32
    %1 = tpu.assume_multiple %0, 8 : i32
    %c0 = arith.constant 0 : index
    %c0_0 = arith.constant 0 : index
    %c0_1 = arith.constant 0 : index
    %2 = vector.load %arg3[%c0, %c0_0, %c0_1] : memref<1x8x32xbf16, #tpu.memory_space<vmem>>, vector<1x8x32xbf16>
    %3 = vector.shape_cast %2 : vector<1x8x32xbf16> to vector<8x32xbf16>
    %4 = arith.extf %3 : vector<8x32xbf16> to vector<8x32xf32>
    %5 = arith.truncf %4 : vector<8x32xf32> to vector<8x32xbf16>
    %c0_2 = arith.constant 0 : index
    %c0_3 = arith.constant 0 : index
    %6 = vector.load %arg5[%c0_2, %c0_3] : memref<32x32xbf16, #tpu.memory_space<vmem>>, vector<32x32xbf16>
    %cst = arith.constant dense<0.000000e+00> : vector<8x32xf32>
    %7 = tpu.matmul %5, %6, %cst {dimension_numbers = #tpu.dot_dimension_numbers<[1], [0], [0], [1], [0, 0, 1, 1], [], []>} : vector<8x32xbf16>, vector<32x32xbf16>, vector<8x32xf32> -> vector<8x32xf32>
    %c0_4 = arith.constant 0 : index
    %c0_5 = arith.constant 0 : index
    %8 = vector.load %arg6[%c0_4, %c0_5] : memref<1x32xf32, #tpu.memory_space<vmem>>, vector<1x32xf32>
    %9 = vector.broadcast %8 : vector<1x32xf32> to vector<8x32xf32>
    %10 = arith.addf %7, %9 : vector<8x32xf32>
    %11 = arith.truncf %4 : vector<8x32xf32> to vector<8x32xbf16>
    %c0_6 = arith.constant 0 : index
    %c0_7 = arith.constant 0 : index
    %12 = vector.load %arg7[%c0_6, %c0_7] : memref<32x64xbf16, #tpu.memory_space<vmem>>, vector<32x64xbf16>
    %cst_8 = arith.constant dense<0.000000e+00> : vector<8x64xf32>
    %13 = tpu.matmul %11, %12, %cst_8 {dimension_numbers = #tpu.dot_dimension_numbers<[1], [0], [0], [1], [0, 0, 1, 1], [], []>} : vector<8x32xbf16>, vector<32x64xbf16>, vector<8x64xf32> -> vector<8x64xf32>
    %c0_9 = arith.constant 0 : index
    %c0_10 = arith.constant 0 : index
    %14 = vector.load %arg8[%c0_9, %c0_10] : memref<1x64xf32, #tpu.memory_space<vmem>>, vector<1x64xf32>
    %15 = vector.broadcast %14 : vector<1x64xf32> to vector<8x64xf32>
    %16 = arith.addf %13, %15 : vector<8x64xf32>
    %17 = arith.truncf %10 : vector<8x32xf32> to vector<8x32xbf16>
    %18 = arith.truncf %16 : vector<8x64xf32> to vector<8x64xbf16>
    %c0_11 = arith.constant 0 : index
    %c0_12 = arith.constant 0 : index
    %c0_13 = arith.constant 0 : index
    %19 = vector.load %arg2[%c0_11, %c0_12, %c0_13] : memref<1x1x8xi32, #tpu.memory_space<vmem>>, vector<1x1x8xi32>
    %20 = vector.shape_cast %19 : vector<1x1x8xi32> to vector<1x8xi32>
    %c0_i32 = arith.constant 0 : i32
    %21 = vector.broadcast %c0_i32 : i32 to vector<1x8xi32>
    %22 = arith.cmpi eq, %20, %21 : vector<1x8xi32>
    %cst_14 = arith.constant -1.000000e+09 : f32
    %cst_15 = arith.constant 0.000000e+00 : f32
    %23 = vector.broadcast %cst_14 : f32 to vector<1x8xf32>
    %24 = vector.broadcast %cst_15 : f32 to vector<1x8xf32>
    %25 = arith.select %22, %23, %24 : vector<1x8xi1>, vector<1x8xf32>
    %26 = tpu.iota {dimensions = array<i32: 0>} : vector<8x8xi32>
    %27 = vector.broadcast %1 : i32 to vector<8x8xi32>
    %28 = arith.addi %26, %27 : vector<8x8xi32>
    %29 = tpu.iota {dimensions = array<i32: 1>} : vector<8x8xi32>
    %30 = arith.cmpi sgt, %29, %28 : vector<8x8xi32>
    %cst_16 = arith.constant -1.000000e+09 : f32
    %cst_17 = arith.constant 0.000000e+00 : f32
    %31 = vector.broadcast %cst_16 : f32 to vector<8x8xf32>
    %32 = vector.broadcast %cst_17 : f32 to vector<8x8xf32>
    %33 = arith.select %30, %31, %32 : vector<8x8xi1>, vector<8x8xf32>
    %34 = vector.broadcast %25 : vector<1x8xf32> to vector<8x8xf32>
    %35 = arith.addf %34, %33 : vector<8x8xf32>
    %cst_18 = arith.constant 0.000000e+00 : f32
    %36 = vector.broadcast %cst_18 : f32 to vector<8x32xf32>
    %37 = vector.extract_strided_slice %17 {offsets = [0, 0], sizes = [8, 8], strides = [1, 1]} : vector<8x32xbf16> to vector<8x8xbf16>
    %38 = vector.extract_strided_slice %18 {offsets = [0, 0], sizes = [8, 8], strides = [1, 1]} : vector<8x64xbf16> to vector<8x8xbf16>
    %39 = vector.extract_strided_slice %18 {offsets = [0, 32], sizes = [8, 8], strides = [1, 1]} : vector<8x64xbf16> to vector<8x8xbf16>
    %cst_19 = arith.constant dense<0.000000e+00> : vector<8x8xf32>
    %40 = tpu.matmul %37, %38, %cst_19 {dimension_numbers = #tpu.dot_dimension_numbers<[1], [1], [0], [0], [0, 0, 1, 0], [], []>} : vector<8x8xbf16>, vector<8x8xbf16>, vector<8x8xf32> -> vector<8x8xf32>
    %41 = arith.addf %40, %35 : vector<8x8xf32>
    %cst_20 = arith.constant dense<0xFF800000> : vector<8xf32>
    %42 = vector.multi_reduction <maximumf>, %41, %cst_20 [1] : vector<8x8xf32> to vector<8xf32>
    %43 = vector.shape_cast %42 : vector<8xf32> to vector<8x1xf32>
    %44 = vector.broadcast %43 : vector<8x1xf32> to vector<8x8xf32>
    %45 = arith.subf %41, %44 : vector<8x8xf32>
    %46 = math.exp %45 : vector<8x8xf32>
    %cst_21 = arith.constant dense<0.000000e+00> : vector<8xf32>
    %47 = vector.multi_reduction <add>, %46, %cst_21 [1] : vector<8x8xf32> to vector<8xf32>
    %48 = vector.shape_cast %47 : vector<8xf32> to vector<8x1xf32>
    %49 = tpu.reciprocal %48 : vector<8x1xf32> -> vector<8x1xf32>
    %50 = vector.broadcast %49 : vector<8x1xf32> to vector<8x8xf32>
    %51 = arith.mulf %46, %50 : vector<8x8xf32>
    %52 = arith.truncf %51 : vector<8x8xf32> to vector<8x8xbf16>
    %cst_22 = arith.constant dense<0.000000e+00> : vector<8x8xf32>
    %53 = tpu.matmul %52, %39, %cst_22 {dimension_numbers = #tpu.dot_dimension_numbers<[1], [0], [0], [1], [0, 0, 1, 1], [], []>} : vector<8x8xbf16>, vector<8x8xbf16>, vector<8x8xf32> -> vector<8x8xf32>
    %54 = arith.truncf %53 : vector<8x8xf32> to vector<8x8xbf16>
    %c0_23 = arith.constant 0 : index
    %c0_24 = arith.constant 0 : index
    %c0_25 = arith.constant 0 : index
    %55 = vector.load %arg9[%c0_23, %c0_24, %c0_25] : memref<4x8x32xbf16, #tpu.memory_space<vmem>>, vector<1x8x32xbf16>
    %56 = vector.shape_cast %55 : vector<1x8x32xbf16> to vector<8x32xbf16>
    %cst_26 = arith.constant dense<0.000000e+00> : vector<8x32xf32>
    %57 = tpu.matmul %54, %56, %cst_26 {dimension_numbers = #tpu.dot_dimension_numbers<[1], [0], [0], [1], [0, 0, 1, 1], [], []>} : vector<8x8xbf16>, vector<8x32xbf16>, vector<8x32xf32> -> vector<8x32xf32>
    %58 = arith.addf %36, %57 : vector<8x32xf32>
    %59 = vector.extract_strided_slice %17 {offsets = [0, 8], sizes = [8, 8], strides = [1, 1]} : vector<8x32xbf16> to vector<8x8xbf16>
    %60 = vector.extract_strided_slice %18 {offsets = [0, 8], sizes = [8, 8], strides = [1, 1]} : vector<8x64xbf16> to vector<8x8xbf16>
    %61 = vector.extract_strided_slice %18 {offsets = [0, 40], sizes = [8, 8], strides = [1, 1]} : vector<8x64xbf16> to vector<8x8xbf16>
    %cst_27 = arith.constant dense<0.000000e+00> : vector<8x8xf32>
    %62 = tpu.matmul %59, %60, %cst_27 {dimension_numbers = #tpu.dot_dimension_numbers<[1], [1], [0], [0], [0, 0, 1, 0], [], []>} : vector<8x8xbf16>, vector<8x8xbf16>, vector<8x8xf32> -> vector<8x8xf32>
    %63 = arith.addf %62, %35 : vector<8x8xf32>
    %cst_28 = arith.constant dense<0xFF800000> : vector<8xf32>
    %64 = vector.multi_reduction <maximumf>, %63, %cst_28 [1] : vector<8x8xf32> to vector<8xf32>
    %65 = vector.shape_cast %64 : vector<8xf32> to vector<8x1xf32>
    %66 = vector.broadcast %65 : vector<8x1xf32> to vector<8x8xf32>
    %67 = arith.subf %63, %66 : vector<8x8xf32>
    %68 = math.exp %67 : vector<8x8xf32>
    %cst_29 = arith.constant dense<0.000000e+00> : vector<8xf32>
    %69 = vector.multi_reduction <add>, %68, %cst_29 [1] : vector<8x8xf32> to vector<8xf32>
    %70 = vector.shape_cast %69 : vector<8xf32> to vector<8x1xf32>
    %71 = tpu.reciprocal %70 : vector<8x1xf32> -> vector<8x1xf32>
    %72 = vector.broadcast %71 : vector<8x1xf32> to vector<8x8xf32>
    %73 = arith.mulf %68, %72 : vector<8x8xf32>
    %74 = arith.truncf %73 : vector<8x8xf32> to vector<8x8xbf16>
    %cst_30 = arith.constant dense<0.000000e+00> : vector<8x8xf32>
    %75 = tpu.matmul %74, %61, %cst_30 {dimension_numbers = #tpu.dot_dimension_numbers<[1], [0], [0], [1], [0, 0, 1, 1], [], []>} : vector<8x8xbf16>, vector<8x8xbf16>, vector<8x8xf32> -> vector<8x8xf32>
    %76 = arith.truncf %75 : vector<8x8xf32> to vector<8x8xbf16>
    %c1 = arith.constant 1 : index
    %c0_31 = arith.constant 0 : index
    %c0_32 = arith.constant 0 : index
    %77 = vector.load %arg9[%c1, %c0_31, %c0_32] : memref<4x8x32xbf16, #tpu.memory_space<vmem>>, vector<1x8x32xbf16>
    %78 = vector.shape_cast %77 : vector<1x8x32xbf16> to vector<8x32xbf16>
    %cst_33 = arith.constant dense<0.000000e+00> : vector<8x32xf32>
    %79 = tpu.matmul %76, %78, %cst_33 {dimension_numbers = #tpu.dot_dimension_numbers<[1], [0], [0], [1], [0, 0, 1, 1], [], []>} : vector<8x8xbf16>, vector<8x32xbf16>, vector<8x32xf32> -> vector<8x32xf32>
    %80 = arith.addf %58, %79 : vector<8x32xf32>
    %81 = vector.extract_strided_slice %17 {offsets = [0, 16], sizes = [8, 8], strides = [1, 1]} : vector<8x32xbf16> to vector<8x8xbf16>
    %82 = vector.extract_strided_slice %18 {offsets = [0, 16], sizes = [8, 8], strides = [1, 1]} : vector<8x64xbf16> to vector<8x8xbf16>
    %83 = vector.extract_strided_slice %18 {offsets = [0, 48], sizes = [8, 8], strides = [1, 1]} : vector<8x64xbf16> to vector<8x8xbf16>
    %cst_34 = arith.constant dense<0.000000e+00> : vector<8x8xf32>
    %84 = tpu.matmul %81, %82, %cst_34 {dimension_numbers = #tpu.dot_dimension_numbers<[1], [1], [0], [0], [0, 0, 1, 0], [], []>} : vector<8x8xbf16>, vector<8x8xbf16>, vector<8x8xf32> -> vector<8x8xf32>
    %85 = arith.addf %84, %35 : vector<8x8xf32>
    %cst_35 = arith.constant dense<0xFF800000> : vector<8xf32>
    %86 = vector.multi_reduction <maximumf>, %85, %cst_35 [1] : vector<8x8xf32> to vector<8xf32>
    %87 = vector.shape_cast %86 : vector<8xf32> to vector<8x1xf32>
    %88 = vector.broadcast %87 : vector<8x1xf32> to vector<8x8xf32>
    %89 = arith.subf %85, %88 : vector<8x8xf32>
    %90 = math.exp %89 : vector<8x8xf32>
    %cst_36 = arith.constant dense<0.000000e+00> : vector<8xf32>
    %91 = vector.multi_reduction <add>, %90, %cst_36 [1] : vector<8x8xf32> to vector<8xf32>
    %92 = vector.shape_cast %91 : vector<8xf32> to vector<8x1xf32>
    %93 = tpu.reciprocal %92 : vector<8x1xf32> -> vector<8x1xf32>
    %94 = vector.broadcast %93 : vector<8x1xf32> to vector<8x8xf32>
    %95 = arith.mulf %90, %94 : vector<8x8xf32>
    %96 = arith.truncf %95 : vector<8x8xf32> to vector<8x8xbf16>
    %cst_37 = arith.constant dense<0.000000e+00> : vector<8x8xf32>
    %97 = tpu.matmul %96, %83, %cst_37 {dimension_numbers = #tpu.dot_dimension_numbers<[1], [0], [0], [1], [0, 0, 1, 1], [], []>} : vector<8x8xbf16>, vector<8x8xbf16>, vector<8x8xf32> -> vector<8x8xf32>
    %98 = arith.truncf %97 : vector<8x8xf32> to vector<8x8xbf16>
    %c2 = arith.constant 2 : index
    %c0_38 = arith.constant 0 : index
    %c0_39 = arith.constant 0 : index
    %99 = vector.load %arg9[%c2, %c0_38, %c0_39] : memref<4x8x32xbf16, #tpu.memory_space<vmem>>, vector<1x8x32xbf16>
    %100 = vector.shape_cast %99 : vector<1x8x32xbf16> to vector<8x32xbf16>
    %cst_40 = arith.constant dense<0.000000e+00> : vector<8x32xf32>
    %101 = tpu.matmul %98, %100, %cst_40 {dimension_numbers = #tpu.dot_dimension_numbers<[1], [0], [0], [1], [0, 0, 1, 1], [], []>} : vector<8x8xbf16>, vector<8x32xbf16>, vector<8x32xf32> -> vector<8x32xf32>
    %102 = arith.addf %80, %101 : vector<8x32xf32>
    %103 = vector.extract_strided_slice %17 {offsets = [0, 24], sizes = [8, 8], strides = [1, 1]} : vector<8x32xbf16> to vector<8x8xbf16>
    %104 = vector.extract_strided_slice %18 {offsets = [0, 24], sizes = [8, 8], strides = [1, 1]} : vector<8x64xbf16> to vector<8x8xbf16>
    %105 = vector.extract_strided_slice %18 {offsets = [0, 56], sizes = [8, 8], strides = [1, 1]} : vector<8x64xbf16> to vector<8x8xbf16>
    %cst_41 = arith.constant dense<0.000000e+00> : vector<8x8xf32>
    %106 = tpu.matmul %103, %104, %cst_41 {dimension_numbers = #tpu.dot_dimension_numbers<[1], [1], [0], [0], [0, 0, 1, 0], [], []>} : vector<8x8xbf16>, vector<8x8xbf16>, vector<8x8xf32> -> vector<8x8xf32>
    %107 = arith.addf %106, %35 : vector<8x8xf32>
    %cst_42 = arith.constant dense<0xFF800000> : vector<8xf32>
    %108 = vector.multi_reduction <maximumf>, %107, %cst_42 [1] : vector<8x8xf32> to vector<8xf32>
    %109 = vector.shape_cast %108 : vector<8xf32> to vector<8x1xf32>
    %110 = vector.broadcast %109 : vector<8x1xf32> to vector<8x8xf32>
    %111 = arith.subf %107, %110 : vector<8x8xf32>
    %112 = math.exp %111 : vector<8x8xf32>
    %cst_43 = arith.constant dense<0.000000e+00> : vector<8xf32>
    %113 = vector.multi_reduction <add>, %112, %cst_43 [1] : vector<8x8xf32> to vector<8xf32>
    %114 = vector.shape_cast %113 : vector<8xf32> to vector<8x1xf32>
    %115 = tpu.reciprocal %114 : vector<8x1xf32> -> vector<8x1xf32>
    %116 = vector.broadcast %115 : vector<8x1xf32> to vector<8x8xf32>
    %117 = arith.mulf %112, %116 : vector<8x8xf32>
    %118 = arith.truncf %117 : vector<8x8xf32> to vector<8x8xbf16>
    %cst_44 = arith.constant dense<0.000000e+00> : vector<8x8xf32>
    %119 = tpu.matmul %118, %105, %cst_44 {dimension_numbers = #tpu.dot_dimension_numbers<[1], [0], [0], [1], [0, 0, 1, 1], [], []>} : vector<8x8xbf16>, vector<8x8xbf16>, vector<8x8xf32> -> vector<8x8xf32>
    %120 = arith.truncf %119 : vector<8x8xf32> to vector<8x8xbf16>
    %c3 = arith.constant 3 : index
    %c0_45 = arith.constant 0 : index
    %c0_46 = arith.constant 0 : index
    %121 = vector.load %arg9[%c3, %c0_45, %c0_46] : memref<4x8x32xbf16, #tpu.memory_space<vmem>>, vector<1x8x32xbf16>
    %122 = vector.shape_cast %121 : vector<1x8x32xbf16> to vector<8x32xbf16>
    %cst_47 = arith.constant dense<0.000000e+00> : vector<8x32xf32>
    %123 = tpu.matmul %120, %122, %cst_47 {dimension_numbers = #tpu.dot_dimension_numbers<[1], [0], [0], [1], [0, 0, 1, 1], [], []>} : vector<8x8xbf16>, vector<8x32xbf16>, vector<8x32xf32> -> vector<8x32xf32>
    %124 = arith.addf %102, %123 : vector<8x32xf32>
    %c0_48 = arith.constant 0 : index
    %c0_49 = arith.constant 0 : index
    %125 = vector.load %arg10[%c0_48, %c0_49] : memref<1x32xf32, #tpu.memory_space<vmem>>, vector<1x32xf32>
    %126 = vector.broadcast %125 : vector<1x32xf32> to vector<8x32xf32>
    %127 = arith.addf %124, %126 : vector<8x32xf32>
    %128 = arith.addf %127, %4 : vector<8x32xf32>
    %cst_50 = arith.constant dense<0.000000e+00> : vector<8xf32>
    %129 = vector.multi_reduction <add>, %128, %cst_50 [1] : vector<8x32xf32> to vector<8xf32>
    %130 = vector.shape_cast %129 : vector<8xf32> to vector<8x1xf32>
    %cst_51 = arith.constant 3.200000e+01 : f32
    %131 = vector.broadcast %cst_51 : f32 to vector<8x1xf32>
    %132 = arith.divf %130, %131 : vector<8x1xf32>
    %133 = vector.broadcast %132 : vector<8x1xf32> to vector<8x32xf32>
    %134 = arith.subf %128, %133 : vector<8x32xf32>
    %135 = vector.broadcast %132 : vector<8x1xf32> to vector<8x32xf32>
    %136 = arith.subf %128, %135 : vector<8x32xf32>
    %137 = arith.mulf %134, %136 : vector<8x32xf32>
    %cst_52 = arith.constant dense<0.000000e+00> : vector<8xf32>
    %138 = vector.multi_reduction <add>, %137, %cst_52 [1] : vector<8x32xf32> to vector<8xf32>
    %139 = vector.shape_cast %138 : vector<8xf32> to vector<8x1xf32>
    %cst_53 = arith.constant 3.200000e+01 : f32
    %140 = vector.broadcast %cst_53 : f32 to vector<8x1xf32>
    %141 = arith.divf %139, %140 : vector<8x1xf32>
    %142 = vector.broadcast %132 : vector<8x1xf32> to vector<8x32xf32>
    %143 = arith.subf %128, %142 : vector<8x32xf32>
    %cst_54 = arith.constant 9.99999997E-7 : f32
    %144 = vector.broadcast %cst_54 : f32 to vector<8x1xf32>
    %145 = arith.addf %141, %144 : vector<8x1xf32>
    %146 = math.rsqrt %145 : vector<8x1xf32>
    %147 = vector.broadcast %146 : vector<8x1xf32> to vector<8x32xf32>
    %148 = arith.mulf %143, %147 : vector<8x32xf32>
    %c0_55 = arith.constant 0 : index
    %c0_56 = arith.constant 0 : index
    %149 = vector.load %arg11[%c0_55, %c0_56] : memref<1x32xf32, #tpu.memory_space<vmem>>, vector<1x32xf32>
    %150 = vector.broadcast %149 : vector<1x32xf32> to vector<8x32xf32>
    %151 = arith.mulf %148, %150 : vector<8x32xf32>
    %c0_57 = arith.constant 0 : index
    %c0_58 = arith.constant 0 : index
    %152 = vector.load %arg12[%c0_57, %c0_58] : memref<1x32xf32, #tpu.memory_space<vmem>>, vector<1x32xf32>
    %153 = vector.broadcast %152 : vector<1x32xf32> to vector<8x32xf32>
    %154 = arith.addf %151, %153 : vector<8x32xf32>
    %c0_59 = arith.constant 0 : index
    %c0_60 = arith.constant 0 : index
    %c0_61 = arith.constant 0 : index
    %155 = vector.load %arg4[%c0_59, %c0_60, %c0_61] : memref<1x8x1xf32, #tpu.memory_space<vmem>>, vector<1x8x1xf32>
    %156 = vector.shape_cast %155 : vector<1x8x1xf32> to vector<8x1xf32>
    %157 = vector.broadcast %156 : vector<8x1xf32> to vector<8x32xf32>
    %158 = arith.mulf %154, %157 : vector<8x32xf32>
    %159 = arith.truncf %158 : vector<8x32xf32> to vector<8x32xbf16>
    %c0_62 = arith.constant 0 : index
    %c0_63 = arith.constant 0 : index
    %c0_64 = arith.constant 0 : index
    %160 = vector.load %arg13[%c0_62, %c0_63, %c0_64] : memref<1x8x32xbf16, #tpu.memory_space<vmem>>, vector<1x8x32xbf16>
    %161 = vector.shape_cast %160 : vector<1x8x32xbf16> to vector<8x32xbf16>
    %162 = vector.shape_cast %159 : vector<8x32xbf16> to vector<1x8x32xbf16>
    tpu.vector_store %arg13[%c0_62, %c0_63, %c0_64], %162 {strides = array<i32>} : memref<1x8x32xbf16, #tpu.memory_space<vmem>>, vector<1x8x32xbf16>,
    return
  }
  func.func @transform_0(%arg0: i32, %arg1: i32) -> (i32, i32, i32) {
    %c0_i32 = arith.constant 0 : i32
    %c0_i32_0 = arith.constant 0 : i32
    %c0_i32_1 = arith.constant 0 : i32
    return %arg0, %c0_i32, %c0_i32_0 : i32, i32, i32
  }
  func.func @transform_1(%arg0: i32, %arg1: i32) -> (i32, i32, i32) {
    %c0_i32 = arith.constant 0 : i32
    %c0_i32_0 = arith.constant 0 : i32
    %c0_i32_1 = arith.constant 0 : i32
    return %arg0, %c0_i32, %c0_i32_0 : i32, i32, i32
  }
  func.func @transform_2(%arg0: i32, %arg1: i32) -> (i32, i32, i32) {
    %c0_i32 = arith.constant 0 : i32
    %c0_i32_0 = arith.constant 0 : i32
    return %arg0, %arg1, %c0_i32 : i32, i32, i32
  }
  func.func @transform_3(%arg0: i32, %arg1: i32) -> (i32, i32) {
    %c0_i32 = arith.constant 0 : i32
    %c0_i32_0 = arith.constant 0 : i32
    %c0_i32_1 = arith.constant 0 : i32
    return %c0_i32, %c0_i32_0 : i32, i32
  }
  func.func @transform_4(%arg0: i32, %arg1: i32) -> (i32, i32) {
    %c0_i32 = arith.constant 0 : i32
    %c0_i32_0 = arith.constant 0 : i32
    %c0_i32_1 = arith.constant 0 : i32
    return %c0_i32, %c0_i32_0 : i32, i32
  }
  func.func @transform_5(%arg0: i32, %arg1: i32) -> (i32, i32) {
    %c0_i32 = arith.constant 0 : i32
    %c0_i32_0 = arith.constant 0 : i32
    %c0_i32_1 = arith.constant 0 : i32
    return %c0_i32, %c0_i32_0 : i32, i32
  }
  func.func @transform_6(%arg0: i32, %arg1: i32) -> (i32, i32) {
    %c0_i32 = arith.constant 0 : i32
    %c0_i32_0 = arith.constant 0 : i32
    %c0_i32_1 = arith.constant 0 : i32
    return %c0_i32, %c0_i32_0 : i32, i32
  }
  func.func @transform_7(%arg0: i32, %arg1: i32) -> (i32, i32, i32) {
    %c0_i32 = arith.constant 0 : i32
    %c0_i32_0 = arith.constant 0 : i32
    %c0_i32_1 = arith.constant 0 : i32
    %c0_i32_2 = arith.constant 0 : i32
    return %c0_i32, %c0_i32_0, %c0_i32_1 : i32, i32, i32
  }
  func.func @transform_8(%arg0: i32, %arg1: i32) -> (i32, i32) {
    %c0_i32 = arith.constant 0 : i32
    %c0_i32_0 = arith.constant 0 : i32
    %c0_i32_1 = arith.constant 0 : i32
    return %c0_i32, %c0_i32_0 : i32, i32
  }
  func.func @transform_9(%arg0: i32, %arg1: i32) -> (i32, i32) {
    %c0_i32 = arith.constant 0 : i32
    %c0_i32_0 = arith.constant 0 : i32
    %c0_i32_1 = arith.constant 0 : i32
    return %c0_i32, %c0_i32_0 : i32, i32
  }
  func.func @transform_10(%arg0: i32, %arg1: i32) -> (i32, i32) {
    %c0_i32 = arith.constant 0 : i32
    %c0_i32_0 = arith.constant 0 : i32
    %c0_i32_1 = arith.constant 0 : i32
    return %c0_i32, %c0_i32_0 : i32, i32
  }
  func.func @transform_11(%arg0: i32, %arg1: i32) -> (i32, i32, i32) {
    %c0_i32 = arith.constant 0 : i32
    %c0_i32_0 = arith.constant 0 : i32
    return %arg0, %arg1, %c0_i32 : i32, i32, i32
  }
}

module attributes {stable_mosaic.version = 11 : i64} {
  func.func @_matmul_bias_kernel(%arg0: i32, %arg1: i32, %arg2: memref<16x32xbf16, #tpu.memory_space<vmem>>, %arg3: memref<32x50xbf16, #tpu.memory_space<vmem>>, %arg4: memref<1x50xf32, #tpu.memory_space<vmem>>, %arg5: memref<16x50xf32, #tpu.memory_space<vmem>>) attributes {dimension_semantics = [#tpu.dimension_semantics<parallel>, #tpu.dimension_semantics<parallel>], iteration_bounds = array<i64: 1, 1>, scalar_prefetch = 0 : i64, scratch_operands = 0 : i64, tpu.core_type = #tpu.core_type<tc>, window_params = [{transform_indices = @transform_0, window_bounds = array<i64: 16, 32>}, {transform_indices = @transform_1, window_bounds = array<i64: 32, 50>}, {transform_indices = @transform_2, window_bounds = array<i64: 1, 50>}, {transform_indices = @transform_3, window_bounds = array<i64: 16, 50>}]} {
    %c0 = arith.constant 0 : index
    %c0_0 = arith.constant 0 : index
    %0 = vector.load %arg2[%c0, %c0_0] : memref<16x32xbf16, #tpu.memory_space<vmem>>, vector<16x32xbf16>
    %c0_1 = arith.constant 0 : index
    %c0_2 = arith.constant 0 : index
    %1 = vector.load %arg3[%c0_1, %c0_2] : memref<32x50xbf16, #tpu.memory_space<vmem>>, vector<32x50xbf16>
    %cst = arith.constant dense<0.000000e+00> : vector<16x50xf32>
    %2 = tpu.matmul %0, %1, %cst {dimension_numbers = #tpu.dot_dimension_numbers<[1], [0], [0], [1], [0, 0, 1, 1], [], []>} : vector<16x32xbf16>, vector<32x50xbf16>, vector<16x50xf32> -> vector<16x50xf32>
    %c0_3 = arith.constant 0 : index
    %c0_4 = arith.constant 0 : index
    %3 = vector.load %arg4[%c0_3, %c0_4] : memref<1x50xf32, #tpu.memory_space<vmem>>, vector<1x50xf32>
    %4 = vector.broadcast %3 : vector<1x50xf32> to vector<16x50xf32>
    %5 = arith.addf %2, %4 : vector<16x50xf32>
    %c0_5 = arith.constant 0 : index
    %c0_6 = arith.constant 0 : index
    %6 = vector.load %arg5[%c0_5, %c0_6] : memref<16x50xf32, #tpu.memory_space<vmem>>, vector<16x50xf32>
    tpu.vector_store %arg5[%c0_5, %c0_6], %5 {strides = array<i32>} : memref<16x50xf32, #tpu.memory_space<vmem>>, vector<16x50xf32>,
    return
  }
  func.func @transform_0(%arg0: i32, %arg1: i32) -> (i32, i32) {
    %c0_i32 = arith.constant 0 : i32
    %c0_i32_0 = arith.constant 0 : i32
    return %arg0, %c0_i32 : i32, i32
  }
  func.func @transform_1(%arg0: i32, %arg1: i32) -> (i32, i32) {
    %c0_i32 = arith.constant 0 : i32
    %c0_i32_0 = arith.constant 0 : i32
    return %c0_i32, %arg1 : i32, i32
  }
  func.func @transform_2(%arg0: i32, %arg1: i32) -> (i32, i32) {
    %c0_i32 = arith.constant 0 : i32
    %c0_i32_0 = arith.constant 0 : i32
    return %c0_i32, %arg1 : i32, i32
  }
  func.func @transform_3(%arg0: i32, %arg1: i32) -> (i32, i32) {
    %c0_i32 = arith.constant 0 : i32
    return %arg0, %arg1 : i32, i32
  }
}

module attributes {stable_mosaic.version = 11 : i64} {
  func.func @_attn_kernel(%arg0: i32, %arg1: i32, %arg2: memref<1x1x8xi32, #tpu.memory_space<vmem>>, %arg3: memref<1x8x32xbf16, #tpu.memory_space<vmem>>, %arg4: memref<1x8x32xbf16, #tpu.memory_space<vmem>>, %arg5: memref<1x8x1xf32, #tpu.memory_space<vmem>>, %arg6: memref<32x32xbf16, #tpu.memory_space<vmem>>, %arg7: memref<1x32xf32, #tpu.memory_space<vmem>>, %arg8: memref<32x64xbf16, #tpu.memory_space<vmem>>, %arg9: memref<1x64xf32, #tpu.memory_space<vmem>>, %arg10: memref<4x8x32xbf16, #tpu.memory_space<vmem>>, %arg11: memref<1x32xf32, #tpu.memory_space<vmem>>, %arg12: memref<1x32xf32, #tpu.memory_space<vmem>>, %arg13: memref<1x32xf32, #tpu.memory_space<vmem>>, %arg14: memref<1x32xf32, #tpu.memory_space<vmem>>, %arg15: memref<1x32xf32, #tpu.memory_space<vmem>>, %arg16: memref<1x8x32xbf16, #tpu.memory_space<vmem>>) attributes {dimension_semantics = [#tpu.dimension_semantics<parallel>, #tpu.dimension_semantics<parallel>], iteration_bounds = array<i64: 2, 1>, scalar_prefetch = 0 : i64, scratch_operands = 0 : i64, tpu.core_type = #tpu.core_type<tc>, window_params = [{transform_indices = @transform_0, window_bounds = array<i64: 1, 1, 8>}, {transform_indices = @transform_1, window_bounds = array<i64: 1, 8, 32>}, {transform_indices = @transform_2, window_bounds = array<i64: 1, 8, 32>}, {transform_indices = @transform_3, window_bounds = array<i64: 1, 8, 1>}, {pipeline_mode = #tpu.pipeline_mode<synchronous>, transform_indices = @transform_4, window_bounds = array<i64: 32, 32>}, {pipeline_mode = #tpu.pipeline_mode<synchronous>, transform_indices = @transform_5, window_bounds = array<i64: 1, 32>}, {pipeline_mode = #tpu.pipeline_mode<synchronous>, transform_indices = @transform_6, window_bounds = array<i64: 32, 64>}, {pipeline_mode = #tpu.pipeline_mode<synchronous>, transform_indices = @transform_7, window_bounds = array<i64: 1, 64>}, {pipeline_mode = #tpu.pipeline_mode<synchronous>, transform_indices = @transform_8, window_bounds = array<i64: 4, 8, 32>}, {pipeline_mode = #tpu.pipeline_mode<synchronous>, transform_indices = @transform_9, window_bounds = array<i64: 1, 32>}, {pipeline_mode = #tpu.pipeline_mode<synchronous>, transform_indices = @transform_10, window_bounds = array<i64: 1, 32>}, {pipeline_mode = #tpu.pipeline_mode<synchronous>, transform_indices = @transform_11, window_bounds = array<i64: 1, 32>}, {pipeline_mode = #tpu.pipeline_mode<synchronous>, transform_indices = @transform_12, window_bounds = array<i64: 1, 32>}, {pipeline_mode = #tpu.pipeline_mode<synchronous>, transform_indices = @transform_13, window_bounds = array<i64: 1, 32>}, {transform_indices = @transform_14, window_bounds = array<i64: 1, 8, 32>}]} {
    %c0 = arith.constant 0 : index
    %c0_0 = arith.constant 0 : index
    %c0_1 = arith.constant 0 : index
    %0 = vector.load %arg3[%c0, %c0_0, %c0_1] : memref<1x8x32xbf16, #tpu.memory_space<vmem>>, vector<1x8x32xbf16>
    %1 = vector.shape_cast %0 : vector<1x8x32xbf16> to vector<8x32xbf16>
    %2 = arith.extf %1 : vector<8x32xbf16> to vector<8x32xf32>
    %c0_2 = arith.constant 0 : index
    %c0_3 = arith.constant 0 : index
    %c0_4 = arith.constant 0 : index
    %3 = vector.load %arg4[%c0_2, %c0_3, %c0_4] : memref<1x8x32xbf16, #tpu.memory_space<vmem>>, vector<1x8x32xbf16>
    %4 = vector.shape_cast %3 : vector<1x8x32xbf16> to vector<8x32xbf16>
    %5 = arith.extf %4 : vector<8x32xbf16> to vector<8x32xf32>
    %cst = arith.constant dense<0.000000e+00> : vector<8xf32>
    %6 = vector.multi_reduction <add>, %5, %cst [1] : vector<8x32xf32> to vector<8xf32>
    %7 = vector.shape_cast %6 : vector<8xf32> to vector<8x1xf32>
    %cst_5 = arith.constant 3.200000e+01 : f32
    %8 = vector.broadcast %cst_5 : f32 to vector<8x1xf32>
    %9 = arith.divf %7, %8 : vector<8x1xf32>
    %10 = vector.broadcast %9 : vector<8x1xf32> to vector<8x32xf32>
    %11 = arith.subf %5, %10 : vector<8x32xf32>
    %12 = vector.broadcast %9 : vector<8x1xf32> to vector<8x32xf32>
    %13 = arith.subf %5, %12 : vector<8x32xf32>
    %14 = arith.mulf %11, %13 : vector<8x32xf32>
    %cst_6 = arith.constant dense<0.000000e+00> : vector<8xf32>
    %15 = vector.multi_reduction <add>, %14, %cst_6 [1] : vector<8x32xf32> to vector<8xf32>
    %16 = vector.shape_cast %15 : vector<8xf32> to vector<8x1xf32>
    %cst_7 = arith.constant 3.200000e+01 : f32
    %17 = vector.broadcast %cst_7 : f32 to vector<8x1xf32>
    %18 = arith.divf %16, %17 : vector<8x1xf32>
    %19 = vector.broadcast %9 : vector<8x1xf32> to vector<8x32xf32>
    %20 = arith.subf %5, %19 : vector<8x32xf32>
    %cst_8 = arith.constant 9.99999997E-7 : f32
    %21 = vector.broadcast %cst_8 : f32 to vector<8x1xf32>
    %22 = arith.addf %18, %21 : vector<8x1xf32>
    %23 = math.rsqrt %22 : vector<8x1xf32>
    %24 = vector.broadcast %23 : vector<8x1xf32> to vector<8x32xf32>
    %25 = arith.mulf %20, %24 : vector<8x32xf32>
    %c0_9 = arith.constant 0 : index
    %c0_10 = arith.constant 0 : index
    %26 = vector.load %arg12[%c0_9, %c0_10] : memref<1x32xf32, #tpu.memory_space<vmem>>, vector<1x32xf32>
    %27 = vector.broadcast %26 : vector<1x32xf32> to vector<8x32xf32>
    %28 = arith.mulf %25, %27 : vector<8x32xf32>
    %c0_11 = arith.constant 0 : index
    %c0_12 = arith.constant 0 : index
    %29 = vector.load %arg13[%c0_11, %c0_12] : memref<1x32xf32, #tpu.memory_space<vmem>>, vector<1x32xf32>
    %30 = vector.broadcast %29 : vector<1x32xf32> to vector<8x32xf32>
    %31 = arith.addf %28, %30 : vector<8x32xf32>
    %32 = arith.truncf %2 : vector<8x32xf32> to vector<8x32xbf16>
    %c0_13 = arith.constant 0 : index
    %c0_14 = arith.constant 0 : index
    %33 = vector.load %arg6[%c0_13, %c0_14] : memref<32x32xbf16, #tpu.memory_space<vmem>>, vector<32x32xbf16>
    %cst_15 = arith.constant dense<0.000000e+00> : vector<8x32xf32>
    %34 = tpu.matmul %32, %33, %cst_15 {dimension_numbers = #tpu.dot_dimension_numbers<[1], [0], [0], [1], [0, 0, 1, 1], [], []>} : vector<8x32xbf16>, vector<32x32xbf16>, vector<8x32xf32> -> vector<8x32xf32>
    %c0_16 = arith.constant 0 : index
    %c0_17 = arith.constant 0 : index
    %35 = vector.load %arg7[%c0_16, %c0_17] : memref<1x32xf32, #tpu.memory_space<vmem>>, vector<1x32xf32>
    %36 = vector.broadcast %35 : vector<1x32xf32> to vector<8x32xf32>
    %37 = arith.addf %34, %36 : vector<8x32xf32>
    %38 = arith.truncf %31 : vector<8x32xf32> to vector<8x32xbf16>
    %c0_18 = arith.constant 0 : index
    %c0_19 = arith.constant 0 : index
    %39 = vector.load %arg8[%c0_18, %c0_19] : memref<32x64xbf16, #tpu.memory_space<vmem>>, vector<32x64xbf16>
    %cst_20 = arith.constant dense<0.000000e+00> : vector<8x64xf32>
    %40 = tpu.matmul %38, %39, %cst_20 {dimension_numbers = #tpu.dot_dimension_numbers<[1], [0], [0], [1], [0, 0, 1, 1], [], []>} : vector<8x32xbf16>, vector<32x64xbf16>, vector<8x64xf32> -> vector<8x64xf32>
    %c0_21 = arith.constant 0 : index
    %c0_22 = arith.constant 0 : index
    %41 = vector.load %arg9[%c0_21, %c0_22] : memref<1x64xf32, #tpu.memory_space<vmem>>, vector<1x64xf32>
    %42 = vector.broadcast %41 : vector<1x64xf32> to vector<8x64xf32>
    %43 = arith.addf %40, %42 : vector<8x64xf32>
    %44 = arith.truncf %37 : vector<8x32xf32> to vector<8x32xbf16>
    %45 = arith.truncf %43 : vector<8x64xf32> to vector<8x64xbf16>
    %c0_23 = arith.constant 0 : index
    %c0_24 = arith.constant 0 : index
    %c0_25 = arith.constant 0 : index
    %46 = vector.load %arg2[%c0_23, %c0_24, %c0_25] : memref<1x1x8xi32, #tpu.memory_space<vmem>>, vector<1x1x8xi32>
    %47 = vector.shape_cast %46 : vector<1x1x8xi32> to vector<1x8xi32>
    %c0_i32 = arith.constant 0 : i32
    %48 = vector.broadcast %c0_i32 : i32 to vector<1x8xi32>
    %49 = arith.cmpi eq, %47, %48 : vector<1x8xi32>
    %cst_26 = arith.constant -1.000000e+09 : f32
    %cst_27 = arith.constant 0.000000e+00 : f32
    %50 = vector.broadcast %cst_26 : f32 to vector<1x8xf32>
    %51 = vector.broadcast %cst_27 : f32 to vector<1x8xf32>
    %52 = arith.select %49, %50, %51 : vector<1x8xi1>, vector<1x8xf32>
    %cst_28 = arith.constant 0.000000e+00 : f32
    %53 = vector.broadcast %cst_28 : f32 to vector<8x32xf32>
    %54 = vector.extract_strided_slice %44 {offsets = [0, 0], sizes = [8, 8], strides = [1, 1]} : vector<8x32xbf16> to vector<8x8xbf16>
    %55 = vector.extract_strided_slice %45 {offsets = [0, 0], sizes = [8, 8], strides = [1, 1]} : vector<8x64xbf16> to vector<8x8xbf16>
    %56 = vector.extract_strided_slice %45 {offsets = [0, 32], sizes = [8, 8], strides = [1, 1]} : vector<8x64xbf16> to vector<8x8xbf16>
    %cst_29 = arith.constant dense<0.000000e+00> : vector<8x8xf32>
    %57 = tpu.matmul %54, %55, %cst_29 {dimension_numbers = #tpu.dot_dimension_numbers<[1], [1], [0], [0], [0, 0, 1, 0], [], []>} : vector<8x8xbf16>, vector<8x8xbf16>, vector<8x8xf32> -> vector<8x8xf32>
    %58 = vector.broadcast %52 : vector<1x8xf32> to vector<8x8xf32>
    %59 = arith.addf %57, %58 : vector<8x8xf32>
    %cst_30 = arith.constant dense<0xFF800000> : vector<8xf32>
    %60 = vector.multi_reduction <maximumf>, %59, %cst_30 [1] : vector<8x8xf32> to vector<8xf32>
    %61 = vector.shape_cast %60 : vector<8xf32> to vector<8x1xf32>
    %62 = vector.broadcast %61 : vector<8x1xf32> to vector<8x8xf32>
    %63 = arith.subf %59, %62 : vector<8x8xf32>
    %64 = math.exp %63 : vector<8x8xf32>
    %cst_31 = arith.constant dense<0.000000e+00> : vector<8xf32>
    %65 = vector.multi_reduction <add>, %64, %cst_31 [1] : vector<8x8xf32> to vector<8xf32>
    %66 = vector.shape_cast %65 : vector<8xf32> to vector<8x1xf32>
    %67 = tpu.reciprocal %66 : vector<8x1xf32> -> vector<8x1xf32>
    %68 = vector.broadcast %67 : vector<8x1xf32> to vector<8x8xf32>
    %69 = arith.mulf %64, %68 : vector<8x8xf32>
    %70 = arith.truncf %69 : vector<8x8xf32> to vector<8x8xbf16>
    %cst_32 = arith.constant dense<0.000000e+00> : vector<8x8xf32>
    %71 = tpu.matmul %70, %56, %cst_32 {dimension_numbers = #tpu.dot_dimension_numbers<[1], [0], [0], [1], [0, 0, 1, 1], [], []>} : vector<8x8xbf16>, vector<8x8xbf16>, vector<8x8xf32> -> vector<8x8xf32>
    %72 = arith.truncf %71 : vector<8x8xf32> to vector<8x8xbf16>
    %c0_33 = arith.constant 0 : index
    %c0_34 = arith.constant 0 : index
    %c0_35 = arith.constant 0 : index
    %73 = vector.load %arg10[%c0_33, %c0_34, %c0_35] : memref<4x8x32xbf16, #tpu.memory_space<vmem>>, vector<1x8x32xbf16>
    %74 = vector.shape_cast %73 : vector<1x8x32xbf16> to vector<8x32xbf16>
    %cst_36 = arith.constant dense<0.000000e+00> : vector<8x32xf32>
    %75 = tpu.matmul %72, %74, %cst_36 {dimension_numbers = #tpu.dot_dimension_numbers<[1], [0], [0], [1], [0, 0, 1, 1], [], []>} : vector<8x8xbf16>, vector<8x32xbf16>, vector<8x32xf32> -> vector<8x32xf32>
    %76 = arith.addf %53, %75 : vector<8x32xf32>
    %77 = vector.extract_strided_slice %44 {offsets = [0, 8], sizes = [8, 8], strides = [1, 1]} : vector<8x32xbf16> to vector<8x8xbf16>
    %78 = vector.extract_strided_slice %45 {offsets = [0, 8], sizes = [8, 8], strides = [1, 1]} : vector<8x64xbf16> to vector<8x8xbf16>
    %79 = vector.extract_strided_slice %45 {offsets = [0, 40], sizes = [8, 8], strides = [1, 1]} : vector<8x64xbf16> to vector<8x8xbf16>
    %cst_37 = arith.constant dense<0.000000e+00> : vector<8x8xf32>
    %80 = tpu.matmul %77, %78, %cst_37 {dimension_numbers = #tpu.dot_dimension_numbers<[1], [1], [0], [0], [0, 0, 1, 0], [], []>} : vector<8x8xbf16>, vector<8x8xbf16>, vector<8x8xf32> -> vector<8x8xf32>
    %81 = vector.broadcast %52 : vector<1x8xf32> to vector<8x8xf32>
    %82 = arith.addf %80, %81 : vector<8x8xf32>
    %cst_38 = arith.constant dense<0xFF800000> : vector<8xf32>
    %83 = vector.multi_reduction <maximumf>, %82, %cst_38 [1] : vector<8x8xf32> to vector<8xf32>
    %84 = vector.shape_cast %83 : vector<8xf32> to vector<8x1xf32>
    %85 = vector.broadcast %84 : vector<8x1xf32> to vector<8x8xf32>
    %86 = arith.subf %82, %85 : vector<8x8xf32>
    %87 = math.exp %86 : vector<8x8xf32>
    %cst_39 = arith.constant dense<0.000000e+00> : vector<8xf32>
    %88 = vector.multi_reduction <add>, %87, %cst_39 [1] : vector<8x8xf32> to vector<8xf32>
    %89 = vector.shape_cast %88 : vector<8xf32> to vector<8x1xf32>
    %90 = tpu.reciprocal %89 : vector<8x1xf32> -> vector<8x1xf32>
    %91 = vector.broadcast %90 : vector<8x1xf32> to vector<8x8xf32>
    %92 = arith.mulf %87, %91 : vector<8x8xf32>
    %93 = arith.truncf %92 : vector<8x8xf32> to vector<8x8xbf16>
    %cst_40 = arith.constant dense<0.000000e+00> : vector<8x8xf32>
    %94 = tpu.matmul %93, %79, %cst_40 {dimension_numbers = #tpu.dot_dimension_numbers<[1], [0], [0], [1], [0, 0, 1, 1], [], []>} : vector<8x8xbf16>, vector<8x8xbf16>, vector<8x8xf32> -> vector<8x8xf32>
    %95 = arith.truncf %94 : vector<8x8xf32> to vector<8x8xbf16>
    %c1 = arith.constant 1 : index
    %c0_41 = arith.constant 0 : index
    %c0_42 = arith.constant 0 : index
    %96 = vector.load %arg10[%c1, %c0_41, %c0_42] : memref<4x8x32xbf16, #tpu.memory_space<vmem>>, vector<1x8x32xbf16>
    %97 = vector.shape_cast %96 : vector<1x8x32xbf16> to vector<8x32xbf16>
    %cst_43 = arith.constant dense<0.000000e+00> : vector<8x32xf32>
    %98 = tpu.matmul %95, %97, %cst_43 {dimension_numbers = #tpu.dot_dimension_numbers<[1], [0], [0], [1], [0, 0, 1, 1], [], []>} : vector<8x8xbf16>, vector<8x32xbf16>, vector<8x32xf32> -> vector<8x32xf32>
    %99 = arith.addf %76, %98 : vector<8x32xf32>
    %100 = vector.extract_strided_slice %44 {offsets = [0, 16], sizes = [8, 8], strides = [1, 1]} : vector<8x32xbf16> to vector<8x8xbf16>
    %101 = vector.extract_strided_slice %45 {offsets = [0, 16], sizes = [8, 8], strides = [1, 1]} : vector<8x64xbf16> to vector<8x8xbf16>
    %102 = vector.extract_strided_slice %45 {offsets = [0, 48], sizes = [8, 8], strides = [1, 1]} : vector<8x64xbf16> to vector<8x8xbf16>
    %cst_44 = arith.constant dense<0.000000e+00> : vector<8x8xf32>
    %103 = tpu.matmul %100, %101, %cst_44 {dimension_numbers = #tpu.dot_dimension_numbers<[1], [1], [0], [0], [0, 0, 1, 0], [], []>} : vector<8x8xbf16>, vector<8x8xbf16>, vector<8x8xf32> -> vector<8x8xf32>
    %104 = vector.broadcast %52 : vector<1x8xf32> to vector<8x8xf32>
    %105 = arith.addf %103, %104 : vector<8x8xf32>
    %cst_45 = arith.constant dense<0xFF800000> : vector<8xf32>
    %106 = vector.multi_reduction <maximumf>, %105, %cst_45 [1] : vector<8x8xf32> to vector<8xf32>
    %107 = vector.shape_cast %106 : vector<8xf32> to vector<8x1xf32>
    %108 = vector.broadcast %107 : vector<8x1xf32> to vector<8x8xf32>
    %109 = arith.subf %105, %108 : vector<8x8xf32>
    %110 = math.exp %109 : vector<8x8xf32>
    %cst_46 = arith.constant dense<0.000000e+00> : vector<8xf32>
    %111 = vector.multi_reduction <add>, %110, %cst_46 [1] : vector<8x8xf32> to vector<8xf32>
    %112 = vector.shape_cast %111 : vector<8xf32> to vector<8x1xf32>
    %113 = tpu.reciprocal %112 : vector<8x1xf32> -> vector<8x1xf32>
    %114 = vector.broadcast %113 : vector<8x1xf32> to vector<8x8xf32>
    %115 = arith.mulf %110, %114 : vector<8x8xf32>
    %116 = arith.truncf %115 : vector<8x8xf32> to vector<8x8xbf16>
    %cst_47 = arith.constant dense<0.000000e+00> : vector<8x8xf32>
    %117 = tpu.matmul %116, %102, %cst_47 {dimension_numbers = #tpu.dot_dimension_numbers<[1], [0], [0], [1], [0, 0, 1, 1], [], []>} : vector<8x8xbf16>, vector<8x8xbf16>, vector<8x8xf32> -> vector<8x8xf32>
    %118 = arith.truncf %117 : vector<8x8xf32> to vector<8x8xbf16>
    %c2 = arith.constant 2 : index
    %c0_48 = arith.constant 0 : index
    %c0_49 = arith.constant 0 : index
    %119 = vector.load %arg10[%c2, %c0_48, %c0_49] : memref<4x8x32xbf16, #tpu.memory_space<vmem>>, vector<1x8x32xbf16>
    %120 = vector.shape_cast %119 : vector<1x8x32xbf16> to vector<8x32xbf16>
    %cst_50 = arith.constant dense<0.000000e+00> : vector<8x32xf32>
    %121 = tpu.matmul %118, %120, %cst_50 {dimension_numbers = #tpu.dot_dimension_numbers<[1], [0], [0], [1], [0, 0, 1, 1], [], []>} : vector<8x8xbf16>, vector<8x32xbf16>, vector<8x32xf32> -> vector<8x32xf32>
    %122 = arith.addf %99, %121 : vector<8x32xf32>
    %123 = vector.extract_strided_slice %44 {offsets = [0, 24], sizes = [8, 8], strides = [1, 1]} : vector<8x32xbf16> to vector<8x8xbf16>
    %124 = vector.extract_strided_slice %45 {offsets = [0, 24], sizes = [8, 8], strides = [1, 1]} : vector<8x64xbf16> to vector<8x8xbf16>
    %125 = vector.extract_strided_slice %45 {offsets = [0, 56], sizes = [8, 8], strides = [1, 1]} : vector<8x64xbf16> to vector<8x8xbf16>
    %cst_51 = arith.constant dense<0.000000e+00> : vector<8x8xf32>
    %126 = tpu.matmul %123, %124, %cst_51 {dimension_numbers = #tpu.dot_dimension_numbers<[1], [1], [0], [0], [0, 0, 1, 0], [], []>} : vector<8x8xbf16>, vector<8x8xbf16>, vector<8x8xf32> -> vector<8x8xf32>
    %127 = vector.broadcast %52 : vector<1x8xf32> to vector<8x8xf32>
    %128 = arith.addf %126, %127 : vector<8x8xf32>
    %cst_52 = arith.constant dense<0xFF800000> : vector<8xf32>
    %129 = vector.multi_reduction <maximumf>, %128, %cst_52 [1] : vector<8x8xf32> to vector<8xf32>
    %130 = vector.shape_cast %129 : vector<8xf32> to vector<8x1xf32>
    %131 = vector.broadcast %130 : vector<8x1xf32> to vector<8x8xf32>
    %132 = arith.subf %128, %131 : vector<8x8xf32>
    %133 = math.exp %132 : vector<8x8xf32>
    %cst_53 = arith.constant dense<0.000000e+00> : vector<8xf32>
    %134 = vector.multi_reduction <add>, %133, %cst_53 [1] : vector<8x8xf32> to vector<8xf32>
    %135 = vector.shape_cast %134 : vector<8xf32> to vector<8x1xf32>
    %136 = tpu.reciprocal %135 : vector<8x1xf32> -> vector<8x1xf32>
    %137 = vector.broadcast %136 : vector<8x1xf32> to vector<8x8xf32>
    %138 = arith.mulf %133, %137 : vector<8x8xf32>
    %139 = arith.truncf %138 : vector<8x8xf32> to vector<8x8xbf16>
    %cst_54 = arith.constant dense<0.000000e+00> : vector<8x8xf32>
    %140 = tpu.matmul %139, %125, %cst_54 {dimension_numbers = #tpu.dot_dimension_numbers<[1], [0], [0], [1], [0, 0, 1, 1], [], []>} : vector<8x8xbf16>, vector<8x8xbf16>, vector<8x8xf32> -> vector<8x8xf32>
    %141 = arith.truncf %140 : vector<8x8xf32> to vector<8x8xbf16>
    %c3 = arith.constant 3 : index
    %c0_55 = arith.constant 0 : index
    %c0_56 = arith.constant 0 : index
    %142 = vector.load %arg10[%c3, %c0_55, %c0_56] : memref<4x8x32xbf16, #tpu.memory_space<vmem>>, vector<1x8x32xbf16>
    %143 = vector.shape_cast %142 : vector<1x8x32xbf16> to vector<8x32xbf16>
    %cst_57 = arith.constant dense<0.000000e+00> : vector<8x32xf32>
    %144 = tpu.matmul %141, %143, %cst_57 {dimension_numbers = #tpu.dot_dimension_numbers<[1], [0], [0], [1], [0, 0, 1, 1], [], []>} : vector<8x8xbf16>, vector<8x32xbf16>, vector<8x32xf32> -> vector<8x32xf32>
    %145 = arith.addf %122, %144 : vector<8x32xf32>
    %c0_58 = arith.constant 0 : index
    %c0_59 = arith.constant 0 : index
    %146 = vector.load %arg11[%c0_58, %c0_59] : memref<1x32xf32, #tpu.memory_space<vmem>>, vector<1x32xf32>
    %147 = vector.broadcast %146 : vector<1x32xf32> to vector<8x32xf32>
    %148 = arith.addf %145, %147 : vector<8x32xf32>
    %149 = arith.addf %148, %2 : vector<8x32xf32>
    %cst_60 = arith.constant dense<0.000000e+00> : vector<8xf32>
    %150 = vector.multi_reduction <add>, %149, %cst_60 [1] : vector<8x32xf32> to vector<8xf32>
    %151 = vector.shape_cast %150 : vector<8xf32> to vector<8x1xf32>
    %cst_61 = arith.constant 3.200000e+01 : f32
    %152 = vector.broadcast %cst_61 : f32 to vector<8x1xf32>
    %153 = arith.divf %151, %152 : vector<8x1xf32>
    %154 = vector.broadcast %153 : vector<8x1xf32> to vector<8x32xf32>
    %155 = arith.subf %149, %154 : vector<8x32xf32>
    %156 = vector.broadcast %153 : vector<8x1xf32> to vector<8x32xf32>
    %157 = arith.subf %149, %156 : vector<8x32xf32>
    %158 = arith.mulf %155, %157 : vector<8x32xf32>
    %cst_62 = arith.constant dense<0.000000e+00> : vector<8xf32>
    %159 = vector.multi_reduction <add>, %158, %cst_62 [1] : vector<8x32xf32> to vector<8xf32>
    %160 = vector.shape_cast %159 : vector<8xf32> to vector<8x1xf32>
    %cst_63 = arith.constant 3.200000e+01 : f32
    %161 = vector.broadcast %cst_63 : f32 to vector<8x1xf32>
    %162 = arith.divf %160, %161 : vector<8x1xf32>
    %163 = vector.broadcast %153 : vector<8x1xf32> to vector<8x32xf32>
    %164 = arith.subf %149, %163 : vector<8x32xf32>
    %cst_64 = arith.constant 9.99999997E-7 : f32
    %165 = vector.broadcast %cst_64 : f32 to vector<8x1xf32>
    %166 = arith.addf %162, %165 : vector<8x1xf32>
    %167 = math.rsqrt %166 : vector<8x1xf32>
    %168 = vector.broadcast %167 : vector<8x1xf32> to vector<8x32xf32>
    %169 = arith.mulf %164, %168 : vector<8x32xf32>
    %c0_65 = arith.constant 0 : index
    %c0_66 = arith.constant 0 : index
    %170 = vector.load %arg14[%c0_65, %c0_66] : memref<1x32xf32, #tpu.memory_space<vmem>>, vector<1x32xf32>
    %171 = vector.broadcast %170 : vector<1x32xf32> to vector<8x32xf32>
    %172 = arith.mulf %169, %171 : vector<8x32xf32>
    %c0_67 = arith.constant 0 : index
    %c0_68 = arith.constant 0 : index
    %173 = vector.load %arg15[%c0_67, %c0_68] : memref<1x32xf32, #tpu.memory_space<vmem>>, vector<1x32xf32>
    %174 = vector.broadcast %173 : vector<1x32xf32> to vector<8x32xf32>
    %175 = arith.addf %172, %174 : vector<8x32xf32>
    %c0_69 = arith.constant 0 : index
    %c0_70 = arith.constant 0 : index
    %c0_71 = arith.constant 0 : index
    %176 = vector.load %arg5[%c0_69, %c0_70, %c0_71] : memref<1x8x1xf32, #tpu.memory_space<vmem>>, vector<1x8x1xf32>
    %177 = vector.shape_cast %176 : vector<1x8x1xf32> to vector<8x1xf32>
    %178 = vector.broadcast %177 : vector<8x1xf32> to vector<8x32xf32>
    %179 = arith.mulf %175, %178 : vector<8x32xf32>
    %180 = arith.truncf %179 : vector<8x32xf32> to vector<8x32xbf16>
    %c0_72 = arith.constant 0 : index
    %c0_73 = arith.constant 0 : index
    %c0_74 = arith.constant 0 : index
    %181 = vector.load %arg16[%c0_72, %c0_73, %c0_74] : memref<1x8x32xbf16, #tpu.memory_space<vmem>>, vector<1x8x32xbf16>
    %182 = vector.shape_cast %181 : vector<1x8x32xbf16> to vector<8x32xbf16>
    %183 = vector.shape_cast %180 : vector<8x32xbf16> to vector<1x8x32xbf16>
    tpu.vector_store %arg16[%c0_72, %c0_73, %c0_74], %183 {strides = array<i32>} : memref<1x8x32xbf16, #tpu.memory_space<vmem>>, vector<1x8x32xbf16>,
    return
  }
  func.func @transform_0(%arg0: i32, %arg1: i32) -> (i32, i32, i32) {
    %c0_i32 = arith.constant 0 : i32
    %c0_i32_0 = arith.constant 0 : i32
    %c0_i32_1 = arith.constant 0 : i32
    return %arg0, %c0_i32, %c0_i32_0 : i32, i32, i32
  }
  func.func @transform_1(%arg0: i32, %arg1: i32) -> (i32, i32, i32) {
    %c0_i32 = arith.constant 0 : i32
    %c0_i32_0 = arith.constant 0 : i32
    return %arg0, %arg1, %c0_i32 : i32, i32, i32
  }
  func.func @transform_2(%arg0: i32, %arg1: i32) -> (i32, i32, i32) {
    %c0_i32 = arith.constant 0 : i32
    %c0_i32_0 = arith.constant 0 : i32
    %c0_i32_1 = arith.constant 0 : i32
    return %arg0, %c0_i32, %c0_i32_0 : i32, i32, i32
  }
  func.func @transform_3(%arg0: i32, %arg1: i32) -> (i32, i32, i32) {
    %c0_i32 = arith.constant 0 : i32
    %c0_i32_0 = arith.constant 0 : i32
    return %arg0, %arg1, %c0_i32 : i32, i32, i32
  }
  func.func @transform_4(%arg0: i32, %arg1: i32) -> (i32, i32) {
    %c0_i32 = arith.constant 0 : i32
    %c0_i32_0 = arith.constant 0 : i32
    %c0_i32_1 = arith.constant 0 : i32
    return %c0_i32, %c0_i32_0 : i32, i32
  }
  func.func @transform_5(%arg0: i32, %arg1: i32) -> (i32, i32) {
    %c0_i32 = arith.constant 0 : i32
    %c0_i32_0 = arith.constant 0 : i32
    %c0_i32_1 = arith.constant 0 : i32
    return %c0_i32, %c0_i32_0 : i32, i32
  }
  func.func @transform_6(%arg0: i32, %arg1: i32) -> (i32, i32) {
    %c0_i32 = arith.constant 0 : i32
    %c0_i32_0 = arith.constant 0 : i32
    %c0_i32_1 = arith.constant 0 : i32
    return %c0_i32, %c0_i32_0 : i32, i32
  }
  func.func @transform_7(%arg0: i32, %arg1: i32) -> (i32, i32) {
    %c0_i32 = arith.constant 0 : i32
    %c0_i32_0 = arith.constant 0 : i32
    %c0_i32_1 = arith.constant 0 : i32
    return %c0_i32, %c0_i32_0 : i32, i32
  }
  func.func @transform_8(%arg0: i32, %arg1: i32) -> (i32, i32, i32) {
    %c0_i32 = arith.constant 0 : i32
    %c0_i32_0 = arith.constant 0 : i32
    %c0_i32_1 = arith.constant 0 : i32
    %c0_i32_2 = arith.constant 0 : i32
    return %c0_i32, %c0_i32_0, %c0_i32_1 : i32, i32, i32
  }
  func.func @transform_9(%arg0: i32, %arg1: i32) -> (i32, i32) {
    %c0_i32 = arith.constant 0 : i32
    %c0_i32_0 = arith.constant 0 : i32
    %c0_i32_1 = arith.constant 0 : i32
    return %c0_i32, %c0_i32_0 : i32, i32
  }
  func.func @transform_10(%arg0: i32, %arg1: i32) -> (i32, i32) {
    %c0_i32 = arith.constant 0 : i32
    %c0_i32_0 = arith.constant 0 : i32
    %c0_i32_1 = arith.constant 0 : i32
    return %c0_i32, %c0_i32_0 : i32, i32
  }
  func.func @transform_11(%arg0: i32, %arg1: i32) -> (i32, i32) {
    %c0_i32 = arith.constant 0 : i32
    %c0_i32_0 = arith.constant 0 : i32
    %c0_i32_1 = arith.constant 0 : i32
    return %c0_i32, %c0_i32_0 : i32, i32
  }
  func.func @transform_12(%arg0: i32, %arg1: i32) -> (i32, i32) {
    %c0_i32 = arith.constant 0 : i32
    %c0_i32_0 = arith.constant 0 : i32
    %c0_i32_1 = arith.constant 0 : i32
    return %c0_i32, %c0_i32_0 : i32, i32
  }
  func.func @transform_13(%arg0: i32, %arg1: i32) -> (i32, i32) {
    %c0_i32 = arith.constant 0 : i32
    %c0_i32_0 = arith.constant 0 : i32
    %c0_i32_1 = arith.constant 0 : i32
    return %c0_i32, %c0_i32_0 : i32, i32
  }
  func.func @transform_14(%arg0: i32, %arg1: i32) -> (i32, i32, i32) {
    %c0_i32 = arith.constant 0 : i32
    %c0_i32_0 = arith.constant 0 : i32
    return %arg0, %arg1, %c0_i32 : i32, i32, i32
  }
}

</mosaic_0001>

<llo_original>
// kernel: _lambda_.12
$region0: #{_lambda_.12}
  #allocation0 [shape = 'u32[]', space=smem, size = 0x4, offset = 0x4, fixed_abs, tag = 'smem constant byte address 0x4 - core index']
  #allocation1 [shape = 'u32[144,128]{1,0:T(1,128)}', space=vmem, size = 0x12000, scoped, tag = 'internal scratch']
  %s0 = inlined_call_operand.vmem [shape: bf16[16,32], index: 0, kind: input, shape index: {}]
  %s1 = inlined_call_operand.vmem [shape: f32[16,1], index: 1, kind: input, shape index: {}]
  %s2 = inlined_call_operand.vmem [shape: bf16[32,64], index: 2, kind: input, shape index: {}]
  %s3 = inlined_call_operand.vmem [shape: f32[1,64], index: 3, kind: input, shape index: {}]
  %s4 = inlined_call_operand.vmem [shape: bf16[64,32], index: 4, kind: input, shape index: {}]
  %s5 = inlined_call_operand.vmem [shape: f32[1,32], index: 5, kind: input, shape index: {}]
  %s6 = inlined_call_operand.vmem [shape: f32[1,32], index: 6, kind: input, shape index: {}]
  %s7 = inlined_call_operand.vmem [shape: f32[1,32], index: 7, kind: input, shape index: {}]
  %s8 = inlined_call_operand.vmem [shape: bf16[16,32], index: 8, kind: output, shape index: {}]
  %s9 = sld [smem:[#allocation0]]
  $region42: #{_lambda_.12} parent=0
    _
  %s11 = ssub.s32 1, %s9
  %s12 = scalar_select 0, %s11, %s9
  // Predicated region
  $region2: #{_lambda_.12} parent=0 // pred_check
    _
  $region3: #{_lambda_.12} parent=0 // pred_check_branch
    %14 = sbr.rel (0) target = $region5
  $region4: #{_lambda_.12} parent=0 // pred_region
    _
  $region5: #{_lambda_.12} parent=0 // pred_fallthru
    _
  // Predicated region
  $region6: #{_lambda_.12} parent=0 // pred_check
    _
  $region7: #{_lambda_.12} parent=0 // pred_check_branch
    %16 = sbr.rel (0) target = $region9
  $region8: #{_lambda_.12} parent=0 // pred_region
    _
  $region9: #{_lambda_.12} parent=0 // pred_fallthru
    _
  // Predicated region
  $region10: #{_lambda_.12} parent=0 // pred_check
    _
  $region11: #{_lambda_.12} parent=0 // pred_check_branch
    %18 = sbr.rel (0) target = $region13
  $region12: #{_lambda_.12} parent=0 // pred_region
    _
  $region13: #{_lambda_.12} parent=0 // pred_fallthru
    _
  // Predicated region
  $region14: #{_lambda_.12} parent=0 // pred_check
    _
  $region15: #{_lambda_.12} parent=0 // pred_check_branch
    %20 = sbr.rel (0) target = $region17
  $region16: #{_lambda_.12} parent=0 // pred_region
    _
  $region17: #{_lambda_.12} parent=0 // pred_fallthru
    _
  // Predicated region
  $region18: #{_lambda_.12} parent=0 // pred_check
    _
  $region19: #{_lambda_.12} parent=0 // pred_check_branch
    %22 = sbr.rel (0) target = $region21
  $region20: #{_lambda_.12} parent=0 // pred_region
    _
  $region21: #{_lambda_.12} parent=0 // pred_fallthru
    _
  // Predicated region
  $region22: #{_lambda_.12} parent=0 // pred_check
    _
  $region23: #{_lambda_.12} parent=0 // pred_check_branch
    %24 = sbr.rel (0) target = $region25
  $region24: #{_lambda_.12} parent=0 // pred_region
    _
  $region25: #{_lambda_.12} parent=0 // pred_fallthru
    _
  // Predicated region
  $region26: #{_lambda_.12} parent=0 // pred_check
    _
  $region27: #{_lambda_.12} parent=0 // pred_check_branch
    %26 = sbr.rel (0) target = $region29
  $region28: #{_lambda_.12} parent=0 // pred_region
    _
  $region29: #{_lambda_.12} parent=0 // pred_fallthru
    _
  // Predicated region
  $region30: #{_lambda_.12} parent=0 // pred_check
    _
  $region31: #{_lambda_.12} parent=0 // pred_check_branch
    %28 = sbr.rel (0) target = $region33
  $region32: #{_lambda_.12} parent=0 // pred_region
    _
  $region33: #{_lambda_.12} parent=0 // pred_fallthru
    _
  %v30 = vld [vmem:[%s0] sm:$0xf]
  %v31 = vld [vmem:[%s0 + $0x4] sm:$0xf]
  %v32 = vunpack.c.l.bf16 %v30
  %v33 = vunpack.c.l.bf16 %v31
  %v34 = vld [vmem:[%s2] sm:$0xf]
  %v35 = vld [vmem:[%s2 + $0x4] sm:$0xf]
  %v36 = vld [vmem:[%s2 + $0x8] sm:$0xf]
  %v37 = vld [vmem:[%s2 + $0xc] sm:$0xf]
  %v38 = vld [vmem:[%s3] sm:$0x1]
  %v40 = vlaneseq
  %v41 = vshrl.u32 %v40, 7
  %v42 = vsub.s32 0, %v41
  %v43 = vrot.slane %v38, %v42
  %v47 = vunpack.c.l.b16 %v30
  %v48 = vunpack.c.l.b16 %v31
  %v49 = vpack.c.b16 %v48, %v47
  %v54 = vunpack.c.l.b16 %v34
  %v55 = vunpack.c.l.b16 %v35
  %v56 = vunpack.c.l.b16 %v36
  %v57 = vunpack.c.l.b16 %v37
  %v58 = vpack.c.b16 %v55, %v54
  %v59 = vpack.c.b16 %v57, %v56
  %vm62 = vcmask 261120
  %v64 = vsel %vm62, %v49, 0
  %66 = vmatprep.subr.bf16.mxu0 0
  %67 = vmatpush1.bf16.msra.mxu0 0
  %68 = vmatprep.subr.bf16.mxu0 0
  %69 = vmatpush1.bf16.msra.mxu0 0
  %70 = vmatprep.subr.bf16.mxu0 0
  %71 = vmatpush1.bf16.msra.mxu0 0
  %72 = vmatprep.subr.bf16.mxu0 0
  %73 = vmatpush1.bf16.msra.mxu0 0
  %74 = vmatprep.subr.bf16.mxu0 0
  %75 = vmatpush1.bf16.msra.mxu0 0
  %76 = vmatprep.subr.bf16.mxu0 0
  %77 = vmatpush1.bf16.msra.mxu0 0
  %78 = vmatprep.subr.bf16.mxu0 0
  %79 = vmatpush1.bf16.msra.mxu0 %v59
  %80 = vmatprep.subr.bf16.mxu0 0
  %81 = vmatpush1.bf16.msra.mxu0 %v58
  %82 = vmatprep.subr.bf16.mxu0 0
  %83 = vmatpush2.bf16.msra.mxu0 0
  %84 = vmatprep.subr.bf16.mxu0 0
  %85 = vmatpush2.bf16.msra.mxu0 0
  %86 = vmatprep.subr.bf16.mxu0 0
  %87 = vmatpush2.bf16.msra.mxu0 0
  %88 = vmatprep.subr.bf16.mxu0 0
  %89 = vmatpush2.bf16.msra.mxu0 0
  %90 = vmatprep.subr.bf16.mxu0 0
  %91 = vmatpush2.bf16.msra.mxu0 0
  %92 = vmatprep.subr.bf16.mxu0 0
  %93 = vmatpush2.bf16.msra.mxu0 0
  %94 = vmatprep.subr.bf16.mxu0 0
  %95 = vmatpush2.bf16.msra.mxu0 0
  %96 = vmatprep.subr.bf16.mxu0 0
  %97 = vmatpush2.bf16.msra.mxu0 0
  %98 = vmatprep.mubr.bf16.mxu0 0
  %99 = vmatmul.mubr.bf16.gmra.mxu0 %v64
  %v100 = vpop.f32.mrf.mxu0
  %v101 = vadd.f32 %v43, %v100
  %v102 = vpop.f32.mrf.mxu0
  %v103 = vpop.f32.mrf.mxu0
  %v104 = vadd.f32 %v43, %v103
  %v105 = vpop.f32.mrf.mxu0
  %106 = vdwg.mxu0
  %v107 = vmax.f32 %v101, 0.0
  %v108 = vmax.f32 %v104, 0.0
  %v109 = vpack.c.bf16 %v108, %v107
  %v110 = vld [vmem:[%s4] sm:$0xf]
  %v111 = vld [vmem:[%s4 + $0x4] sm:$0xf]
  %v112 = vld [vmem:[%s4 + $0x8] sm:$0xf]
  %v113 = vld [vmem:[%s4 + $0xc] sm:$0xf]
  %v114 = vld [vmem:[%s4 + $0x10] sm:$0xf]
  %v115 = vld [vmem:[%s4 + $0x14] sm:$0xf]
  %v116 = vld [vmem:[%s4 + $0x18] sm:$0xf]
  %v117 = vld [vmem:[%s4 + $0x1c] sm:$0xf]
  %v118 = vld [vmem:[%s5] sm:$0x1]
  %v120 = vlaneseq
  %v121 = vshrl.u32 %v120, 7
  %v122 = vsub.s32 0, %v121
  %v123 = vrot.slane %v118, %v122
  %v133 = vunpack.c.l.b16 %v110
  %v134 = vunpack.c.l.b16 %v111
  %v135 = vunpack.c.l.b16 %v112
  %v136 = vunpack.c.l.b16 %v113
  %v137 = vunpack.c.l.b16 %v114
  %v138 = vunpack.c.l.b16 %v115
  %v139 = vunpack.c.l.b16 %v116
  %v140 = vunpack.c.l.b16 %v117
  %v141 = vpack.c.b16 %v134, %v133
  %v142 = vpack.c.b16 %v136, %v135
  %v143 = vpack.c.b16 %v138, %v137
  %v144 = vpack.c.b16 %v140, %v139
  %vm149 = vcmask 523264
  %v151 = vsel %vm149, %v109, 0
  %153 = vmatprep.subr.bf16.mxu0 0
  %154 = vmatpush1.bf16.msra.mxu0 0
  %155 = vmatprep.subr.bf16.mxu0 0
  %156 = vmatpush1.bf16.msra.mxu0 0
  %157 = vmatprep.subr.bf16.mxu0 0
  %158 = vmatpush1.bf16.msra.mxu0 0
  %159 = vmatprep.subr.bf16.mxu0 0
  %160 = vmatpush1.bf16.msra.mxu0 0
  %161 = vmatprep.subr.bf16.mxu0 0
  %162 = vmatpush1.bf16.msra.mxu0 %v144
  %163 = vmatprep.subr.bf16.mxu0 0
  %164 = vmatpush1.bf16.msra.mxu0 %v143
  %165 = vmatprep.subr.bf16.mxu0 0
  %166 = vmatpush1.bf16.msra.mxu0 %v142
  %167 = vmatprep.subr.bf16.mxu0 0
  %168 = vmatpush1.bf16.msra.mxu0 %v141
  %169 = vmatprep.subr.bf16.mxu0 0
  %170 = vmatpush2.bf16.msra.mxu0 0
  %171 = vmatprep.subr.bf16.mxu0 0
  %172 = vmatpush2.bf16.msra.mxu0 0
  %173 = vmatprep.subr.bf16.mxu0 0
  %174 = vmatpush2.bf16.msra.mxu0 0
  %175 = vmatprep.subr.bf16.mxu0 0
  %176 = vmatpush2.bf16.msra.mxu0 0
  %177 = vmatprep.subr.bf16.mxu0 0
  %178 = vmatpush2.bf16.msra.mxu0 0
  %179 = vmatprep.subr.bf16.mxu0 0
  %180 = vmatpush2.bf16.msra.mxu0 0
  %181 = vmatprep.subr.bf16.mxu0 0
  %182 = vmatpush2.bf16.msra.mxu0 0
  %183 = vmatprep.subr.bf16.mxu0 0
  %184 = vmatpush2.bf16.msra.mxu0 0
  %185 = vmatprep.mubr.bf16.mxu0 0
  %186 = vmatmul.mubr.bf16.gmra.mxu0 %v151
  %v187 = vpop.f32.mrf.mxu0
  %v188 = vadd.f32 %v123, %v187
  %v189 = vpop.f32.mrf.mxu0
  %v190 = vpop.f32.mrf.mxu0
  %v191 = vadd.f32 %v123, %v190
  %v192 = vpop.f32.mrf.mxu0
  %193 = vdwg.mxu0
  %v194 = vadd.f32 %v188, %v32
  %v195 = vadd.f32 %v191, %v33
  %v196 = vsel %vm62, %v194, 0.0
  %197 = vadd.xlane.f32.xlu0 %v196
  %v198 = vpop.xlane.xlu0 %197
  %v199 = vsel %vm62, %v195, 0.0
  %200 = vadd.xlane.f32.xlu0 %v199
  %v201 = vpop.xlane.xlu0 %200
  %v202 = vrcp.pop 32.0
  %v203 = vmul.f32 %v198, %v202
  %v204 = vmul.f32 %v201, %v202
  %v205 = vsub.f32 %v194, %v203
  %v206 = vsub.f32 %v195, %v204
  %v207 = vmul.f32 %v205, %v205
  %v208 = vmul.f32 %v206, %v206
  %v209 = vsel %vm62, %v207, 0.0
  %210 = vadd.xlane.f32.xlu0 %v209
  %v211 = vpop.xlane.xlu0 %210
  %v212 = vsel %vm62, %v208, 0.0
  %213 = vadd.xlane.f32.xlu0 %v212
  %v214 = vpop.xlane.xlu0 %213
  %v215 = vmul.f32 %v211, %v202
  %v216 = vmul.f32 %v214, %v202
  %v217 = vadd.f32 %v215, 1e-06
  %v218 = vadd.f32 %v216, 1e-06
  %v219 = vrsqrt.pop %v217
  %v220 = vrsqrt.pop %v218
  %v221 = vmul.f32 %v205, %v219
  %v222 = vmul.f32 %v206, %v220
  %v223 = vld [vmem:[%s6] sm:$0x1]
  %v225 = vlaneseq
  %v226 = vshrl.u32 %v225, 7
  %v227 = vsub.s32 0, %v226
  %v228 = vrot.slane %v223, %v227
  %v230 = vmul.f32 %v221, %v228
  %v231 = vmul.f32 %v222, %v228
  %v232 = vld [vmem:[%s7] sm:$0x1]
  %v234 = vlaneseq
  %v235 = vshrl.u32 %v234, 7
  %v236 = vsub.s32 0, %v235
  %v237 = vrot.slane %v232, %v236
  %v239 = vadd.f32 %v230, %v237
  %v240 = vadd.f32 %v231, %v237
  %v241 = vld [vmem:[%s1] sm:$0xff]
  %v242 = vld [vmem:[%s1 + $0x8] sm:$0xff]
  %244 = vset.pattern.permute.xlu0 0
  %245 = vperm.xlu0 %244, %v241
  %v246 = vpop.permute.xlu0 %245
  %249 = vset.pattern.permute.xlu0 0
  %250 = vperm.xlu0 %249, %v242
  %v251 = vpop.permute.xlu0 %250
  %v253 = vmul.f32 %v239, %v246
  %v254 = vmul.f32 %v240, %v251
  %v255 = vpack.c.bf16 %v254, %v253
  %v257 = vunpack.c.l.b16 %v255
  %v258 = vunpack.c.h.b16 %v255
  %v259 = vpack.c.b16 %v257, %v257
  %v260 = vpack.c.b16 %v258, %v258
  %vm263 = vcmask 257024
  %264 = vst.msk [vmem:[%s8] sm:$0xf] %vm263, %v259
  %265 = vst.msk [vmem:[%s8 + $0x4] sm:$0xf] %vm263, %v260
  // Predicated region
  $region34: #{_lambda_.12} parent=0 // pred_check
    _
  $region35: #{_lambda_.12} parent=0 // pred_check_branch
    %267 = sbr.rel (0) target = $region37
  $region36: #{_lambda_.12} parent=0 // pred_region
    _
  $region37: #{_lambda_.12} parent=0 // pred_fallthru
    _
  // Predicated region
  $region38: #{_lambda_.12} parent=0 // pred_check
    _
  $region39: #{_lambda_.12} parent=0 // pred_check_branch
    %269 = sbr.rel (0) target = $region41
  $region40: #{_lambda_.12} parent=0 // pred_region
    _
  $region41: #{_lambda_.12} parent=0 // pred_fallthru
    _

// kernel: _lambda_.11
$region0: #{_lambda_.11}
  #allocation0 [shape = 'u32[]', space=smem, size = 0x4, offset = 0x4, fixed_abs, tag = 'smem constant byte address 0x4 - core index']
  #allocation1 [shape = 'u32[144,128]{1,0:T(1,128)}', space=vmem, size = 0x12000, scoped, tag = 'internal scratch']
  %s0 = inlined_call_operand.vmem [shape: s32[2,1,8], index: 0, kind: input, shape index: {}]
  %s1 = inlined_call_operand.vmem [shape: bf16[2,8,32], index: 1, kind: input, shape index: {}]
  %s2 = inlined_call_operand.vmem [shape: f32[2,8,1], index: 2, kind: input, shape index: {}]
  %s3 = inlined_call_operand.vmem [shape: bf16[32,32], index: 3, kind: input, shape index: {}]
  %s4 = inlined_call_operand.vmem [shape: f32[1,32], index: 4, kind: input, shape index: {}]
  %s5 = inlined_call_operand.vmem [shape: bf16[32,64], index: 5, kind: input, shape index: {}]
  %s6 = inlined_call_operand.vmem [shape: f32[1,64], index: 6, kind: input, shape index: {}]
  %s7 = inlined_call_operand.vmem [shape: bf16[4,8,32], index: 7, kind: input, shape index: {}]
  %s8 = inlined_call_operand.vmem [shape: f32[1,32], index: 8, kind: input, shape index: {}]
  %s9 = inlined_call_operand.vmem [shape: f32[1,32], index: 9, kind: input, shape index: {}]
  %s10 = inlined_call_operand.vmem [shape: f32[1,32], index: 10, kind: input, shape index: {}]
  %s11 = inlined_call_operand.vmem [shape: f32[1,32], index: 11, kind: input, shape index: {}]
  %s12 = inlined_call_operand.vmem [shape: f32[1,32], index: 12, kind: input, shape index: {}]
  %s13 = inlined_call_operand.vmem [shape: bf16[2,8,32], index: 13, kind: output, shape index: {}]
  %s14 = sld [smem:[#allocation0]]
  $region85: #{_lambda_.11} parent=0
    _
  %s16 = ssub.s32 1, %s14
  %s17 = scalar_select 0, %s16, %s14
  loop: start=0, step=1, limit=4
  $region2: #{_lambda_.11} parent=0 // loop_pre_header
    _
  $region3: #{_lambda_.11} parent=0 // loop_header
    %s19 = sphi 0, %s23
    %p20 = scmp.ge.s32.totalorder %s19, 4
    %s26 = sphi 0, %s38
    %s27 = sphi 0, %s34
    %s28 = sphi 0, %s26
    %s29 = sphi 0, %s27
    %s30 = sphi 0, %s28
    %s31 = sphi 0, %s29
    %s41 = sphi 0, %s43
    %s44 = sphi 0, %s41
    %s45 = sphi 0, %s44
    %s61 = sphi 0, %s45
    %s67 = sphi 0, %s69
    %s70 = sphi 0, %s67
    %s71 = sphi 0, %s70
    %s87 = sphi 0, %s71
    %s95 = sphi 0, %s97
    %s98 = sphi 0, %s95
    %s99 = sphi 0, %s98
    %s115 = sphi 0, %s99
    %s119 = sphi 0, %s119
    %s121 = sphi 0, %s119
    %s122 = sphi 0, %s121
    %s136 = sphi 0, %s122
    %s140 = sphi 0, %s140
    %s142 = sphi 0, %s140
    %s143 = sphi 0, %s142
    %s157 = sphi 0, %s143
    %s161 = sphi 0, %s161
    %s163 = sphi 0, %s161
    %s164 = sphi 0, %s163
    %s178 = sphi 0, %s164
    %s182 = sphi 0, %s182
    %s184 = sphi 0, %s182
    %s185 = sphi 0, %s184
    %s199 = sphi 0, %s185
    %s203 = sphi 0, %s203
    %s205 = sphi 0, %s203
    %s206 = sphi 0, %s205
    %s220 = sphi 0, %s206
    %s224 = sphi 0, %s224
    %s226 = sphi 0, %s224
    %s227 = sphi 0, %s226
    %s241 = sphi 0, %s227
    %s245 = sphi 0, %s245
    %s247 = sphi 0, %s245
    %s248 = sphi 0, %s247
    %s262 = sphi 0, %s248
    %s266 = sphi 0, %s266
    %s268 = sphi 0, %s266
    %s269 = sphi 0, %s268
    %s283 = sphi 0, %s269
    %s287 = sphi 0, %s287
    %s289 = sphi 0, %s287
    %s290 = sphi 0, %s289
    %s304 = sphi 0, %s290
    %s308 = sphi 0, %s308
    %s310 = sphi 0, %s308
    %s311 = sphi 0, %s310
    %s325 = sphi 0, %s311
    %s333 = sphi 0, %s335
    %s336 = sphi 0, %s333
    %s337 = sphi 0, %s336
    %s353 = sphi 0, %s337
  $region4: #{_lambda_.11} parent=0 // loop_header_branch
    %22 = sbr.rel (%p20) target = $region8
  $region5: #{_lambda_.11} parent=0 // loop_body
    %s24 = ssub.s32 %s19, 1
    %s25 = ssub.s32 %s19, 2
    %s32 = sadd.s32 1, %s27
    %p33 = scmp.ge.s32.totalorder %s32, 1
    %s34 = scalar_select %p33, 0, %s32
    %s35 = sadd.s32 1, %s26
    %s36 = scalar_select %p33, %s35, %s26
    %p37 = scmp.ge.s32.totalorder %s36, 2
    %s38 = scalar_select %p37, 0, %s36
    %s39 = ssub.s32 %s26, %s38
    %p40 = scmp.eq.s32.totalorder %s39, 0
    %s42 = sadd.s32 %s41, 1
    %s43 = scalar_select %p40, %s41, %s42
    %p46 = pneg %p40
    %p47 = scmp.eq.s32.totalorder %s19, 1
    %p48 = por %p46, %p47
    %p49 = scmp.ne.s32.totalorder %s41, %s44
    %p50 = scmp.eq.s32.totalorder %s19, 0
    %p51 = por %p49, %p50
    %p52 = scmp.ne.s32.totalorder %s41, %s44
    %p53 = scmp.eq.s32.totalorder %s24, 1
    %p54 = por %p52, %p53
    %p55 = scmp.ne.s32.totalorder %s44, %s45
    %p56 = scmp.eq.s32.totalorder %s24, 0
    %p57 = por %p55, %p56
    %p58 = scmp.ne.s32.totalorder %s44, %s45
    %p59 = scmp.eq.s32.totalorder %s25, 1
    %p60 = por %p58, %p59
    %p62 = scmp.ne.s32.totalorder %s45, %s61
    %p63 = scmp.eq.s32.totalorder %s25, 0
    %p64 = por %p62, %p63
    %s65 = ssub.s32 %s26, %s38
    %p66 = scmp.eq.s32.totalorder %s65, 0
    %s68 = sadd.s32 %s67, 1
    %s69 = scalar_select %p66, %s67, %s68
    %p72 = pneg %p66
    %p73 = scmp.eq.s32.totalorder %s19, 1
    %p74 = por %p72, %p73
    %p75 = scmp.ne.s32.totalorder %s67, %s70
    %p76 = scmp.eq.s32.totalorder %s19, 0
    %p77 = por %p75, %p76
    %p78 = scmp.ne.s32.totalorder %s67, %s70
    %p79 = scmp.eq.s32.totalorder %s24, 1
    %p80 = por %p78, %p79
    %p81 = scmp.ne.s32.totalorder %s70, %s71
    %p82 = scmp.eq.s32.totalorder %s24, 0
    %p83 = por %p81, %p82
    %p84 = scmp.ne.s32.totalorder %s70, %s71
    %p85 = scmp.eq.s32.totalorder %s25, 1
    %p86 = por %p84, %p85
    %p88 = scmp.ne.s32.totalorder %s71, %s87
    %p89 = scmp.eq.s32.totalorder %s25, 0
    %p90 = por %p88, %p89
    %s91 = ssub.s32 %s26, %s38
    %s92 = ssub.s32 %s27, %s34
    %s93 = sor.u32 %s91, %s92
    %p94 = scmp.eq.s32.totalorder %s93, 0
    %s96 = sadd.s32 %s95, 1
    %s97 = scalar_select %p94, %s95, %s96
    %p100 = pneg %p94
    %p101 = scmp.eq.s32.totalorder %s19, 1
    %p102 = por %p100, %p101
    %p103 = scmp.ne.s32.totalorder %s95, %s98
    %p104 = scmp.eq.s32.totalorder %s19, 0
    %p105 = por %p103, %p104
    %p106 = scmp.ne.s32.totalorder %s95, %s98
    %p107 = scmp.eq.s32.totalorder %s24, 1
    %p108 = por %p106, %p107
    %p109 = scmp.ne.s32.totalorder %s98, %s99
    %p110 = scmp.eq.s32.totalorder %s24, 0
    %p111 = por %p109, %p110
    %p112 = scmp.ne.s32.totalorder %s98, %s99
    %p113 = scmp.eq.s32.totalorder %s25, 1
    %p114 = por %p112, %p113
    %p116 = scmp.ne.s32.totalorder %s99, %s115
    %p117 = scmp.eq.s32.totalorder %s25, 0
    %p118 = por %p116, %p117
    %s120 = sadd.s32 %s119, 1
    %p123 = scmp.eq.s32.totalorder %s19, 1
    %p124 = scmp.ne.s32.totalorder %s119, %s121
    %p125 = scmp.eq.s32.totalorder %s19, 0
    %p126 = por %p124, %p125
    %p127 = scmp.ne.s32.totalorder %s119, %s121
    %p128 = scmp.eq.s32.totalorder %s24, 1
    %p129 = por %p127, %p128
    %p130 = scmp.ne.s32.totalorder %s121, %s122
    %p131 = scmp.eq.s32.totalorder %s24, 0
    %p132 = por %p130, %p131
    %p133 = scmp.ne.s32.totalorder %s121, %s122
    %p134 = scmp.eq.s32.totalorder %s25, 1
    %p135 = por %p133, %p134
    %p137 = scmp.ne.s32.totalorder %s122, %s136
    %p138 = scmp.eq.s32.totalorder %s25, 0
    %p139 = por %p137, %p138
    %s141 = sadd.s32 %s140, 1
    %p144 = scmp.eq.s32.totalorder %s19, 1
    %p145 = scmp.ne.s32.totalorder %s140, %s142
    %p146 = scmp.eq.s32.totalorder %s19, 0
    %p147 = por %p145, %p146
    %p148 = scmp.ne.s32.totalorder %s140, %s142
    %p149 = scmp.eq.s32.totalorder %s24, 1
    %p150 = por %p148, %p149
    %p151 = scmp.ne.s32.totalorder %s142, %s143
    %p152 = scmp.eq.s32.totalorder %s24, 0
    %p153 = por %p151, %p152
    %p154 = scmp.ne.s32.totalorder %s142, %s143
    %p155 = scmp.eq.s32.totalorder %s25, 1
    %p156 = por %p154, %p155
    %p158 = scmp.ne.s32.totalorder %s143, %s157
    %p159 = scmp.eq.s32.totalorder %s25, 0
    %p160 = por %p158, %p159
    %s162 = sadd.s32 %s161, 1
    %p165 = scmp.eq.s32.totalorder %s19, 1
    %p166 = scmp.ne.s32.totalorder %s161, %s163
    %p167 = scmp.eq.s32.totalorder %s19, 0
    %p168 = por %p166, %p167
    %p169 = scmp.ne.s32.totalorder %s161, %s163
    %p170 = scmp.eq.s32.totalorder %s24, 1
    %p171 = por %p169, %p170
    %p172 = scmp.ne.s32.totalorder %s163, %s164
    %p173 = scmp.eq.s32.totalorder %s24, 0
    %p174 = por %p172, %p173
    %p175 = scmp.ne.s32.totalorder %s163, %s164
    %p176 = scmp.eq.s32.totalorder %s25, 1
    %p177 = por %p175, %p176
    %p179 = scmp.ne.s32.totalorder %s164, %s178
    %p180 = scmp.eq.s32.totalorder %s25, 0
    %p181 = por %p179, %p180
    %s183 = sadd.s32 %s182, 1
    %p186 = scmp.eq.s32.totalorder %s19, 1
    %p187 = scmp.ne.s32.totalorder %s182, %s184
    %p188 = scmp.eq.s32.totalorder %s19, 0
    %p189 = por %p187, %p188
    %p190 = scmp.ne.s32.totalorder %s182, %s184
    %p191 = scmp.eq.s32.totalorder %s24, 1
    %p192 = por %p190, %p191
    %p193 = scmp.ne.s32.totalorder %s184, %s185
    %p194 = scmp.eq.s32.totalorder %s24, 0
    %p195 = por %p193, %p194
    %p196 = scmp.ne.s32.totalorder %s184, %s185
    %p197 = scmp.eq.s32.totalorder %s25, 1
    %p198 = por %p196, %p197
    %p200 = scmp.ne.s32.totalorder %s185, %s199
    %p201 = scmp.eq.s32.totalorder %s25, 0
    %p202 = por %p200, %p201
    %s204 = sadd.s32 %s203, 1
    %p207 = scmp.eq.s32.totalorder %s19, 1
    %p208 = scmp.ne.s32.totalorder %s203, %s205
    %p209 = scmp.eq.s32.totalorder %s19, 0
    %p210 = por %p208, %p209
    %p211 = scmp.ne.s32.totalorder %s203, %s205
    %p212 = scmp.eq.s32.totalorder %s24, 1
    %p213 = por %p211, %p212
    %p214 = scmp.ne.s32.totalorder %s205, %s206
    %p215 = scmp.eq.s32.totalorder %s24, 0
    %p216 = por %p214, %p215
    %p217 = scmp.ne.s32.totalorder %s205, %s206
    %p218 = scmp.eq.s32.totalorder %s25, 1
    %p219 = por %p217, %p218
    %p221 = scmp.ne.s32.totalorder %s206, %s220
    %p222 = scmp.eq.s32.totalorder %s25, 0
    %p223 = por %p221, %p222
    %s225 = sadd.s32 %s224, 1
    %p228 = scmp.eq.s32.totalorder %s19, 1
    %p229 = scmp.ne.s32.totalorder %s224, %s226
    %p230 = scmp.eq.s32.totalorder %s19, 0
    %p231 = por %p229, %p230
    %p232 = scmp.ne.s32.totalorder %s224, %s226
    %p233 = scmp.eq.s32.totalorder %s24, 1
    %p234 = por %p232, %p233
    %p235 = scmp.ne.s32.totalorder %s226, %s227
    %p236 = scmp.eq.s32.totalorder %s24, 0
    %p237 = por %p235, %p236
    %p238 = scmp.ne.s32.totalorder %s226, %s227
    %p239 = scmp.eq.s32.totalorder %s25, 1
    %p240 = por %p238, %p239
    %p242 = scmp.ne.s32.totalorder %s227, %s241
    %p243 = scmp.eq.s32.totalorder %s25, 0
    %p244 = por %p242, %p243
    %s246 = sadd.s32 %s245, 1
    %p249 = scmp.eq.s32.totalorder %s19, 1
    %p250 = scmp.ne.s32.totalorder %s245, %s247
    %p251 = scmp.eq.s32.totalorder %s19, 0
    %p252 = por %p250, %p251
    %p253 = scmp.ne.s32.totalorder %s245, %s247
    %p254 = scmp.eq.s32.totalorder %s24, 1
    %p255 = por %p253, %p254
    %p256 = scmp.ne.s32.totalorder %s247, %s248
    %p257 = scmp.eq.s32.totalorder %s24, 0
    %p258 = por %p256, %p257
    %p259 = scmp.ne.s32.totalorder %s247, %s248
    %p260 = scmp.eq.s32.totalorder %s25, 1
    %p261 = por %p259, %p260
    %p263 = scmp.ne.s32.totalorder %s248, %s262
    %p264 = scmp.eq.s32.totalorder %s25, 0
    %p265 = por %p263, %p264
    %s267 = sadd.s32 %s266, 1
    %p270 = scmp.eq.s32.totalorder %s19, 1
    %p271 = scmp.ne.s32.totalorder %s266, %s268
    %p272 = scmp.eq.s32.totalorder %s19, 0
    %p273 = por %p271, %p272
    %p274 = scmp.ne.s32.totalorder %s266, %s268
    %p275 = scmp.eq.s32.totalorder %s24, 1
    %p276 = por %p274, %p275
    %p277 = scmp.ne.s32.totalorder %s268, %s269
    %p278 = scmp.eq.s32.totalorder %s24, 0
    %p279 = por %p277, %p278
    %p280 = scmp.ne.s32.totalorder %s268, %s269
    %p281 = scmp.eq.s32.totalorder %s25, 1
    %p282 = por %p280, %p281
    %p284 = scmp.ne.s32.totalorder %s269, %s283
    %p285 = scmp.eq.s32.totalorder %s25, 0
    %p286 = por %p284, %p285
    %s288 = sadd.s32 %s287, 1
    %p291 = scmp.eq.s32.totalorder %s19, 1
    %p292 = scmp.ne.s32.totalorder %s287, %s289
    %p293 = scmp.eq.s32.totalorder %s19, 0
    %p294 = por %p292, %p293
    %p295 = scmp.ne.s32.totalorder %s287, %s289
    %p296 = scmp.eq.s32.totalorder %s24, 1
    %p297 = por %p295, %p296
    %p298 = scmp.ne.s32.totalorder %s289, %s290
    %p299 = scmp.eq.s32.totalorder %s24, 0
    %p300 = por %p298, %p299
    %p301 = scmp.ne.s32.totalorder %s289, %s290
    %p302 = scmp.eq.s32.totalorder %s25, 1
    %p303 = por %p301, %p302
    %p305 = scmp.ne.s32.totalorder %s290, %s304
    %p306 = scmp.eq.s32.totalorder %s25, 0
    %p307 = por %p305, %p306
    %s309 = sadd.s32 %s308, 1
    %p312 = scmp.eq.s32.totalorder %s19, 1
    %p313 = scmp.ne.s32.totalorder %s308, %s310
    %p314 = scmp.eq.s32.totalorder %s19, 0
    %p315 = por %p313, %p314
    %p316 = scmp.ne.s32.totalorder %s308, %s310
    %p317 = scmp.eq.s32.totalorder %s24, 1
    %p318 = por %p316, %p317
    %p319 = scmp.ne.s32.totalorder %s310, %s311
    %p320 = scmp.eq.s32.totalorder %s24, 0
    %p321 = por %p319, %p320
    %p322 = scmp.ne.s32.totalorder %s310, %s311
    %p323 = scmp.eq.s32.totalorder %s25, 1
    %p324 = por %p322, %p323
    %p326 = scmp.ne.s32.totalorder %s311, %s325
    %p327 = scmp.eq.s32.totalorder %s25, 0
    %p328 = por %p326, %p327
    %s329 = ssub.s32 %s26, %s38
    %s330 = ssub.s32 %s27, %s34
    %s331 = sor.u32 %s329, %s330
    %p332 = scmp.eq.s32.totalorder %s331, 0
    %s334 = sadd.s32 %s333, 1
    %s335 = scalar_select %p332, %s333, %s334
    %p338 = pneg %p332
    %p339 = scmp.eq.s32.totalorder %s19, 1
    %p340 = por %p338, %p339
    %p341 = scmp.ne.s32.totalorder %s333, %s336
    %p342 = scmp.eq.s32.totalorder %s19, 0
    %p343 = por %p341, %p342
    %p344 = scmp.ne.s32.totalorder %s333, %s336
    %p345 = scmp.eq.s32.totalorder %s24, 1
    %p346 = por %p344, %p345
    %p347 = scmp.ne.s32.totalorder %s336, %s337
    %p348 = scmp.eq.s32.totalorder %s24, 0
    %p349 = por %p347, %p348
    %p350 = scmp.ne.s32.totalorder %s336, %s337
    %p351 = scmp.eq.s32.totalorder %s25, 1
    %p352 = por %p350, %p351
    %p354 = scmp.ne.s32.totalorder %s337, %s353
    %p355 = scmp.eq.s32.totalorder %s25, 0
    %p356 = por %p354, %p355
    %p357 = scmp.le.s32.totalorder 1, %s19
    %p358 = scmp.lt.s32.totalorder %s19, 3
    %p359 = pnand %p357, %p358
    %p360 = pneg %p359
    // Predicated region
    $region9: #{_lambda_.11} parent=5 // pred_check
      _
    $region10: #{_lambda_.11} parent=5 // pred_check_branch
      %362 = sbr.rel (%p359) target = $region12
    $region11: #{_lambda_.11} parent=5 // pred_region
      %s363 = ssub.s32 %s19, 1
      // Predicated region
      $region13: #{_lambda_.11} parent=11 // pred_check
        %p364 = pneg %p132
      $region14: #{_lambda_.11} parent=11 // pred_check_branch
        %366 = sbr.rel (%p364) target = $region16
      $region15: #{_lambda_.11} parent=11 // pred_region
        _
      $region16: #{_lambda_.11} parent=11 // pred_fallthru
        _
      // Predicated region
      $region17: #{_lambda_.11} parent=11 // pred_check
        %p367 = pneg %p153
      $region18: #{_lambda_.11} parent=11 // pred_check_branch
        %369 = sbr.rel (%p367) target = $region20
      $region19: #{_lambda_.11} parent=11 // pred_region
        _
      $region20: #{_lambda_.11} parent=11 // pred_fallthru
        _
      // Predicated region
      $region21: #{_lambda_.11} parent=11 // pred_check
        %p370 = pneg %p174
      $region22: #{_lambda_.11} parent=11 // pred_check_branch
        %372 = sbr.rel (%p370) target = $region24
      $region23: #{_lambda_.11} parent=11 // pred_region
        _
      $region24: #{_lambda_.11} parent=11 // pred_fallthru
        _
      // Predicated region
      $region25: #{_lambda_.11} parent=11 // pred_check
        %p373 = pneg %p195
      $region26: #{_lambda_.11} parent=11 // pred_check_branch
        %375 = sbr.rel (%p373) target = $region28
      $region27: #{_lambda_.11} parent=11 // pred_region
        _
      $region28: #{_lambda_.11} parent=11 // pred_fallthru
        _
      // Predicated region
      $region29: #{_lambda_.11} parent=11 // pred_check
        %p376 = pneg %p216
      $region30: #{_lambda_.11} parent=11 // pred_check_branch
        %378 = sbr.rel (%p376) target = $region32
      $region31: #{_lambda_.11} parent=11 // pred_region
        _
      $region32: #{_lambda_.11} parent=11 // pred_fallthru
        _
      // Predicated region
      $region33: #{_lambda_.11} parent=11 // pred_check
        %p379 = pneg %p237
      $region34: #{_lambda_.11} parent=11 // pred_check_branch
        %381 = sbr.rel (%p379) target = $region36
      $region35: #{_lambda_.11} parent=11 // pred_region
        _
      $region36: #{_lambda_.11} parent=11 // pred_fallthru
        _
      // Predicated region
      $region37: #{_lambda_.11} parent=11 // pred_check
        %p382 = pneg %p258
      $region38: #{_lambda_.11} parent=11 // pred_check_branch
        %384 = sbr.rel (%p382) target = $region40
      $region39: #{_lambda_.11} parent=11 // pred_region
        _
      $region40: #{_lambda_.11} parent=11 // pred_fallthru
        _
      // Predicated region
      $region41: #{_lambda_.11} parent=11 // pred_check
        %p385 = pneg %p279
      $region42: #{_lambda_.11} parent=11 // pred_check_branch
        %387 = sbr.rel (%p385) target = $region44
      $region43: #{_lambda_.11} parent=11 // pred_region
        _
      $region44: #{_lambda_.11} parent=11 // pred_fallthru
        _
      // Predicated region
      $region45: #{_lambda_.11} parent=11 // pred_check
        %p388 = pneg %p300
      $region46: #{_lambda_.11} parent=11 // pred_check_branch
        %390 = sbr.rel (%p388) target = $region48
      $region47: #{_lambda_.11} parent=11 // pred_region
        _
      $region48: #{_lambda_.11} parent=11 // pred_fallthru
        _
      // Predicated region
      $region49: #{_lambda_.11} parent=11 // pred_check
        %p391 = pneg %p321
      $region50: #{_lambda_.11} parent=11 // pred_check_branch
        %393 = sbr.rel (%p391) target = $region52
      $region51: #{_lambda_.11} parent=11 // pred_region
        _
      $region52: #{_lambda_.11} parent=11 // pred_fallthru
        _
    $region12: #{_lambda_.11} parent=5 // pred_fallthru
      _
    %p394 = scmp.lt.s32.totalorder %s19, 2
    // Predicated region
    $region53: #{_lambda_.11} parent=5 // pred_check
      %p395 = pneg %p394
    $region54: #{_lambda_.11} parent=5 // pred_check_branch
      %397 = sbr.rel (%p395) target = $region56
    $region55: #{_lambda_.11} parent=5 // pred_region
      // Predicated region
      $region57: #{_lambda_.11} parent=55 // pred_check
        %p398 = pneg %p51
      $region58: #{_lambda_.11} parent=55 // pred_check_branch
        %400 = sbr.rel (%p398) target = $region60
      $region59: #{_lambda_.11} parent=55 // pred_region
        %p401 = scmp.lt.s32.totalorder %s26, 1
        %s402 = scalar_select %p401, %s26, 1
        %s403 = scalar_lea.vmem %s0, %s402
      $region60: #{_lambda_.11} parent=55 // pred_fallthru
        _
      // Predicated region
      $region61: #{_lambda_.11} parent=55 // pred_check
        %p404 = pneg %p77
      $region62: #{_lambda_.11} parent=55 // pred_check_branch
        %406 = sbr.rel (%p404) target = $region64
      $region63: #{_lambda_.11} parent=55 // pred_region
        %p407 = scmp.lt.s32.totalorder %s26, 1
        %s408 = scalar_select %p407, %s26, 1
        %s409 = smul.addr %s408, 4
        %s410 = scalar_lea.vmem %s1, %s409
      $region64: #{_lambda_.11} parent=55 // pred_fallthru
        _
      // Predicated region
      $region65: #{_lambda_.11} parent=55 // pred_check
        %p411 = pneg %p105
      $region66: #{_lambda_.11} parent=55 // pred_check_branch
        %413 = sbr.rel (%p411) target = $region68
      $region67: #{_lambda_.11} parent=55 // pred_region
        %p414 = scmp.lt.s32.totalorder %s26, 1
        %s415 = scalar_select %p414, %s26, 1
        %p416 = scmp.lt.s32.totalorder %s27, 0
        %s417 = scalar_select %p416, %s27, 0
        %s418 = sadd.s32 %s417, %s415
        %s419 = smul.addr %s418, 8
        %s420 = scalar_lea.vmem %s2, %s419
      $region68: #{_lambda_.11} parent=55 // pred_fallthru
        _
    $region56: #{_lambda_.11} parent=5 // pred_fallthru
      _
    %p421 = scmp.le.s32.totalorder 1, %s19
    %p422 = scmp.lt.s32.totalorder %s19, 3
    %p423 = pnand %p421, %p422
    %p424 = pneg %p423
    // Predicated region
    $region69: #{_lambda_.11} parent=5 // pred_check
      _
    $region70: #{_lambda_.11} parent=5 // pred_check_branch
      %426 = sbr.rel (%p423) target = $region72
    $region71: #{_lambda_.11} parent=5 // pred_region
      %s427 = ssub.s32 %s19, 1
      %p428 = scmp.lt.s32.totalorder %s28, 1
      %s429 = scalar_select %p428, %s28, 1
      %s430 = scalar_lea.vmem %s0, %s429
      %p431 = pneg %p57
      %p432 = pneg %p54
      %p433 = scmp.lt.s32.totalorder %s28, 1
      %s434 = scalar_select %p433, %s28, 1
      %s435 = smul.addr %s434, 4
      %s436 = scalar_lea.vmem %s1, %s435
      %p437 = pneg %p83
      %p438 = pneg %p80
      %p439 = scmp.lt.s32.totalorder %s28, 1
      %s440 = scalar_select %p439, %s28, 1
      %p441 = scmp.lt.s32.totalorder %s29, 0
      %s442 = scalar_select %p441, %s29, 0
      %s443 = sadd.s32 %s442, %s440
      %s444 = smul.addr %s443, 8
      %s445 = scalar_lea.vmem %s2, %s444
      %p446 = pneg %p111
      %p447 = pneg %p108
      %p448 = pneg %p132
      %p449 = pneg %p129
      %p450 = pneg %p153
      %p451 = pneg %p150
      %p452 = pneg %p174
      %p453 = pneg %p171
      %p454 = pneg %p195
      %p455 = pneg %p192
      %p456 = pneg %p216
      %p457 = pneg %p213
      %p458 = pneg %p237
      %p459 = pneg %p234
      %p460 = pneg %p258
      %p461 = pneg %p255
      %p462 = pneg %p279
      %p463 = pneg %p276
      %p464 = pneg %p300
      %p465 = pneg %p297
      %p466 = pneg %p321
      %p467 = pneg %p318
      %p468 = pneg %p349
      %p469 = pneg %p346
      %p470 = scmp.lt.s32.totalorder %s28, 1
      %s471 = scalar_select %p470, %s28, 1
      %p472 = scmp.lt.s32.totalorder %s29, 0
      %s473 = scalar_select %p472, %s29, 0
      %s474 = sadd.s32 %s473, %s471
      %s475 = smul.addr %s474, 4
      %s476 = scalar_lea.vmem %s13, %s475
      %p477 = scmp.lt.s32.totalorder %s28, 1
      %s478 = scalar_select %p477, %s28, 1
      %s479 = scalar_lea.vmem %s0, %s478
      %p480 = scmp.lt.s32.totalorder %s28, 1
      %s481 = scalar_select %p480, %s28, 1
      %s482 = smul.addr %s481, 4
      %s483 = scalar_lea.vmem %s1, %s482
      %p484 = scmp.lt.s32.totalorder %s28, 1
      %s485 = scalar_select %p484, %s28, 1
      %p486 = scmp.lt.s32.totalorder %s29, 0
      %s487 = scalar_select %p486, %s29, 0
      %s488 = sadd.s32 %s487, %s485
      %s489 = smul.addr %s488, 8
      %s490 = scalar_lea.vmem %s2, %s489
      %p491 = scmp.lt.s32.totalorder %s28, 1
      %s492 = scalar_select %p491, %s28, 1
      %p493 = scmp.lt.s32.totalorder %s29, 0
      %s494 = scalar_select %p493, %s29, 0
      %s495 = sadd.s32 %s494, %s492
      %s496 = smul.addr %s495, 4
      %s497 = scalar_lea.vmem %s13, %s496
      %v499 = vld [vmem:[%s483] sm:$0xf]
      %v500 = vunpack.c.l.bf16 %v499
      %vm501 = vcmask 261120
      %v502 = vsel %vm501, %v500, 0.0
      %503 = vadd.xlane.f32.xlu0 %v502
      %v504 = vpop.xlane.xlu0 %503
      %v505 = vrcp.pop 32.0
      %v506 = vmul.f32 %v504, %v505
      %v507 = vsub.f32 %v500, %v506
      %v508 = vmul.f32 %v507, %v507
      %v509 = vsel %vm501, %v508, 0.0
      %510 = vadd.xlane.f32.xlu0 %v509
      %v511 = vpop.xlane.xlu0 %510
      %v512 = vmul.f32 %v511, %v505
      %v513 = vadd.f32 %v512, 1e-06
      %v514 = vrsqrt.pop %v513
      %v515 = vmul.f32 %v507, %v514
      %v516 = vld [vmem:[%s9] sm:$0x1]
      %v518 = vlaneseq
      %v519 = vshrl.u32 %v518, 7
      %v520 = vsub.s32 0, %v519
      %v521 = vrot.slane %v516, %v520
      %v523 = vmul.f32 %v515, %v521
      %v524 = vld [vmem:[%s10] sm:$0x1]
      %v526 = vlaneseq
      %v527 = vshrl.u32 %v526, 7
      %v528 = vsub.s32 0, %v527
      %v529 = vrot.slane %v524, %v528
      %v531 = vadd.f32 %v523, %v529
      %v532 = vpack.c.bf16 %v531, %v531
      %v533 = vld [vmem:[%s3] sm:$0xf]
      %v534 = vld [vmem:[%s3 + $0x4] sm:$0xf]
      %v535 = vld [vmem:[%s3 + $0x8] sm:$0xf]
      %v536 = vld [vmem:[%s3 + $0xc] sm:$0xf]
      %v537 = vld [vmem:[%s4] sm:$0x1]
      %v539 = vlaneseq
      %v540 = vshrl.u32 %v539, 7
      %v541 = vsub.s32 0, %v540
      %v542 = vrot.slane %v537, %v541
      %v548 = vunpack.c.l.b16 %v533
      %v549 = vunpack.c.l.b16 %v534
      %v550 = vunpack.c.l.b16 %v535
      %v551 = vunpack.c.l.b16 %v536
      %v552 = vpack.c.b16 %v549, %v548
      %v553 = vpack.c.b16 %v551, %v550
      %v557 = vsel %vm501, %v532, 0
      %559 = vmatprep.subr.bf16.mxu0 0
      %560 = vmatpush1.bf16.msra.mxu0 0
      %561 = vmatprep.subr.bf16.mxu0 0
      %562 = vmatpush1.bf16.msra.mxu0 0
      %563 = vmatprep.subr.bf16.mxu0 0
      %564 = vmatpush1.bf16.msra.mxu0 0
      %565 = vmatprep.subr.bf16.mxu0 0
      %566 = vmatpush1.bf16.msra.mxu0 0
      %567 = vmatprep.subr.bf16.mxu0 0
      %568 = vmatpush1.bf16.msra.mxu0 0
      %569 = vmatprep.subr.bf16.mxu0 0
      %570 = vmatpush1.bf16.msra.mxu0 0
      %571 = vmatprep.subr.bf16.mxu0 0
      %572 = vmatpush1.bf16.msra.mxu0 %v553
      %573 = vmatprep.subr.bf16.mxu0 0
      %574 = vmatpush1.bf16.msra.mxu0 %v552
      %575 = vmatprep.subr.bf16.mxu0 0
      %576 = vmatpush2.bf16.msra.mxu0 0
      %577 = vmatprep.subr.bf16.mxu0 0
      %578 = vmatpush2.bf16.msra.mxu0 0
      %579 = vmatprep.subr.bf16.mxu0 0
      %580 = vmatpush2.bf16.msra.mxu0 0
      %581 = vmatprep.subr.bf16.mxu0 0
      %582 = vmatpush2.bf16.msra.mxu0 0
      %583 = vmatprep.subr.bf16.mxu0 0
      %584 = vmatpush2.bf16.msra.mxu0 0
      %585 = vmatprep.subr.bf16.mxu0 0
      %586 = vmatpush2.bf16.msra.mxu0 0
      %587 = vmatprep.subr.bf16.mxu0 0
      %588 = vmatpush2.bf16.msra.mxu0 0
      %589 = vmatprep.subr.bf16.mxu0 0
      %590 = vmatpush2.bf16.msra.mxu0 0
      %591 = vmatprep.mubr.bf16.mxu0 0
      %592 = vmatmul.mubr.bf16.gmra.mxu0 %v557
      %v593 = vpop.f32.mrf.mxu0
      %v594 = vadd.f32 %v542, %v593
      %v595 = vpop.f32.mrf.mxu0
      %v596 = vpop.f32.mrf.mxu0
      %v597 = vpop.f32.mrf.mxu0
      %598 = vdwg.mxu0
      %v599 = vld [vmem:[%s5] sm:$0xf]
      %v600 = vld [vmem:[%s5 + $0x4] sm:$0xf]
      %v601 = vld [vmem:[%s5 + $0x8] sm:$0xf]
      %v602 = vld [vmem:[%s5 + $0xc] sm:$0xf]
      %v603 = vld [vmem:[%s6] sm:$0x1]
      %v605 = vlaneseq
      %v606 = vshrl.u32 %v605, 7
      %v607 = vsub.s32 0, %v606
      %v608 = vrot.slane %v603, %v607
      %v614 = vunpack.c.l.b16 %v599
      %v615 = vunpack.c.l.b16 %v600
      %v616 = vunpack.c.l.b16 %v601
      %v617 = vunpack.c.l.b16 %v602
      %v618 = vpack.c.b16 %v615, %v614
      %v619 = vpack.c.b16 %v617, %v616
      %622 = vmatprep.subr.bf16.mxu0 0
      %623 = vmatpush1.bf16.msra.mxu0 0
      %624 = vmatprep.subr.bf16.mxu0 0
      %625 = vmatpush1.bf16.msra.mxu0 0
      %626 = vmatprep.subr.bf16.mxu0 0
      %627 = vmatpush1.bf16.msra.mxu0 0
      %628 = vmatprep.subr.bf16.mxu0 0
      %629 = vmatpush1.bf16.msra.mxu0 0
      %630 = vmatprep.subr.bf16.mxu0 0
      %631 = vmatpush1.bf16.msra.mxu0 0
      %632 = vmatprep.subr.bf16.mxu0 0
      %633 = vmatpush1.bf16.msra.mxu0 0
      %634 = vmatprep.subr.bf16.mxu0 0
      %635 = vmatpush1.bf16.msra.mxu0 %v619
      %636 = vmatprep.subr.bf16.mxu0 0
      %637 = vmatpush1.bf16.msra.mxu0 %v618
      %638 = vmatprep.subr.bf16.mxu0 0
      %639 = vmatpush2.bf16.msra.mxu0 0
      %640 = vmatprep.subr.bf16.mxu0 0
      %641 = vmatpush2.bf16.msra.mxu0 0
      %642 = vmatprep.subr.bf16.mxu0 0
      %643 = vmatpush2.bf16.msra.mxu0 0
      %644 = vmatprep.subr.bf16.mxu0 0
      %645 = vmatpush2.bf16.msra.mxu0 0
      %646 = vmatprep.subr.bf16.mxu0 0
      %647 = vmatpush2.bf16.msra.mxu0 0
      %648 = vmatprep.subr.bf16.mxu0 0
      %649 = vmatpush2.bf16.msra.mxu0 0
      %650 = vmatprep.subr.bf16.mxu0 0
      %651 = vmatpush2.bf16.msra.mxu0 0
      %652 = vmatprep.subr.bf16.mxu0 0
      %653 = vmatpush2.bf16.msra.mxu0 0
      %654 = vmatprep.mubr.bf16.mxu0 0
      %655 = vmatmul.mubr.bf16.gmra.mxu0 %v557
      %v656 = vpop.f32.mrf.mxu0
      %v657 = vadd.f32 %v608, %v656
      %v658 = vpop.f32.mrf.mxu0
      %v659 = vpop.f32.mrf.mxu0
      %v660 = vpop.f32.mrf.mxu0
      %661 = vdwg.mxu0
      %v662 = vpack.c.bf16 %v594, %v594
      %v663 = vpack.c.bf16 %v657, %v657
      %v664 = vld [vmem:[%s479] sm:$0x1]
      %vm665 = vcmp.eq.s32.totalorder %v664, 0
      %v666 = vsel %vm665, -1e+09, 0.0
      %v668 = vlaneseq
      %v669 = vshrl.u32 %v668, 7
      %v670 = vsub.s32 0, %v669
      %v671 = vrot.slane %v666, %v670
      %vm673 = vcmask 64512
      %v675 = vsel %vm673, %v662, 0
      %v678 = vsel %vm673, %v663, 0
      %680 = vmatprep.subr.bf16.mxu0 0
      %681 = vmatpush1.bf16.xpose.msra.mxu0 0
      %682 = vmatprep.subr.bf16.mxu0 0
      %683 = vmatpush1.bf16.xpose.msra.mxu0 0
      %684 = vmatprep.subr.bf16.mxu0 0
      %685 = vmatpush1.bf16.xpose.msra.mxu0 0
      %686 = vmatprep.subr.bf16.mxu0 0
      %687 = vmatpush1.bf16.xpose.msra.mxu0 0
      %688 = vmatprep.subr.bf16.mxu0 0
      %689 = vmatpush1.bf16.xpose.msra.mxu0 0
      %690 = vmatprep.subr.bf16.mxu0 0
      %691 = vmatpush1.bf16.xpose.msra.mxu0 0
      %692 = vmatprep.subr.bf16.mxu0 0
      %693 = vmatpush1.bf16.xpose.msra.mxu0 0
      %694 = vmatprep.subr.bf16.mxu0 0
      %695 = vmatpush1.bf16.xpose.msra.mxu0 %v678
      %696 = vmatprep.subr.bf16.mxu0 0
      %697 = vmatpush2.bf16.xpose.msra.mxu0 0
      %698 = vmatprep.subr.bf16.mxu0 0
      %699 = vmatpush2.bf16.xpose.msra.mxu0 0
      %700 = vmatprep.subr.bf16.mxu0 0
      %701 = vmatpush2.bf16.xpose.msra.mxu0 0
      %702 = vmatprep.subr.bf16.mxu0 0
      %703 = vmatpush2.bf16.xpose.msra.mxu0 0
      %704 = vmatprep.subr.bf16.mxu0 0
      %705 = vmatpush2.bf16.xpose.msra.mxu0 0
      %706 = vmatprep.subr.bf16.mxu0 0
      %707 = vmatpush2.bf16.xpose.msra.mxu0 0
      %708 = vmatprep.subr.bf16.mxu0 0
      %709 = vmatpush2.bf16.xpose.msra.mxu0 0
      %710 = vmatprep.subr.bf16.mxu0 0
      %711 = vmatpush2.bf16.xpose.msra.mxu0 0
      %712 = vmatprep.mubr.bf16.mxu0 0
      %713 = vmatmul.mubr.bf16.gmra.mxu0 %v675
      %v714 = vpop.f32.mrf.mxu0
      %v715 = vadd.f32 %v671, %v714
      %v716 = vpop.f32.mrf.mxu0
      %v717 = vpop.f32.mrf.mxu0
      %v718 = vpop.f32.mrf.mxu0
      %719 = vdwg.mxu0
      %v720 = vsel %vm673, %v715, -inf
      %721 = vmax.xlane.f32.xlu0 %v720
      %v722 = vpop.xlane.xlu0 %721
      %v723 = vsub.f32 %v715, %v722
      %v724 = vmul.f32 %v723, 1.442695
      %v725 = vpow.pop %v724
      %v726 = vsel %vm673, %v725, 0.0
      %727 = vadd.xlane.f32.xlu0 %v726
      %v728 = vpop.xlane.xlu0 %727
      %v729 = vrcp.pop %v728
      %v730 = vmul.f32 %v725, %v729
      %v731 = vpack.c.bf16 %v730, %v730
      %733 = vrot.lane.b32.xlu0 %v663, 96
      %v734 = vpop.permute.xlu0 %733
      %v736 = vsel %vm673, %v731, 0
      %vm738 = vcmask 1043456
      %v740 = vsel %vm738, %v734, 0
      %742 = vmatprep.subr.bf16.mxu0 0
      %743 = vmatpush1.bf16.msra.mxu0 0
      %744 = vmatprep.subr.bf16.mxu0 0
      %745 = vmatpush1.bf16.msra.mxu0 0
      %746 = vmatprep.subr.bf16.mxu0 0
      %747 = vmatpush1.bf16.msra.mxu0 0
      %748 = vmatprep.subr.bf16.mxu0 0
      %749 = vmatpush1.bf16.msra.mxu0 0
      %750 = vmatprep.subr.bf16.mxu0 0
      %751 = vmatpush1.bf16.msra.mxu0 0
      %752 = vmatprep.subr.bf16.mxu0 0
      %753 = vmatpush1.bf16.msra.mxu0 0
      %754 = vmatprep.subr.bf16.mxu0 0
      %755 = vmatpush1.bf16.msra.mxu0 0
      %756 = vmatprep.subr.bf16.mxu0 0
      %757 = vmatpush1.bf16.msra.mxu0 %v740
      %758 = vmatprep.subr.bf16.mxu0 0
      %759 = vmatpush2.bf16.msra.mxu0 0
      %760 = vmatprep.subr.bf16.mxu0 0
      %761 = vmatpush2.bf16.msra.mxu0 0
      %762 = vmatprep.subr.bf16.mxu0 0
      %763 = vmatpush2.bf16.msra.mxu0 0
      %764 = vmatprep.subr.bf16.mxu0 0
      %765 = vmatpush2.bf16.msra.mxu0 0
      %766 = vmatprep.subr.bf16.mxu0 0
      %767 = vmatpush2.bf16.msra.mxu0 0
      %768 = vmatprep.subr.bf16.mxu0 0
      %769 = vmatpush2.bf16.msra.mxu0 0
      %770 = vmatprep.subr.bf16.mxu0 0
      %771 = vmatpush2.bf16.msra.mxu0 0
      %772 = vmatprep.subr.bf16.mxu0 0
      %773 = vmatpush2.bf16.msra.mxu0 0
      %774 = vmatprep.mubr.bf16.mxu0 0
      %775 = vmatmul.mubr.bf16.gmra.mxu0 %v736
      %v776 = vpop.f32.mrf.mxu0
      %v777 = vadd.f32 0.0, %v776
      %v778 = vpop.f32.mrf.mxu0
      %v779 = vpop.f32.mrf.mxu0
      %v780 = vpop.f32.mrf.mxu0
      %781 = vdwg.mxu0
      %v782 = vpack.c.bf16 %v777, %v777
      %v783 = vld [vmem:[%s7] sm:$0xf]
      %785 = vrot.lane.b32.xlu0 %v662, 120
      %v786 = vpop.permute.xlu0 %785
      %787 = vrot.lane.b32.xlu0 %v663, 120
      %v788 = vpop.permute.xlu0 %787
      %v790 = vsel %vm673, %v786, 0
      %v793 = vsel %vm673, %v788, 0
      %795 = vmatprep.subr.bf16.mxu0 0
      %796 = vmatpush1.bf16.xpose.msra.mxu0 0
      %797 = vmatprep.subr.bf16.mxu0 0
      %798 = vmatpush1.bf16.xpose.msra.mxu0 0
      %799 = vmatprep.subr.bf16.mxu0 0
      %800 = vmatpush1.bf16.xpose.msra.mxu0 0
      %801 = vmatprep.subr.bf16.mxu0 0
      %802 = vmatpush1.bf16.xpose.msra.mxu0 0
      %803 = vmatprep.subr.bf16.mxu0 0
      %804 = vmatpush1.bf16.xpose.msra.mxu0 0
      %805 = vmatprep.subr.bf16.mxu0 0
      %806 = vmatpush1.bf16.xpose.msra.mxu0 0
      %807 = vmatprep.subr.bf16.mxu0 0
      %808 = vmatpush1.bf16.xpose.msra.mxu0 0
      %809 = vmatprep.subr.bf16.mxu0 0
      %810 = vmatpush1.bf16.xpose.msra.mxu0 %v793
      %811 = vmatprep.subr.bf16.mxu0 0
      %812 = vmatpush2.bf16.xpose.msra.mxu0 0
      %813 = vmatprep.subr.bf16.mxu0 0
      %814 = vmatpush2.bf16.xpose.msra.mxu0 0
      %815 = vmatprep.subr.bf16.mxu0 0
      %816 = vmatpush2.bf16.xpose.msra.mxu0 0
      %817 = vmatprep.subr.bf16.mxu0 0
      %818 = vmatpush2.bf16.xpose.msra.mxu0 0
      %819 = vmatprep.subr.bf16.mxu0 0
      %820 = vmatpush2.bf16.xpose.msra.mxu0 0
      %821 = vmatprep.subr.bf16.mxu0 0
      %822 = vmatpush2.bf16.xpose.msra.mxu0 0
      %823 = vmatprep.subr.bf16.mxu0 0
      %824 = vmatpush2.bf16.xpose.msra.mxu0 0
      %825 = vmatprep.subr.bf16.mxu0 0
      %826 = vmatpush2.bf16.xpose.msra.mxu0 0
      %827 = vmatprep.mubr.bf16.mxu0 0
      %828 = vmatmul.mubr.bf16.gmra.mxu0 %v790
      %v829 = vpop.f32.mrf.mxu0
      %v830 = vadd.f32 %v671, %v829
      %v831 = vpop.f32.mrf.mxu0
      %v832 = vpop.f32.mrf.mxu0
      %v833 = vpop.f32.mrf.mxu0
      %834 = vdwg.mxu0
      %v835 = vsel %vm673, %v830, -inf
      %836 = vmax.xlane.f32.xlu0 %v835
      %v837 = vpop.xlane.xlu0 %836
      %v838 = vsub.f32 %v830, %v837
      %v839 = vmul.f32 %v838, 1.442695
      %v840 = vpow.pop %v839
      %v841 = vsel %vm673, %v840, 0.0
      %842 = vadd.xlane.f32.xlu0 %v841
      %v843 = vpop.xlane.xlu0 %842
      %v844 = vrcp.pop %v843
      %v845 = vmul.f32 %v840, %v844
      %v846 = vpack.c.bf16 %v845, %v845
      %847 = vrot.lane.b32.xlu0 %v663, 88
      %v848 = vpop.permute.xlu0 %847
      %v850 = vsel %vm673, %v846, 0
      %v853 = vsel %vm738, %v848, 0
      %855 = vmatprep.subr.bf16.mxu0 0
      %856 = vmatpush1.bf16.msra.mxu0 0
      %857 = vmatprep.subr.bf16.mxu0 0
      %858 = vmatpush1.bf16.msra.mxu0 0
      %859 = vmatprep.subr.bf16.mxu0 0
      %860 = vmatpush1.bf16.msra.mxu0 0
      %861 = vmatprep.subr.bf16.mxu0 0
      %862 = vmatpush1.bf16.msra.mxu0 0
      %863 = vmatprep.subr.bf16.mxu0 0
      %864 = vmatpush1.bf16.msra.mxu0 0
      %865 = vmatprep.subr.bf16.mxu0 0
      %866 = vmatpush1.bf16.msra.mxu0 0
      %867 = vmatprep.subr.bf16.mxu0 0
      %868 = vmatpush1.bf16.msra.mxu0 0
      %869 = vmatprep.subr.bf16.mxu0 0
      %870 = vmatpush1.bf16.msra.mxu0 %v853
      %871 = vmatprep.subr.bf16.mxu0 0
      %872 = vmatpush2.bf16.msra.mxu0 0
      %873 = vmatprep.subr.bf16.mxu0 0
      %874 = vmatpush2.bf16.msra.mxu0 0
      %875 = vmatprep.subr.bf16.mxu0 0
      %876 = vmatpush2.bf16.msra.mxu0 0
      %877 = vmatprep.subr.bf16.mxu0 0
      %878 = vmatpush2.bf16.msra.mxu0 0
      %879 = vmatprep.subr.bf16.mxu0 0
      %880 = vmatpush2.bf16.msra.mxu0 0
      %881 = vmatprep.subr.bf16.mxu0 0
      %882 = vmatpush2.bf16.msra.mxu0 0
      %883 = vmatprep.subr.bf16.mxu0 0
      %884 = vmatpush2.bf16.msra.mxu0 0
      %885 = vmatprep.subr.bf16.mxu0 0
      %886 = vmatpush2.bf16.msra.mxu0 0
      %887 = vmatprep.mubr.bf16.mxu0 0
      %888 = vmatmul.mubr.bf16.gmra.mxu0 %v850
      %v889 = vpop.f32.mrf.mxu0
      %v890 = vadd.f32 0.0, %v889
      %v891 = vpop.f32.mrf.mxu0
      %v892 = vpop.f32.mrf.mxu0
      %v893 = vpop.f32.mrf.mxu0
      %894 = vdwg.mxu0
      %v895 = vpack.c.bf16 %v890, %v890
      %s896 = scalar_lea.vmem %s7, 4
      %v897 = vld [vmem:[%s896] sm:$0xf]
      %v899 = vsel %vm673, %v895, 0
      %v902 = vsel %vm738, %v897, 0
      %904 = vmatprep.subr.bf16.mxu0 0
      %905 = vmatpush1.bf16.msra.mxu0 0
      %906 = vmatprep.subr.bf16.mxu0 0
      %907 = vmatpush1.bf16.msra.mxu0 0
      %908 = vmatprep.subr.bf16.mxu0 0
      %909 = vmatpush1.bf16.msra.mxu0 0
      %910 = vmatprep.subr.bf16.mxu0 0
      %911 = vmatpush1.bf16.msra.mxu0 0
      %912 = vmatprep.subr.bf16.mxu0 0
      %913 = vmatpush1.bf16.msra.mxu0 0
      %914 = vmatprep.subr.bf16.mxu0 0
      %915 = vmatpush1.bf16.msra.mxu0 0
      %916 = vmatprep.subr.bf16.mxu0 0
      %917 = vmatpush1.bf16.msra.mxu0 0
      %918 = vmatprep.subr.bf16.mxu0 0
      %919 = vmatpush1.bf16.msra.mxu0 %v902
      %920 = vmatprep.subr.bf16.mxu0 0
      %921 = vmatpush2.bf16.msra.mxu0 0
      %922 = vmatprep.subr.bf16.mxu0 0
      %923 = vmatpush2.bf16.msra.mxu0 0
      %924 = vmatprep.subr.bf16.mxu0 0
      %925 = vmatpush2.bf16.msra.mxu0 0
      %926 = vmatprep.subr.bf16.mxu0 0
      %927 = vmatpush2.bf16.msra.mxu0 0
      %928 = vmatprep.subr.bf16.mxu0 0
      %929 = vmatpush2.bf16.msra.mxu0 0
      %930 = vmatprep.subr.bf16.mxu0 0
      %931 = vmatpush2.bf16.msra.mxu0 0
      %932 = vmatprep.subr.bf16.mxu0 0
      %933 = vmatpush2.bf16.msra.mxu0 0
      %934 = vmatprep.subr.bf16.mxu0 0
      %935 = vmatpush2.bf16.msra.mxu0 0
      %936 = vmatprep.mubr.bf16.mxu0 0
      %937 = vmatmul.mubr.bf16.gmra.mxu0 %v899
      %v938 = vpop.f32.mrf.mxu0
      %v939 = vadd.f32 0.0, %v938
      %v940 = vpop.f32.mrf.mxu0
      %v941 = vpop.f32.mrf.mxu0
      %v942 = vpop.f32.mrf.mxu0
      %943 = vdwg.mxu0
      %v945 = vsel %vm673, %v782, 0
      %v948 = vsel %vm738, %v783, 0
      %950 = vmatprep.subr.bf16.mxu0 0
      %951 = vmatpush1.bf16.msra.mxu0 0
      %952 = vmatprep.subr.bf16.mxu0 0
      %953 = vmatpush1.bf16.msra.mxu0 0
      %954 = vmatprep.subr.bf16.mxu0 0
      %955 = vmatpush1.bf16.msra.mxu0 0
      %956 = vmatprep.subr.bf16.mxu0 0
      %957 = vmatpush1.bf16.msra.mxu0 0
      %958 = vmatprep.subr.bf16.mxu0 0
      %959 = vmatpush1.bf16.msra.mxu0 0
      %960 = vmatprep.subr.bf16.mxu0 0
      %961 = vmatpush1.bf16.msra.mxu0 0
      %962 = vmatprep.subr.bf16.mxu0 0
      %963 = vmatpush1.bf16.msra.mxu0 0
      %964 = vmatprep.subr.bf16.mxu0 0
      %965 = vmatpush1.bf16.msra.mxu0 %v948
      %966 = vmatprep.subr.bf16.mxu0 0
      %967 = vmatpush2.bf16.msra.mxu0 0
      %968 = vmatprep.subr.bf16.mxu0 0
      %969 = vmatpush2.bf16.msra.mxu0 0
      %970 = vmatprep.subr.bf16.mxu0 0
      %971 = vmatpush2.bf16.msra.mxu0 0
      %972 = vmatprep.subr.bf16.mxu0 0
      %973 = vmatpush2.bf16.msra.mxu0 0
      %974 = vmatprep.subr.bf16.mxu0 0
      %975 = vmatpush2.bf16.msra.mxu0 0
      %976 = vmatprep.subr.bf16.mxu0 0
      %977 = vmatpush2.bf16.msra.mxu0 0
      %978 = vmatprep.subr.bf16.mxu0 0
      %979 = vmatpush2.bf16.msra.mxu0 0
      %980 = vmatprep.subr.bf16.mxu0 0
      %981 = vmatpush2.bf16.msra.mxu0 0
      %982 = vmatprep.mubr.bf16.mxu0 0
      %983 = vmatmul.mubr.bf16.gmra.mxu0 %v945
      %v984 = vpop.f32.mrf.mxu0
      %v985 = vadd.f32 %v939, %v984
      %v986 = vpop.f32.mrf.mxu0
      %v987 = vpop.f32.mrf.mxu0
      %v988 = vpop.f32.mrf.mxu0
      %989 = vdwg.mxu0
      %990 = vrot.lane.b32.xlu0 %v662, 112
      %v991 = vpop.permute.xlu0 %990
      %992 = vrot.lane.b32.xlu0 %v663, 112
      %v993 = vpop.permute.xlu0 %992
      %v995 = vsel %vm673, %v991, 0
      %v998 = vsel %vm673, %v993, 0
      %1000 = vmatprep.subr.bf16.mxu0 0
      %1001 = vmatpush1.bf16.xpose.msra.mxu0 0
      %1002 = vmatprep.subr.bf16.mxu0 0
      %1003 = vmatpush1.bf16.xpose.msra.mxu0 0
      %1004 = vmatprep.subr.bf16.mxu0 0
      %1005 = vmatpush1.bf16.xpose.msra.mxu0 0
      %1006 = vmatprep.subr.bf16.mxu0 0
      %1007 = vmatpush1.bf16.xpose.msra.mxu0 0
      %1008 = vmatprep.subr.bf16.mxu0 0
      %1009 = vmatpush1.bf16.xpose.msra.mxu0 0
      %1010 = vmatprep.subr.bf16.mxu0 0
      %1011 = vmatpush1.bf16.xpose.msra.mxu0 0
      %1012 = vmatprep.subr.bf16.mxu0 0
      %1013 = vmatpush1.bf16.xpose.msra.mxu0 0
      %1014 = vmatprep.subr.bf16.mxu0 0
      %1015 = vmatpush1.bf16.xpose.msra.mxu0 %v998
      %1016 = vmatprep.subr.bf16.mxu0 0
      %1017 = vmatpush2.bf16.xpose.msra.mxu0 0
      %1018 = vmatprep.subr.bf16.mxu0 0
      %1019 = vmatpush2.bf16.xpose.msra.mxu0 0
      %1020 = vmatprep.subr.bf16.mxu0 0
      %1021 = vmatpush2.bf16.xpose.msra.mxu0 0
      %1022 = vmatprep.subr.bf16.mxu0 0
      %1023 = vmatpush2.bf16.xpose.msra.mxu0 0
      %1024 = vmatprep.subr.bf16.mxu0 0
      %1025 = vmatpush2.bf16.xpose.msra.mxu0 0
      %1026 = vmatprep.subr.bf16.mxu0 0
      %1027 = vmatpush2.bf16.xpose.msra.mxu0 0
      %1028 = vmatprep.subr.bf16.mxu0 0
      %1029 = vmatpush2.bf16.xpose.msra.mxu0 0
      %1030 = vmatprep.subr.bf16.mxu0 0
      %1031 = vmatpush2.bf16.xpose.msra.mxu0 0
      %1032 = vmatprep.mubr.bf16.mxu0 0
      %1033 = vmatmul.mubr.bf16.gmra.mxu0 %v995
      %v1034 = vpop.f32.mrf.mxu0
      %v1035 = vadd.f32 %v671, %v1034
      %v1036 = vpop.f32.mrf.mxu0
      %v1037 = vpop.f32.mrf.mxu0
      %v1038 = vpop.f32.mrf.mxu0
      %1039 = vdwg.mxu0
      %v1040 = vsel %vm673, %v1035, -inf
      %1041 = vmax.xlane.f32.xlu0 %v1040
      %v1042 = vpop.xlane.xlu0 %1041
      %v1043 = vsub.f32 %v1035, %v1042
      %v1044 = vmul.f32 %v1043, 1.442695
      %v1045 = vpow.pop %v1044
      %v1046 = vsel %vm673, %v1045, 0.0
      %1047 = vadd.xlane.f32.xlu0 %v1046
      %v1048 = vpop.xlane.xlu0 %1047
      %v1049 = vrcp.pop %v1048
      %v1050 = vmul.f32 %v1045, %v1049
      %v1051 = vpack.c.bf16 %v1050, %v1050
      %1052 = vrot.lane.b32.xlu0 %v663, 80
      %v1053 = vpop.permute.xlu0 %1052
      %v1055 = vsel %vm673, %v1051, 0
      %v1058 = vsel %vm738, %v1053, 0
      %1060 = vmatprep.subr.bf16.mxu0 0
      %1061 = vmatpush1.bf16.msra.mxu0 0
      %1062 = vmatprep.subr.bf16.mxu0 0
      %1063 = vmatpush1.bf16.msra.mxu0 0
      %1064 = vmatprep.subr.bf16.mxu0 0
      %1065 = vmatpush1.bf16.msra.mxu0 0
      %1066 = vmatprep.subr.bf16.mxu0 0
      %1067 = vmatpush1.bf16.msra.mxu0 0
      %1068 = vmatprep.subr.bf16.mxu0 0
      %1069 = vmatpush1.bf16.msra.mxu0 0
      %1070 = vmatprep.subr.bf16.mxu0 0
      %1071 = vmatpush1.bf16.msra.mxu0 0
      %1072 = vmatprep.subr.bf16.mxu0 0
      %1073 = vmatpush1.bf16.msra.mxu0 0
      %1074 = vmatprep.subr.bf16.mxu0 0
      %1075 = vmatpush1.bf16.msra.mxu0 %v1058
      %1076 = vmatprep.subr.bf16.mxu0 0
      %1077 = vmatpush2.bf16.msra.mxu0 0
      %1078 = vmatprep.subr.bf16.mxu0 0
      %1079 = vmatpush2.bf16.msra.mxu0 0
      %1080 = vmatprep.subr.bf16.mxu0 0
      %1081 = vmatpush2.bf16.msra.mxu0 0
      %1082 = vmatprep.subr.bf16.mxu0 0
      %1083 = vmatpush2.bf16.msra.mxu0 0
      %1084 = vmatprep.subr.bf16.mxu0 0
      %1085 = vmatpush2.bf16.msra.mxu0 0
      %1086 = vmatprep.subr.bf16.mxu0 0
      %1087 = vmatpush2.bf16.msra.mxu0 0
      %1088 = vmatprep.subr.bf16.mxu0 0
      %1089 = vmatpush2.bf16.msra.mxu0 0
      %1090 = vmatprep.subr.bf16.mxu0 0
      %1091 = vmatpush2.bf16.msra.mxu0 0
      %1092 = vmatprep.mubr.bf16.mxu0 0
      %1093 = vmatmul.mubr.bf16.gmra.mxu0 %v1055
      %v1094 = vpop.f32.mrf.mxu0
      %v1095 = vadd.f32 0.0, %v1094
      %v1096 = vpop.f32.mrf.mxu0
      %v1097 = vpop.f32.mrf.mxu0
      %v1098 = vpop.f32.mrf.mxu0
      %1099 = vdwg.mxu0
      %v1100 = vpack.c.bf16 %v1095, %v1095
      %s1101 = scalar_lea.vmem %s7, 8
      %v1102 = vld [vmem:[%s1101] sm:$0xf]
      %v1104 = vsel %vm673, %v1100, 0
      %v1107 = vsel %vm738, %v1102, 0
      %1109 = vmatprep.subr.bf16.mxu0 0
      %1110 = vmatpush1.bf16.msra.mxu0 0
      %1111 = vmatprep.subr.bf16.mxu0 0
      %1112 = vmatpush1.bf16.msra.mxu0 0
      %1113 = vmatprep.subr.bf16.mxu0 0
      %1114 = vmatpush1.bf16.msra.mxu0 0
      %1115 = vmatprep.subr.bf16.mxu0 0
      %1116 = vmatpush1.bf16.msra.mxu0 0
      %1117 = vmatprep.subr.bf16.mxu0 0
      %1118 = vmatpush1.bf16.msra.mxu0 0
      %1119 = vmatprep.subr.bf16.mxu0 0
      %1120 = vmatpush1.bf16.msra.mxu0 0
      %1121 = vmatprep.subr.bf16.mxu0 0
      %1122 = vmatpush1.bf16.msra.mxu0 0
      %1123 = vmatprep.subr.bf16.mxu0 0
      %1124 = vmatpush1.bf16.msra.mxu0 %v1107
      %1125 = vmatprep.subr.bf16.mxu0 0
      %1126 = vmatpush2.bf16.msra.mxu0 0
      %1127 = vmatprep.subr.bf16.mxu0 0
      %1128 = vmatpush2.bf16.msra.mxu0 0
      %1129 = vmatprep.subr.bf16.mxu0 0
      %1130 = vmatpush2.bf16.msra.mxu0 0
      %1131 = vmatprep.subr.bf16.mxu0 0
      %1132 = vmatpush2.bf16.msra.mxu0 0
      %1133 = vmatprep.subr.bf16.mxu0 0
      %1134 = vmatpush2.bf16.msra.mxu0 0
      %1135 = vmatprep.subr.bf16.mxu0 0
      %1136 = vmatpush2.bf16.msra.mxu0 0
      %1137 = vmatprep.subr.bf16.mxu0 0
      %1138 = vmatpush2.bf16.msra.mxu0 0
      %1139 = vmatprep.subr.bf16.mxu0 0
      %1140 = vmatpush2.bf16.msra.mxu0 0
      %1141 = vmatprep.mubr.bf16.mxu0 0
      %1142 = vmatmul.mubr.bf16.gmra.mxu0 %v1104
      %v1143 = vpop.f32.mrf.mxu0
      %v1144 = vadd.f32 0.0, %v1143
      %v1145 = vpop.f32.mrf.mxu0
      %v1146 = vpop.f32.mrf.mxu0
      %v1147 = vpop.f32.mrf.mxu0
      %1148 = vdwg.mxu0
      %v1149 = vadd.f32 %v985, %v1144
      %1150 = vrot.lane.b32.xlu0 %v662, 104
      %v1151 = vpop.permute.xlu0 %1150
      %1152 = vrot.lane.b32.xlu0 %v663, 104
      %v1153 = vpop.permute.xlu0 %1152
      %v1155 = vsel %vm673, %v1151, 0
      %v1158 = vsel %vm673, %v1153, 0
      %1160 = vmatprep.subr.bf16.mxu0 0
      %1161 = vmatpush1.bf16.xpose.msra.mxu0 0
      %1162 = vmatprep.subr.bf16.mxu0 0
      %1163 = vmatpush1.bf16.xpose.msra.mxu0 0
      %1164 = vmatprep.subr.bf16.mxu0 0
      %1165 = vmatpush1.bf16.xpose.msra.mxu0 0
      %1166 = vmatprep.subr.bf16.mxu0 0
      %1167 = vmatpush1.bf16.xpose.msra.mxu0 0
      %1168 = vmatprep.subr.bf16.mxu0 0
      %1169 = vmatpush1.bf16.xpose.msra.mxu0 0
      %1170 = vmatprep.subr.bf16.mxu0 0
      %1171 = vmatpush1.bf16.xpose.msra.mxu0 0
      %1172 = vmatprep.subr.bf16.mxu0 0
      %1173 = vmatpush1.bf16.xpose.msra.mxu0 0
      %1174 = vmatprep.subr.bf16.mxu0 0
      %1175 = vmatpush1.bf16.xpose.msra.mxu0 %v1158
      %1176 = vmatprep.subr.bf16.mxu0 0
      %1177 = vmatpush2.bf16.xpose.msra.mxu0 0
      %1178 = vmatprep.subr.bf16.mxu0 0
      %1179 = vmatpush2.bf16.xpose.msra.mxu0 0
      %1180 = vmatprep.subr.bf16.mxu0 0
      %1181 = vmatpush2.bf16.xpose.msra.mxu0 0
      %1182 = vmatprep.subr.bf16.mxu0 0
      %1183 = vmatpush2.bf16.xpose.msra.mxu0 0
      %1184 = vmatprep.subr.bf16.mxu0 0
      %1185 = vmatpush2.bf16.xpose.msra.mxu0 0
      %1186 = vmatprep.subr.bf16.mxu0 0
      %1187 = vmatpush2.bf16.xpose.msra.mxu0 0
      %1188 = vmatprep.subr.bf16.mxu0 0
      %1189 = vmatpush2.bf16.xpose.msra.mxu0 0
      %1190 = vmatprep.subr.bf16.mxu0 0
      %1191 = vmatpush2.bf16.xpose.msra.mxu0 0
      %1192 = vmatprep.mubr.bf16.mxu0 0
      %1193 = vmatmul.mubr.bf16.gmra.mxu0 %v1155
      %v1194 = vpop.f32.mrf.mxu0
      %v1195 = vadd.f32 %v671, %v1194
      %v1196 = vpop.f32.mrf.mxu0
      %v1197 = vpop.f32.mrf.mxu0
      %v1198 = vpop.f32.mrf.mxu0
      %1199 = vdwg.mxu0
      %v1200 = vsel %vm673, %v1195, -inf
      %1201 = vmax.xlane.f32.xlu0 %v1200
      %v1202 = vpop.xlane.xlu0 %1201
      %v1203 = vsub.f32 %v1195, %v1202
      %v1204 = vmul.f32 %v1203, 1.442695
      %v1205 = vpow.pop %v1204
      %v1206 = vsel %vm673, %v1205, 0.0
      %1207 = vadd.xlane.f32.xlu0 %v1206
      %v1208 = vpop.xlane.xlu0 %1207
      %v1209 = vrcp.pop %v1208
      %v1210 = vmul.f32 %v1205, %v1209
      %v1211 = vpack.c.bf16 %v1210, %v1210
      %1212 = vrot.lane.b32.xlu0 %v663, 72
      %v1213 = vpop.permute.xlu0 %1212
      %v1215 = vsel %vm673, %v1211, 0
      %v1218 = vsel %vm738, %v1213, 0
      %1220 = vmatprep.subr.bf16.mxu0 0
      %1221 = vmatpush1.bf16.msra.mxu0 0
      %1222 = vmatprep.subr.bf16.mxu0 0
      %1223 = vmatpush1.bf16.msra.mxu0 0
      %1224 = vmatprep.subr.bf16.mxu0 0
      %1225 = vmatpush1.bf16.msra.mxu0 0
      %1226 = vmatprep.subr.bf16.mxu0 0
      %1227 = vmatpush1.bf16.msra.mxu0 0
      %1228 = vmatprep.subr.bf16.mxu0 0
      %1229 = vmatpush1.bf16.msra.mxu0 0
      %1230 = vmatprep.subr.bf16.mxu0 0
      %1231 = vmatpush1.bf16.msra.mxu0 0
      %1232 = vmatprep.subr.bf16.mxu0 0
      %1233 = vmatpush1.bf16.msra.mxu0 0
      %1234 = vmatprep.subr.bf16.mxu0 0
      %1235 = vmatpush1.bf16.msra.mxu0 %v1218
      %1236 = vmatprep.subr.bf16.mxu0 0
      %1237 = vmatpush2.bf16.msra.mxu0 0
      %1238 = vmatprep.subr.bf16.mxu0 0
      %1239 = vmatpush2.bf16.msra.mxu0 0
      %1240 = vmatprep.subr.bf16.mxu0 0
      %1241 = vmatpush2.bf16.msra.mxu0 0
      %1242 = vmatprep.subr.bf16.mxu0 0
      %1243 = vmatpush2.bf16.msra.mxu0 0
      %1244 = vmatprep.subr.bf16.mxu0 0
      %1245 = vmatpush2.bf16.msra.mxu0 0
      %1246 = vmatprep.subr.bf16.mxu0 0
      %1247 = vmatpush2.bf16.msra.mxu0 0
      %1248 = vmatprep.subr.bf16.mxu0 0
      %1249 = vmatpush2.bf16.msra.mxu0 0
      %1250 = vmatprep.subr.bf16.mxu0 0
      %1251 = vmatpush2.bf16.msra.mxu0 0
      %1252 = vmatprep.mubr.bf16.mxu0 0
      %1253 = vmatmul.mubr.bf16.gmra.mxu0 %v1215
      %v1254 = vpop.f32.mrf.mxu0
      %v1255 = vadd.f32 0.0, %v1254
      %v1256 = vpop.f32.mrf.mxu0
      %v1257 = vpop.f32.mrf.mxu0
      %v1258 = vpop.f32.mrf.mxu0
      %1259 = vdwg.mxu0
      %v1260 = vpack.c.bf16 %v1255, %v1255
      %s1261 = scalar_lea.vmem %s7, 12
      %v1262 = vld [vmem:[%s1261] sm:$0xf]
      %v1264 = vsel %vm673, %v1260, 0
      %v1267 = vsel %vm738, %v1262, 0
      %1269 = vmatprep.subr.bf16.mxu0 0
      %1270 = vmatpush1.bf16.msra.mxu0 0
      %1271 = vmatprep.subr.bf16.mxu0 0
      %1272 = vmatpush1.bf16.msra.mxu0 0
      %1273 = vmatprep.subr.bf16.mxu0 0
      %1274 = vmatpush1.bf16.msra.mxu0 0
      %1275 = vmatprep.subr.bf16.mxu0 0
      %1276 = vmatpush1.bf16.msra.mxu0 0
      %1277 = vmatprep.subr.bf16.mxu0 0
      %1278 = vmatpush1.bf16.msra.mxu0 0
      %1279 = vmatprep.subr.bf16.mxu0 0
      %1280 = vmatpush1.bf16.msra.mxu0 0
      %1281 = vmatprep.subr.bf16.mxu0 0
      %1282 = vmatpush1.bf16.msra.mxu0 0
      %1283 = vmatprep.subr.bf16.mxu0 0
      %1284 = vmatpush1.bf16.msra.mxu0 %v1267
      %1285 = vmatprep.subr.bf16.mxu0 0
      %1286 = vmatpush2.bf16.msra.mxu0 0
      %1287 = vmatprep.subr.bf16.mxu0 0
      %1288 = vmatpush2.bf16.msra.mxu0 0
      %1289 = vmatprep.subr.bf16.mxu0 0
      %1290 = vmatpush2.bf16.msra.mxu0 0
      %1291 = vmatprep.subr.bf16.mxu0 0
      %1292 = vmatpush2.bf16.msra.mxu0 0
      %1293 = vmatprep.subr.bf16.mxu0 0
      %1294 = vmatpush2.bf16.msra.mxu0 0
      %1295 = vmatprep.subr.bf16.mxu0 0
      %1296 = vmatpush2.bf16.msra.mxu0 0
      %1297 = vmatprep.subr.bf16.mxu0 0
      %1298 = vmatpush2.bf16.msra.mxu0 0
      %1299 = vmatprep.subr.bf16.mxu0 0
      %1300 = vmatpush2.bf16.msra.mxu0 0
      %1301 = vmatprep.mubr.bf16.mxu0 0
      %1302 = vmatmul.mubr.bf16.gmra.mxu0 %v1264
      %v1303 = vpop.f32.mrf.mxu0
      %v1304 = vadd.f32 0.0, %v1303
      %v1305 = vpop.f32.mrf.mxu0
      %v1306 = vpop.f32.mrf.mxu0
      %v1307 = vpop.f32.mrf.mxu0
      %1308 = vdwg.mxu0
      %v1309 = vadd.f32 %v1149, %v1304
      %v1310 = vld [vmem:[%s8] sm:$0x1]
      %v1312 = vlaneseq
      %v1313 = vshrl.u32 %v1312, 7
      %v1314 = vsub.s32 0, %v1313
      %v1315 = vrot.slane %v1310, %v1314
      %v1317 = vadd.f32 %v1309, %v1315
      %v1318 = vadd.f32 %v1317, %v531
      %v1319 = vsel %vm501, %v1318, 0.0
      %1320 = vadd.xlane.f32.xlu0 %v1319
      %v1321 = vpop.xlane.xlu0 %1320
      %v1322 = vmul.f32 %v1321, %v505
      %v1323 = vsub.f32 %v1318, %v1322
      %v1324 = vmul.f32 %v1323, %v1323
      %v1325 = vsel %vm501, %v1324, 0.0
      %1326 = vadd.xlane.f32.xlu0 %v1325
      %v1327 = vpop.xlane.xlu0 %1326
      %v1328 = vmul.f32 %v1327, %v505
      %v1329 = vadd.f32 %v1328, 1e-06
      %v1330 = vrsqrt.pop %v1329
      %v1331 = vmul.f32 %v1323, %v1330
      %v1332 = vld [vmem:[%s11] sm:$0x1]
      %v1334 = vlaneseq
      %v1335 = vshrl.u32 %v1334, 7
      %v1336 = vsub.s32 0, %v1335
      %v1337 = vrot.slane %v1332, %v1336
      %v1339 = vmul.f32 %v1331, %v1337
      %v1340 = vld [vmem:[%s12] sm:$0x1]
      %v1342 = vlaneseq
      %v1343 = vshrl.u32 %v1342, 7
      %v1344 = vsub.s32 0, %v1343
      %v1345 = vrot.slane %v1340, %v1344
      %v1347 = vadd.f32 %v1339, %v1345
      %v1348 = vld [vmem:[%s490] sm:$0xff]
      %1350 = vset.pattern.permute.xlu0 0
      %1351 = vperm.xlu0 %1350, %v1348
      %v1352 = vpop.permute.xlu0 %1351
      %v1354 = vmul.f32 %v1347, %v1352
      %v1355 = vpack.c.bf16 %v1354, %v1354
      %vm1356 = vcmask 257024
      %1357 = vst.msk [vmem:[%s497] sm:$0xf] %vm1356, %v1355
      %p1358 = scmp.lt.s32.totalorder %s28, 1
      %s1359 = scalar_select %p1358, %s28, 1
      %p1360 = scmp.lt.s32.totalorder %s29, 0
      %s1361 = scalar_select %p1360, %s29, 0
      %s1362 = sadd.s32 %s1361, %s1359
      %s1363 = smul.addr %s1362, 4
      %s1364 = scalar_lea.vmem %s13, %s1363
      // Predicated region
      $region73: #{_lambda_.11} parent=71 // pred_check
        %p1365 = pneg %p346
      $region74: #{_lambda_.11} parent=71 // pred_check_branch
        %1367 = sbr.rel (%p1365) target = $region76
      $region75: #{_lambda_.11} parent=71 // pred_region
        _
      $region76: #{_lambda_.11} parent=71 // pred_fallthru
        _
    $region72: #{_lambda_.11} parent=5 // pred_fallthru
      _
    %p1368 = scmp.le.s32.totalorder 2, %s19
    // Predicated region
    $region77: #{_lambda_.11} parent=5 // pred_check
      %p1369 = pneg %p1368
    $region78: #{_lambda_.11} parent=5 // pred_check_branch
      %1371 = sbr.rel (%p1369) target = $region80
    $region79: #{_lambda_.11} parent=5 // pred_region
      %s1372 = ssub.s32 %s19, 2
      // Predicated region
      $region81: #{_lambda_.11} parent=79 // pred_check
        %p1373 = pneg %p352
      $region82: #{_lambda_.11} parent=79 // pred_check_branch
        %1375 = sbr.rel (%p1373) target = $region84
      $region83: #{_lambda_.11} parent=79 // pred_region
        %p1376 = scmp.lt.s32.totalorder %s30, 1
        %s1377 = scalar_select %p1376, %s30, 1
        %p1378 = scmp.lt.s32.totalorder %s31, 0
        %s1379 = scalar_select %p1378, %s31, 0
        %s1380 = sadd.s32 %s1379, %s1377
        %s1381 = smul.addr %s1380, 4
        %s1382 = scalar_lea.vmem %s13, %s1381
      $region84: #{_lambda_.11} parent=79 // pred_fallthru
        _
    $region80: #{_lambda_.11} parent=5 // pred_fallthru
      _
  $region6: #{_lambda_.11} parent=0 // loop_footer
    %s23 = sadd.s32 1, %s19
  $region7: #{_lambda_.11} parent=0 // loop_footer_branch
    %18 = sbr.rel target = $region3
  $region8: #{_lambda_.11} parent=0 // loop_exit
    _

// kernel: _lambda_.13
$region0: #{_lambda_.13}
  #allocation0 [shape = 'u32[]', space=smem, size = 0x4, offset = 0x4, fixed_abs, tag = 'smem constant byte address 0x4 - core index']
  #allocation1 [shape = 'u32[144,128]{1,0:T(1,128)}', space=vmem, size = 0x12000, scoped, tag = 'internal scratch']
  %s0 = inlined_call_operand.vmem [shape: s32[2,1,8], index: 0, kind: input, shape index: {}]
  %s1 = inlined_call_operand.vmem [shape: bf16[2,8,32], index: 1, kind: input, shape index: {}]
  %s2 = inlined_call_operand.vmem [shape: f32[2,8,1], index: 2, kind: input, shape index: {}]
  %s3 = inlined_call_operand.vmem [shape: bf16[32,32], index: 3, kind: input, shape index: {}]
  %s4 = inlined_call_operand.vmem [shape: f32[1,32], index: 4, kind: input, shape index: {}]
  %s5 = inlined_call_operand.vmem [shape: bf16[32,64], index: 5, kind: input, shape index: {}]
  %s6 = inlined_call_operand.vmem [shape: f32[1,64], index: 6, kind: input, shape index: {}]
  %s7 = inlined_call_operand.vmem [shape: bf16[4,8,32], index: 7, kind: input, shape index: {}]
  %s8 = inlined_call_operand.vmem [shape: f32[1,32], index: 8, kind: input, shape index: {}]
  %s9 = inlined_call_operand.vmem [shape: f32[1,32], index: 9, kind: input, shape index: {}]
  %s10 = inlined_call_operand.vmem [shape: f32[1,32], index: 10, kind: input, shape index: {}]
  %s11 = inlined_call_operand.vmem [shape: bf16[2,8,32], index: 11, kind: output, shape index: {}]
  %s12 = sld [smem:[#allocation0]]
  $region77: #{_lambda_.13} parent=0
    _
  %s14 = ssub.s32 1, %s12
  %s15 = scalar_select 0, %s14, %s12
  loop: start=0, step=1, limit=4
  $region2: #{_lambda_.13} parent=0 // loop_pre_header
    _
  $region3: #{_lambda_.13} parent=0 // loop_header
    %s17 = sphi 0, %s21
    %p18 = scmp.ge.s32.totalorder %s17, 4
    %s24 = sphi 0, %s36
    %s25 = sphi 0, %s32
    %s26 = sphi 0, %s24
    %s27 = sphi 0, %s25
    %s28 = sphi 0, %s26
    %s29 = sphi 0, %s27
    %s39 = sphi 0, %s41
    %s42 = sphi 0, %s39
    %s43 = sphi 0, %s42
    %s59 = sphi 0, %s43
    %s65 = sphi 0, %s67
    %s68 = sphi 0, %s65
    %s69 = sphi 0, %s68
    %s85 = sphi 0, %s69
    %s93 = sphi 0, %s95
    %s96 = sphi 0, %s93
    %s97 = sphi 0, %s96
    %s113 = sphi 0, %s97
    %s117 = sphi 0, %s117
    %s119 = sphi 0, %s117
    %s120 = sphi 0, %s119
    %s134 = sphi 0, %s120
    %s138 = sphi 0, %s138
    %s140 = sphi 0, %s138
    %s141 = sphi 0, %s140
    %s155 = sphi 0, %s141
    %s159 = sphi 0, %s159
    %s161 = sphi 0, %s159
    %s162 = sphi 0, %s161
    %s176 = sphi 0, %s162
    %s180 = sphi 0, %s180
    %s182 = sphi 0, %s180
    %s183 = sphi 0, %s182
    %s197 = sphi 0, %s183
    %s201 = sphi 0, %s201
    %s203 = sphi 0, %s201
    %s204 = sphi 0, %s203
    %s218 = sphi 0, %s204
    %s222 = sphi 0, %s222
    %s224 = sphi 0, %s222
    %s225 = sphi 0, %s224
    %s239 = sphi 0, %s225
    %s243 = sphi 0, %s243
    %s245 = sphi 0, %s243
    %s246 = sphi 0, %s245
    %s260 = sphi 0, %s246
    %s264 = sphi 0, %s264
    %s266 = sphi 0, %s264
    %s267 = sphi 0, %s266
    %s281 = sphi 0, %s267
    %s289 = sphi 0, %s291
    %s292 = sphi 0, %s289
    %s293 = sphi 0, %s292
    %s309 = sphi 0, %s293
  $region4: #{_lambda_.13} parent=0 // loop_header_branch
    %20 = sbr.rel (%p18) target = $region8
  $region5: #{_lambda_.13} parent=0 // loop_body
    %s22 = ssub.s32 %s17, 1
    %s23 = ssub.s32 %s17, 2
    %s30 = sadd.s32 1, %s25
    %p31 = scmp.ge.s32.totalorder %s30, 1
    %s32 = scalar_select %p31, 0, %s30
    %s33 = sadd.s32 1, %s24
    %s34 = scalar_select %p31, %s33, %s24
    %p35 = scmp.ge.s32.totalorder %s34, 2
    %s36 = scalar_select %p35, 0, %s34
    %s37 = ssub.s32 %s24, %s36
    %p38 = scmp.eq.s32.totalorder %s37, 0
    %s40 = sadd.s32 %s39, 1
    %s41 = scalar_select %p38, %s39, %s40
    %p44 = pneg %p38
    %p45 = scmp.eq.s32.totalorder %s17, 1
    %p46 = por %p44, %p45
    %p47 = scmp.ne.s32.totalorder %s39, %s42
    %p48 = scmp.eq.s32.totalorder %s17, 0
    %p49 = por %p47, %p48
    %p50 = scmp.ne.s32.totalorder %s39, %s42
    %p51 = scmp.eq.s32.totalorder %s22, 1
    %p52 = por %p50, %p51
    %p53 = scmp.ne.s32.totalorder %s42, %s43
    %p54 = scmp.eq.s32.totalorder %s22, 0
    %p55 = por %p53, %p54
    %p56 = scmp.ne.s32.totalorder %s42, %s43
    %p57 = scmp.eq.s32.totalorder %s23, 1
    %p58 = por %p56, %p57
    %p60 = scmp.ne.s32.totalorder %s43, %s59
    %p61 = scmp.eq.s32.totalorder %s23, 0
    %p62 = por %p60, %p61
    %s63 = ssub.s32 %s24, %s36
    %p64 = scmp.eq.s32.totalorder %s63, 0
    %s66 = sadd.s32 %s65, 1
    %s67 = scalar_select %p64, %s65, %s66
    %p70 = pneg %p64
    %p71 = scmp.eq.s32.totalorder %s17, 1
    %p72 = por %p70, %p71
    %p73 = scmp.ne.s32.totalorder %s65, %s68
    %p74 = scmp.eq.s32.totalorder %s17, 0
    %p75 = por %p73, %p74
    %p76 = scmp.ne.s32.totalorder %s65, %s68
    %p77 = scmp.eq.s32.totalorder %s22, 1
    %p78 = por %p76, %p77
    %p79 = scmp.ne.s32.totalorder %s68, %s69
    %p80 = scmp.eq.s32.totalorder %s22, 0
    %p81 = por %p79, %p80
    %p82 = scmp.ne.s32.totalorder %s68, %s69
    %p83 = scmp.eq.s32.totalorder %s23, 1
    %p84 = por %p82, %p83
    %p86 = scmp.ne.s32.totalorder %s69, %s85
    %p87 = scmp.eq.s32.totalorder %s23, 0
    %p88 = por %p86, %p87
    %s89 = ssub.s32 %s24, %s36
    %s90 = ssub.s32 %s25, %s32
    %s91 = sor.u32 %s89, %s90
    %p92 = scmp.eq.s32.totalorder %s91, 0
    %s94 = sadd.s32 %s93, 1
    %s95 = scalar_select %p92, %s93, %s94
    %p98 = pneg %p92
    %p99 = scmp.eq.s32.totalorder %s17, 1
    %p100 = por %p98, %p99
    %p101 = scmp.ne.s32.totalorder %s93, %s96
    %p102 = scmp.eq.s32.totalorder %s17, 0
    %p103 = por %p101, %p102
    %p104 = scmp.ne.s32.totalorder %s93, %s96
    %p105 = scmp.eq.s32.totalorder %s22, 1
    %p106 = por %p104, %p105
    %p107 = scmp.ne.s32.totalorder %s96, %s97
    %p108 = scmp.eq.s32.totalorder %s22, 0
    %p109 = por %p107, %p108
    %p110 = scmp.ne.s32.totalorder %s96, %s97
    %p111 = scmp.eq.s32.totalorder %s23, 1
    %p112 = por %p110, %p111
    %p114 = scmp.ne.s32.totalorder %s97, %s113
    %p115 = scmp.eq.s32.totalorder %s23, 0
    %p116 = por %p114, %p115
    %s118 = sadd.s32 %s117, 1
    %p121 = scmp.eq.s32.totalorder %s17, 1
    %p122 = scmp.ne.s32.totalorder %s117, %s119
    %p123 = scmp.eq.s32.totalorder %s17, 0
    %p124 = por %p122, %p123
    %p125 = scmp.ne.s32.totalorder %s117, %s119
    %p126 = scmp.eq.s32.totalorder %s22, 1
    %p127 = por %p125, %p126
    %p128 = scmp.ne.s32.totalorder %s119, %s120
    %p129 = scmp.eq.s32.totalorder %s22, 0
    %p130 = por %p128, %p129
    %p131 = scmp.ne.s32.totalorder %s119, %s120
    %p132 = scmp.eq.s32.totalorder %s23, 1
    %p133 = por %p131, %p132
    %p135 = scmp.ne.s32.totalorder %s120, %s134
    %p136 = scmp.eq.s32.totalorder %s23, 0
    %p137 = por %p135, %p136
    %s139 = sadd.s32 %s138, 1
    %p142 = scmp.eq.s32.totalorder %s17, 1
    %p143 = scmp.ne.s32.totalorder %s138, %s140
    %p144 = scmp.eq.s32.totalorder %s17, 0
    %p145 = por %p143, %p144
    %p146 = scmp.ne.s32.totalorder %s138, %s140
    %p147 = scmp.eq.s32.totalorder %s22, 1
    %p148 = por %p146, %p147
    %p149 = scmp.ne.s32.totalorder %s140, %s141
    %p150 = scmp.eq.s32.totalorder %s22, 0
    %p151 = por %p149, %p150
    %p152 = scmp.ne.s32.totalorder %s140, %s141
    %p153 = scmp.eq.s32.totalorder %s23, 1
    %p154 = por %p152, %p153
    %p156 = scmp.ne.s32.totalorder %s141, %s155
    %p157 = scmp.eq.s32.totalorder %s23, 0
    %p158 = por %p156, %p157
    %s160 = sadd.s32 %s159, 1
    %p163 = scmp.eq.s32.totalorder %s17, 1
    %p164 = scmp.ne.s32.totalorder %s159, %s161
    %p165 = scmp.eq.s32.totalorder %s17, 0
    %p166 = por %p164, %p165
    %p167 = scmp.ne.s32.totalorder %s159, %s161
    %p168 = scmp.eq.s32.totalorder %s22, 1
    %p169 = por %p167, %p168
    %p170 = scmp.ne.s32.totalorder %s161, %s162
    %p171 = scmp.eq.s32.totalorder %s22, 0
    %p172 = por %p170, %p171
    %p173 = scmp.ne.s32.totalorder %s161, %s162
    %p174 = scmp.eq.s32.totalorder %s23, 1
    %p175 = por %p173, %p174
    %p177 = scmp.ne.s32.totalorder %s162, %s176
    %p178 = scmp.eq.s32.totalorder %s23, 0
    %p179 = por %p177, %p178
    %s181 = sadd.s32 %s180, 1
    %p184 = scmp.eq.s32.totalorder %s17, 1
    %p185 = scmp.ne.s32.totalorder %s180, %s182
    %p186 = scmp.eq.s32.totalorder %s17, 0
    %p187 = por %p185, %p186
    %p188 = scmp.ne.s32.totalorder %s180, %s182
    %p189 = scmp.eq.s32.totalorder %s22, 1
    %p190 = por %p188, %p189
    %p191 = scmp.ne.s32.totalorder %s182, %s183
    %p192 = scmp.eq.s32.totalorder %s22, 0
    %p193 = por %p191, %p192
    %p194 = scmp.ne.s32.totalorder %s182, %s183
    %p195 = scmp.eq.s32.totalorder %s23, 1
    %p196 = por %p194, %p195
    %p198 = scmp.ne.s32.totalorder %s183, %s197
    %p199 = scmp.eq.s32.totalorder %s23, 0
    %p200 = por %p198, %p199
    %s202 = sadd.s32 %s201, 1
    %p205 = scmp.eq.s32.totalorder %s17, 1
    %p206 = scmp.ne.s32.totalorder %s201, %s203
    %p207 = scmp.eq.s32.totalorder %s17, 0
    %p208 = por %p206, %p207
    %p209 = scmp.ne.s32.totalorder %s201, %s203
    %p210 = scmp.eq.s32.totalorder %s22, 1
    %p211 = por %p209, %p210
    %p212 = scmp.ne.s32.totalorder %s203, %s204
    %p213 = scmp.eq.s32.totalorder %s22, 0
    %p214 = por %p212, %p213
    %p215 = scmp.ne.s32.totalorder %s203, %s204
    %p216 = scmp.eq.s32.totalorder %s23, 1
    %p217 = por %p215, %p216
    %p219 = scmp.ne.s32.totalorder %s204, %s218
    %p220 = scmp.eq.s32.totalorder %s23, 0
    %p221 = por %p219, %p220
    %s223 = sadd.s32 %s222, 1
    %p226 = scmp.eq.s32.totalorder %s17, 1
    %p227 = scmp.ne.s32.totalorder %s222, %s224
    %p228 = scmp.eq.s32.totalorder %s17, 0
    %p229 = por %p227, %p228
    %p230 = scmp.ne.s32.totalorder %s222, %s224
    %p231 = scmp.eq.s32.totalorder %s22, 1
    %p232 = por %p230, %p231
    %p233 = scmp.ne.s32.totalorder %s224, %s225
    %p234 = scmp.eq.s32.totalorder %s22, 0
    %p235 = por %p233, %p234
    %p236 = scmp.ne.s32.totalorder %s224, %s225
    %p237 = scmp.eq.s32.totalorder %s23, 1
    %p238 = por %p236, %p237
    %p240 = scmp.ne.s32.totalorder %s225, %s239
    %p241 = scmp.eq.s32.totalorder %s23, 0
    %p242 = por %p240, %p241
    %s244 = sadd.s32 %s243, 1
    %p247 = scmp.eq.s32.totalorder %s17, 1
    %p248 = scmp.ne.s32.totalorder %s243, %s245
    %p249 = scmp.eq.s32.totalorder %s17, 0
    %p250 = por %p248, %p249
    %p251 = scmp.ne.s32.totalorder %s243, %s245
    %p252 = scmp.eq.s32.totalorder %s22, 1
    %p253 = por %p251, %p252
    %p254 = scmp.ne.s32.totalorder %s245, %s246
    %p255 = scmp.eq.s32.totalorder %s22, 0
    %p256 = por %p254, %p255
    %p257 = scmp.ne.s32.totalorder %s245, %s246
    %p258 = scmp.eq.s32.totalorder %s23, 1
    %p259 = por %p257, %p258
    %p261 = scmp.ne.s32.totalorder %s246, %s260
    %p262 = scmp.eq.s32.totalorder %s23, 0
    %p263 = por %p261, %p262
    %s265 = sadd.s32 %s264, 1
    %p268 = scmp.eq.s32.totalorder %s17, 1
    %p269 = scmp.ne.s32.totalorder %s264, %s266
    %p270 = scmp.eq.s32.totalorder %s17, 0
    %p271 = por %p269, %p270
    %p272 = scmp.ne.s32.totalorder %s264, %s266
    %p273 = scmp.eq.s32.totalorder %s22, 1
    %p274 = por %p272, %p273
    %p275 = scmp.ne.s32.totalorder %s266, %s267
    %p276 = scmp.eq.s32.totalorder %s22, 0
    %p277 = por %p275, %p276
    %p278 = scmp.ne.s32.totalorder %s266, %s267
    %p279 = scmp.eq.s32.totalorder %s23, 1
    %p280 = por %p278, %p279
    %p282 = scmp.ne.s32.totalorder %s267, %s281
    %p283 = scmp.eq.s32.totalorder %s23, 0
    %p284 = por %p282, %p283
    %s285 = ssub.s32 %s24, %s36
    %s286 = ssub.s32 %s25, %s32
    %s287 = sor.u32 %s285, %s286
    %p288 = scmp.eq.s32.totalorder %s287, 0
    %s290 = sadd.s32 %s289, 1
    %s291 = scalar_select %p288, %s289, %s290
    %p294 = pneg %p288
    %p295 = scmp.eq.s32.totalorder %s17, 1
    %p296 = por %p294, %p295
    %p297 = scmp.ne.s32.totalorder %s289, %s292
    %p298 = scmp.eq.s32.totalorder %s17, 0
    %p299 = por %p297, %p298
    %p300 = scmp.ne.s32.totalorder %s289, %s292
    %p301 = scmp.eq.s32.totalorder %s22, 1
    %p302 = por %p300, %p301
    %p303 = scmp.ne.s32.totalorder %s292, %s293
    %p304 = scmp.eq.s32.totalorder %s22, 0
    %p305 = por %p303, %p304
    %p306 = scmp.ne.s32.totalorder %s292, %s293
    %p307 = scmp.eq.s32.totalorder %s23, 1
    %p308 = por %p306, %p307
    %p310 = scmp.ne.s32.totalorder %s293, %s309
    %p311 = scmp.eq.s32.totalorder %s23, 0
    %p312 = por %p310, %p311
    %p313 = scmp.le.s32.totalorder 1, %s17
    %p314 = scmp.lt.s32.totalorder %s17, 3
    %p315 = pnand %p313, %p314
    %p316 = pneg %p315
    // Predicated region
    $region9: #{_lambda_.13} parent=5 // pred_check
      _
    $region10: #{_lambda_.13} parent=5 // pred_check_branch
      %318 = sbr.rel (%p315) target = $region12
    $region11: #{_lambda_.13} parent=5 // pred_region
      %s319 = ssub.s32 %s17, 1
      // Predicated region
      $region13: #{_lambda_.13} parent=11 // pred_check
        %p320 = pneg %p130
      $region14: #{_lambda_.13} parent=11 // pred_check_branch
        %322 = sbr.rel (%p320) target = $region16
      $region15: #{_lambda_.13} parent=11 // pred_region
        _
      $region16: #{_lambda_.13} parent=11 // pred_fallthru
        _
      // Predicated region
      $region17: #{_lambda_.13} parent=11 // pred_check
        %p323 = pneg %p151
      $region18: #{_lambda_.13} parent=11 // pred_check_branch
        %325 = sbr.rel (%p323) target = $region20
      $region19: #{_lambda_.13} parent=11 // pred_region
        _
      $region20: #{_lambda_.13} parent=11 // pred_fallthru
        _
      // Predicated region
      $region21: #{_lambda_.13} parent=11 // pred_check
        %p326 = pneg %p172
      $region22: #{_lambda_.13} parent=11 // pred_check_branch
        %328 = sbr.rel (%p326) target = $region24
      $region23: #{_lambda_.13} parent=11 // pred_region
        _
      $region24: #{_lambda_.13} parent=11 // pred_fallthru
        _
      // Predicated region
      $region25: #{_lambda_.13} parent=11 // pred_check
        %p329 = pneg %p193
      $region26: #{_lambda_.13} parent=11 // pred_check_branch
        %331 = sbr.rel (%p329) target = $region28
      $region27: #{_lambda_.13} parent=11 // pred_region
        _
      $region28: #{_lambda_.13} parent=11 // pred_fallthru
        _
      // Predicated region
      $region29: #{_lambda_.13} parent=11 // pred_check
        %p332 = pneg %p214
      $region30: #{_lambda_.13} parent=11 // pred_check_branch
        %334 = sbr.rel (%p332) target = $region32
      $region31: #{_lambda_.13} parent=11 // pred_region
        _
      $region32: #{_lambda_.13} parent=11 // pred_fallthru
        _
      // Predicated region
      $region33: #{_lambda_.13} parent=11 // pred_check
        %p335 = pneg %p235
      $region34: #{_lambda_.13} parent=11 // pred_check_branch
        %337 = sbr.rel (%p335) target = $region36
      $region35: #{_lambda_.13} parent=11 // pred_region
        _
      $region36: #{_lambda_.13} parent=11 // pred_fallthru
        _
      // Predicated region
      $region37: #{_lambda_.13} parent=11 // pred_check
        %p338 = pneg %p256
      $region38: #{_lambda_.13} parent=11 // pred_check_branch
        %340 = sbr.rel (%p338) target = $region40
      $region39: #{_lambda_.13} parent=11 // pred_region
        _
      $region40: #{_lambda_.13} parent=11 // pred_fallthru
        _
      // Predicated region
      $region41: #{_lambda_.13} parent=11 // pred_check
        %p341 = pneg %p277
      $region42: #{_lambda_.13} parent=11 // pred_check_branch
        %343 = sbr.rel (%p341) target = $region44
      $region43: #{_lambda_.13} parent=11 // pred_region
        _
      $region44: #{_lambda_.13} parent=11 // pred_fallthru
        _
    $region12: #{_lambda_.13} parent=5 // pred_fallthru
      _
    %p344 = scmp.lt.s32.totalorder %s17, 2
    // Predicated region
    $region45: #{_lambda_.13} parent=5 // pred_check
      %p345 = pneg %p344
    $region46: #{_lambda_.13} parent=5 // pred_check_branch
      %347 = sbr.rel (%p345) target = $region48
    $region47: #{_lambda_.13} parent=5 // pred_region
      // Predicated region
      $region49: #{_lambda_.13} parent=47 // pred_check
        %p348 = pneg %p49
      $region50: #{_lambda_.13} parent=47 // pred_check_branch
        %350 = sbr.rel (%p348) target = $region52
      $region51: #{_lambda_.13} parent=47 // pred_region
        %p351 = scmp.lt.s32.totalorder %s24, 1
        %s352 = scalar_select %p351, %s24, 1
        %s353 = scalar_lea.vmem %s0, %s352
      $region52: #{_lambda_.13} parent=47 // pred_fallthru
        _
      // Predicated region
      $region53: #{_lambda_.13} parent=47 // pred_check
        %p354 = pneg %p75
      $region54: #{_lambda_.13} parent=47 // pred_check_branch
        %356 = sbr.rel (%p354) target = $region56
      $region55: #{_lambda_.13} parent=47 // pred_region
        %p357 = scmp.lt.s32.totalorder %s24, 1
        %s358 = scalar_select %p357, %s24, 1
        %s359 = smul.addr %s358, 4
        %s360 = scalar_lea.vmem %s1, %s359
      $region56: #{_lambda_.13} parent=47 // pred_fallthru
        _
      // Predicated region
      $region57: #{_lambda_.13} parent=47 // pred_check
        %p361 = pneg %p103
      $region58: #{_lambda_.13} parent=47 // pred_check_branch
        %363 = sbr.rel (%p361) target = $region60
      $region59: #{_lambda_.13} parent=47 // pred_region
        %p364 = scmp.lt.s32.totalorder %s24, 1
        %s365 = scalar_select %p364, %s24, 1
        %p366 = scmp.lt.s32.totalorder %s25, 0
        %s367 = scalar_select %p366, %s25, 0
        %s368 = sadd.s32 %s367, %s365
        %s369 = smul.addr %s368, 8
        %s370 = scalar_lea.vmem %s2, %s369
      $region60: #{_lambda_.13} parent=47 // pred_fallthru
        _
    $region48: #{_lambda_.13} parent=5 // pred_fallthru
      _
    %p371 = scmp.le.s32.totalorder 1, %s17
    %p372 = scmp.lt.s32.totalorder %s17, 3
    %p373 = pnand %p371, %p372
    %p374 = pneg %p373
    // Predicated region
    $region61: #{_lambda_.13} parent=5 // pred_check
      _
    $region62: #{_lambda_.13} parent=5 // pred_check_branch
      %376 = sbr.rel (%p373) target = $region64
    $region63: #{_lambda_.13} parent=5 // pred_region
      %s377 = ssub.s32 %s17, 1
      %p378 = scmp.lt.s32.totalorder %s26, 1
      %s379 = scalar_select %p378, %s26, 1
      %s380 = scalar_lea.vmem %s0, %s379
      %p381 = pneg %p55
      %p382 = pneg %p52
      %p383 = scmp.lt.s32.totalorder %s26, 1
      %s384 = scalar_select %p383, %s26, 1
      %s385 = smul.addr %s384, 4
      %s386 = scalar_lea.vmem %s1, %s385
      %p387 = pneg %p81
      %p388 = pneg %p78
      %p389 = scmp.lt.s32.totalorder %s26, 1
      %s390 = scalar_select %p389, %s26, 1
      %p391 = scmp.lt.s32.totalorder %s27, 0
      %s392 = scalar_select %p391, %s27, 0
      %s393 = sadd.s32 %s392, %s390
      %s394 = smul.addr %s393, 8
      %s395 = scalar_lea.vmem %s2, %s394
      %p396 = pneg %p109
      %p397 = pneg %p106
      %p398 = pneg %p130
      %p399 = pneg %p127
      %p400 = pneg %p151
      %p401 = pneg %p148
      %p402 = pneg %p172
      %p403 = pneg %p169
      %p404 = pneg %p193
      %p405 = pneg %p190
      %p406 = pneg %p214
      %p407 = pneg %p211
      %p408 = pneg %p235
      %p409 = pneg %p232
      %p410 = pneg %p256
      %p411 = pneg %p253
      %p412 = pneg %p277
      %p413 = pneg %p274
      %p414 = pneg %p305
      %p415 = pneg %p302
      %p416 = scmp.lt.s32.totalorder %s26, 1
      %s417 = scalar_select %p416, %s26, 1
      %p418 = scmp.lt.s32.totalorder %s27, 0
      %s419 = scalar_select %p418, %s27, 0
      %s420 = sadd.s32 %s419, %s417
      %s421 = smul.addr %s420, 4
      %s422 = scalar_lea.vmem %s11, %s421
      %p423 = scmp.lt.s32.totalorder %s26, 1
      %s424 = scalar_select %p423, %s26, 1
      %s425 = scalar_lea.vmem %s0, %s424
      %p426 = scmp.lt.s32.totalorder %s26, 1
      %s427 = scalar_select %p426, %s26, 1
      %s428 = smul.addr %s427, 4
      %s429 = scalar_lea.vmem %s1, %s428
      %p430 = scmp.lt.s32.totalorder %s26, 1
      %s431 = scalar_select %p430, %s26, 1
      %p432 = scmp.lt.s32.totalorder %s27, 0
      %s433 = scalar_select %p432, %s27, 0
      %s434 = sadd.s32 %s433, %s431
      %s435 = smul.addr %s434, 8
      %s436 = scalar_lea.vmem %s2, %s435
      %p437 = scmp.lt.s32.totalorder %s26, 1
      %s438 = scalar_select %p437, %s26, 1
      %p439 = scmp.lt.s32.totalorder %s27, 0
      %s440 = scalar_select %p439, %s27, 0
      %s441 = sadd.s32 %s440, %s438
      %s442 = smul.addr %s441, 4
      %s443 = scalar_lea.vmem %s11, %s442
      %v445 = vld [vmem:[%s429] sm:$0xf]
      %v446 = vunpack.c.l.bf16 %v445
      %v447 = vld [vmem:[%s3] sm:$0xf]
      %v448 = vld [vmem:[%s3 + $0x4] sm:$0xf]
      %v449 = vld [vmem:[%s3 + $0x8] sm:$0xf]
      %v450 = vld [vmem:[%s3 + $0xc] sm:$0xf]
      %v451 = vld [vmem:[%s4] sm:$0x1]
      %v453 = vlaneseq
      %v454 = vshrl.u32 %v453, 7
      %v455 = vsub.s32 0, %v454
      %v456 = vrot.slane %v451, %v455
      %v462 = vunpack.c.l.b16 %v447
      %v463 = vunpack.c.l.b16 %v448
      %v464 = vunpack.c.l.b16 %v449
      %v465 = vunpack.c.l.b16 %v450
      %v466 = vpack.c.b16 %v463, %v462
      %v467 = vpack.c.b16 %v465, %v464
      %vm470 = vcmask 261120
      %v472 = vsel %vm470, %v445, 0
      %474 = vmatprep.subr.bf16.mxu0 0
      %475 = vmatpush1.bf16.msra.mxu0 0
      %476 = vmatprep.subr.bf16.mxu0 0
      %477 = vmatpush1.bf16.msra.mxu0 0
      %478 = vmatprep.subr.bf16.mxu0 0
      %479 = vmatpush1.bf16.msra.mxu0 0
      %480 = vmatprep.subr.bf16.mxu0 0
      %481 = vmatpush1.bf16.msra.mxu0 0
      %482 = vmatprep.subr.bf16.mxu0 0
      %483 = vmatpush1.bf16.msra.mxu0 0
      %484 = vmatprep.subr.bf16.mxu0 0
      %485 = vmatpush1.bf16.msra.mxu0 0
      %486 = vmatprep.subr.bf16.mxu0 0
      %487 = vmatpush1.bf16.msra.mxu0 %v467
      %488 = vmatprep.subr.bf16.mxu0 0
      %489 = vmatpush1.bf16.msra.mxu0 %v466
      %490 = vmatprep.subr.bf16.mxu0 0
      %491 = vmatpush2.bf16.msra.mxu0 0
      %492 = vmatprep.subr.bf16.mxu0 0
      %493 = vmatpush2.bf16.msra.mxu0 0
      %494 = vmatprep.subr.bf16.mxu0 0
      %495 = vmatpush2.bf16.msra.mxu0 0
      %496 = vmatprep.subr.bf16.mxu0 0
      %497 = vmatpush2.bf16.msra.mxu0 0
      %498 = vmatprep.subr.bf16.mxu0 0
      %499 = vmatpush2.bf16.msra.mxu0 0
      %500 = vmatprep.subr.bf16.mxu0 0
      %501 = vmatpush2.bf16.msra.mxu0 0
      %502 = vmatprep.subr.bf16.mxu0 0
      %503 = vmatpush2.bf16.msra.mxu0 0
      %504 = vmatprep.subr.bf16.mxu0 0
      %505 = vmatpush2.bf16.msra.mxu0 0
      %506 = vmatprep.mubr.bf16.mxu0 0
      %507 = vmatmul.mubr.bf16.gmra.mxu0 %v472
      %v508 = vpop.f32.mrf.mxu0
      %v509 = vadd.f32 %v456, %v508
      %v510 = vpop.f32.mrf.mxu0
      %v511 = vpop.f32.mrf.mxu0
      %v512 = vpop.f32.mrf.mxu0
      %513 = vdwg.mxu0
      %v514 = vld [vmem:[%s5] sm:$0xf]
      %v515 = vld [vmem:[%s5 + $0x4] sm:$0xf]
      %v516 = vld [vmem:[%s5 + $0x8] sm:$0xf]
      %v517 = vld [vmem:[%s5 + $0xc] sm:$0xf]
      %v518 = vld [vmem:[%s6] sm:$0x1]
      %v520 = vlaneseq
      %v521 = vshrl.u32 %v520, 7
      %v522 = vsub.s32 0, %v521
      %v523 = vrot.slane %v518, %v522
      %v529 = vunpack.c.l.b16 %v514
      %v530 = vunpack.c.l.b16 %v515
      %v531 = vunpack.c.l.b16 %v516
      %v532 = vunpack.c.l.b16 %v517
      %v533 = vpack.c.b16 %v530, %v529
      %v534 = vpack.c.b16 %v532, %v531
      %537 = vmatprep.subr.bf16.mxu0 0
      %538 = vmatpush1.bf16.msra.mxu0 0
      %539 = vmatprep.subr.bf16.mxu0 0
      %540 = vmatpush1.bf16.msra.mxu0 0
      %541 = vmatprep.subr.bf16.mxu0 0
      %542 = vmatpush1.bf16.msra.mxu0 0
      %543 = vmatprep.subr.bf16.mxu0 0
      %544 = vmatpush1.bf16.msra.mxu0 0
      %545 = vmatprep.subr.bf16.mxu0 0
      %546 = vmatpush1.bf16.msra.mxu0 0
      %547 = vmatprep.subr.bf16.mxu0 0
      %548 = vmatpush1.bf16.msra.mxu0 0
      %549 = vmatprep.subr.bf16.mxu0 0
      %550 = vmatpush1.bf16.msra.mxu0 %v534
      %551 = vmatprep.subr.bf16.mxu0 0
      %552 = vmatpush1.bf16.msra.mxu0 %v533
      %553 = vmatprep.subr.bf16.mxu0 0
      %554 = vmatpush2.bf16.msra.mxu0 0
      %555 = vmatprep.subr.bf16.mxu0 0
      %556 = vmatpush2.bf16.msra.mxu0 0
      %557 = vmatprep.subr.bf16.mxu0 0
      %558 = vmatpush2.bf16.msra.mxu0 0
      %559 = vmatprep.subr.bf16.mxu0 0
      %560 = vmatpush2.bf16.msra.mxu0 0
      %561 = vmatprep.subr.bf16.mxu0 0
      %562 = vmatpush2.bf16.msra.mxu0 0
      %563 = vmatprep.subr.bf16.mxu0 0
      %564 = vmatpush2.bf16.msra.mxu0 0
      %565 = vmatprep.subr.bf16.mxu0 0
      %566 = vmatpush2.bf16.msra.mxu0 0
      %567 = vmatprep.subr.bf16.mxu0 0
      %568 = vmatpush2.bf16.msra.mxu0 0
      %569 = vmatprep.mubr.bf16.mxu0 0
      %570 = vmatmul.mubr.bf16.gmra.mxu0 %v472
      %v571 = vpop.f32.mrf.mxu0
      %v572 = vadd.f32 %v523, %v571
      %v573 = vpop.f32.mrf.mxu0
      %v574 = vpop.f32.mrf.mxu0
      %v575 = vpop.f32.mrf.mxu0
      %576 = vdwg.mxu0
      %v577 = vpack.c.bf16 %v509, %v509
      %v578 = vpack.c.bf16 %v572, %v572
      %v579 = vld [vmem:[%s425] sm:$0x1]
      %vm580 = vcmp.eq.s32.totalorder %v579, 0
      %v581 = vsel %vm580, -1e+09, 0.0
      %v583 = vlaneseq
      %v584 = vshrl.u32 %v583, 7
      %v585 = vsub.s32 0, %v584
      %v586 = vrot.slane %v581, %v585
      %vm588 = vcmask 64512
      %v590 = vsel %vm588, %v577, 0
      %v593 = vsel %vm588, %v578, 0
      %595 = vmatprep.subr.bf16.mxu0 0
      %596 = vmatpush1.bf16.xpose.msra.mxu0 0
      %597 = vmatprep.subr.bf16.mxu0 0
      %598 = vmatpush1.bf16.xpose.msra.mxu0 0
      %599 = vmatprep.subr.bf16.mxu0 0
      %600 = vmatpush1.bf16.xpose.msra.mxu0 0
      %601 = vmatprep.subr.bf16.mxu0 0
      %602 = vmatpush1.bf16.xpose.msra.mxu0 0
      %603 = vmatprep.subr.bf16.mxu0 0
      %604 = vmatpush1.bf16.xpose.msra.mxu0 0
      %605 = vmatprep.subr.bf16.mxu0 0
      %606 = vmatpush1.bf16.xpose.msra.mxu0 0
      %607 = vmatprep.subr.bf16.mxu0 0
      %608 = vmatpush1.bf16.xpose.msra.mxu0 0
      %609 = vmatprep.subr.bf16.mxu0 0
      %610 = vmatpush1.bf16.xpose.msra.mxu0 %v593
      %611 = vmatprep.subr.bf16.mxu0 0
      %612 = vmatpush2.bf16.xpose.msra.mxu0 0
      %613 = vmatprep.subr.bf16.mxu0 0
      %614 = vmatpush2.bf16.xpose.msra.mxu0 0
      %615 = vmatprep.subr.bf16.mxu0 0
      %616 = vmatpush2.bf16.xpose.msra.mxu0 0
      %617 = vmatprep.subr.bf16.mxu0 0
      %618 = vmatpush2.bf16.xpose.msra.mxu0 0
      %619 = vmatprep.subr.bf16.mxu0 0
      %620 = vmatpush2.bf16.xpose.msra.mxu0 0
      %621 = vmatprep.subr.bf16.mxu0 0
      %622 = vmatpush2.bf16.xpose.msra.mxu0 0
      %623 = vmatprep.subr.bf16.mxu0 0
      %624 = vmatpush2.bf16.xpose.msra.mxu0 0
      %625 = vmatprep.subr.bf16.mxu0 0
      %626 = vmatpush2.bf16.xpose.msra.mxu0 0
      %627 = vmatprep.mubr.bf16.mxu0 0
      %628 = vmatmul.mubr.bf16.gmra.mxu0 %v590
      %v629 = vpop.f32.mrf.mxu0
      %v630 = vadd.f32 %v586, %v629
      %v631 = vpop.f32.mrf.mxu0
      %v632 = vpop.f32.mrf.mxu0
      %v633 = vpop.f32.mrf.mxu0
      %634 = vdwg.mxu0
      %v635 = vsel %vm588, %v630, -inf
      %636 = vmax.xlane.f32.xlu0 %v635
      %v637 = vpop.xlane.xlu0 %636
      %v638 = vsub.f32 %v630, %v637
      %v639 = vmul.f32 %v638, 1.442695
      %v640 = vpow.pop %v639
      %v641 = vsel %vm588, %v640, 0.0
      %642 = vadd.xlane.f32.xlu0 %v641
      %v643 = vpop.xlane.xlu0 %642
      %v644 = vrcp.pop %v643
      %v645 = vmul.f32 %v640, %v644
      %v646 = vpack.c.bf16 %v645, %v645
      %648 = vrot.lane.b32.xlu0 %v578, 96
      %v649 = vpop.permute.xlu0 %648
      %v651 = vsel %vm588, %v646, 0
      %vm653 = vcmask 1043456
      %v655 = vsel %vm653, %v649, 0
      %657 = vmatprep.subr.bf16.mxu0 0
      %658 = vmatpush1.bf16.msra.mxu0 0
      %659 = vmatprep.subr.bf16.mxu0 0
      %660 = vmatpush1.bf16.msra.mxu0 0
      %661 = vmatprep.subr.bf16.mxu0 0
      %662 = vmatpush1.bf16.msra.mxu0 0
      %663 = vmatprep.subr.bf16.mxu0 0
      %664 = vmatpush1.bf16.msra.mxu0 0
      %665 = vmatprep.subr.bf16.mxu0 0
      %666 = vmatpush1.bf16.msra.mxu0 0
      %667 = vmatprep.subr.bf16.mxu0 0
      %668 = vmatpush1.bf16.msra.mxu0 0
      %669 = vmatprep.subr.bf16.mxu0 0
      %670 = vmatpush1.bf16.msra.mxu0 0
      %671 = vmatprep.subr.bf16.mxu0 0
      %672 = vmatpush1.bf16.msra.mxu0 %v655
      %673 = vmatprep.subr.bf16.mxu0 0
      %674 = vmatpush2.bf16.msra.mxu0 0
      %675 = vmatprep.subr.bf16.mxu0 0
      %676 = vmatpush2.bf16.msra.mxu0 0
      %677 = vmatprep.subr.bf16.mxu0 0
      %678 = vmatpush2.bf16.msra.mxu0 0
      %679 = vmatprep.subr.bf16.mxu0 0
      %680 = vmatpush2.bf16.msra.mxu0 0
      %681 = vmatprep.subr.bf16.mxu0 0
      %682 = vmatpush2.bf16.msra.mxu0 0
      %683 = vmatprep.subr.bf16.mxu0 0
      %684 = vmatpush2.bf16.msra.mxu0 0
      %685 = vmatprep.subr.bf16.mxu0 0
      %686 = vmatpush2.bf16.msra.mxu0 0
      %687 = vmatprep.subr.bf16.mxu0 0
      %688 = vmatpush2.bf16.msra.mxu0 0
      %689 = vmatprep.mubr.bf16.mxu0 0
      %690 = vmatmul.mubr.bf16.gmra.mxu0 %v651
      %v691 = vpop.f32.mrf.mxu0
      %v692 = vadd.f32 0.0, %v691
      %v693 = vpop.f32.mrf.mxu0
      %v694 = vpop.f32.mrf.mxu0
      %v695 = vpop.f32.mrf.mxu0
      %696 = vdwg.mxu0
      %v697 = vpack.c.bf16 %v692, %v692
      %v698 = vld [vmem:[%s7] sm:$0xf]
      %700 = vrot.lane.b32.xlu0 %v577, 120
      %v701 = vpop.permute.xlu0 %700
      %702 = vrot.lane.b32.xlu0 %v578, 120
      %v703 = vpop.permute.xlu0 %702
      %v705 = vsel %vm588, %v701, 0
      %v708 = vsel %vm588, %v703, 0
      %710 = vmatprep.subr.bf16.mxu0 0
      %711 = vmatpush1.bf16.xpose.msra.mxu0 0
      %712 = vmatprep.subr.bf16.mxu0 0
      %713 = vmatpush1.bf16.xpose.msra.mxu0 0
      %714 = vmatprep.subr.bf16.mxu0 0
      %715 = vmatpush1.bf16.xpose.msra.mxu0 0
      %716 = vmatprep.subr.bf16.mxu0 0
      %717 = vmatpush1.bf16.xpose.msra.mxu0 0
      %718 = vmatprep.subr.bf16.mxu0 0
      %719 = vmatpush1.bf16.xpose.msra.mxu0 0
      %720 = vmatprep.subr.bf16.mxu0 0
      %721 = vmatpush1.bf16.xpose.msra.mxu0 0
      %722 = vmatprep.subr.bf16.mxu0 0
      %723 = vmatpush1.bf16.xpose.msra.mxu0 0
      %724 = vmatprep.subr.bf16.mxu0 0
      %725 = vmatpush1.bf16.xpose.msra.mxu0 %v708
      %726 = vmatprep.subr.bf16.mxu0 0
      %727 = vmatpush2.bf16.xpose.msra.mxu0 0
      %728 = vmatprep.subr.bf16.mxu0 0
      %729 = vmatpush2.bf16.xpose.msra.mxu0 0
      %730 = vmatprep.subr.bf16.mxu0 0
      %731 = vmatpush2.bf16.xpose.msra.mxu0 0
      %732 = vmatprep.subr.bf16.mxu0 0
      %733 = vmatpush2.bf16.xpose.msra.mxu0 0
      %734 = vmatprep.subr.bf16.mxu0 0
      %735 = vmatpush2.bf16.xpose.msra.mxu0 0
      %736 = vmatprep.subr.bf16.mxu0 0
      %737 = vmatpush2.bf16.xpose.msra.mxu0 0
      %738 = vmatprep.subr.bf16.mxu0 0
      %739 = vmatpush2.bf16.xpose.msra.mxu0 0
      %740 = vmatprep.subr.bf16.mxu0 0
      %741 = vmatpush2.bf16.xpose.msra.mxu0 0
      %742 = vmatprep.mubr.bf16.mxu0 0
      %743 = vmatmul.mubr.bf16.gmra.mxu0 %v705
      %v744 = vpop.f32.mrf.mxu0
      %v745 = vadd.f32 %v586, %v744
      %v746 = vpop.f32.mrf.mxu0
      %v747 = vpop.f32.mrf.mxu0
      %v748 = vpop.f32.mrf.mxu0
      %749 = vdwg.mxu0
      %v750 = vsel %vm588, %v745, -inf
      %751 = vmax.xlane.f32.xlu0 %v750
      %v752 = vpop.xlane.xlu0 %751
      %v753 = vsub.f32 %v745, %v752
      %v754 = vmul.f32 %v753, 1.442695
      %v755 = vpow.pop %v754
      %v756 = vsel %vm588, %v755, 0.0
      %757 = vadd.xlane.f32.xlu0 %v756
      %v758 = vpop.xlane.xlu0 %757
      %v759 = vrcp.pop %v758
      %v760 = vmul.f32 %v755, %v759
      %v761 = vpack.c.bf16 %v760, %v760
      %762 = vrot.lane.b32.xlu0 %v578, 88
      %v763 = vpop.permute.xlu0 %762
      %v765 = vsel %vm588, %v761, 0
      %v768 = vsel %vm653, %v763, 0
      %770 = vmatprep.subr.bf16.mxu0 0
      %771 = vmatpush1.bf16.msra.mxu0 0
      %772 = vmatprep.subr.bf16.mxu0 0
      %773 = vmatpush1.bf16.msra.mxu0 0
      %774 = vmatprep.subr.bf16.mxu0 0
      %775 = vmatpush1.bf16.msra.mxu0 0
      %776 = vmatprep.subr.bf16.mxu0 0
      %777 = vmatpush1.bf16.msra.mxu0 0
      %778 = vmatprep.subr.bf16.mxu0 0
      %779 = vmatpush1.bf16.msra.mxu0 0
      %780 = vmatprep.subr.bf16.mxu0 0
      %781 = vmatpush1.bf16.msra.mxu0 0
      %782 = vmatprep.subr.bf16.mxu0 0
      %783 = vmatpush1.bf16.msra.mxu0 0
      %784 = vmatprep.subr.bf16.mxu0 0
      %785 = vmatpush1.bf16.msra.mxu0 %v768
      %786 = vmatprep.subr.bf16.mxu0 0
      %787 = vmatpush2.bf16.msra.mxu0 0
      %788 = vmatprep.subr.bf16.mxu0 0
      %789 = vmatpush2.bf16.msra.mxu0 0
      %790 = vmatprep.subr.bf16.mxu0 0
      %791 = vmatpush2.bf16.msra.mxu0 0
      %792 = vmatprep.subr.bf16.mxu0 0
      %793 = vmatpush2.bf16.msra.mxu0 0
      %794 = vmatprep.subr.bf16.mxu0 0
      %795 = vmatpush2.bf16.msra.mxu0 0
      %796 = vmatprep.subr.bf16.mxu0 0
      %797 = vmatpush2.bf16.msra.mxu0 0
      %798 = vmatprep.subr.bf16.mxu0 0
      %799 = vmatpush2.bf16.msra.mxu0 0
      %800 = vmatprep.subr.bf16.mxu0 0
      %801 = vmatpush2.bf16.msra.mxu0 0
      %802 = vmatprep.mubr.bf16.mxu0 0
      %803 = vmatmul.mubr.bf16.gmra.mxu0 %v765
      %v804 = vpop.f32.mrf.mxu0
      %v805 = vadd.f32 0.0, %v804
      %v806 = vpop.f32.mrf.mxu0
      %v807 = vpop.f32.mrf.mxu0
      %v808 = vpop.f32.mrf.mxu0
      %809 = vdwg.mxu0
      %v810 = vpack.c.bf16 %v805, %v805
      %s811 = scalar_lea.vmem %s7, 4
      %v812 = vld [vmem:[%s811] sm:$0xf]
      %v814 = vsel %vm588, %v810, 0
      %v817 = vsel %vm653, %v812, 0
      %819 = vmatprep.subr.bf16.mxu0 0
      %820 = vmatpush1.bf16.msra.mxu0 0
      %821 = vmatprep.subr.bf16.mxu0 0
      %822 = vmatpush1.bf16.msra.mxu0 0
      %823 = vmatprep.subr.bf16.mxu0 0
      %824 = vmatpush1.bf16.msra.mxu0 0
      %825 = vmatprep.subr.bf16.mxu0 0
      %826 = vmatpush1.bf16.msra.mxu0 0
      %827 = vmatprep.subr.bf16.mxu0 0
      %828 = vmatpush1.bf16.msra.mxu0 0
      %829 = vmatprep.subr.bf16.mxu0 0
      %830 = vmatpush1.bf16.msra.mxu0 0
      %831 = vmatprep.subr.bf16.mxu0 0
      %832 = vmatpush1.bf16.msra.mxu0 0
      %833 = vmatprep.subr.bf16.mxu0 0
      %834 = vmatpush1.bf16.msra.mxu0 %v817
      %835 = vmatprep.subr.bf16.mxu0 0
      %836 = vmatpush2.bf16.msra.mxu0 0
      %837 = vmatprep.subr.bf16.mxu0 0
      %838 = vmatpush2.bf16.msra.mxu0 0
      %839 = vmatprep.subr.bf16.mxu0 0
      %840 = vmatpush2.bf16.msra.mxu0 0
      %841 = vmatprep.subr.bf16.mxu0 0
      %842 = vmatpush2.bf16.msra.mxu0 0
      %843 = vmatprep.subr.bf16.mxu0 0
      %844 = vmatpush2.bf16.msra.mxu0 0
      %845 = vmatprep.subr.bf16.mxu0 0
      %846 = vmatpush2.bf16.msra.mxu0 0
      %847 = vmatprep.subr.bf16.mxu0 0
      %848 = vmatpush2.bf16.msra.mxu0 0
      %849 = vmatprep.subr.bf16.mxu0 0
      %850 = vmatpush2.bf16.msra.mxu0 0
      %851 = vmatprep.mubr.bf16.mxu0 0
      %852 = vmatmul.mubr.bf16.gmra.mxu0 %v814
      %v853 = vpop.f32.mrf.mxu0
      %v854 = vadd.f32 0.0, %v853
      %v855 = vpop.f32.mrf.mxu0
      %v856 = vpop.f32.mrf.mxu0
      %v857 = vpop.f32.mrf.mxu0
      %858 = vdwg.mxu0
      %v860 = vsel %vm588, %v697, 0
      %v863 = vsel %vm653, %v698, 0
      %865 = vmatprep.subr.bf16.mxu0 0
      %866 = vmatpush1.bf16.msra.mxu0 0
      %867 = vmatprep.subr.bf16.mxu0 0
      %868 = vmatpush1.bf16.msra.mxu0 0
      %869 = vmatprep.subr.bf16.mxu0 0
      %870 = vmatpush1.bf16.msra.mxu0 0
      %871 = vmatprep.subr.bf16.mxu0 0
      %872 = vmatpush1.bf16.msra.mxu0 0
      %873 = vmatprep.subr.bf16.mxu0 0
      %874 = vmatpush1.bf16.msra.mxu0 0
      %875 = vmatprep.subr.bf16.mxu0 0
      %876 = vmatpush1.bf16.msra.mxu0 0
      %877 = vmatprep.subr.bf16.mxu0 0
      %878 = vmatpush1.bf16.msra.mxu0 0
      %879 = vmatprep.subr.bf16.mxu0 0
      %880 = vmatpush1.bf16.msra.mxu0 %v863
      %881 = vmatprep.subr.bf16.mxu0 0
      %882 = vmatpush2.bf16.msra.mxu0 0
      %883 = vmatprep.subr.bf16.mxu0 0
      %884 = vmatpush2.bf16.msra.mxu0 0
      %885 = vmatprep.subr.bf16.mxu0 0
      %886 = vmatpush2.bf16.msra.mxu0 0
      %887 = vmatprep.subr.bf16.mxu0 0
      %888 = vmatpush2.bf16.msra.mxu0 0
      %889 = vmatprep.subr.bf16.mxu0 0
      %890 = vmatpush2.bf16.msra.mxu0 0
      %891 = vmatprep.subr.bf16.mxu0 0
      %892 = vmatpush2.bf16.msra.mxu0 0
      %893 = vmatprep.subr.bf16.mxu0 0
      %894 = vmatpush2.bf16.msra.mxu0 0
      %895 = vmatprep.subr.bf16.mxu0 0
      %896 = vmatpush2.bf16.msra.mxu0 0
      %897 = vmatprep.mubr.bf16.mxu0 0
      %898 = vmatmul.mubr.bf16.gmra.mxu0 %v860
      %v899 = vpop.f32.mrf.mxu0
      %v900 = vadd.f32 %v854, %v899
      %v901 = vpop.f32.mrf.mxu0
      %v902 = vpop.f32.mrf.mxu0
      %v903 = vpop.f32.mrf.mxu0
      %904 = vdwg.mxu0
      %905 = vrot.lane.b32.xlu0 %v577, 112
      %v906 = vpop.permute.xlu0 %905
      %907 = vrot.lane.b32.xlu0 %v578, 112
      %v908 = vpop.permute.xlu0 %907
      %v910 = vsel %vm588, %v906, 0
      %v913 = vsel %vm588, %v908, 0
      %915 = vmatprep.subr.bf16.mxu0 0
      %916 = vmatpush1.bf16.xpose.msra.mxu0 0
      %917 = vmatprep.subr.bf16.mxu0 0
      %918 = vmatpush1.bf16.xpose.msra.mxu0 0
      %919 = vmatprep.subr.bf16.mxu0 0
      %920 = vmatpush1.bf16.xpose.msra.mxu0 0
      %921 = vmatprep.subr.bf16.mxu0 0
      %922 = vmatpush1.bf16.xpose.msra.mxu0 0
      %923 = vmatprep.subr.bf16.mxu0 0
      %924 = vmatpush1.bf16.xpose.msra.mxu0 0
      %925 = vmatprep.subr.bf16.mxu0 0
      %926 = vmatpush1.bf16.xpose.msra.mxu0 0
      %927 = vmatprep.subr.bf16.mxu0 0
      %928 = vmatpush1.bf16.xpose.msra.mxu0 0
      %929 = vmatprep.subr.bf16.mxu0 0
      %930 = vmatpush1.bf16.xpose.msra.mxu0 %v913
      %931 = vmatprep.subr.bf16.mxu0 0
      %932 = vmatpush2.bf16.xpose.msra.mxu0 0
      %933 = vmatprep.subr.bf16.mxu0 0
      %934 = vmatpush2.bf16.xpose.msra.mxu0 0
      %935 = vmatprep.subr.bf16.mxu0 0
      %936 = vmatpush2.bf16.xpose.msra.mxu0 0
      %937 = vmatprep.subr.bf16.mxu0 0
      %938 = vmatpush2.bf16.xpose.msra.mxu0 0
      %939 = vmatprep.subr.bf16.mxu0 0
      %940 = vmatpush2.bf16.xpose.msra.mxu0 0
      %941 = vmatprep.subr.bf16.mxu0 0
      %942 = vmatpush2.bf16.xpose.msra.mxu0 0
      %943 = vmatprep.subr.bf16.mxu0 0
      %944 = vmatpush2.bf16.xpose.msra.mxu0 0
      %945 = vmatprep.subr.bf16.mxu0 0
      %946 = vmatpush2.bf16.xpose.msra.mxu0 0
      %947 = vmatprep.mubr.bf16.mxu0 0
      %948 = vmatmul.mubr.bf16.gmra.mxu0 %v910
      %v949 = vpop.f32.mrf.mxu0
      %v950 = vadd.f32 %v586, %v949
      %v951 = vpop.f32.mrf.mxu0
      %v952 = vpop.f32.mrf.mxu0
      %v953 = vpop.f32.mrf.mxu0
      %954 = vdwg.mxu0
      %v955 = vsel %vm588, %v950, -inf
      %956 = vmax.xlane.f32.xlu0 %v955
      %v957 = vpop.xlane.xlu0 %956
      %v958 = vsub.f32 %v950, %v957
      %v959 = vmul.f32 %v958, 1.442695
      %v960 = vpow.pop %v959
      %v961 = vsel %vm588, %v960, 0.0
      %962 = vadd.xlane.f32.xlu0 %v961
      %v963 = vpop.xlane.xlu0 %962
      %v964 = vrcp.pop %v963
      %v965 = vmul.f32 %v960, %v964
      %v966 = vpack.c.bf16 %v965, %v965
      %967 = vrot.lane.b32.xlu0 %v578, 80
      %v968 = vpop.permute.xlu0 %967
      %v970 = vsel %vm588, %v966, 0
      %v973 = vsel %vm653, %v968, 0
      %975 = vmatprep.subr.bf16.mxu0 0
      %976 = vmatpush1.bf16.msra.mxu0 0
      %977 = vmatprep.subr.bf16.mxu0 0
      %978 = vmatpush1.bf16.msra.mxu0 0
      %979 = vmatprep.subr.bf16.mxu0 0
      %980 = vmatpush1.bf16.msra.mxu0 0
      %981 = vmatprep.subr.bf16.mxu0 0
      %982 = vmatpush1.bf16.msra.mxu0 0
      %983 = vmatprep.subr.bf16.mxu0 0
      %984 = vmatpush1.bf16.msra.mxu0 0
      %985 = vmatprep.subr.bf16.mxu0 0
      %986 = vmatpush1.bf16.msra.mxu0 0
      %987 = vmatprep.subr.bf16.mxu0 0
      %988 = vmatpush1.bf16.msra.mxu0 0
      %989 = vmatprep.subr.bf16.mxu0 0
      %990 = vmatpush1.bf16.msra.mxu0 %v973
      %991 = vmatprep.subr.bf16.mxu0 0
      %992 = vmatpush2.bf16.msra.mxu0 0
      %993 = vmatprep.subr.bf16.mxu0 0
      %994 = vmatpush2.bf16.msra.mxu0 0
      %995 = vmatprep.subr.bf16.mxu0 0
      %996 = vmatpush2.bf16.msra.mxu0 0
      %997 = vmatprep.subr.bf16.mxu0 0
      %998 = vmatpush2.bf16.msra.mxu0 0
      %999 = vmatprep.subr.bf16.mxu0 0
      %1000 = vmatpush2.bf16.msra.mxu0 0
      %1001 = vmatprep.subr.bf16.mxu0 0
      %1002 = vmatpush2.bf16.msra.mxu0 0
      %1003 = vmatprep.subr.bf16.mxu0 0
      %1004 = vmatpush2.bf16.msra.mxu0 0
      %1005 = vmatprep.subr.bf16.mxu0 0
      %1006 = vmatpush2.bf16.msra.mxu0 0
      %1007 = vmatprep.mubr.bf16.mxu0 0
      %1008 = vmatmul.mubr.bf16.gmra.mxu0 %v970
      %v1009 = vpop.f32.mrf.mxu0
      %v1010 = vadd.f32 0.0, %v1009
      %v1011 = vpop.f32.mrf.mxu0
      %v1012 = vpop.f32.mrf.mxu0
      %v1013 = vpop.f32.mrf.mxu0
      %1014 = vdwg.mxu0
      %v1015 = vpack.c.bf16 %v1010, %v1010
      %s1016 = scalar_lea.vmem %s7, 8
      %v1017 = vld [vmem:[%s1016] sm:$0xf]
      %v1019 = vsel %vm588, %v1015, 0
      %v1022 = vsel %vm653, %v1017, 0
      %1024 = vmatprep.subr.bf16.mxu0 0
      %1025 = vmatpush1.bf16.msra.mxu0 0
      %1026 = vmatprep.subr.bf16.mxu0 0
      %1027 = vmatpush1.bf16.msra.mxu0 0
      %1028 = vmatprep.subr.bf16.mxu0 0
      %1029 = vmatpush1.bf16.msra.mxu0 0
      %1030 = vmatprep.subr.bf16.mxu0 0
      %1031 = vmatpush1.bf16.msra.mxu0 0
      %1032 = vmatprep.subr.bf16.mxu0 0
      %1033 = vmatpush1.bf16.msra.mxu0 0
      %1034 = vmatprep.subr.bf16.mxu0 0
      %1035 = vmatpush1.bf16.msra.mxu0 0
      %1036 = vmatprep.subr.bf16.mxu0 0
      %1037 = vmatpush1.bf16.msra.mxu0 0
      %1038 = vmatprep.subr.bf16.mxu0 0
      %1039 = vmatpush1.bf16.msra.mxu0 %v1022
      %1040 = vmatprep.subr.bf16.mxu0 0
      %1041 = vmatpush2.bf16.msra.mxu0 0
      %1042 = vmatprep.subr.bf16.mxu0 0
      %1043 = vmatpush2.bf16.msra.mxu0 0
      %1044 = vmatprep.subr.bf16.mxu0 0
      %1045 = vmatpush2.bf16.msra.mxu0 0
      %1046 = vmatprep.subr.bf16.mxu0 0
      %1047 = vmatpush2.bf16.msra.mxu0 0
      %1048 = vmatprep.subr.bf16.mxu0 0
      %1049 = vmatpush2.bf16.msra.mxu0 0
      %1050 = vmatprep.subr.bf16.mxu0 0
      %1051 = vmatpush2.bf16.msra.mxu0 0
      %1052 = vmatprep.subr.bf16.mxu0 0
      %1053 = vmatpush2.bf16.msra.mxu0 0
      %1054 = vmatprep.subr.bf16.mxu0 0
      %1055 = vmatpush2.bf16.msra.mxu0 0
      %1056 = vmatprep.mubr.bf16.mxu0 0
      %1057 = vmatmul.mubr.bf16.gmra.mxu0 %v1019
      %v1058 = vpop.f32.mrf.mxu0
      %v1059 = vadd.f32 0.0, %v1058
      %v1060 = vpop.f32.mrf.mxu0
      %v1061 = vpop.f32.mrf.mxu0
      %v1062 = vpop.f32.mrf.mxu0
      %1063 = vdwg.mxu0
      %v1064 = vadd.f32 %v900, %v1059
      %1065 = vrot.lane.b32.xlu0 %v577, 104
      %v1066 = vpop.permute.xlu0 %1065
      %1067 = vrot.lane.b32.xlu0 %v578, 104
      %v1068 = vpop.permute.xlu0 %1067
      %v1070 = vsel %vm588, %v1066, 0
      %v1073 = vsel %vm588, %v1068, 0
      %1075 = vmatprep.subr.bf16.mxu0 0
      %1076 = vmatpush1.bf16.xpose.msra.mxu0 0
      %1077 = vmatprep.subr.bf16.mxu0 0
      %1078 = vmatpush1.bf16.xpose.msra.mxu0 0
      %1079 = vmatprep.subr.bf16.mxu0 0
      %1080 = vmatpush1.bf16.xpose.msra.mxu0 0
      %1081 = vmatprep.subr.bf16.mxu0 0
      %1082 = vmatpush1.bf16.xpose.msra.mxu0 0
      %1083 = vmatprep.subr.bf16.mxu0 0
      %1084 = vmatpush1.bf16.xpose.msra.mxu0 0
      %1085 = vmatprep.subr.bf16.mxu0 0
      %1086 = vmatpush1.bf16.xpose.msra.mxu0 0
      %1087 = vmatprep.subr.bf16.mxu0 0
      %1088 = vmatpush1.bf16.xpose.msra.mxu0 0
      %1089 = vmatprep.subr.bf16.mxu0 0
      %1090 = vmatpush1.bf16.xpose.msra.mxu0 %v1073
      %1091 = vmatprep.subr.bf16.mxu0 0
      %1092 = vmatpush2.bf16.xpose.msra.mxu0 0
      %1093 = vmatprep.subr.bf16.mxu0 0
      %1094 = vmatpush2.bf16.xpose.msra.mxu0 0
      %1095 = vmatprep.subr.bf16.mxu0 0
      %1096 = vmatpush2.bf16.xpose.msra.mxu0 0
      %1097 = vmatprep.subr.bf16.mxu0 0
      %1098 = vmatpush2.bf16.xpose.msra.mxu0 0
      %1099 = vmatprep.subr.bf16.mxu0 0
      %1100 = vmatpush2.bf16.xpose.msra.mxu0 0
      %1101 = vmatprep.subr.bf16.mxu0 0
      %1102 = vmatpush2.bf16.xpose.msra.mxu0 0
      %1103 = vmatprep.subr.bf16.mxu0 0
      %1104 = vmatpush2.bf16.xpose.msra.mxu0 0
      %1105 = vmatprep.subr.bf16.mxu0 0
      %1106 = vmatpush2.bf16.xpose.msra.mxu0 0
      %1107 = vmatprep.mubr.bf16.mxu0 0
      %1108 = vmatmul.mubr.bf16.gmra.mxu0 %v1070
      %v1109 = vpop.f32.mrf.mxu0
      %v1110 = vadd.f32 %v586, %v1109
      %v1111 = vpop.f32.mrf.mxu0
      %v1112 = vpop.f32.mrf.mxu0
      %v1113 = vpop.f32.mrf.mxu0
      %1114 = vdwg.mxu0
      %v1115 = vsel %vm588, %v1110, -inf
      %1116 = vmax.xlane.f32.xlu0 %v1115
      %v1117 = vpop.xlane.xlu0 %1116
      %v1118 = vsub.f32 %v1110, %v1117
      %v1119 = vmul.f32 %v1118, 1.442695
      %v1120 = vpow.pop %v1119
      %v1121 = vsel %vm588, %v1120, 0.0
      %1122 = vadd.xlane.f32.xlu0 %v1121
      %v1123 = vpop.xlane.xlu0 %1122
      %v1124 = vrcp.pop %v1123
      %v1125 = vmul.f32 %v1120, %v1124
      %v1126 = vpack.c.bf16 %v1125, %v1125
      %1127 = vrot.lane.b32.xlu0 %v578, 72
      %v1128 = vpop.permute.xlu0 %1127
      %v1130 = vsel %vm588, %v1126, 0
      %v1133 = vsel %vm653, %v1128, 0
      %1135 = vmatprep.subr.bf16.mxu0 0
      %1136 = vmatpush1.bf16.msra.mxu0 0
      %1137 = vmatprep.subr.bf16.mxu0 0
      %1138 = vmatpush1.bf16.msra.mxu0 0
      %1139 = vmatprep.subr.bf16.mxu0 0
      %1140 = vmatpush1.bf16.msra.mxu0 0
      %1141 = vmatprep.subr.bf16.mxu0 0
      %1142 = vmatpush1.bf16.msra.mxu0 0
      %1143 = vmatprep.subr.bf16.mxu0 0
      %1144 = vmatpush1.bf16.msra.mxu0 0
      %1145 = vmatprep.subr.bf16.mxu0 0
      %1146 = vmatpush1.bf16.msra.mxu0 0
      %1147 = vmatprep.subr.bf16.mxu0 0
      %1148 = vmatpush1.bf16.msra.mxu0 0
      %1149 = vmatprep.subr.bf16.mxu0 0
      %1150 = vmatpush1.bf16.msra.mxu0 %v1133
      %1151 = vmatprep.subr.bf16.mxu0 0
      %1152 = vmatpush2.bf16.msra.mxu0 0
      %1153 = vmatprep.subr.bf16.mxu0 0
      %1154 = vmatpush2.bf16.msra.mxu0 0
      %1155 = vmatprep.subr.bf16.mxu0 0
      %1156 = vmatpush2.bf16.msra.mxu0 0
      %1157 = vmatprep.subr.bf16.mxu0 0
      %1158 = vmatpush2.bf16.msra.mxu0 0
      %1159 = vmatprep.subr.bf16.mxu0 0
      %1160 = vmatpush2.bf16.msra.mxu0 0
      %1161 = vmatprep.subr.bf16.mxu0 0
      %1162 = vmatpush2.bf16.msra.mxu0 0
      %1163 = vmatprep.subr.bf16.mxu0 0
      %1164 = vmatpush2.bf16.msra.mxu0 0
      %1165 = vmatprep.subr.bf16.mxu0 0
      %1166 = vmatpush2.bf16.msra.mxu0 0
      %1167 = vmatprep.mubr.bf16.mxu0 0
      %1168 = vmatmul.mubr.bf16.gmra.mxu0 %v1130
      %v1169 = vpop.f32.mrf.mxu0
      %v1170 = vadd.f32 0.0, %v1169
      %v1171 = vpop.f32.mrf.mxu0
      %v1172 = vpop.f32.mrf.mxu0
      %v1173 = vpop.f32.mrf.mxu0
      %1174 = vdwg.mxu0
      %v1175 = vpack.c.bf16 %v1170, %v1170
      %s1176 = scalar_lea.vmem %s7, 12
      %v1177 = vld [vmem:[%s1176] sm:$0xf]
      %v1179 = vsel %vm588, %v1175, 0
      %v1182 = vsel %vm653, %v1177, 0
      %1184 = vmatprep.subr.bf16.mxu0 0
      %1185 = vmatpush1.bf16.msra.mxu0 0
      %1186 = vmatprep.subr.bf16.mxu0 0
      %1187 = vmatpush1.bf16.msra.mxu0 0
      %1188 = vmatprep.subr.bf16.mxu0 0
      %1189 = vmatpush1.bf16.msra.mxu0 0
      %1190 = vmatprep.subr.bf16.mxu0 0
      %1191 = vmatpush1.bf16.msra.mxu0 0
      %1192 = vmatprep.subr.bf16.mxu0 0
      %1193 = vmatpush1.bf16.msra.mxu0 0
      %1194 = vmatprep.subr.bf16.mxu0 0
      %1195 = vmatpush1.bf16.msra.mxu0 0
      %1196 = vmatprep.subr.bf16.mxu0 0
      %1197 = vmatpush1.bf16.msra.mxu0 0
      %1198 = vmatprep.subr.bf16.mxu0 0
      %1199 = vmatpush1.bf16.msra.mxu0 %v1182
      %1200 = vmatprep.subr.bf16.mxu0 0
      %1201 = vmatpush2.bf16.msra.mxu0 0
      %1202 = vmatprep.subr.bf16.mxu0 0
      %1203 = vmatpush2.bf16.msra.mxu0 0
      %1204 = vmatprep.subr.bf16.mxu0 0
      %1205 = vmatpush2.bf16.msra.mxu0 0
      %1206 = vmatprep.subr.bf16.mxu0 0
      %1207 = vmatpush2.bf16.msra.mxu0 0
      %1208 = vmatprep.subr.bf16.mxu0 0
      %1209 = vmatpush2.bf16.msra.mxu0 0
      %1210 = vmatprep.subr.bf16.mxu0 0
      %1211 = vmatpush2.bf16.msra.mxu0 0
      %1212 = vmatprep.subr.bf16.mxu0 0
      %1213 = vmatpush2.bf16.msra.mxu0 0
      %1214 = vmatprep.subr.bf16.mxu0 0
      %1215 = vmatpush2.bf16.msra.mxu0 0
      %1216 = vmatprep.mubr.bf16.mxu0 0
      %1217 = vmatmul.mubr.bf16.gmra.mxu0 %v1179
      %v1218 = vpop.f32.mrf.mxu0
      %v1219 = vadd.f32 0.0, %v1218
      %v1220 = vpop.f32.mrf.mxu0
      %v1221 = vpop.f32.mrf.mxu0
      %v1222 = vpop.f32.mrf.mxu0
      %1223 = vdwg.mxu0
      %v1224 = vadd.f32 %v1064, %v1219
      %v1225 = vld [vmem:[%s8] sm:$0x1]
      %v1227 = vlaneseq
      %v1228 = vshrl.u32 %v1227, 7
      %v1229 = vsub.s32 0, %v1228
      %v1230 = vrot.slane %v1225, %v1229
      %v1232 = vadd.f32 %v1224, %v1230
      %v1233 = vadd.f32 %v1232, %v446
      %v1234 = vsel %vm470, %v1233, 0.0
      %1235 = vadd.xlane.f32.xlu0 %v1234
      %v1236 = vpop.xlane.xlu0 %1235
      %v1237 = vrcp.pop 32.0
      %v1238 = vmul.f32 %v1236, %v1237
      %v1239 = vsub.f32 %v1233, %v1238
      %v1240 = vmul.f32 %v1239, %v1239
      %v1241 = vsel %vm470, %v1240, 0.0
      %1242 = vadd.xlane.f32.xlu0 %v1241
      %v1243 = vpop.xlane.xlu0 %1242
      %v1244 = vmul.f32 %v1243, %v1237
      %v1245 = vadd.f32 %v1244, 1e-06
      %v1246 = vrsqrt.pop %v1245
      %v1247 = vmul.f32 %v1239, %v1246
      %v1248 = vld [vmem:[%s9] sm:$0x1]
      %v1250 = vlaneseq
      %v1251 = vshrl.u32 %v1250, 7
      %v1252 = vsub.s32 0, %v1251
      %v1253 = vrot.slane %v1248, %v1252
      %v1255 = vmul.f32 %v1247, %v1253
      %v1256 = vld [vmem:[%s10] sm:$0x1]
      %v1258 = vlaneseq
      %v1259 = vshrl.u32 %v1258, 7
      %v1260 = vsub.s32 0, %v1259
      %v1261 = vrot.slane %v1256, %v1260
      %v1263 = vadd.f32 %v1255, %v1261
      %v1264 = vld [vmem:[%s436] sm:$0xff]
      %1266 = vset.pattern.permute.xlu0 0
      %1267 = vperm.xlu0 %1266, %v1264
      %v1268 = vpop.permute.xlu0 %1267
      %v1270 = vmul.f32 %v1263, %v1268
      %v1271 = vpack.c.bf16 %v1270, %v1270
      %vm1272 = vcmask 257024
      %1273 = vst.msk [vmem:[%s443] sm:$0xf] %vm1272, %v1271
      %p1274 = scmp.lt.s32.totalorder %s26, 1
      %s1275 = scalar_select %p1274, %s26, 1
      %p1276 = scmp.lt.s32.totalorder %s27, 0
      %s1277 = scalar_select %p1276, %s27, 0
      %s1278 = sadd.s32 %s1277, %s1275
      %s1279 = smul.addr %s1278, 4
      %s1280 = scalar_lea.vmem %s11, %s1279
      // Predicated region
      $region65: #{_lambda_.13} parent=63 // pred_check
        %p1281 = pneg %p302
      $region66: #{_lambda_.13} parent=63 // pred_check_branch
        %1283 = sbr.rel (%p1281) target = $region68
      $region67: #{_lambda_.13} parent=63 // pred_region
        _
      $region68: #{_lambda_.13} parent=63 // pred_fallthru
        _
    $region64: #{_lambda_.13} parent=5 // pred_fallthru
      _
    %p1284 = scmp.le.s32.totalorder 2, %s17
    // Predicated region
    $region69: #{_lambda_.13} parent=5 // pred_check
      %p1285 = pneg %p1284
    $region70: #{_lambda_.13} parent=5 // pred_check_branch
      %1287 = sbr.rel (%p1285) target = $region72
    $region71: #{_lambda_.13} parent=5 // pred_region
      %s1288 = ssub.s32 %s17, 2
      // Predicated region
      $region73: #{_lambda_.13} parent=71 // pred_check
        %p1289 = pneg %p308
      $region74: #{_lambda_.13} parent=71 // pred_check_branch
        %1291 = sbr.rel (%p1289) target = $region76
      $region75: #{_lambda_.13} parent=71 // pred_region
        %p1292 = scmp.lt.s32.totalorder %s28, 1
        %s1293 = scalar_select %p1292, %s28, 1
        %p1294 = scmp.lt.s32.totalorder %s29, 0
        %s1295 = scalar_select %p1294, %s29, 0
        %s1296 = sadd.s32 %s1295, %s1293
        %s1297 = smul.addr %s1296, 4
        %s1298 = scalar_lea.vmem %s11, %s1297
      $region76: #{_lambda_.13} parent=71 // pred_fallthru
        _
    $region72: #{_lambda_.13} parent=5 // pred_fallthru
      _
  $region6: #{_lambda_.13} parent=0 // loop_footer
    %s21 = sadd.s32 1, %s17
  $region7: #{_lambda_.13} parent=0 // loop_footer_branch
    %16 = sbr.rel target = $region3
  $region8: #{_lambda_.13} parent=0 // loop_exit
    _

// kernel: _lambda_.21
$region0: #{_lambda_.21}
  #allocation0 [shape = 'u32[]', space=smem, size = 0x4, offset = 0x4, fixed_abs, tag = 'smem constant byte address 0x4 - core index']
  #allocation1 [shape = 'u32[144,128]{1,0:T(1,128)}', space=vmem, size = 0x12000, scoped, tag = 'internal scratch']
  %s0 = inlined_call_operand.vmem [shape: bf16[16,32], index: 0, kind: input, shape index: {}]
  %s1 = inlined_call_operand.vmem [shape: bf16[32,50], index: 1, kind: input, shape index: {}]
  %s2 = inlined_call_operand.vmem [shape: f32[1,50], index: 2, kind: input, shape index: {}]
  %s3 = inlined_call_operand.hbm [shape: f32[16,50], index: 3, kind: output, shape index: {}]
  %s4 = sld [smem:[#allocation0]]
  $region22: #{_lambda_.21} parent=0
    _
  %s6 = ssub.s32 1, %s4
  %s7 = scalar_select 0, %s6, %s4
  $region1: #{_lambda_.21} parent=0
    #allocation2 [shape = 'u8[8192]{0}', space=vmem, size = 0x2000, scoped, tag = 'output window, operand 0, single buffered']
    #allocation3 [shape = 's32[1]{0}', space=sflag, size = 0x4, scoped, tag = 'scoped memory for _lambda_.21']
    %8 = vsyncpa [#allocation3], 0
    // Predicated region
    $region2: #{_lambda_.21} parent=1 // pred_check
      _
    $region3: #{_lambda_.21} parent=1 // pred_check_branch
      %10 = sbr.rel (0) target = $region5
    $region4: #{_lambda_.21} parent=1 // pred_region
      _
    $region5: #{_lambda_.21} parent=1 // pred_fallthru
      _
    // Predicated region
    $region6: #{_lambda_.21} parent=1 // pred_check
      _
    $region7: #{_lambda_.21} parent=1 // pred_check_branch
      %12 = sbr.rel (0) target = $region9
    $region8: #{_lambda_.21} parent=1 // pred_region
      _
    $region9: #{_lambda_.21} parent=1 // pred_fallthru
      _
    // Predicated region
    $region10: #{_lambda_.21} parent=1 // pred_check
      _
    $region11: #{_lambda_.21} parent=1 // pred_check_branch
      %14 = sbr.rel (0) target = $region13
    $region12: #{_lambda_.21} parent=1 // pred_region
      _
    $region13: #{_lambda_.21} parent=1 // pred_fallthru
      _
    %v16 = vld [vmem:[%s0] sm:$0xf]
    %v17 = vld [vmem:[%s0 + $0x4] sm:$0xf]
    %v18 = vld [vmem:[%s1] sm:$0xf]
    %v19 = vld [vmem:[%s1 + $0x4] sm:$0xf]
    %v20 = vld [vmem:[%s1 + $0x8] sm:$0xf]
    %v21 = vld [vmem:[%s1 + $0xc] sm:$0xf]
    %v22 = vld [vmem:[%s2] sm:$0x1]
    %v24 = vlaneseq
    %v25 = vshrl.u32 %v24, 7
    %v26 = vsub.s32 0, %v25
    %v27 = vrot.slane %v22, %v26
    %v31 = vunpack.c.l.b16 %v16
    %v32 = vunpack.c.l.b16 %v17
    %v33 = vpack.c.b16 %v32, %v31
    %v38 = vunpack.c.l.b16 %v18
    %v39 = vunpack.c.l.b16 %v19
    %v40 = vunpack.c.l.b16 %v20
    %v41 = vunpack.c.l.b16 %v21
    %v42 = vpack.c.b16 %v39, %v38
    %v43 = vpack.c.b16 %v41, %v40
    %vm46 = vcmask 261120
    %v48 = vsel %vm46, %v33, 0
    %50 = vmatprep.subr.bf16.mxu0 0
    %51 = vmatpush1.bf16.msra.mxu0 0
    %52 = vmatprep.subr.bf16.mxu0 0
    %53 = vmatpush1.bf16.msra.mxu0 0
    %54 = vmatprep.subr.bf16.mxu0 0
    %55 = vmatpush1.bf16.msra.mxu0 0
    %56 = vmatprep.subr.bf16.mxu0 0
    %57 = vmatpush1.bf16.msra.mxu0 0
    %58 = vmatprep.subr.bf16.mxu0 0
    %59 = vmatpush1.bf16.msra.mxu0 0
    %60 = vmatprep.subr.bf16.mxu0 0
    %61 = vmatpush1.bf16.msra.mxu0 0
    %62 = vmatprep.subr.bf16.mxu0 0
    %63 = vmatpush1.bf16.msra.mxu0 %v43
    %64 = vmatprep.subr.bf16.mxu0 0
    %65 = vmatpush1.bf16.msra.mxu0 %v42
    %66 = vmatprep.subr.bf16.mxu0 0
    %67 = vmatpush2.bf16.msra.mxu0 0
    %68 = vmatprep.subr.bf16.mxu0 0
    %69 = vmatpush2.bf16.msra.mxu0 0
    %70 = vmatprep.subr.bf16.mxu0 0
    %71 = vmatpush2.bf16.msra.mxu0 0
    %72 = vmatprep.subr.bf16.mxu0 0
    %73 = vmatpush2.bf16.msra.mxu0 0
    %74 = vmatprep.subr.bf16.mxu0 0
    %75 = vmatpush2.bf16.msra.mxu0 0
    %76 = vmatprep.subr.bf16.mxu0 0
    %77 = vmatpush2.bf16.msra.mxu0 0
    %78 = vmatprep.subr.bf16.mxu0 0
    %79 = vmatpush2.bf16.msra.mxu0 0
    %80 = vmatprep.subr.bf16.mxu0 0
    %81 = vmatpush2.bf16.msra.mxu0 0
    %82 = vmatprep.mubr.bf16.mxu0 0
    %83 = vmatmul.mubr.bf16.gmra.mxu0 %v48
    %v84 = vpop.f32.mrf.mxu0
    %v85 = vadd.f32 %v27, %v84
    %v86 = vpop.f32.mrf.mxu0
    %v87 = vpop.f32.mrf.mxu0
    %v88 = vadd.f32 %v27, %v87
    %v89 = vpop.f32.mrf.mxu0
    %90 = vdwg.mxu0
    %vm91 = vcmask 408576
    %92 = vst.msk [vmem:[#allocation2] sm:$0xff] %vm91, %v85
    %93 = vst.msk [vmem:[#allocation2 + $0x8] sm:$0xff] %vm91, %v88
    // Predicated region
    $region14: #{_lambda_.21} parent=1 // pred_check
      _
    $region15: #{_lambda_.21} parent=1 // pred_check_branch
      %95 = sbr.rel (0) target = $region17
    $region16: #{_lambda_.21} parent=1 // pred_region
      %s97 = ssub.s32 256, 256
      %98 = vsyncadd [#allocation3], %s97
      %s99 = sshll.u32 [#allocation2], 4
      %s100 = int_to_ptr.vmem [resolvable:$true] %s99
      %105 = dma.vmem_to_hbm [thread:$0]  %s100, 256, %s3, [#allocation3], 128, 128, 8
    $region17: #{_lambda_.21} parent=1 // pred_fallthru
      _
    // Predicated region
    $region18: #{_lambda_.21} parent=1 // pred_check
      _
    $region19: #{_lambda_.21} parent=1 // pred_check_branch
      %107 = sbr.rel (0) target = $region21
    $region20: #{_lambda_.21} parent=1 // pred_region
      %108 = dma.done [#allocation3], 256
    $region21: #{_lambda_.21} parent=1 // pred_fallthru
      _
    %109 = vsyncpa [#allocation3], 1

// kernel: _lambda_.15
$region0: #{_lambda_.15}
  #allocation0 [shape = 'u32[]', space=smem, size = 0x4, offset = 0x4, fixed_abs, tag = 'smem constant byte address 0x4 - core index']
  #allocation1 [shape = 'u32[144,128]{1,0:T(1,128)}', space=vmem, size = 0x12000, scoped, tag = 'internal scratch']
  %s0 = inlined_call_operand.vmem [shape: s32[2,1,8], index: 0, kind: input, shape index: {}]
  %s1 = inlined_call_operand.vmem [shape: bf16[2,8,32], index: 1, kind: input, shape index: {}]
  %s2 = inlined_call_operand.vmem [shape: f32[2,8,1], index: 2, kind: input, shape index: {}]
  %s3 = inlined_call_operand.vmem [shape: bf16[32,32], index: 3, kind: input, shape index: {}]
  %s4 = inlined_call_operand.vmem [shape: f32[1,32], index: 4, kind: input, shape index: {}]
  %s5 = inlined_call_operand.vmem [shape: bf16[32,64], index: 5, kind: input, shape index: {}]
  %s6 = inlined_call_operand.vmem [shape: f32[1,64], index: 6, kind: input, shape index: {}]
  %s7 = inlined_call_operand.vmem [shape: bf16[4,8,32], index: 7, kind: input, shape index: {}]
  %s8 = inlined_call_operand.vmem [shape: f32[1,32], index: 8, kind: input, shape index: {}]
  %s9 = inlined_call_operand.vmem [shape: f32[1,32], index: 9, kind: input, shape index: {}]
  %s10 = inlined_call_operand.vmem [shape: f32[1,32], index: 10, kind: input, shape index: {}]
  %s11 = inlined_call_operand.vmem [shape: bf16[2,8,32], index: 11, kind: output, shape index: {}]
  %s12 = sld [smem:[#allocation0]]
  $region77: #{_lambda_.15} parent=0
    _
  %s14 = ssub.s32 1, %s12
  %s15 = scalar_select 0, %s14, %s12
  loop: start=0, step=1, limit=4
  $region2: #{_lambda_.15} parent=0 // loop_pre_header
    _
  $region3: #{_lambda_.15} parent=0 // loop_header
    %s17 = sphi 0, %s21
    %p18 = scmp.ge.s32.totalorder %s17, 4
    %s24 = sphi 0, %s36
    %s25 = sphi 0, %s32
    %s26 = sphi 0, %s24
    %s27 = sphi 0, %s25
    %s28 = sphi 0, %s26
    %s29 = sphi 0, %s27
    %s39 = sphi 0, %s41
    %s42 = sphi 0, %s39
    %s43 = sphi 0, %s42
    %s59 = sphi 0, %s43
    %s65 = sphi 0, %s67
    %s68 = sphi 0, %s65
    %s69 = sphi 0, %s68
    %s85 = sphi 0, %s69
    %s93 = sphi 0, %s95
    %s96 = sphi 0, %s93
    %s97 = sphi 0, %s96
    %s113 = sphi 0, %s97
    %s117 = sphi 0, %s117
    %s119 = sphi 0, %s117
    %s120 = sphi 0, %s119
    %s134 = sphi 0, %s120
    %s138 = sphi 0, %s138
    %s140 = sphi 0, %s138
    %s141 = sphi 0, %s140
    %s155 = sphi 0, %s141
    %s159 = sphi 0, %s159
    %s161 = sphi 0, %s159
    %s162 = sphi 0, %s161
    %s176 = sphi 0, %s162
    %s180 = sphi 0, %s180
    %s182 = sphi 0, %s180
    %s183 = sphi 0, %s182
    %s197 = sphi 0, %s183
    %s201 = sphi 0, %s201
    %s203 = sphi 0, %s201
    %s204 = sphi 0, %s203
    %s218 = sphi 0, %s204
    %s222 = sphi 0, %s222
    %s224 = sphi 0, %s222
    %s225 = sphi 0, %s224
    %s239 = sphi 0, %s225
    %s243 = sphi 0, %s243
    %s245 = sphi 0, %s243
    %s246 = sphi 0, %s245
    %s260 = sphi 0, %s246
    %s264 = sphi 0, %s264
    %s266 = sphi 0, %s264
    %s267 = sphi 0, %s266
    %s281 = sphi 0, %s267
    %s289 = sphi 0, %s291
    %s292 = sphi 0, %s289
    %s293 = sphi 0, %s292
    %s309 = sphi 0, %s293
  $region4: #{_lambda_.15} parent=0 // loop_header_branch
    %20 = sbr.rel (%p18) target = $region8
  $region5: #{_lambda_.15} parent=0 // loop_body
    %s22 = ssub.s32 %s17, 1
    %s23 = ssub.s32 %s17, 2
    %s30 = sadd.s32 1, %s25
    %p31 = scmp.ge.s32.totalorder %s30, 1
    %s32 = scalar_select %p31, 0, %s30
    %s33 = sadd.s32 1, %s24
    %s34 = scalar_select %p31, %s33, %s24
    %p35 = scmp.ge.s32.totalorder %s34, 2
    %s36 = scalar_select %p35, 0, %s34
    %s37 = ssub.s32 %s24, %s36
    %p38 = scmp.eq.s32.totalorder %s37, 0
    %s40 = sadd.s32 %s39, 1
    %s41 = scalar_select %p38, %s39, %s40
    %p44 = pneg %p38
    %p45 = scmp.eq.s32.totalorder %s17, 1
    %p46 = por %p44, %p45
    %p47 = scmp.ne.s32.totalorder %s39, %s42
    %p48 = scmp.eq.s32.totalorder %s17, 0
    %p49 = por %p47, %p48
    %p50 = scmp.ne.s32.totalorder %s39, %s42
    %p51 = scmp.eq.s32.totalorder %s22, 1
    %p52 = por %p50, %p51
    %p53 = scmp.ne.s32.totalorder %s42, %s43
    %p54 = scmp.eq.s32.totalorder %s22, 0
    %p55 = por %p53, %p54
    %p56 = scmp.ne.s32.totalorder %s42, %s43
    %p57 = scmp.eq.s32.totalorder %s23, 1
    %p58 = por %p56, %p57
    %p60 = scmp.ne.s32.totalorder %s43, %s59
    %p61 = scmp.eq.s32.totalorder %s23, 0
    %p62 = por %p60, %p61
    %s63 = ssub.s32 %s24, %s36
    %p64 = scmp.eq.s32.totalorder %s63, 0
    %s66 = sadd.s32 %s65, 1
    %s67 = scalar_select %p64, %s65, %s66
    %p70 = pneg %p64
    %p71 = scmp.eq.s32.totalorder %s17, 1
    %p72 = por %p70, %p71
    %p73 = scmp.ne.s32.totalorder %s65, %s68
    %p74 = scmp.eq.s32.totalorder %s17, 0
    %p75 = por %p73, %p74
    %p76 = scmp.ne.s32.totalorder %s65, %s68
    %p77 = scmp.eq.s32.totalorder %s22, 1
    %p78 = por %p76, %p77
    %p79 = scmp.ne.s32.totalorder %s68, %s69
    %p80 = scmp.eq.s32.totalorder %s22, 0
    %p81 = por %p79, %p80
    %p82 = scmp.ne.s32.totalorder %s68, %s69
    %p83 = scmp.eq.s32.totalorder %s23, 1
    %p84 = por %p82, %p83
    %p86 = scmp.ne.s32.totalorder %s69, %s85
    %p87 = scmp.eq.s32.totalorder %s23, 0
    %p88 = por %p86, %p87
    %s89 = ssub.s32 %s24, %s36
    %s90 = ssub.s32 %s25, %s32
    %s91 = sor.u32 %s89, %s90
    %p92 = scmp.eq.s32.totalorder %s91, 0
    %s94 = sadd.s32 %s93, 1
    %s95 = scalar_select %p92, %s93, %s94
    %p98 = pneg %p92
    %p99 = scmp.eq.s32.totalorder %s17, 1
    %p100 = por %p98, %p99
    %p101 = scmp.ne.s32.totalorder %s93, %s96
    %p102 = scmp.eq.s32.totalorder %s17, 0
    %p103 = por %p101, %p102
    %p104 = scmp.ne.s32.totalorder %s93, %s96
    %p105 = scmp.eq.s32.totalorder %s22, 1
    %p106 = por %p104, %p105
    %p107 = scmp.ne.s32.totalorder %s96, %s97
    %p108 = scmp.eq.s32.totalorder %s22, 0
    %p109 = por %p107, %p108
    %p110 = scmp.ne.s32.totalorder %s96, %s97
    %p111 = scmp.eq.s32.totalorder %s23, 1
    %p112 = por %p110, %p111
    %p114 = scmp.ne.s32.totalorder %s97, %s113
    %p115 = scmp.eq.s32.totalorder %s23, 0
    %p116 = por %p114, %p115
    %s118 = sadd.s32 %s117, 1
    %p121 = scmp.eq.s32.totalorder %s17, 1
    %p122 = scmp.ne.s32.totalorder %s117, %s119
    %p123 = scmp.eq.s32.totalorder %s17, 0
    %p124 = por %p122, %p123
    %p125 = scmp.ne.s32.totalorder %s117, %s119
    %p126 = scmp.eq.s32.totalorder %s22, 1
    %p127 = por %p125, %p126
    %p128 = scmp.ne.s32.totalorder %s119, %s120
    %p129 = scmp.eq.s32.totalorder %s22, 0
    %p130 = por %p128, %p129
    %p131 = scmp.ne.s32.totalorder %s119, %s120
    %p132 = scmp.eq.s32.totalorder %s23, 1
    %p133 = por %p131, %p132
    %p135 = scmp.ne.s32.totalorder %s120, %s134
    %p136 = scmp.eq.s32.totalorder %s23, 0
    %p137 = por %p135, %p136
    %s139 = sadd.s32 %s138, 1
    %p142 = scmp.eq.s32.totalorder %s17, 1
    %p143 = scmp.ne.s32.totalorder %s138, %s140
    %p144 = scmp.eq.s32.totalorder %s17, 0
    %p145 = por %p143, %p144
    %p146 = scmp.ne.s32.totalorder %s138, %s140
    %p147 = scmp.eq.s32.totalorder %s22, 1
    %p148 = por %p146, %p147
    %p149 = scmp.ne.s32.totalorder %s140, %s141
    %p150 = scmp.eq.s32.totalorder %s22, 0
    %p151 = por %p149, %p150
    %p152 = scmp.ne.s32.totalorder %s140, %s141
    %p153 = scmp.eq.s32.totalorder %s23, 1
    %p154 = por %p152, %p153
    %p156 = scmp.ne.s32.totalorder %s141, %s155
    %p157 = scmp.eq.s32.totalorder %s23, 0
    %p158 = por %p156, %p157
    %s160 = sadd.s32 %s159, 1
    %p163 = scmp.eq.s32.totalorder %s17, 1
    %p164 = scmp.ne.s32.totalorder %s159, %s161
    %p165 = scmp.eq.s32.totalorder %s17, 0
    %p166 = por %p164, %p165
    %p167 = scmp.ne.s32.totalorder %s159, %s161
    %p168 = scmp.eq.s32.totalorder %s22, 1
    %p169 = por %p167, %p168
    %p170 = scmp.ne.s32.totalorder %s161, %s162
    %p171 = scmp.eq.s32.totalorder %s22, 0
    %p172 = por %p170, %p171
    %p173 = scmp.ne.s32.totalorder %s161, %s162
    %p174 = scmp.eq.s32.totalorder %s23, 1
    %p175 = por %p173, %p174
    %p177 = scmp.ne.s32.totalorder %s162, %s176
    %p178 = scmp.eq.s32.totalorder %s23, 0
    %p179 = por %p177, %p178
    %s181 = sadd.s32 %s180, 1
    %p184 = scmp.eq.s32.totalorder %s17, 1
    %p185 = scmp.ne.s32.totalorder %s180, %s182
    %p186 = scmp.eq.s32.totalorder %s17, 0
    %p187 = por %p185, %p186
    %p188 = scmp.ne.s32.totalorder %s180, %s182
    %p189 = scmp.eq.s32.totalorder %s22, 1
    %p190 = por %p188, %p189
    %p191 = scmp.ne.s32.totalorder %s182, %s183
    %p192 = scmp.eq.s32.totalorder %s22, 0
    %p193 = por %p191, %p192
    %p194 = scmp.ne.s32.totalorder %s182, %s183
    %p195 = scmp.eq.s32.totalorder %s23, 1
    %p196 = por %p194, %p195
    %p198 = scmp.ne.s32.totalorder %s183, %s197
    %p199 = scmp.eq.s32.totalorder %s23, 0
    %p200 = por %p198, %p199
    %s202 = sadd.s32 %s201, 1
    %p205 = scmp.eq.s32.totalorder %s17, 1
    %p206 = scmp.ne.s32.totalorder %s201, %s203
    %p207 = scmp.eq.s32.totalorder %s17, 0
    %p208 = por %p206, %p207
    %p209 = scmp.ne.s32.totalorder %s201, %s203
    %p210 = scmp.eq.s32.totalorder %s22, 1
    %p211 = por %p209, %p210
    %p212 = scmp.ne.s32.totalorder %s203, %s204
    %p213 = scmp.eq.s32.totalorder %s22, 0
    %p214 = por %p212, %p213
    %p215 = scmp.ne.s32.totalorder %s203, %s204
    %p216 = scmp.eq.s32.totalorder %s23, 1
    %p217 = por %p215, %p216
    %p219 = scmp.ne.s32.totalorder %s204, %s218
    %p220 = scmp.eq.s32.totalorder %s23, 0
    %p221 = por %p219, %p220
    %s223 = sadd.s32 %s222, 1
    %p226 = scmp.eq.s32.totalorder %s17, 1
    %p227 = scmp.ne.s32.totalorder %s222, %s224
    %p228 = scmp.eq.s32.totalorder %s17, 0
    %p229 = por %p227, %p228
    %p230 = scmp.ne.s32.totalorder %s222, %s224
    %p231 = scmp.eq.s32.totalorder %s22, 1
    %p232 = por %p230, %p231
    %p233 = scmp.ne.s32.totalorder %s224, %s225
    %p234 = scmp.eq.s32.totalorder %s22, 0
    %p235 = por %p233, %p234
    %p236 = scmp.ne.s32.totalorder %s224, %s225
    %p237 = scmp.eq.s32.totalorder %s23, 1
    %p238 = por %p236, %p237
    %p240 = scmp.ne.s32.totalorder %s225, %s239
    %p241 = scmp.eq.s32.totalorder %s23, 0
    %p242 = por %p240, %p241
    %s244 = sadd.s32 %s243, 1
    %p247 = scmp.eq.s32.totalorder %s17, 1
    %p248 = scmp.ne.s32.totalorder %s243, %s245
    %p249 = scmp.eq.s32.totalorder %s17, 0
    %p250 = por %p248, %p249
    %p251 = scmp.ne.s32.totalorder %s243, %s245
    %p252 = scmp.eq.s32.totalorder %s22, 1
    %p253 = por %p251, %p252
    %p254 = scmp.ne.s32.totalorder %s245, %s246
    %p255 = scmp.eq.s32.totalorder %s22, 0
    %p256 = por %p254, %p255
    %p257 = scmp.ne.s32.totalorder %s245, %s246
    %p258 = scmp.eq.s32.totalorder %s23, 1
    %p259 = por %p257, %p258
    %p261 = scmp.ne.s32.totalorder %s246, %s260
    %p262 = scmp.eq.s32.totalorder %s23, 0
    %p263 = por %p261, %p262
    %s265 = sadd.s32 %s264, 1
    %p268 = scmp.eq.s32.totalorder %s17, 1
    %p269 = scmp.ne.s32.totalorder %s264, %s266
    %p270 = scmp.eq.s32.totalorder %s17, 0
    %p271 = por %p269, %p270
    %p272 = scmp.ne.s32.totalorder %s264, %s266
    %p273 = scmp.eq.s32.totalorder %s22, 1
    %p274 = por %p272, %p273
    %p275 = scmp.ne.s32.totalorder %s266, %s267
    %p276 = scmp.eq.s32.totalorder %s22, 0
    %p277 = por %p275, %p276
    %p278 = scmp.ne.s32.totalorder %s266, %s267
    %p279 = scmp.eq.s32.totalorder %s23, 1
    %p280 = por %p278, %p279
    %p282 = scmp.ne.s32.totalorder %s267, %s281
    %p283 = scmp.eq.s32.totalorder %s23, 0
    %p284 = por %p282, %p283
    %s285 = ssub.s32 %s24, %s36
    %s286 = ssub.s32 %s25, %s32
    %s287 = sor.u32 %s285, %s286
    %p288 = scmp.eq.s32.totalorder %s287, 0
    %s290 = sadd.s32 %s289, 1
    %s291 = scalar_select %p288, %s289, %s290
    %p294 = pneg %p288
    %p295 = scmp.eq.s32.totalorder %s17, 1
    %p296 = por %p294, %p295
    %p297 = scmp.ne.s32.totalorder %s289, %s292
    %p298 = scmp.eq.s32.totalorder %s17, 0
    %p299 = por %p297, %p298
    %p300 = scmp.ne.s32.totalorder %s289, %s292
    %p301 = scmp.eq.s32.totalorder %s22, 1
    %p302 = por %p300, %p301
    %p303 = scmp.ne.s32.totalorder %s292, %s293
    %p304 = scmp.eq.s32.totalorder %s22, 0
    %p305 = por %p303, %p304
    %p306 = scmp.ne.s32.totalorder %s292, %s293
    %p307 = scmp.eq.s32.totalorder %s23, 1
    %p308 = por %p306, %p307
    %p310 = scmp.ne.s32.totalorder %s293, %s309
    %p311 = scmp.eq.s32.totalorder %s23, 0
    %p312 = por %p310, %p311
    %p313 = scmp.le.s32.totalorder 1, %s17
    %p314 = scmp.lt.s32.totalorder %s17, 3
    %p315 = pnand %p313, %p314
    %p316 = pneg %p315
    // Predicated region
    $region9: #{_lambda_.15} parent=5 // pred_check
      _
    $region10: #{_lambda_.15} parent=5 // pred_check_branch
      %318 = sbr.rel (%p315) target = $region12
    $region11: #{_lambda_.15} parent=5 // pred_region
      %s319 = ssub.s32 %s17, 1
      // Predicated region
      $region13: #{_lambda_.15} parent=11 // pred_check
        %p320 = pneg %p130
      $region14: #{_lambda_.15} parent=11 // pred_check_branch
        %322 = sbr.rel (%p320) target = $region16
      $region15: #{_lambda_.15} parent=11 // pred_region
        _
      $region16: #{_lambda_.15} parent=11 // pred_fallthru
        _
      // Predicated region
      $region17: #{_lambda_.15} parent=11 // pred_check
        %p323 = pneg %p151
      $region18: #{_lambda_.15} parent=11 // pred_check_branch
        %325 = sbr.rel (%p323) target = $region20
      $region19: #{_lambda_.15} parent=11 // pred_region
        _
      $region20: #{_lambda_.15} parent=11 // pred_fallthru
        _
      // Predicated region
      $region21: #{_lambda_.15} parent=11 // pred_check
        %p326 = pneg %p172
      $region22: #{_lambda_.15} parent=11 // pred_check_branch
        %328 = sbr.rel (%p326) target = $region24
      $region23: #{_lambda_.15} parent=11 // pred_region
        _
      $region24: #{_lambda_.15} parent=11 // pred_fallthru
        _
      // Predicated region
      $region25: #{_lambda_.15} parent=11 // pred_check
        %p329 = pneg %p193
      $region26: #{_lambda_.15} parent=11 // pred_check_branch
        %331 = sbr.rel (%p329) target = $region28
      $region27: #{_lambda_.15} parent=11 // pred_region
        _
      $region28: #{_lambda_.15} parent=11 // pred_fallthru
        _
      // Predicated region
      $region29: #{_lambda_.15} parent=11 // pred_check
        %p332 = pneg %p214
      $region30: #{_lambda_.15} parent=11 // pred_check_branch
        %334 = sbr.rel (%p332) target = $region32
      $region31: #{_lambda_.15} parent=11 // pred_region
        _
      $region32: #{_lambda_.15} parent=11 // pred_fallthru
        _
      // Predicated region
      $region33: #{_lambda_.15} parent=11 // pred_check
        %p335 = pneg %p235
      $region34: #{_lambda_.15} parent=11 // pred_check_branch
        %337 = sbr.rel (%p335) target = $region36
      $region35: #{_lambda_.15} parent=11 // pred_region
        _
      $region36: #{_lambda_.15} parent=11 // pred_fallthru
        _
      // Predicated region
      $region37: #{_lambda_.15} parent=11 // pred_check
        %p338 = pneg %p256
      $region38: #{_lambda_.15} parent=11 // pred_check_branch
        %340 = sbr.rel (%p338) target = $region40
      $region39: #{_lambda_.15} parent=11 // pred_region
        _
      $region40: #{_lambda_.15} parent=11 // pred_fallthru
        _
      // Predicated region
      $region41: #{_lambda_.15} parent=11 // pred_check
        %p341 = pneg %p277
      $region42: #{_lambda_.15} parent=11 // pred_check_branch
        %343 = sbr.rel (%p341) target = $region44
      $region43: #{_lambda_.15} parent=11 // pred_region
        _
      $region44: #{_lambda_.15} parent=11 // pred_fallthru
        _
    $region12: #{_lambda_.15} parent=5 // pred_fallthru
      _
    %p344 = scmp.lt.s32.totalorder %s17, 2
    // Predicated region
    $region45: #{_lambda_.15} parent=5 // pred_check
      %p345 = pneg %p344
    $region46: #{_lambda_.15} parent=5 // pred_check_branch
      %347 = sbr.rel (%p345) target = $region48
    $region47: #{_lambda_.15} parent=5 // pred_region
      // Predicated region
      $region49: #{_lambda_.15} parent=47 // pred_check
        %p348 = pneg %p49
      $region50: #{_lambda_.15} parent=47 // pred_check_branch
        %350 = sbr.rel (%p348) target = $region52
      $region51: #{_lambda_.15} parent=47 // pred_region
        %p351 = scmp.lt.s32.totalorder %s24, 1
        %s352 = scalar_select %p351, %s24, 1
        %s353 = scalar_lea.vmem %s0, %s352
      $region52: #{_lambda_.15} parent=47 // pred_fallthru
        _
      // Predicated region
      $region53: #{_lambda_.15} parent=47 // pred_check
        %p354 = pneg %p75
      $region54: #{_lambda_.15} parent=47 // pred_check_branch
        %356 = sbr.rel (%p354) target = $region56
      $region55: #{_lambda_.15} parent=47 // pred_region
        %p357 = scmp.lt.s32.totalorder %s24, 1
        %s358 = scalar_select %p357, %s24, 1
        %s359 = smul.addr %s358, 4
        %s360 = scalar_lea.vmem %s1, %s359
      $region56: #{_lambda_.15} parent=47 // pred_fallthru
        _
      // Predicated region
      $region57: #{_lambda_.15} parent=47 // pred_check
        %p361 = pneg %p103
      $region58: #{_lambda_.15} parent=47 // pred_check_branch
        %363 = sbr.rel (%p361) target = $region60
      $region59: #{_lambda_.15} parent=47 // pred_region
        %p364 = scmp.lt.s32.totalorder %s24, 1
        %s365 = scalar_select %p364, %s24, 1
        %p366 = scmp.lt.s32.totalorder %s25, 0
        %s367 = scalar_select %p366, %s25, 0
        %s368 = sadd.s32 %s367, %s365
        %s369 = smul.addr %s368, 8
        %s370 = scalar_lea.vmem %s2, %s369
      $region60: #{_lambda_.15} parent=47 // pred_fallthru
        _
    $region48: #{_lambda_.15} parent=5 // pred_fallthru
      _
    %p371 = scmp.le.s32.totalorder 1, %s17
    %p372 = scmp.lt.s32.totalorder %s17, 3
    %p373 = pnand %p371, %p372
    %p374 = pneg %p373
    // Predicated region
    $region61: #{_lambda_.15} parent=5 // pred_check
      _
    $region62: #{_lambda_.15} parent=5 // pred_check_branch
      %376 = sbr.rel (%p373) target = $region64
    $region63: #{_lambda_.15} parent=5 // pred_region
      %s377 = ssub.s32 %s17, 1
      %p378 = scmp.lt.s32.totalorder %s26, 1
      %s379 = scalar_select %p378, %s26, 1
      %s380 = scalar_lea.vmem %s0, %s379
      %p381 = pneg %p55
      %p382 = pneg %p52
      %p383 = scmp.lt.s32.totalorder %s26, 1
      %s384 = scalar_select %p383, %s26, 1
      %s385 = smul.addr %s384, 4
      %s386 = scalar_lea.vmem %s1, %s385
      %p387 = pneg %p81
      %p388 = pneg %p78
      %p389 = scmp.lt.s32.totalorder %s26, 1
      %s390 = scalar_select %p389, %s26, 1
      %p391 = scmp.lt.s32.totalorder %s27, 0
      %s392 = scalar_select %p391, %s27, 0
      %s393 = sadd.s32 %s392, %s390
      %s394 = smul.addr %s393, 8
      %s395 = scalar_lea.vmem %s2, %s394
      %p396 = pneg %p109
      %p397 = pneg %p106
      %p398 = pneg %p130
      %p399 = pneg %p127
      %p400 = pneg %p151
      %p401 = pneg %p148
      %p402 = pneg %p172
      %p403 = pneg %p169
      %p404 = pneg %p193
      %p405 = pneg %p190
      %p406 = pneg %p214
      %p407 = pneg %p211
      %p408 = pneg %p235
      %p409 = pneg %p232
      %p410 = pneg %p256
      %p411 = pneg %p253
      %p412 = pneg %p277
      %p413 = pneg %p274
      %p414 = pneg %p305
      %p415 = pneg %p302
      %p416 = scmp.lt.s32.totalorder %s26, 1
      %s417 = scalar_select %p416, %s26, 1
      %p418 = scmp.lt.s32.totalorder %s27, 0
      %s419 = scalar_select %p418, %s27, 0
      %s420 = sadd.s32 %s419, %s417
      %s421 = smul.addr %s420, 4
      %s422 = scalar_lea.vmem %s11, %s421
      %p423 = scmp.lt.s32.totalorder %s26, 1
      %s424 = scalar_select %p423, %s26, 1
      %s425 = scalar_lea.vmem %s0, %s424
      %p426 = scmp.lt.s32.totalorder %s26, 1
      %s427 = scalar_select %p426, %s26, 1
      %s428 = smul.addr %s427, 4
      %s429 = scalar_lea.vmem %s1, %s428
      %p430 = scmp.lt.s32.totalorder %s26, 1
      %s431 = scalar_select %p430, %s26, 1
      %p432 = scmp.lt.s32.totalorder %s27, 0
      %s433 = scalar_select %p432, %s27, 0
      %s434 = sadd.s32 %s433, %s431
      %s435 = smul.addr %s434, 8
      %s436 = scalar_lea.vmem %s2, %s435
      %p437 = scmp.lt.s32.totalorder %s26, 1
      %s438 = scalar_select %p437, %s26, 1
      %p439 = scmp.lt.s32.totalorder %s27, 0
      %s440 = scalar_select %p439, %s27, 0
      %s441 = sadd.s32 %s440, %s438
      %s442 = smul.addr %s441, 4
      %s443 = scalar_lea.vmem %s11, %s442
      %s445 = smul.u32 %s27, 8
      %v446 = vld [vmem:[%s429] sm:$0xf]
      %v447 = vunpack.c.l.bf16 %v446
      %v448 = vld [vmem:[%s3] sm:$0xf]
      %v449 = vld [vmem:[%s3 + $0x4] sm:$0xf]
      %v450 = vld [vmem:[%s3 + $0x8] sm:$0xf]
      %v451 = vld [vmem:[%s3 + $0xc] sm:$0xf]
      %v452 = vld [vmem:[%s4] sm:$0x1]
      %v454 = vlaneseq
      %v455 = vshrl.u32 %v454, 7
      %v456 = vsub.s32 0, %v455
      %v457 = vrot.slane %v452, %v456
      %v463 = vunpack.c.l.b16 %v448
      %v464 = vunpack.c.l.b16 %v449
      %v465 = vunpack.c.l.b16 %v450
      %v466 = vunpack.c.l.b16 %v451
      %v467 = vpack.c.b16 %v464, %v463
      %v468 = vpack.c.b16 %v466, %v465
      %vm471 = vcmask 261120
      %v473 = vsel %vm471, %v446, 0
      %475 = vmatprep.subr.bf16.mxu0 0
      %476 = vmatpush1.bf16.msra.mxu0 0
      %477 = vmatprep.subr.bf16.mxu0 0
      %478 = vmatpush1.bf16.msra.mxu0 0
      %479 = vmatprep.subr.bf16.mxu0 0
      %480 = vmatpush1.bf16.msra.mxu0 0
      %481 = vmatprep.subr.bf16.mxu0 0
      %482 = vmatpush1.bf16.msra.mxu0 0
      %483 = vmatprep.subr.bf16.mxu0 0
      %484 = vmatpush1.bf16.msra.mxu0 0
      %485 = vmatprep.subr.bf16.mxu0 0
      %486 = vmatpush1.bf16.msra.mxu0 0
      %487 = vmatprep.subr.bf16.mxu0 0
      %488 = vmatpush1.bf16.msra.mxu0 %v468
      %489 = vmatprep.subr.bf16.mxu0 0
      %490 = vmatpush1.bf16.msra.mxu0 %v467
      %491 = vmatprep.subr.bf16.mxu0 0
      %492 = vmatpush2.bf16.msra.mxu0 0
      %493 = vmatprep.subr.bf16.mxu0 0
      %494 = vmatpush2.bf16.msra.mxu0 0
      %495 = vmatprep.subr.bf16.mxu0 0
      %496 = vmatpush2.bf16.msra.mxu0 0
      %497 = vmatprep.subr.bf16.mxu0 0
      %498 = vmatpush2.bf16.msra.mxu0 0
      %499 = vmatprep.subr.bf16.mxu0 0
      %500 = vmatpush2.bf16.msra.mxu0 0
      %501 = vmatprep.subr.bf16.mxu0 0
      %502 = vmatpush2.bf16.msra.mxu0 0
      %503 = vmatprep.subr.bf16.mxu0 0
      %504 = vmatpush2.bf16.msra.mxu0 0
      %505 = vmatprep.subr.bf16.mxu0 0
      %506 = vmatpush2.bf16.msra.mxu0 0
      %507 = vmatprep.mubr.bf16.mxu0 0
      %508 = vmatmul.mubr.bf16.gmra.mxu0 %v473
      %v509 = vpop.f32.mrf.mxu0
      %v510 = vadd.f32 %v457, %v509
      %v511 = vpop.f32.mrf.mxu0
      %v512 = vpop.f32.mrf.mxu0
      %v513 = vpop.f32.mrf.mxu0
      %514 = vdwg.mxu0
      %v515 = vld [vmem:[%s5] sm:$0xf]
      %v516 = vld [vmem:[%s5 + $0x4] sm:$0xf]
      %v517 = vld [vmem:[%s5 + $0x8] sm:$0xf]
      %v518 = vld [vmem:[%s5 + $0xc] sm:$0xf]
      %v519 = vld [vmem:[%s6] sm:$0x1]
      %v521 = vlaneseq
      %v522 = vshrl.u32 %v521, 7
      %v523 = vsub.s32 0, %v522
      %v524 = vrot.slane %v519, %v523
      %v530 = vunpack.c.l.b16 %v515
      %v531 = vunpack.c.l.b16 %v516
      %v532 = vunpack.c.l.b16 %v517
      %v533 = vunpack.c.l.b16 %v518
      %v534 = vpack.c.b16 %v531, %v530
      %v535 = vpack.c.b16 %v533, %v532
      %538 = vmatprep.subr.bf16.mxu0 0
      %539 = vmatpush1.bf16.msra.mxu0 0
      %540 = vmatprep.subr.bf16.mxu0 0
      %541 = vmatpush1.bf16.msra.mxu0 0
      %542 = vmatprep.subr.bf16.mxu0 0
      %543 = vmatpush1.bf16.msra.mxu0 0
      %544 = vmatprep.subr.bf16.mxu0 0
      %545 = vmatpush1.bf16.msra.mxu0 0
      %546 = vmatprep.subr.bf16.mxu0 0
      %547 = vmatpush1.bf16.msra.mxu0 0
      %548 = vmatprep.subr.bf16.mxu0 0
      %549 = vmatpush1.bf16.msra.mxu0 0
      %550 = vmatprep.subr.bf16.mxu0 0
      %551 = vmatpush1.bf16.msra.mxu0 %v535
      %552 = vmatprep.subr.bf16.mxu0 0
      %553 = vmatpush1.bf16.msra.mxu0 %v534
      %554 = vmatprep.subr.bf16.mxu0 0
      %555 = vmatpush2.bf16.msra.mxu0 0
      %556 = vmatprep.subr.bf16.mxu0 0
      %557 = vmatpush2.bf16.msra.mxu0 0
      %558 = vmatprep.subr.bf16.mxu0 0
      %559 = vmatpush2.bf16.msra.mxu0 0
      %560 = vmatprep.subr.bf16.mxu0 0
      %561 = vmatpush2.bf16.msra.mxu0 0
      %562 = vmatprep.subr.bf16.mxu0 0
      %563 = vmatpush2.bf16.msra.mxu0 0
      %564 = vmatprep.subr.bf16.mxu0 0
      %565 = vmatpush2.bf16.msra.mxu0 0
      %566 = vmatprep.subr.bf16.mxu0 0
      %567 = vmatpush2.bf16.msra.mxu0 0
      %568 = vmatprep.subr.bf16.mxu0 0
      %569 = vmatpush2.bf16.msra.mxu0 0
      %570 = vmatprep.mubr.bf16.mxu0 0
      %571 = vmatmul.mubr.bf16.gmra.mxu0 %v473
      %v572 = vpop.f32.mrf.mxu0
      %v573 = vadd.f32 %v524, %v572
      %v574 = vpop.f32.mrf.mxu0
      %v575 = vpop.f32.mrf.mxu0
      %v576 = vpop.f32.mrf.mxu0
      %577 = vdwg.mxu0
      %v578 = vpack.c.bf16 %v510, %v510
      %v579 = vpack.c.bf16 %v573, %v573
      %v580 = vld [vmem:[%s425] sm:$0x1]
      %vm581 = vcmp.eq.s32.totalorder %v580, 0
      %v582 = vsel %vm581, -1e+09, 0.0
      %v583 = vlaneseq
      %v584 = vshrl.u32 %v583, 7
      %v585 = vstv %s445
      %v586 = vadd.s32 %v584, %v585
      %v587 = vlaneseq
      %v588 = vand.u32 %v587, 127
      %vm589 = vcmp.gt.s32.totalorder %v588, %v586
      %v590 = vsel %vm589, -1e+09, 0.0
      %v592 = vlaneseq
      %v593 = vshrl.u32 %v592, 7
      %v594 = vsub.s32 0, %v593
      %v595 = vrot.slane %v582, %v594
      %v597 = vadd.f32 %v595, %v590
      %vm598 = vcmask 64512
      %v600 = vsel %vm598, %v578, 0
      %v603 = vsel %vm598, %v579, 0
      %605 = vmatprep.subr.bf16.mxu0 0
      %606 = vmatpush1.bf16.xpose.msra.mxu0 0
      %607 = vmatprep.subr.bf16.mxu0 0
      %608 = vmatpush1.bf16.xpose.msra.mxu0 0
      %609 = vmatprep.subr.bf16.mxu0 0
      %610 = vmatpush1.bf16.xpose.msra.mxu0 0
      %611 = vmatprep.subr.bf16.mxu0 0
      %612 = vmatpush1.bf16.xpose.msra.mxu0 0
      %613 = vmatprep.subr.bf16.mxu0 0
      %614 = vmatpush1.bf16.xpose.msra.mxu0 0
      %615 = vmatprep.subr.bf16.mxu0 0
      %616 = vmatpush1.bf16.xpose.msra.mxu0 0
      %617 = vmatprep.subr.bf16.mxu0 0
      %618 = vmatpush1.bf16.xpose.msra.mxu0 0
      %619 = vmatprep.subr.bf16.mxu0 0
      %620 = vmatpush1.bf16.xpose.msra.mxu0 %v603
      %621 = vmatprep.subr.bf16.mxu0 0
      %622 = vmatpush2.bf16.xpose.msra.mxu0 0
      %623 = vmatprep.subr.bf16.mxu0 0
      %624 = vmatpush2.bf16.xpose.msra.mxu0 0
      %625 = vmatprep.subr.bf16.mxu0 0
      %626 = vmatpush2.bf16.xpose.msra.mxu0 0
      %627 = vmatprep.subr.bf16.mxu0 0
      %628 = vmatpush2.bf16.xpose.msra.mxu0 0
      %629 = vmatprep.subr.bf16.mxu0 0
      %630 = vmatpush2.bf16.xpose.msra.mxu0 0
      %631 = vmatprep.subr.bf16.mxu0 0
      %632 = vmatpush2.bf16.xpose.msra.mxu0 0
      %633 = vmatprep.subr.bf16.mxu0 0
      %634 = vmatpush2.bf16.xpose.msra.mxu0 0
      %635 = vmatprep.subr.bf16.mxu0 0
      %636 = vmatpush2.bf16.xpose.msra.mxu0 0
      %637 = vmatprep.mubr.bf16.mxu0 0
      %638 = vmatmul.mubr.bf16.gmra.mxu0 %v600
      %v639 = vpop.f32.mrf.mxu0
      %v640 = vadd.f32 %v597, %v639
      %v641 = vpop.f32.mrf.mxu0
      %v642 = vpop.f32.mrf.mxu0
      %v643 = vpop.f32.mrf.mxu0
      %644 = vdwg.mxu0
      %v645 = vsel %vm598, %v640, -inf
      %646 = vmax.xlane.f32.xlu0 %v645
      %v647 = vpop.xlane.xlu0 %646
      %v648 = vsub.f32 %v640, %v647
      %v649 = vmul.f32 %v648, 1.442695
      %v650 = vpow.pop %v649
      %v651 = vsel %vm598, %v650, 0.0
      %652 = vadd.xlane.f32.xlu0 %v651
      %v653 = vpop.xlane.xlu0 %652
      %v654 = vrcp.pop %v653
      %v655 = vmul.f32 %v650, %v654
      %v656 = vpack.c.bf16 %v655, %v655
      %658 = vrot.lane.b32.xlu0 %v579, 96
      %v659 = vpop.permute.xlu0 %658
      %v661 = vsel %vm598, %v656, 0
      %vm663 = vcmask 1043456
      %v665 = vsel %vm663, %v659, 0
      %667 = vmatprep.subr.bf16.mxu0 0
      %668 = vmatpush1.bf16.msra.mxu0 0
      %669 = vmatprep.subr.bf16.mxu0 0
      %670 = vmatpush1.bf16.msra.mxu0 0
      %671 = vmatprep.subr.bf16.mxu0 0
      %672 = vmatpush1.bf16.msra.mxu0 0
      %673 = vmatprep.subr.bf16.mxu0 0
      %674 = vmatpush1.bf16.msra.mxu0 0
      %675 = vmatprep.subr.bf16.mxu0 0
      %676 = vmatpush1.bf16.msra.mxu0 0
      %677 = vmatprep.subr.bf16.mxu0 0
      %678 = vmatpush1.bf16.msra.mxu0 0
      %679 = vmatprep.subr.bf16.mxu0 0
      %680 = vmatpush1.bf16.msra.mxu0 0
      %681 = vmatprep.subr.bf16.mxu0 0
      %682 = vmatpush1.bf16.msra.mxu0 %v665
      %683 = vmatprep.subr.bf16.mxu0 0
      %684 = vmatpush2.bf16.msra.mxu0 0
      %685 = vmatprep.subr.bf16.mxu0 0
      %686 = vmatpush2.bf16.msra.mxu0 0
      %687 = vmatprep.subr.bf16.mxu0 0
      %688 = vmatpush2.bf16.msra.mxu0 0
      %689 = vmatprep.subr.bf16.mxu0 0
      %690 = vmatpush2.bf16.msra.mxu0 0
      %691 = vmatprep.subr.bf16.mxu0 0
      %692 = vmatpush2.bf16.msra.mxu0 0
      %693 = vmatprep.subr.bf16.mxu0 0
      %694 = vmatpush2.bf16.msra.mxu0 0
      %695 = vmatprep.subr.bf16.mxu0 0
      %696 = vmatpush2.bf16.msra.mxu0 0
      %697 = vmatprep.subr.bf16.mxu0 0
      %698 = vmatpush2.bf16.msra.mxu0 0
      %699 = vmatprep.mubr.bf16.mxu0 0
      %700 = vmatmul.mubr.bf16.gmra.mxu0 %v661
      %v701 = vpop.f32.mrf.mxu0
      %v702 = vadd.f32 0.0, %v701
      %v703 = vpop.f32.mrf.mxu0
      %v704 = vpop.f32.mrf.mxu0
      %v705 = vpop.f32.mrf.mxu0
      %706 = vdwg.mxu0
      %v707 = vpack.c.bf16 %v702, %v702
      %v708 = vld [vmem:[%s7] sm:$0xf]
      %710 = vrot.lane.b32.xlu0 %v578, 120
      %v711 = vpop.permute.xlu0 %710
      %712 = vrot.lane.b32.xlu0 %v579, 120
      %v713 = vpop.permute.xlu0 %712
      %v715 = vsel %vm598, %v711, 0
      %v718 = vsel %vm598, %v713, 0
      %720 = vmatprep.subr.bf16.mxu0 0
      %721 = vmatpush1.bf16.xpose.msra.mxu0 0
      %722 = vmatprep.subr.bf16.mxu0 0
      %723 = vmatpush1.bf16.xpose.msra.mxu0 0
      %724 = vmatprep.subr.bf16.mxu0 0
      %725 = vmatpush1.bf16.xpose.msra.mxu0 0
      %726 = vmatprep.subr.bf16.mxu0 0
      %727 = vmatpush1.bf16.xpose.msra.mxu0 0
      %728 = vmatprep.subr.bf16.mxu0 0
      %729 = vmatpush1.bf16.xpose.msra.mxu0 0
      %730 = vmatprep.subr.bf16.mxu0 0
      %731 = vmatpush1.bf16.xpose.msra.mxu0 0
      %732 = vmatprep.subr.bf16.mxu0 0
      %733 = vmatpush1.bf16.xpose.msra.mxu0 0
      %734 = vmatprep.subr.bf16.mxu0 0
      %735 = vmatpush1.bf16.xpose.msra.mxu0 %v718
      %736 = vmatprep.subr.bf16.mxu0 0
      %737 = vmatpush2.bf16.xpose.msra.mxu0 0
      %738 = vmatprep.subr.bf16.mxu0 0
      %739 = vmatpush2.bf16.xpose.msra.mxu0 0
      %740 = vmatprep.subr.bf16.mxu0 0
      %741 = vmatpush2.bf16.xpose.msra.mxu0 0
      %742 = vmatprep.subr.bf16.mxu0 0
      %743 = vmatpush2.bf16.xpose.msra.mxu0 0
      %744 = vmatprep.subr.bf16.mxu0 0
      %745 = vmatpush2.bf16.xpose.msra.mxu0 0
      %746 = vmatprep.subr.bf16.mxu0 0
      %747 = vmatpush2.bf16.xpose.msra.mxu0 0
      %748 = vmatprep.subr.bf16.mxu0 0
      %749 = vmatpush2.bf16.xpose.msra.mxu0 0
      %750 = vmatprep.subr.bf16.mxu0 0
      %751 = vmatpush2.bf16.xpose.msra.mxu0 0
      %752 = vmatprep.mubr.bf16.mxu0 0
      %753 = vmatmul.mubr.bf16.gmra.mxu0 %v715
      %v754 = vpop.f32.mrf.mxu0
      %v755 = vadd.f32 %v597, %v754
      %v756 = vpop.f32.mrf.mxu0
      %v757 = vpop.f32.mrf.mxu0
      %v758 = vpop.f32.mrf.mxu0
      %759 = vdwg.mxu0
      %v760 = vsel %vm598, %v755, -inf
      %761 = vmax.xlane.f32.xlu0 %v760
      %v762 = vpop.xlane.xlu0 %761
      %v763 = vsub.f32 %v755, %v762
      %v764 = vmul.f32 %v763, 1.442695
      %v765 = vpow.pop %v764
      %v766 = vsel %vm598, %v765, 0.0
      %767 = vadd.xlane.f32.xlu0 %v766
      %v768 = vpop.xlane.xlu0 %767
      %v769 = vrcp.pop %v768
      %v770 = vmul.f32 %v765, %v769
      %v771 = vpack.c.bf16 %v770, %v770
      %772 = vrot.lane.b32.xlu0 %v579, 88
      %v773 = vpop.permute.xlu0 %772
      %v775 = vsel %vm598, %v771, 0
      %v778 = vsel %vm663, %v773, 0
      %780 = vmatprep.subr.bf16.mxu0 0
      %781 = vmatpush1.bf16.msra.mxu0 0
      %782 = vmatprep.subr.bf16.mxu0 0
      %783 = vmatpush1.bf16.msra.mxu0 0
      %784 = vmatprep.subr.bf16.mxu0 0
      %785 = vmatpush1.bf16.msra.mxu0 0
      %786 = vmatprep.subr.bf16.mxu0 0
      %787 = vmatpush1.bf16.msra.mxu0 0
      %788 = vmatprep.subr.bf16.mxu0 0
      %789 = vmatpush1.bf16.msra.mxu0 0
      %790 = vmatprep.subr.bf16.mxu0 0
      %791 = vmatpush1.bf16.msra.mxu0 0
      %792 = vmatprep.subr.bf16.mxu0 0
      %793 = vmatpush1.bf16.msra.mxu0 0
      %794 = vmatprep.subr.bf16.mxu0 0
      %795 = vmatpush1.bf16.msra.mxu0 %v778
      %796 = vmatprep.subr.bf16.mxu0 0
      %797 = vmatpush2.bf16.msra.mxu0 0
      %798 = vmatprep.subr.bf16.mxu0 0
      %799 = vmatpush2.bf16.msra.mxu0 0
      %800 = vmatprep.subr.bf16.mxu0 0
      %801 = vmatpush2.bf16.msra.mxu0 0
      %802 = vmatprep.subr.bf16.mxu0 0
      %803 = vmatpush2.bf16.msra.mxu0 0
      %804 = vmatprep.subr.bf16.mxu0 0
      %805 = vmatpush2.bf16.msra.mxu0 0
      %806 = vmatprep.subr.bf16.mxu0 0
      %807 = vmatpush2.bf16.msra.mxu0 0
      %808 = vmatprep.subr.bf16.mxu0 0
      %809 = vmatpush2.bf16.msra.mxu0 0
      %810 = vmatprep.subr.bf16.mxu0 0
      %811 = vmatpush2.bf16.msra.mxu0 0
      %812 = vmatprep.mubr.bf16.mxu0 0
      %813 = vmatmul.mubr.bf16.gmra.mxu0 %v775
      %v814 = vpop.f32.mrf.mxu0
      %v815 = vadd.f32 0.0, %v814
      %v816 = vpop.f32.mrf.mxu0
      %v817 = vpop.f32.mrf.mxu0
      %v818 = vpop.f32.mrf.mxu0
      %819 = vdwg.mxu0
      %v820 = vpack.c.bf16 %v815, %v815
      %s821 = scalar_lea.vmem %s7, 4
      %v822 = vld [vmem:[%s821] sm:$0xf]
      %v824 = vsel %vm598, %v820, 0
      %v827 = vsel %vm663, %v822, 0
      %829 = vmatprep.subr.bf16.mxu0 0
      %830 = vmatpush1.bf16.msra.mxu0 0
      %831 = vmatprep.subr.bf16.mxu0 0
      %832 = vmatpush1.bf16.msra.mxu0 0
      %833 = vmatprep.subr.bf16.mxu0 0
      %834 = vmatpush1.bf16.msra.mxu0 0
      %835 = vmatprep.subr.bf16.mxu0 0
      %836 = vmatpush1.bf16.msra.mxu0 0
      %837 = vmatprep.subr.bf16.mxu0 0
      %838 = vmatpush1.bf16.msra.mxu0 0
      %839 = vmatprep.subr.bf16.mxu0 0
      %840 = vmatpush1.bf16.msra.mxu0 0
      %841 = vmatprep.subr.bf16.mxu0 0
      %842 = vmatpush1.bf16.msra.mxu0 0
      %843 = vmatprep.subr.bf16.mxu0 0
      %844 = vmatpush1.bf16.msra.mxu0 %v827
      %845 = vmatprep.subr.bf16.mxu0 0
      %846 = vmatpush2.bf16.msra.mxu0 0
      %847 = vmatprep.subr.bf16.mxu0 0
      %848 = vmatpush2.bf16.msra.mxu0 0
      %849 = vmatprep.subr.bf16.mxu0 0
      %850 = vmatpush2.bf16.msra.mxu0 0
      %851 = vmatprep.subr.bf16.mxu0 0
      %852 = vmatpush2.bf16.msra.mxu0 0
      %853 = vmatprep.subr.bf16.mxu0 0
      %854 = vmatpush2.bf16.msra.mxu0 0
      %855 = vmatprep.subr.bf16.mxu0 0
      %856 = vmatpush2.bf16.msra.mxu0 0
      %857 = vmatprep.subr.bf16.mxu0 0
      %858 = vmatpush2.bf16.msra.mxu0 0
      %859 = vmatprep.subr.bf16.mxu0 0
      %860 = vmatpush2.bf16.msra.mxu0 0
      %861 = vmatprep.mubr.bf16.mxu0 0
      %862 = vmatmul.mubr.bf16.gmra.mxu0 %v824
      %v863 = vpop.f32.mrf.mxu0
      %v864 = vadd.f32 0.0, %v863
      %v865 = vpop.f32.mrf.mxu0
      %v866 = vpop.f32.mrf.mxu0
      %v867 = vpop.f32.mrf.mxu0
      %868 = vdwg.mxu0
      %v870 = vsel %vm598, %v707, 0
      %v873 = vsel %vm663, %v708, 0
      %875 = vmatprep.subr.bf16.mxu0 0
      %876 = vmatpush1.bf16.msra.mxu0 0
      %877 = vmatprep.subr.bf16.mxu0 0
      %878 = vmatpush1.bf16.msra.mxu0 0
      %879 = vmatprep.subr.bf16.mxu0 0
      %880 = vmatpush1.bf16.msra.mxu0 0
      %881 = vmatprep.subr.bf16.mxu0 0
      %882 = vmatpush1.bf16.msra.mxu0 0
      %883 = vmatprep.subr.bf16.mxu0 0
      %884 = vmatpush1.bf16.msra.mxu0 0
      %885 = vmatprep.subr.bf16.mxu0 0
      %886 = vmatpush1.bf16.msra.mxu0 0
      %887 = vmatprep.subr.bf16.mxu0 0
      %888 = vmatpush1.bf16.msra.mxu0 0
      %889 = vmatprep.subr.bf16.mxu0 0
      %890 = vmatpush1.bf16.msra.mxu0 %v873
      %891 = vmatprep.subr.bf16.mxu0 0
      %892 = vmatpush2.bf16.msra.mxu0 0
      %893 = vmatprep.subr.bf16.mxu0 0
      %894 = vmatpush2.bf16.msra.mxu0 0
      %895 = vmatprep.subr.bf16.mxu0 0
      %896 = vmatpush2.bf16.msra.mxu0 0
      %897 = vmatprep.subr.bf16.mxu0 0
      %898 = vmatpush2.bf16.msra.mxu0 0
      %899 = vmatprep.subr.bf16.mxu0 0
      %900 = vmatpush2.bf16.msra.mxu0 0
      %901 = vmatprep.subr.bf16.mxu0 0
      %902 = vmatpush2.bf16.msra.mxu0 0
      %903 = vmatprep.subr.bf16.mxu0 0
      %904 = vmatpush2.bf16.msra.mxu0 0
      %905 = vmatprep.subr.bf16.mxu0 0
      %906 = vmatpush2.bf16.msra.mxu0 0
      %907 = vmatprep.mubr.bf16.mxu0 0
      %908 = vmatmul.mubr.bf16.gmra.mxu0 %v870
      %v909 = vpop.f32.mrf.mxu0
      %v910 = vadd.f32 %v864, %v909
      %v911 = vpop.f32.mrf.mxu0
      %v912 = vpop.f32.mrf.mxu0
      %v913 = vpop.f32.mrf.mxu0
      %914 = vdwg.mxu0
      %915 = vrot.lane.b32.xlu0 %v578, 112
      %v916 = vpop.permute.xlu0 %915
      %917 = vrot.lane.b32.xlu0 %v579, 112
      %v918 = vpop.permute.xlu0 %917
      %v920 = vsel %vm598, %v916, 0
      %v923 = vsel %vm598, %v918, 0
      %925 = vmatprep.subr.bf16.mxu0 0
      %926 = vmatpush1.bf16.xpose.msra.mxu0 0
      %927 = vmatprep.subr.bf16.mxu0 0
      %928 = vmatpush1.bf16.xpose.msra.mxu0 0
      %929 = vmatprep.subr.bf16.mxu0 0
      %930 = vmatpush1.bf16.xpose.msra.mxu0 0
      %931 = vmatprep.subr.bf16.mxu0 0
      %932 = vmatpush1.bf16.xpose.msra.mxu0 0
      %933 = vmatprep.subr.bf16.mxu0 0
      %934 = vmatpush1.bf16.xpose.msra.mxu0 0
      %935 = vmatprep.subr.bf16.mxu0 0
      %936 = vmatpush1.bf16.xpose.msra.mxu0 0
      %937 = vmatprep.subr.bf16.mxu0 0
      %938 = vmatpush1.bf16.xpose.msra.mxu0 0
      %939 = vmatprep.subr.bf16.mxu0 0
      %940 = vmatpush1.bf16.xpose.msra.mxu0 %v923
      %941 = vmatprep.subr.bf16.mxu0 0
      %942 = vmatpush2.bf16.xpose.msra.mxu0 0
      %943 = vmatprep.subr.bf16.mxu0 0
      %944 = vmatpush2.bf16.xpose.msra.mxu0 0
      %945 = vmatprep.subr.bf16.mxu0 0
      %946 = vmatpush2.bf16.xpose.msra.mxu0 0
      %947 = vmatprep.subr.bf16.mxu0 0
      %948 = vmatpush2.bf16.xpose.msra.mxu0 0
      %949 = vmatprep.subr.bf16.mxu0 0
      %950 = vmatpush2.bf16.xpose.msra.mxu0 0
      %951 = vmatprep.subr.bf16.mxu0 0
      %952 = vmatpush2.bf16.xpose.msra.mxu0 0
      %953 = vmatprep.subr.bf16.mxu0 0
      %954 = vmatpush2.bf16.xpose.msra.mxu0 0
      %955 = vmatprep.subr.bf16.mxu0 0
      %956 = vmatpush2.bf16.xpose.msra.mxu0 0
      %957 = vmatprep.mubr.bf16.mxu0 0
      %958 = vmatmul.mubr.bf16.gmra.mxu0 %v920
      %v959 = vpop.f32.mrf.mxu0
      %v960 = vadd.f32 %v597, %v959
      %v961 = vpop.f32.mrf.mxu0
      %v962 = vpop.f32.mrf.mxu0
      %v963 = vpop.f32.mrf.mxu0
      %964 = vdwg.mxu0
      %v965 = vsel %vm598, %v960, -inf
      %966 = vmax.xlane.f32.xlu0 %v965
      %v967 = vpop.xlane.xlu0 %966
      %v968 = vsub.f32 %v960, %v967
      %v969 = vmul.f32 %v968, 1.442695
      %v970 = vpow.pop %v969
      %v971 = vsel %vm598, %v970, 0.0
      %972 = vadd.xlane.f32.xlu0 %v971
      %v973 = vpop.xlane.xlu0 %972
      %v974 = vrcp.pop %v973
      %v975 = vmul.f32 %v970, %v974
      %v976 = vpack.c.bf16 %v975, %v975
      %977 = vrot.lane.b32.xlu0 %v579, 80
      %v978 = vpop.permute.xlu0 %977
      %v980 = vsel %vm598, %v976, 0
      %v983 = vsel %vm663, %v978, 0
      %985 = vmatprep.subr.bf16.mxu0 0
      %986 = vmatpush1.bf16.msra.mxu0 0
      %987 = vmatprep.subr.bf16.mxu0 0
      %988 = vmatpush1.bf16.msra.mxu0 0
      %989 = vmatprep.subr.bf16.mxu0 0
      %990 = vmatpush1.bf16.msra.mxu0 0
      %991 = vmatprep.subr.bf16.mxu0 0
      %992 = vmatpush1.bf16.msra.mxu0 0
      %993 = vmatprep.subr.bf16.mxu0 0
      %994 = vmatpush1.bf16.msra.mxu0 0
      %995 = vmatprep.subr.bf16.mxu0 0
      %996 = vmatpush1.bf16.msra.mxu0 0
      %997 = vmatprep.subr.bf16.mxu0 0
      %998 = vmatpush1.bf16.msra.mxu0 0
      %999 = vmatprep.subr.bf16.mxu0 0
      %1000 = vmatpush1.bf16.msra.mxu0 %v983
      %1001 = vmatprep.subr.bf16.mxu0 0
      %1002 = vmatpush2.bf16.msra.mxu0 0
      %1003 = vmatprep.subr.bf16.mxu0 0
      %1004 = vmatpush2.bf16.msra.mxu0 0
      %1005 = vmatprep.subr.bf16.mxu0 0
      %1006 = vmatpush2.bf16.msra.mxu0 0
      %1007 = vmatprep.subr.bf16.mxu0 0
      %1008 = vmatpush2.bf16.msra.mxu0 0
      %1009 = vmatprep.subr.bf16.mxu0 0
      %1010 = vmatpush2.bf16.msra.mxu0 0
      %1011 = vmatprep.subr.bf16.mxu0 0
      %1012 = vmatpush2.bf16.msra.mxu0 0
      %1013 = vmatprep.subr.bf16.mxu0 0
      %1014 = vmatpush2.bf16.msra.mxu0 0
      %1015 = vmatprep.subr.bf16.mxu0 0
      %1016 = vmatpush2.bf16.msra.mxu0 0
      %1017 = vmatprep.mubr.bf16.mxu0 0
      %1018 = vmatmul.mubr.bf16.gmra.mxu0 %v980
      %v1019 = vpop.f32.mrf.mxu0
      %v1020 = vadd.f32 0.0, %v1019
      %v1021 = vpop.f32.mrf.mxu0
      %v1022 = vpop.f32.mrf.mxu0
      %v1023 = vpop.f32.mrf.mxu0
      %1024 = vdwg.mxu0
      %v1025 = vpack.c.bf16 %v1020, %v1020
      %s1026 = scalar_lea.vmem %s7, 8
      %v1027 = vld [vmem:[%s1026] sm:$0xf]
      %v1029 = vsel %vm598, %v1025, 0
      %v1032 = vsel %vm663, %v1027, 0
      %1034 = vmatprep.subr.bf16.mxu0 0
      %1035 = vmatpush1.bf16.msra.mxu0 0
      %1036 = vmatprep.subr.bf16.mxu0 0
      %1037 = vmatpush1.bf16.msra.mxu0 0
      %1038 = vmatprep.subr.bf16.mxu0 0
      %1039 = vmatpush1.bf16.msra.mxu0 0
      %1040 = vmatprep.subr.bf16.mxu0 0
      %1041 = vmatpush1.bf16.msra.mxu0 0
      %1042 = vmatprep.subr.bf16.mxu0 0
      %1043 = vmatpush1.bf16.msra.mxu0 0
      %1044 = vmatprep.subr.bf16.mxu0 0
      %1045 = vmatpush1.bf16.msra.mxu0 0
      %1046 = vmatprep.subr.bf16.mxu0 0
      %1047 = vmatpush1.bf16.msra.mxu0 0
      %1048 = vmatprep.subr.bf16.mxu0 0
      %1049 = vmatpush1.bf16.msra.mxu0 %v1032
      %1050 = vmatprep.subr.bf16.mxu0 0
      %1051 = vmatpush2.bf16.msra.mxu0 0
      %1052 = vmatprep.subr.bf16.mxu0 0
      %1053 = vmatpush2.bf16.msra.mxu0 0
      %1054 = vmatprep.subr.bf16.mxu0 0
      %1055 = vmatpush2.bf16.msra.mxu0 0
      %1056 = vmatprep.subr.bf16.mxu0 0
      %1057 = vmatpush2.bf16.msra.mxu0 0
      %1058 = vmatprep.subr.bf16.mxu0 0
      %1059 = vmatpush2.bf16.msra.mxu0 0
      %1060 = vmatprep.subr.bf16.mxu0 0
      %1061 = vmatpush2.bf16.msra.mxu0 0
      %1062 = vmatprep.subr.bf16.mxu0 0
      %1063 = vmatpush2.bf16.msra.mxu0 0
      %1064 = vmatprep.subr.bf16.mxu0 0
      %1065 = vmatpush2.bf16.msra.mxu0 0
      %1066 = vmatprep.mubr.bf16.mxu0 0
      %1067 = vmatmul.mubr.bf16.gmra.mxu0 %v1029
      %v1068 = vpop.f32.mrf.mxu0
      %v1069 = vadd.f32 0.0, %v1068
      %v1070 = vpop.f32.mrf.mxu0
      %v1071 = vpop.f32.mrf.mxu0
      %v1072 = vpop.f32.mrf.mxu0
      %1073 = vdwg.mxu0
      %v1074 = vadd.f32 %v910, %v1069
      %1075 = vrot.lane.b32.xlu0 %v578, 104
      %v1076 = vpop.permute.xlu0 %1075
      %1077 = vrot.lane.b32.xlu0 %v579, 104
      %v1078 = vpop.permute.xlu0 %1077
      %v1080 = vsel %vm598, %v1076, 0
      %v1083 = vsel %vm598, %v1078, 0
      %1085 = vmatprep.subr.bf16.mxu0 0
      %1086 = vmatpush1.bf16.xpose.msra.mxu0 0
      %1087 = vmatprep.subr.bf16.mxu0 0
      %1088 = vmatpush1.bf16.xpose.msra.mxu0 0
      %1089 = vmatprep.subr.bf16.mxu0 0
      %1090 = vmatpush1.bf16.xpose.msra.mxu0 0
      %1091 = vmatprep.subr.bf16.mxu0 0
      %1092 = vmatpush1.bf16.xpose.msra.mxu0 0
      %1093 = vmatprep.subr.bf16.mxu0 0
      %1094 = vmatpush1.bf16.xpose.msra.mxu0 0
      %1095 = vmatprep.subr.bf16.mxu0 0
      %1096 = vmatpush1.bf16.xpose.msra.mxu0 0
      %1097 = vmatprep.subr.bf16.mxu0 0
      %1098 = vmatpush1.bf16.xpose.msra.mxu0 0
      %1099 = vmatprep.subr.bf16.mxu0 0
      %1100 = vmatpush1.bf16.xpose.msra.mxu0 %v1083
      %1101 = vmatprep.subr.bf16.mxu0 0
      %1102 = vmatpush2.bf16.xpose.msra.mxu0 0
      %1103 = vmatprep.subr.bf16.mxu0 0
      %1104 = vmatpush2.bf16.xpose.msra.mxu0 0
      %1105 = vmatprep.subr.bf16.mxu0 0
      %1106 = vmatpush2.bf16.xpose.msra.mxu0 0
      %1107 = vmatprep.subr.bf16.mxu0 0
      %1108 = vmatpush2.bf16.xpose.msra.mxu0 0
      %1109 = vmatprep.subr.bf16.mxu0 0
      %1110 = vmatpush2.bf16.xpose.msra.mxu0 0
      %1111 = vmatprep.subr.bf16.mxu0 0
      %1112 = vmatpush2.bf16.xpose.msra.mxu0 0
      %1113 = vmatprep.subr.bf16.mxu0 0
      %1114 = vmatpush2.bf16.xpose.msra.mxu0 0
      %1115 = vmatprep.subr.bf16.mxu0 0
      %1116 = vmatpush2.bf16.xpose.msra.mxu0 0
      %1117 = vmatprep.mubr.bf16.mxu0 0
      %1118 = vmatmul.mubr.bf16.gmra.mxu0 %v1080
      %v1119 = vpop.f32.mrf.mxu0
      %v1120 = vadd.f32 %v597, %v1119
      %v1121 = vpop.f32.mrf.mxu0
      %v1122 = vpop.f32.mrf.mxu0
      %v1123 = vpop.f32.mrf.mxu0
      %1124 = vdwg.mxu0
      %v1125 = vsel %vm598, %v1120, -inf
      %1126 = vmax.xlane.f32.xlu0 %v1125
      %v1127 = vpop.xlane.xlu0 %1126
      %v1128 = vsub.f32 %v1120, %v1127
      %v1129 = vmul.f32 %v1128, 1.442695
      %v1130 = vpow.pop %v1129
      %v1131 = vsel %vm598, %v1130, 0.0
      %1132 = vadd.xlane.f32.xlu0 %v1131
      %v1133 = vpop.xlane.xlu0 %1132
      %v1134 = vrcp.pop %v1133
      %v1135 = vmul.f32 %v1130, %v1134
      %v1136 = vpack.c.bf16 %v1135, %v1135
      %1137 = vrot.lane.b32.xlu0 %v579, 72
      %v1138 = vpop.permute.xlu0 %1137
      %v1140 = vsel %vm598, %v1136, 0
      %v1143 = vsel %vm663, %v1138, 0
      %1145 = vmatprep.subr.bf16.mxu0 0
      %1146 = vmatpush1.bf16.msra.mxu0 0
      %1147 = vmatprep.subr.bf16.mxu0 0
      %1148 = vmatpush1.bf16.msra.mxu0 0
      %1149 = vmatprep.subr.bf16.mxu0 0
      %1150 = vmatpush1.bf16.msra.mxu0 0
      %1151 = vmatprep.subr.bf16.mxu0 0
      %1152 = vmatpush1.bf16.msra.mxu0 0
      %1153 = vmatprep.subr.bf16.mxu0 0
      %1154 = vmatpush1.bf16.msra.mxu0 0
      %1155 = vmatprep.subr.bf16.mxu0 0
      %1156 = vmatpush1.bf16.msra.mxu0 0
      %1157 = vmatprep.subr.bf16.mxu0 0
      %1158 = vmatpush1.bf16.msra.mxu0 0
      %1159 = vmatprep.subr.bf16.mxu0 0
      %1160 = vmatpush1.bf16.msra.mxu0 %v1143
      %1161 = vmatprep.subr.bf16.mxu0 0
      %1162 = vmatpush2.bf16.msra.mxu0 0
      %1163 = vmatprep.subr.bf16.mxu0 0
      %1164 = vmatpush2.bf16.msra.mxu0 0
      %1165 = vmatprep.subr.bf16.mxu0 0
      %1166 = vmatpush2.bf16.msra.mxu0 0
      %1167 = vmatprep.subr.bf16.mxu0 0
      %1168 = vmatpush2.bf16.msra.mxu0 0
      %1169 = vmatprep.subr.bf16.mxu0 0
      %1170 = vmatpush2.bf16.msra.mxu0 0
      %1171 = vmatprep.subr.bf16.mxu0 0
      %1172 = vmatpush2.bf16.msra.mxu0 0
      %1173 = vmatprep.subr.bf16.mxu0 0
      %1174 = vmatpush2.bf16.msra.mxu0 0
      %1175 = vmatprep.subr.bf16.mxu0 0
      %1176 = vmatpush2.bf16.msra.mxu0 0
      %1177 = vmatprep.mubr.bf16.mxu0 0
      %1178 = vmatmul.mubr.bf16.gmra.mxu0 %v1140
      %v1179 = vpop.f32.mrf.mxu0
      %v1180 = vadd.f32 0.0, %v1179
      %v1181 = vpop.f32.mrf.mxu0
      %v1182 = vpop.f32.mrf.mxu0
      %v1183 = vpop.f32.mrf.mxu0
      %1184 = vdwg.mxu0
      %v1185 = vpack.c.bf16 %v1180, %v1180
      %s1186 = scalar_lea.vmem %s7, 12
      %v1187 = vld [vmem:[%s1186] sm:$0xf]
      %v1189 = vsel %vm598, %v1185, 0
      %v1192 = vsel %vm663, %v1187, 0
      %1194 = vmatprep.subr.bf16.mxu0 0
      %1195 = vmatpush1.bf16.msra.mxu0 0
      %1196 = vmatprep.subr.bf16.mxu0 0
      %1197 = vmatpush1.bf16.msra.mxu0 0
      %1198 = vmatprep.subr.bf16.mxu0 0
      %1199 = vmatpush1.bf16.msra.mxu0 0
      %1200 = vmatprep.subr.bf16.mxu0 0
      %1201 = vmatpush1.bf16.msra.mxu0 0
      %1202 = vmatprep.subr.bf16.mxu0 0
      %1203 = vmatpush1.bf16.msra.mxu0 0
      %1204 = vmatprep.subr.bf16.mxu0 0
      %1205 = vmatpush1.bf16.msra.mxu0 0
      %1206 = vmatprep.subr.bf16.mxu0 0
      %1207 = vmatpush1.bf16.msra.mxu0 0
      %1208 = vmatprep.subr.bf16.mxu0 0
      %1209 = vmatpush1.bf16.msra.mxu0 %v1192
      %1210 = vmatprep.subr.bf16.mxu0 0
      %1211 = vmatpush2.bf16.msra.mxu0 0
      %1212 = vmatprep.subr.bf16.mxu0 0
      %1213 = vmatpush2.bf16.msra.mxu0 0
      %1214 = vmatprep.subr.bf16.mxu0 0
      %1215 = vmatpush2.bf16.msra.mxu0 0
      %1216 = vmatprep.subr.bf16.mxu0 0
      %1217 = vmatpush2.bf16.msra.mxu0 0
      %1218 = vmatprep.subr.bf16.mxu0 0
      %1219 = vmatpush2.bf16.msra.mxu0 0
      %1220 = vmatprep.subr.bf16.mxu0 0
      %1221 = vmatpush2.bf16.msra.mxu0 0
      %1222 = vmatprep.subr.bf16.mxu0 0
      %1223 = vmatpush2.bf16.msra.mxu0 0
      %1224 = vmatprep.subr.bf16.mxu0 0
      %1225 = vmatpush2.bf16.msra.mxu0 0
      %1226 = vmatprep.mubr.bf16.mxu0 0
      %1227 = vmatmul.mubr.bf16.gmra.mxu0 %v1189
      %v1228 = vpop.f32.mrf.mxu0
      %v1229 = vadd.f32 0.0, %v1228
      %v1230 = vpop.f32.mrf.mxu0
      %v1231 = vpop.f32.mrf.mxu0
      %v1232 = vpop.f32.mrf.mxu0
      %1233 = vdwg.mxu0
      %v1234 = vadd.f32 %v1074, %v1229
      %v1235 = vld [vmem:[%s8] sm:$0x1]
      %v1237 = vlaneseq
      %v1238 = vshrl.u32 %v1237, 7
      %v1239 = vsub.s32 0, %v1238
      %v1240 = vrot.slane %v1235, %v1239
      %v1242 = vadd.f32 %v1234, %v1240
      %v1243 = vadd.f32 %v1242, %v447
      %v1244 = vsel %vm471, %v1243, 0.0
      %1245 = vadd.xlane.f32.xlu0 %v1244
      %v1246 = vpop.xlane.xlu0 %1245
      %v1247 = vrcp.pop 32.0
      %v1248 = vmul.f32 %v1246, %v1247
      %v1249 = vsub.f32 %v1243, %v1248
      %v1250 = vmul.f32 %v1249, %v1249
      %v1251 = vsel %vm471, %v1250, 0.0
      %1252 = vadd.xlane.f32.xlu0 %v1251
      %v1253 = vpop.xlane.xlu0 %1252
      %v1254 = vmul.f32 %v1253, %v1247
      %v1255 = vadd.f32 %v1254, 1e-06
      %v1256 = vrsqrt.pop %v1255
      %v1257 = vmul.f32 %v1249, %v1256
      %v1258 = vld [vmem:[%s9] sm:$0x1]
      %v1260 = vlaneseq
      %v1261 = vshrl.u32 %v1260, 7
      %v1262 = vsub.s32 0, %v1261
      %v1263 = vrot.slane %v1258, %v1262
      %v1265 = vmul.f32 %v1257, %v1263
      %v1266 = vld [vmem:[%s10] sm:$0x1]
      %v1268 = vlaneseq
      %v1269 = vshrl.u32 %v1268, 7
      %v1270 = vsub.s32 0, %v1269
      %v1271 = vrot.slane %v1266, %v1270
      %v1273 = vadd.f32 %v1265, %v1271
      %v1274 = vld [vmem:[%s436] sm:$0xff]
      %1276 = vset.pattern.permute.xlu0 0
      %1277 = vperm.xlu0 %1276, %v1274
      %v1278 = vpop.permute.xlu0 %1277
      %v1280 = vmul.f32 %v1273, %v1278
      %v1281 = vpack.c.bf16 %v1280, %v1280
      %vm1282 = vcmask 257024
      %1283 = vst.msk [vmem:[%s443] sm:$0xf] %vm1282, %v1281
      %p1284 = scmp.lt.s32.totalorder %s26, 1
      %s1285 = scalar_select %p1284, %s26, 1
      %p1286 = scmp.lt.s32.totalorder %s27, 0
      %s1287 = scalar_select %p1286, %s27, 0
      %s1288 = sadd.s32 %s1287, %s1285
      %s1289 = smul.addr %s1288, 4
      %s1290 = scalar_lea.vmem %s11, %s1289
      // Predicated region
      $region65: #{_lambda_.15} parent=63 // pred_check
        %p1291 = pneg %p302
      $region66: #{_lambda_.15} parent=63 // pred_check_branch
        %1293 = sbr.rel (%p1291) target = $region68
      $region67: #{_lambda_.15} parent=63 // pred_region
        _
      $region68: #{_lambda_.15} parent=63 // pred_fallthru
        _
    $region64: #{_lambda_.15} parent=5 // pred_fallthru
      _
    %p1294 = scmp.le.s32.totalorder 2, %s17
    // Predicated region
    $region69: #{_lambda_.15} parent=5 // pred_check
      %p1295 = pneg %p1294
    $region70: #{_lambda_.15} parent=5 // pred_check_branch
      %1297 = sbr.rel (%p1295) target = $region72
    $region71: #{_lambda_.15} parent=5 // pred_region
      %s1298 = ssub.s32 %s17, 2
      // Predicated region
      $region73: #{_lambda_.15} parent=71 // pred_check
        %p1299 = pneg %p308
      $region74: #{_lambda_.15} parent=71 // pred_check_branch
        %1301 = sbr.rel (%p1299) target = $region76
      $region75: #{_lambda_.15} parent=71 // pred_region
        %p1302 = scmp.lt.s32.totalorder %s28, 1
        %s1303 = scalar_select %p1302, %s28, 1
        %p1304 = scmp.lt.s32.totalorder %s29, 0
        %s1305 = scalar_select %p1304, %s29, 0
        %s1306 = sadd.s32 %s1305, %s1303
        %s1307 = smul.addr %s1306, 4
        %s1308 = scalar_lea.vmem %s11, %s1307
      $region76: #{_lambda_.15} parent=71 // pred_fallthru
        _
    $region72: #{_lambda_.15} parent=5 // pred_fallthru
      _
  $region6: #{_lambda_.15} parent=0 // loop_footer
    %s21 = sadd.s32 1, %s17
  $region7: #{_lambda_.15} parent=0 // loop_footer_branch
    %16 = sbr.rel target = $region3
  $region8: #{_lambda_.15} parent=0 // loop_exit
    _

// kernel: _lambda_.16
$region0: #{_lambda_.16}
  #allocation0 [shape = 'u32[]', space=smem, size = 0x4, offset = 0x4, fixed_abs, tag = 'smem constant byte address 0x4 - core index']
  #allocation1 [shape = 'u32[144,128]{1,0:T(1,128)}', space=vmem, size = 0x12000, scoped, tag = 'internal scratch']
  %s0 = inlined_call_operand.vmem [shape: s32[2,1,8], index: 0, kind: input, shape index: {}]
  %s1 = inlined_call_operand.vmem [shape: bf16[2,8,32], index: 1, kind: input, shape index: {}]
  %s2 = inlined_call_operand.vmem [shape: bf16[2,8,32], index: 2, kind: input, shape index: {}]
  %s3 = inlined_call_operand.vmem [shape: f32[2,8,1], index: 3, kind: input, shape index: {}]
  %s4 = inlined_call_operand.vmem [shape: bf16[32,32], index: 4, kind: input, shape index: {}]
  %s5 = inlined_call_operand.vmem [shape: f32[1,32], index: 5, kind: input, shape index: {}]
  %s6 = inlined_call_operand.vmem [shape: bf16[32,64], index: 6, kind: input, shape index: {}]
  %s7 = inlined_call_operand.vmem [shape: f32[1,64], index: 7, kind: input, shape index: {}]
  %s8 = inlined_call_operand.vmem [shape: bf16[4,8,32], index: 8, kind: input, shape index: {}]
  %s9 = inlined_call_operand.vmem [shape: f32[1,32], index: 9, kind: input, shape index: {}]
  %s10 = inlined_call_operand.vmem [shape: f32[1,32], index: 10, kind: input, shape index: {}]
  %s11 = inlined_call_operand.vmem [shape: f32[1,32], index: 11, kind: input, shape index: {}]
  %s12 = inlined_call_operand.vmem [shape: f32[1,32], index: 12, kind: input, shape index: {}]
  %s13 = inlined_call_operand.vmem [shape: f32[1,32], index: 13, kind: input, shape index: {}]
  %s14 = inlined_call_operand.vmem [shape: bf16[2,8,32], index: 14, kind: output, shape index: {}]
  %s15 = sld [smem:[#allocation0]]
  $region89: #{_lambda_.16} parent=0
    _
  %s17 = ssub.s32 1, %s15
  %s18 = scalar_select 0, %s17, %s15
  loop: start=0, step=1, limit=4
  $region2: #{_lambda_.16} parent=0 // loop_pre_header
    _
  $region3: #{_lambda_.16} parent=0 // loop_header
    %s20 = sphi 0, %s24
    %p21 = scmp.ge.s32.totalorder %s20, 4
    %s27 = sphi 0, %s39
    %s28 = sphi 0, %s35
    %s29 = sphi 0, %s27
    %s30 = sphi 0, %s28
    %s31 = sphi 0, %s29
    %s32 = sphi 0, %s30
    %s42 = sphi 0, %s44
    %s45 = sphi 0, %s42
    %s46 = sphi 0, %s45
    %s62 = sphi 0, %s46
    %s70 = sphi 0, %s72
    %s73 = sphi 0, %s70
    %s74 = sphi 0, %s73
    %s90 = sphi 0, %s74
    %s96 = sphi 0, %s98
    %s99 = sphi 0, %s96
    %s100 = sphi 0, %s99
    %s116 = sphi 0, %s100
    %s124 = sphi 0, %s126
    %s127 = sphi 0, %s124
    %s128 = sphi 0, %s127
    %s144 = sphi 0, %s128
    %s148 = sphi 0, %s148
    %s150 = sphi 0, %s148
    %s151 = sphi 0, %s150
    %s165 = sphi 0, %s151
    %s169 = sphi 0, %s169
    %s171 = sphi 0, %s169
    %s172 = sphi 0, %s171
    %s186 = sphi 0, %s172
    %s190 = sphi 0, %s190
    %s192 = sphi 0, %s190
    %s193 = sphi 0, %s192
    %s207 = sphi 0, %s193
    %s211 = sphi 0, %s211
    %s213 = sphi 0, %s211
    %s214 = sphi 0, %s213
    %s228 = sphi 0, %s214
    %s232 = sphi 0, %s232
    %s234 = sphi 0, %s232
    %s235 = sphi 0, %s234
    %s249 = sphi 0, %s235
    %s253 = sphi 0, %s253
    %s255 = sphi 0, %s253
    %s256 = sphi 0, %s255
    %s270 = sphi 0, %s256
    %s274 = sphi 0, %s274
    %s276 = sphi 0, %s274
    %s277 = sphi 0, %s276
    %s291 = sphi 0, %s277
    %s295 = sphi 0, %s295
    %s297 = sphi 0, %s295
    %s298 = sphi 0, %s297
    %s312 = sphi 0, %s298
    %s316 = sphi 0, %s316
    %s318 = sphi 0, %s316
    %s319 = sphi 0, %s318
    %s333 = sphi 0, %s319
    %s337 = sphi 0, %s337
    %s339 = sphi 0, %s337
    %s340 = sphi 0, %s339
    %s354 = sphi 0, %s340
    %s362 = sphi 0, %s364
    %s365 = sphi 0, %s362
    %s366 = sphi 0, %s365
    %s382 = sphi 0, %s366
  $region4: #{_lambda_.16} parent=0 // loop_header_branch
    %23 = sbr.rel (%p21) target = $region8
  $region5: #{_lambda_.16} parent=0 // loop_body
    %s25 = ssub.s32 %s20, 1
    %s26 = ssub.s32 %s20, 2
    %s33 = sadd.s32 1, %s28
    %p34 = scmp.ge.s32.totalorder %s33, 1
    %s35 = scalar_select %p34, 0, %s33
    %s36 = sadd.s32 1, %s27
    %s37 = scalar_select %p34, %s36, %s27
    %p38 = scmp.ge.s32.totalorder %s37, 2
    %s39 = scalar_select %p38, 0, %s37
    %s40 = ssub.s32 %s27, %s39
    %p41 = scmp.eq.s32.totalorder %s40, 0
    %s43 = sadd.s32 %s42, 1
    %s44 = scalar_select %p41, %s42, %s43
    %p47 = pneg %p41
    %p48 = scmp.eq.s32.totalorder %s20, 1
    %p49 = por %p47, %p48
    %p50 = scmp.ne.s32.totalorder %s42, %s45
    %p51 = scmp.eq.s32.totalorder %s20, 0
    %p52 = por %p50, %p51
    %p53 = scmp.ne.s32.totalorder %s42, %s45
    %p54 = scmp.eq.s32.totalorder %s25, 1
    %p55 = por %p53, %p54
    %p56 = scmp.ne.s32.totalorder %s45, %s46
    %p57 = scmp.eq.s32.totalorder %s25, 0
    %p58 = por %p56, %p57
    %p59 = scmp.ne.s32.totalorder %s45, %s46
    %p60 = scmp.eq.s32.totalorder %s26, 1
    %p61 = por %p59, %p60
    %p63 = scmp.ne.s32.totalorder %s46, %s62
    %p64 = scmp.eq.s32.totalorder %s26, 0
    %p65 = por %p63, %p64
    %s66 = ssub.s32 %s27, %s39
    %s67 = ssub.s32 %s28, %s35
    %s68 = sor.u32 %s66, %s67
    %p69 = scmp.eq.s32.totalorder %s68, 0
    %s71 = sadd.s32 %s70, 1
    %s72 = scalar_select %p69, %s70, %s71
    %p75 = pneg %p69
    %p76 = scmp.eq.s32.totalorder %s20, 1
    %p77 = por %p75, %p76
    %p78 = scmp.ne.s32.totalorder %s70, %s73
    %p79 = scmp.eq.s32.totalorder %s20, 0
    %p80 = por %p78, %p79
    %p81 = scmp.ne.s32.totalorder %s70, %s73
    %p82 = scmp.eq.s32.totalorder %s25, 1
    %p83 = por %p81, %p82
    %p84 = scmp.ne.s32.totalorder %s73, %s74
    %p85 = scmp.eq.s32.totalorder %s25, 0
    %p86 = por %p84, %p85
    %p87 = scmp.ne.s32.totalorder %s73, %s74
    %p88 = scmp.eq.s32.totalorder %s26, 1
    %p89 = por %p87, %p88
    %p91 = scmp.ne.s32.totalorder %s74, %s90
    %p92 = scmp.eq.s32.totalorder %s26, 0
    %p93 = por %p91, %p92
    %s94 = ssub.s32 %s27, %s39
    %p95 = scmp.eq.s32.totalorder %s94, 0
    %s97 = sadd.s32 %s96, 1
    %s98 = scalar_select %p95, %s96, %s97
    %p101 = pneg %p95
    %p102 = scmp.eq.s32.totalorder %s20, 1
    %p103 = por %p101, %p102
    %p104 = scmp.ne.s32.totalorder %s96, %s99
    %p105 = scmp.eq.s32.totalorder %s20, 0
    %p106 = por %p104, %p105
    %p107 = scmp.ne.s32.totalorder %s96, %s99
    %p108 = scmp.eq.s32.totalorder %s25, 1
    %p109 = por %p107, %p108
    %p110 = scmp.ne.s32.totalorder %s99, %s100
    %p111 = scmp.eq.s32.totalorder %s25, 0
    %p112 = por %p110, %p111
    %p113 = scmp.ne.s32.totalorder %s99, %s100
    %p114 = scmp.eq.s32.totalorder %s26, 1
    %p115 = por %p113, %p114
    %p117 = scmp.ne.s32.totalorder %s100, %s116
    %p118 = scmp.eq.s32.totalorder %s26, 0
    %p119 = por %p117, %p118
    %s120 = ssub.s32 %s27, %s39
    %s121 = ssub.s32 %s28, %s35
    %s122 = sor.u32 %s120, %s121
    %p123 = scmp.eq.s32.totalorder %s122, 0
    %s125 = sadd.s32 %s124, 1
    %s126 = scalar_select %p123, %s124, %s125
    %p129 = pneg %p123
    %p130 = scmp.eq.s32.totalorder %s20, 1
    %p131 = por %p129, %p130
    %p132 = scmp.ne.s32.totalorder %s124, %s127
    %p133 = scmp.eq.s32.totalorder %s20, 0
    %p134 = por %p132, %p133
    %p135 = scmp.ne.s32.totalorder %s124, %s127
    %p136 = scmp.eq.s32.totalorder %s25, 1
    %p137 = por %p135, %p136
    %p138 = scmp.ne.s32.totalorder %s127, %s128
    %p139 = scmp.eq.s32.totalorder %s25, 0
    %p140 = por %p138, %p139
    %p141 = scmp.ne.s32.totalorder %s127, %s128
    %p142 = scmp.eq.s32.totalorder %s26, 1
    %p143 = por %p141, %p142
    %p145 = scmp.ne.s32.totalorder %s128, %s144
    %p146 = scmp.eq.s32.totalorder %s26, 0
    %p147 = por %p145, %p146
    %s149 = sadd.s32 %s148, 1
    %p152 = scmp.eq.s32.totalorder %s20, 1
    %p153 = scmp.ne.s32.totalorder %s148, %s150
    %p154 = scmp.eq.s32.totalorder %s20, 0
    %p155 = por %p153, %p154
    %p156 = scmp.ne.s32.totalorder %s148, %s150
    %p157 = scmp.eq.s32.totalorder %s25, 1
    %p158 = por %p156, %p157
    %p159 = scmp.ne.s32.totalorder %s150, %s151
    %p160 = scmp.eq.s32.totalorder %s25, 0
    %p161 = por %p159, %p160
    %p162 = scmp.ne.s32.totalorder %s150, %s151
    %p163 = scmp.eq.s32.totalorder %s26, 1
    %p164 = por %p162, %p163
    %p166 = scmp.ne.s32.totalorder %s151, %s165
    %p167 = scmp.eq.s32.totalorder %s26, 0
    %p168 = por %p166, %p167
    %s170 = sadd.s32 %s169, 1
    %p173 = scmp.eq.s32.totalorder %s20, 1
    %p174 = scmp.ne.s32.totalorder %s169, %s171
    %p175 = scmp.eq.s32.totalorder %s20, 0
    %p176 = por %p174, %p175
    %p177 = scmp.ne.s32.totalorder %s169, %s171
    %p178 = scmp.eq.s32.totalorder %s25, 1
    %p179 = por %p177, %p178
    %p180 = scmp.ne.s32.totalorder %s171, %s172
    %p181 = scmp.eq.s32.totalorder %s25, 0
    %p182 = por %p180, %p181
    %p183 = scmp.ne.s32.totalorder %s171, %s172
    %p184 = scmp.eq.s32.totalorder %s26, 1
    %p185 = por %p183, %p184
    %p187 = scmp.ne.s32.totalorder %s172, %s186
    %p188 = scmp.eq.s32.totalorder %s26, 0
    %p189 = por %p187, %p188
    %s191 = sadd.s32 %s190, 1
    %p194 = scmp.eq.s32.totalorder %s20, 1
    %p195 = scmp.ne.s32.totalorder %s190, %s192
    %p196 = scmp.eq.s32.totalorder %s20, 0
    %p197 = por %p195, %p196
    %p198 = scmp.ne.s32.totalorder %s190, %s192
    %p199 = scmp.eq.s32.totalorder %s25, 1
    %p200 = por %p198, %p199
    %p201 = scmp.ne.s32.totalorder %s192, %s193
    %p202 = scmp.eq.s32.totalorder %s25, 0
    %p203 = por %p201, %p202
    %p204 = scmp.ne.s32.totalorder %s192, %s193
    %p205 = scmp.eq.s32.totalorder %s26, 1
    %p206 = por %p204, %p205
    %p208 = scmp.ne.s32.totalorder %s193, %s207
    %p209 = scmp.eq.s32.totalorder %s26, 0
    %p210 = por %p208, %p209
    %s212 = sadd.s32 %s211, 1
    %p215 = scmp.eq.s32.totalorder %s20, 1
    %p216 = scmp.ne.s32.totalorder %s211, %s213
    %p217 = scmp.eq.s32.totalorder %s20, 0
    %p218 = por %p216, %p217
    %p219 = scmp.ne.s32.totalorder %s211, %s213
    %p220 = scmp.eq.s32.totalorder %s25, 1
    %p221 = por %p219, %p220
    %p222 = scmp.ne.s32.totalorder %s213, %s214
    %p223 = scmp.eq.s32.totalorder %s25, 0
    %p224 = por %p222, %p223
    %p225 = scmp.ne.s32.totalorder %s213, %s214
    %p226 = scmp.eq.s32.totalorder %s26, 1
    %p227 = por %p225, %p226
    %p229 = scmp.ne.s32.totalorder %s214, %s228
    %p230 = scmp.eq.s32.totalorder %s26, 0
    %p231 = por %p229, %p230
    %s233 = sadd.s32 %s232, 1
    %p236 = scmp.eq.s32.totalorder %s20, 1
    %p237 = scmp.ne.s32.totalorder %s232, %s234
    %p238 = scmp.eq.s32.totalorder %s20, 0
    %p239 = por %p237, %p238
    %p240 = scmp.ne.s32.totalorder %s232, %s234
    %p241 = scmp.eq.s32.totalorder %s25, 1
    %p242 = por %p240, %p241
    %p243 = scmp.ne.s32.totalorder %s234, %s235
    %p244 = scmp.eq.s32.totalorder %s25, 0
    %p245 = por %p243, %p244
    %p246 = scmp.ne.s32.totalorder %s234, %s235
    %p247 = scmp.eq.s32.totalorder %s26, 1
    %p248 = por %p246, %p247
    %p250 = scmp.ne.s32.totalorder %s235, %s249
    %p251 = scmp.eq.s32.totalorder %s26, 0
    %p252 = por %p250, %p251
    %s254 = sadd.s32 %s253, 1
    %p257 = scmp.eq.s32.totalorder %s20, 1
    %p258 = scmp.ne.s32.totalorder %s253, %s255
    %p259 = scmp.eq.s32.totalorder %s20, 0
    %p260 = por %p258, %p259
    %p261 = scmp.ne.s32.totalorder %s253, %s255
    %p262 = scmp.eq.s32.totalorder %s25, 1
    %p263 = por %p261, %p262
    %p264 = scmp.ne.s32.totalorder %s255, %s256
    %p265 = scmp.eq.s32.totalorder %s25, 0
    %p266 = por %p264, %p265
    %p267 = scmp.ne.s32.totalorder %s255, %s256
    %p268 = scmp.eq.s32.totalorder %s26, 1
    %p269 = por %p267, %p268
    %p271 = scmp.ne.s32.totalorder %s256, %s270
    %p272 = scmp.eq.s32.totalorder %s26, 0
    %p273 = por %p271, %p272
    %s275 = sadd.s32 %s274, 1
    %p278 = scmp.eq.s32.totalorder %s20, 1
    %p279 = scmp.ne.s32.totalorder %s274, %s276
    %p280 = scmp.eq.s32.totalorder %s20, 0
    %p281 = por %p279, %p280
    %p282 = scmp.ne.s32.totalorder %s274, %s276
    %p283 = scmp.eq.s32.totalorder %s25, 1
    %p284 = por %p282, %p283
    %p285 = scmp.ne.s32.totalorder %s276, %s277
    %p286 = scmp.eq.s32.totalorder %s25, 0
    %p287 = por %p285, %p286
    %p288 = scmp.ne.s32.totalorder %s276, %s277
    %p289 = scmp.eq.s32.totalorder %s26, 1
    %p290 = por %p288, %p289
    %p292 = scmp.ne.s32.totalorder %s277, %s291
    %p293 = scmp.eq.s32.totalorder %s26, 0
    %p294 = por %p292, %p293
    %s296 = sadd.s32 %s295, 1
    %p299 = scmp.eq.s32.totalorder %s20, 1
    %p300 = scmp.ne.s32.totalorder %s295, %s297
    %p301 = scmp.eq.s32.totalorder %s20, 0
    %p302 = por %p300, %p301
    %p303 = scmp.ne.s32.totalorder %s295, %s297
    %p304 = scmp.eq.s32.totalorder %s25, 1
    %p305 = por %p303, %p304
    %p306 = scmp.ne.s32.totalorder %s297, %s298
    %p307 = scmp.eq.s32.totalorder %s25, 0
    %p308 = por %p306, %p307
    %p309 = scmp.ne.s32.totalorder %s297, %s298
    %p310 = scmp.eq.s32.totalorder %s26, 1
    %p311 = por %p309, %p310
    %p313 = scmp.ne.s32.totalorder %s298, %s312
    %p314 = scmp.eq.s32.totalorder %s26, 0
    %p315 = por %p313, %p314
    %s317 = sadd.s32 %s316, 1
    %p320 = scmp.eq.s32.totalorder %s20, 1
    %p321 = scmp.ne.s32.totalorder %s316, %s318
    %p322 = scmp.eq.s32.totalorder %s20, 0
    %p323 = por %p321, %p322
    %p324 = scmp.ne.s32.totalorder %s316, %s318
    %p325 = scmp.eq.s32.totalorder %s25, 1
    %p326 = por %p324, %p325
    %p327 = scmp.ne.s32.totalorder %s318, %s319
    %p328 = scmp.eq.s32.totalorder %s25, 0
    %p329 = por %p327, %p328
    %p330 = scmp.ne.s32.totalorder %s318, %s319
    %p331 = scmp.eq.s32.totalorder %s26, 1
    %p332 = por %p330, %p331
    %p334 = scmp.ne.s32.totalorder %s319, %s333
    %p335 = scmp.eq.s32.totalorder %s26, 0
    %p336 = por %p334, %p335
    %s338 = sadd.s32 %s337, 1
    %p341 = scmp.eq.s32.totalorder %s20, 1
    %p342 = scmp.ne.s32.totalorder %s337, %s339
    %p343 = scmp.eq.s32.totalorder %s20, 0
    %p344 = por %p342, %p343
    %p345 = scmp.ne.s32.totalorder %s337, %s339
    %p346 = scmp.eq.s32.totalorder %s25, 1
    %p347 = por %p345, %p346
    %p348 = scmp.ne.s32.totalorder %s339, %s340
    %p349 = scmp.eq.s32.totalorder %s25, 0
    %p350 = por %p348, %p349
    %p351 = scmp.ne.s32.totalorder %s339, %s340
    %p352 = scmp.eq.s32.totalorder %s26, 1
    %p353 = por %p351, %p352
    %p355 = scmp.ne.s32.totalorder %s340, %s354
    %p356 = scmp.eq.s32.totalorder %s26, 0
    %p357 = por %p355, %p356
    %s358 = ssub.s32 %s27, %s39
    %s359 = ssub.s32 %s28, %s35
    %s360 = sor.u32 %s358, %s359
    %p361 = scmp.eq.s32.totalorder %s360, 0
    %s363 = sadd.s32 %s362, 1
    %s364 = scalar_select %p361, %s362, %s363
    %p367 = pneg %p361
    %p368 = scmp.eq.s32.totalorder %s20, 1
    %p369 = por %p367, %p368
    %p370 = scmp.ne.s32.totalorder %s362, %s365
    %p371 = scmp.eq.s32.totalorder %s20, 0
    %p372 = por %p370, %p371
    %p373 = scmp.ne.s32.totalorder %s362, %s365
    %p374 = scmp.eq.s32.totalorder %s25, 1
    %p375 = por %p373, %p374
    %p376 = scmp.ne.s32.totalorder %s365, %s366
    %p377 = scmp.eq.s32.totalorder %s25, 0
    %p378 = por %p376, %p377
    %p379 = scmp.ne.s32.totalorder %s365, %s366
    %p380 = scmp.eq.s32.totalorder %s26, 1
    %p381 = por %p379, %p380
    %p383 = scmp.ne.s32.totalorder %s366, %s382
    %p384 = scmp.eq.s32.totalorder %s26, 0
    %p385 = por %p383, %p384
    %p386 = scmp.le.s32.totalorder 1, %s20
    %p387 = scmp.lt.s32.totalorder %s20, 3
    %p388 = pnand %p386, %p387
    %p389 = pneg %p388
    // Predicated region
    $region9: #{_lambda_.16} parent=5 // pred_check
      _
    $region10: #{_lambda_.16} parent=5 // pred_check_branch
      %391 = sbr.rel (%p388) target = $region12
    $region11: #{_lambda_.16} parent=5 // pred_region
      %s392 = ssub.s32 %s20, 1
      // Predicated region
      $region13: #{_lambda_.16} parent=11 // pred_check
        %p393 = pneg %p161
      $region14: #{_lambda_.16} parent=11 // pred_check_branch
        %395 = sbr.rel (%p393) target = $region16
      $region15: #{_lambda_.16} parent=11 // pred_region
        _
      $region16: #{_lambda_.16} parent=11 // pred_fallthru
        _
      // Predicated region
      $region17: #{_lambda_.16} parent=11 // pred_check
        %p396 = pneg %p182
      $region18: #{_lambda_.16} parent=11 // pred_check_branch
        %398 = sbr.rel (%p396) target = $region20
      $region19: #{_lambda_.16} parent=11 // pred_region
        _
      $region20: #{_lambda_.16} parent=11 // pred_fallthru
        _
      // Predicated region
      $region21: #{_lambda_.16} parent=11 // pred_check
        %p399 = pneg %p203
      $region22: #{_lambda_.16} parent=11 // pred_check_branch
        %401 = sbr.rel (%p399) target = $region24
      $region23: #{_lambda_.16} parent=11 // pred_region
        _
      $region24: #{_lambda_.16} parent=11 // pred_fallthru
        _
      // Predicated region
      $region25: #{_lambda_.16} parent=11 // pred_check
        %p402 = pneg %p224
      $region26: #{_lambda_.16} parent=11 // pred_check_branch
        %404 = sbr.rel (%p402) target = $region28
      $region27: #{_lambda_.16} parent=11 // pred_region
        _
      $region28: #{_lambda_.16} parent=11 // pred_fallthru
        _
      // Predicated region
      $region29: #{_lambda_.16} parent=11 // pred_check
        %p405 = pneg %p245
      $region30: #{_lambda_.16} parent=11 // pred_check_branch
        %407 = sbr.rel (%p405) target = $region32
      $region31: #{_lambda_.16} parent=11 // pred_region
        _
      $region32: #{_lambda_.16} parent=11 // pred_fallthru
        _
      // Predicated region
      $region33: #{_lambda_.16} parent=11 // pred_check
        %p408 = pneg %p266
      $region34: #{_lambda_.16} parent=11 // pred_check_branch
        %410 = sbr.rel (%p408) target = $region36
      $region35: #{_lambda_.16} parent=11 // pred_region
        _
      $region36: #{_lambda_.16} parent=11 // pred_fallthru
        _
      // Predicated region
      $region37: #{_lambda_.16} parent=11 // pred_check
        %p411 = pneg %p287
      $region38: #{_lambda_.16} parent=11 // pred_check_branch
        %413 = sbr.rel (%p411) target = $region40
      $region39: #{_lambda_.16} parent=11 // pred_region
        _
      $region40: #{_lambda_.16} parent=11 // pred_fallthru
        _
      // Predicated region
      $region41: #{_lambda_.16} parent=11 // pred_check
        %p414 = pneg %p308
      $region42: #{_lambda_.16} parent=11 // pred_check_branch
        %416 = sbr.rel (%p414) target = $region44
      $region43: #{_lambda_.16} parent=11 // pred_region
        _
      $region44: #{_lambda_.16} parent=11 // pred_fallthru
        _
      // Predicated region
      $region45: #{_lambda_.16} parent=11 // pred_check
        %p417 = pneg %p329
      $region46: #{_lambda_.16} parent=11 // pred_check_branch
        %419 = sbr.rel (%p417) target = $region48
      $region47: #{_lambda_.16} parent=11 // pred_region
        _
      $region48: #{_lambda_.16} parent=11 // pred_fallthru
        _
      // Predicated region
      $region49: #{_lambda_.16} parent=11 // pred_check
        %p420 = pneg %p350
      $region50: #{_lambda_.16} parent=11 // pred_check_branch
        %422 = sbr.rel (%p420) target = $region52
      $region51: #{_lambda_.16} parent=11 // pred_region
        _
      $region52: #{_lambda_.16} parent=11 // pred_fallthru
        _
    $region12: #{_lambda_.16} parent=5 // pred_fallthru
      _
    %p423 = scmp.lt.s32.totalorder %s20, 2
    // Predicated region
    $region53: #{_lambda_.16} parent=5 // pred_check
      %p424 = pneg %p423
    $region54: #{_lambda_.16} parent=5 // pred_check_branch
      %426 = sbr.rel (%p424) target = $region56
    $region55: #{_lambda_.16} parent=5 // pred_region
      // Predicated region
      $region57: #{_lambda_.16} parent=55 // pred_check
        %p427 = pneg %p52
      $region58: #{_lambda_.16} parent=55 // pred_check_branch
        %429 = sbr.rel (%p427) target = $region60
      $region59: #{_lambda_.16} parent=55 // pred_region
        %p430 = scmp.lt.s32.totalorder %s27, 1
        %s431 = scalar_select %p430, %s27, 1
        %s432 = scalar_lea.vmem %s0, %s431
      $region60: #{_lambda_.16} parent=55 // pred_fallthru
        _
      // Predicated region
      $region61: #{_lambda_.16} parent=55 // pred_check
        %p433 = pneg %p80
      $region62: #{_lambda_.16} parent=55 // pred_check_branch
        %435 = sbr.rel (%p433) target = $region64
      $region63: #{_lambda_.16} parent=55 // pred_region
        %p436 = scmp.lt.s32.totalorder %s27, 1
        %s437 = scalar_select %p436, %s27, 1
        %p438 = scmp.lt.s32.totalorder %s28, 0
        %s439 = scalar_select %p438, %s28, 0
        %s440 = sadd.s32 %s439, %s437
        %s441 = smul.addr %s440, 4
        %s442 = scalar_lea.vmem %s1, %s441
      $region64: #{_lambda_.16} parent=55 // pred_fallthru
        _
      // Predicated region
      $region65: #{_lambda_.16} parent=55 // pred_check
        %p443 = pneg %p106
      $region66: #{_lambda_.16} parent=55 // pred_check_branch
        %445 = sbr.rel (%p443) target = $region68
      $region67: #{_lambda_.16} parent=55 // pred_region
        %p446 = scmp.lt.s32.totalorder %s27, 1
        %s447 = scalar_select %p446, %s27, 1
        %s448 = smul.addr %s447, 4
        %s449 = scalar_lea.vmem %s2, %s448
      $region68: #{_lambda_.16} parent=55 // pred_fallthru
        _
      // Predicated region
      $region69: #{_lambda_.16} parent=55 // pred_check
        %p450 = pneg %p134
      $region70: #{_lambda_.16} parent=55 // pred_check_branch
        %452 = sbr.rel (%p450) target = $region72
      $region71: #{_lambda_.16} parent=55 // pred_region
        %p453 = scmp.lt.s32.totalorder %s27, 1
        %s454 = scalar_select %p453, %s27, 1
        %p455 = scmp.lt.s32.totalorder %s28, 0
        %s456 = scalar_select %p455, %s28, 0
        %s457 = sadd.s32 %s456, %s454
        %s458 = smul.addr %s457, 8
        %s459 = scalar_lea.vmem %s3, %s458
      $region72: #{_lambda_.16} parent=55 // pred_fallthru
        _
    $region56: #{_lambda_.16} parent=5 // pred_fallthru
      _
    %p460 = scmp.le.s32.totalorder 1, %s20
    %p461 = scmp.lt.s32.totalorder %s20, 3
    %p462 = pnand %p460, %p461
    %p463 = pneg %p462
    // Predicated region
    $region73: #{_lambda_.16} parent=5 // pred_check
      _
    $region74: #{_lambda_.16} parent=5 // pred_check_branch
      %465 = sbr.rel (%p462) target = $region76
    $region75: #{_lambda_.16} parent=5 // pred_region
      %s466 = ssub.s32 %s20, 1
      %p467 = scmp.lt.s32.totalorder %s29, 1
      %s468 = scalar_select %p467, %s29, 1
      %s469 = scalar_lea.vmem %s0, %s468
      %p470 = pneg %p58
      %p471 = pneg %p55
      %p472 = scmp.lt.s32.totalorder %s29, 1
      %s473 = scalar_select %p472, %s29, 1
      %p474 = scmp.lt.s32.totalorder %s30, 0
      %s475 = scalar_select %p474, %s30, 0
      %s476 = sadd.s32 %s475, %s473
      %s477 = smul.addr %s476, 4
      %s478 = scalar_lea.vmem %s1, %s477
      %p479 = pneg %p86
      %p480 = pneg %p83
      %p481 = scmp.lt.s32.totalorder %s29, 1
      %s482 = scalar_select %p481, %s29, 1
      %s483 = smul.addr %s482, 4
      %s484 = scalar_lea.vmem %s2, %s483
      %p485 = pneg %p112
      %p486 = pneg %p109
      %p487 = scmp.lt.s32.totalorder %s29, 1
      %s488 = scalar_select %p487, %s29, 1
      %p489 = scmp.lt.s32.totalorder %s30, 0
      %s490 = scalar_select %p489, %s30, 0
      %s491 = sadd.s32 %s490, %s488
      %s492 = smul.addr %s491, 8
      %s493 = scalar_lea.vmem %s3, %s492
      %p494 = pneg %p140
      %p495 = pneg %p137
      %p496 = pneg %p161
      %p497 = pneg %p158
      %p498 = pneg %p182
      %p499 = pneg %p179
      %p500 = pneg %p203
      %p501 = pneg %p200
      %p502 = pneg %p224
      %p503 = pneg %p221
      %p504 = pneg %p245
      %p505 = pneg %p242
      %p506 = pneg %p266
      %p507 = pneg %p263
      %p508 = pneg %p287
      %p509 = pneg %p284
      %p510 = pneg %p308
      %p511 = pneg %p305
      %p512 = pneg %p329
      %p513 = pneg %p326
      %p514 = pneg %p350
      %p515 = pneg %p347
      %p516 = pneg %p378
      %p517 = pneg %p375
      %p518 = scmp.lt.s32.totalorder %s29, 1
      %s519 = scalar_select %p518, %s29, 1
      %p520 = scmp.lt.s32.totalorder %s30, 0
      %s521 = scalar_select %p520, %s30, 0
      %s522 = sadd.s32 %s521, %s519
      %s523 = smul.addr %s522, 4
      %s524 = scalar_lea.vmem %s14, %s523
      %p525 = scmp.lt.s32.totalorder %s29, 1
      %s526 = scalar_select %p525, %s29, 1
      %s527 = scalar_lea.vmem %s0, %s526
      %p528 = scmp.lt.s32.totalorder %s29, 1
      %s529 = scalar_select %p528, %s29, 1
      %p530 = scmp.lt.s32.totalorder %s30, 0
      %s531 = scalar_select %p530, %s30, 0
      %s532 = sadd.s32 %s531, %s529
      %s533 = smul.addr %s532, 4
      %s534 = scalar_lea.vmem %s1, %s533
      %p535 = scmp.lt.s32.totalorder %s29, 1
      %s536 = scalar_select %p535, %s29, 1
      %s537 = smul.addr %s536, 4
      %s538 = scalar_lea.vmem %s2, %s537
      %p539 = scmp.lt.s32.totalorder %s29, 1
      %s540 = scalar_select %p539, %s29, 1
      %p541 = scmp.lt.s32.totalorder %s30, 0
      %s542 = scalar_select %p541, %s30, 0
      %s543 = sadd.s32 %s542, %s540
      %s544 = smul.addr %s543, 8
      %s545 = scalar_lea.vmem %s3, %s544
      %p546 = scmp.lt.s32.totalorder %s29, 1
      %s547 = scalar_select %p546, %s29, 1
      %p548 = scmp.lt.s32.totalorder %s30, 0
      %s549 = scalar_select %p548, %s30, 0
      %s550 = sadd.s32 %s549, %s547
      %s551 = smul.addr %s550, 4
      %s552 = scalar_lea.vmem %s14, %s551
      %v554 = vld [vmem:[%s534] sm:$0xf]
      %v555 = vunpack.c.l.bf16 %v554
      %v556 = vld [vmem:[%s538] sm:$0xf]
      %v557 = vunpack.c.l.bf16 %v556
      %vm558 = vcmask 261120
      %v559 = vsel %vm558, %v557, 0.0
      %560 = vadd.xlane.f32.xlu0 %v559
      %v561 = vpop.xlane.xlu0 %560
      %v562 = vrcp.pop 32.0
      %v563 = vmul.f32 %v561, %v562
      %v564 = vsub.f32 %v557, %v563
      %v565 = vmul.f32 %v564, %v564
      %v566 = vsel %vm558, %v565, 0.0
      %567 = vadd.xlane.f32.xlu0 %v566
      %v568 = vpop.xlane.xlu0 %567
      %v569 = vmul.f32 %v568, %v562
      %v570 = vadd.f32 %v569, 1e-06
      %v571 = vrsqrt.pop %v570
      %v572 = vmul.f32 %v564, %v571
      %v573 = vld [vmem:[%s10] sm:$0x1]
      %v575 = vlaneseq
      %v576 = vshrl.u32 %v575, 7
      %v577 = vsub.s32 0, %v576
      %v578 = vrot.slane %v573, %v577
      %v580 = vmul.f32 %v572, %v578
      %v581 = vld [vmem:[%s11] sm:$0x1]
      %v583 = vlaneseq
      %v584 = vshrl.u32 %v583, 7
      %v585 = vsub.s32 0, %v584
      %v586 = vrot.slane %v581, %v585
      %v588 = vadd.f32 %v580, %v586
      %v589 = vld [vmem:[%s4] sm:$0xf]
      %v590 = vld [vmem:[%s4 + $0x4] sm:$0xf]
      %v591 = vld [vmem:[%s4 + $0x8] sm:$0xf]
      %v592 = vld [vmem:[%s4 + $0xc] sm:$0xf]
      %v593 = vld [vmem:[%s5] sm:$0x1]
      %v595 = vlaneseq
      %v596 = vshrl.u32 %v595, 7
      %v597 = vsub.s32 0, %v596
      %v598 = vrot.slane %v593, %v597
      %v604 = vunpack.c.l.b16 %v589
      %v605 = vunpack.c.l.b16 %v590
      %v606 = vunpack.c.l.b16 %v591
      %v607 = vunpack.c.l.b16 %v592
      %v608 = vpack.c.b16 %v605, %v604
      %v609 = vpack.c.b16 %v607, %v606
      %v613 = vsel %vm558, %v554, 0
      %615 = vmatprep.subr.bf16.mxu0 0
      %616 = vmatpush1.bf16.msra.mxu0 0
      %617 = vmatprep.subr.bf16.mxu0 0
      %618 = vmatpush1.bf16.msra.mxu0 0
      %619 = vmatprep.subr.bf16.mxu0 0
      %620 = vmatpush1.bf16.msra.mxu0 0
      %621 = vmatprep.subr.bf16.mxu0 0
      %622 = vmatpush1.bf16.msra.mxu0 0
      %623 = vmatprep.subr.bf16.mxu0 0
      %624 = vmatpush1.bf16.msra.mxu0 0
      %625 = vmatprep.subr.bf16.mxu0 0
      %626 = vmatpush1.bf16.msra.mxu0 0
      %627 = vmatprep.subr.bf16.mxu0 0
      %628 = vmatpush1.bf16.msra.mxu0 %v609
      %629 = vmatprep.subr.bf16.mxu0 0
      %630 = vmatpush1.bf16.msra.mxu0 %v608
      %631 = vmatprep.subr.bf16.mxu0 0
      %632 = vmatpush2.bf16.msra.mxu0 0
      %633 = vmatprep.subr.bf16.mxu0 0
      %634 = vmatpush2.bf16.msra.mxu0 0
      %635 = vmatprep.subr.bf16.mxu0 0
      %636 = vmatpush2.bf16.msra.mxu0 0
      %637 = vmatprep.subr.bf16.mxu0 0
      %638 = vmatpush2.bf16.msra.mxu0 0
      %639 = vmatprep.subr.bf16.mxu0 0
      %640 = vmatpush2.bf16.msra.mxu0 0
      %641 = vmatprep.subr.bf16.mxu0 0
      %642 = vmatpush2.bf16.msra.mxu0 0
      %643 = vmatprep.subr.bf16.mxu0 0
      %644 = vmatpush2.bf16.msra.mxu0 0
      %645 = vmatprep.subr.bf16.mxu0 0
      %646 = vmatpush2.bf16.msra.mxu0 0
      %647 = vmatprep.mubr.bf16.mxu0 0
      %648 = vmatmul.mubr.bf16.gmra.mxu0 %v613
      %v649 = vpop.f32.mrf.mxu0
      %v650 = vadd.f32 %v598, %v649
      %v651 = vpop.f32.mrf.mxu0
      %v652 = vpop.f32.mrf.mxu0
      %v653 = vpop.f32.mrf.mxu0
      %654 = vdwg.mxu0
      %v655 = vpack.c.bf16 %v588, %v588
      %v656 = vld [vmem:[%s6] sm:$0xf]
      %v657 = vld [vmem:[%s6 + $0x4] sm:$0xf]
      %v658 = vld [vmem:[%s6 + $0x8] sm:$0xf]
      %v659 = vld [vmem:[%s6 + $0xc] sm:$0xf]
      %v660 = vld [vmem:[%s7] sm:$0x1]
      %v662 = vlaneseq
      %v663 = vshrl.u32 %v662, 7
      %v664 = vsub.s32 0, %v663
      %v665 = vrot.slane %v660, %v664
      %v671 = vunpack.c.l.b16 %v656
      %v672 = vunpack.c.l.b16 %v657
      %v673 = vunpack.c.l.b16 %v658
      %v674 = vunpack.c.l.b16 %v659
      %v675 = vpack.c.b16 %v672, %v671
      %v676 = vpack.c.b16 %v674, %v673
      %v680 = vsel %vm558, %v655, 0
      %682 = vmatprep.subr.bf16.mxu0 0
      %683 = vmatpush1.bf16.msra.mxu0 0
      %684 = vmatprep.subr.bf16.mxu0 0
      %685 = vmatpush1.bf16.msra.mxu0 0
      %686 = vmatprep.subr.bf16.mxu0 0
      %687 = vmatpush1.bf16.msra.mxu0 0
      %688 = vmatprep.subr.bf16.mxu0 0
      %689 = vmatpush1.bf16.msra.mxu0 0
      %690 = vmatprep.subr.bf16.mxu0 0
      %691 = vmatpush1.bf16.msra.mxu0 0
      %692 = vmatprep.subr.bf16.mxu0 0
      %693 = vmatpush1.bf16.msra.mxu0 0
      %694 = vmatprep.subr.bf16.mxu0 0
      %695 = vmatpush1.bf16.msra.mxu0 %v676
      %696 = vmatprep.subr.bf16.mxu0 0
      %697 = vmatpush1.bf16.msra.mxu0 %v675
      %698 = vmatprep.subr.bf16.mxu0 0
      %699 = vmatpush2.bf16.msra.mxu0 0
      %700 = vmatprep.subr.bf16.mxu0 0
      %701 = vmatpush2.bf16.msra.mxu0 0
      %702 = vmatprep.subr.bf16.mxu0 0
      %703 = vmatpush2.bf16.msra.mxu0 0
      %704 = vmatprep.subr.bf16.mxu0 0
      %705 = vmatpush2.bf16.msra.mxu0 0
      %706 = vmatprep.subr.bf16.mxu0 0
      %707 = vmatpush2.bf16.msra.mxu0 0
      %708 = vmatprep.subr.bf16.mxu0 0
      %709 = vmatpush2.bf16.msra.mxu0 0
      %710 = vmatprep.subr.bf16.mxu0 0
      %711 = vmatpush2.bf16.msra.mxu0 0
      %712 = vmatprep.subr.bf16.mxu0 0
      %713 = vmatpush2.bf16.msra.mxu0 0
      %714 = vmatprep.mubr.bf16.mxu0 0
      %715 = vmatmul.mubr.bf16.gmra.mxu0 %v680
      %v716 = vpop.f32.mrf.mxu0
      %v717 = vadd.f32 %v665, %v716
      %v718 = vpop.f32.mrf.mxu0
      %v719 = vpop.f32.mrf.mxu0
      %v720 = vpop.f32.mrf.mxu0
      %721 = vdwg.mxu0
      %v722 = vpack.c.bf16 %v650, %v650
      %v723 = vpack.c.bf16 %v717, %v717
      %v724 = vld [vmem:[%s527] sm:$0x1]
      %vm725 = vcmp.eq.s32.totalorder %v724, 0
      %v726 = vsel %vm725, -1e+09, 0.0
      %v728 = vlaneseq
      %v729 = vshrl.u32 %v728, 7
      %v730 = vsub.s32 0, %v729
      %v731 = vrot.slane %v726, %v730
      %vm733 = vcmask 64512
      %v735 = vsel %vm733, %v722, 0
      %v738 = vsel %vm733, %v723, 0
      %740 = vmatprep.subr.bf16.mxu0 0
      %741 = vmatpush1.bf16.xpose.msra.mxu0 0
      %742 = vmatprep.subr.bf16.mxu0 0
      %743 = vmatpush1.bf16.xpose.msra.mxu0 0
      %744 = vmatprep.subr.bf16.mxu0 0
      %745 = vmatpush1.bf16.xpose.msra.mxu0 0
      %746 = vmatprep.subr.bf16.mxu0 0
      %747 = vmatpush1.bf16.xpose.msra.mxu0 0
      %748 = vmatprep.subr.bf16.mxu0 0
      %749 = vmatpush1.bf16.xpose.msra.mxu0 0
      %750 = vmatprep.subr.bf16.mxu0 0
      %751 = vmatpush1.bf16.xpose.msra.mxu0 0
      %752 = vmatprep.subr.bf16.mxu0 0
      %753 = vmatpush1.bf16.xpose.msra.mxu0 0
      %754 = vmatprep.subr.bf16.mxu0 0
      %755 = vmatpush1.bf16.xpose.msra.mxu0 %v738
      %756 = vmatprep.subr.bf16.mxu0 0
      %757 = vmatpush2.bf16.xpose.msra.mxu0 0
      %758 = vmatprep.subr.bf16.mxu0 0
      %759 = vmatpush2.bf16.xpose.msra.mxu0 0
      %760 = vmatprep.subr.bf16.mxu0 0
      %761 = vmatpush2.bf16.xpose.msra.mxu0 0
      %762 = vmatprep.subr.bf16.mxu0 0
      %763 = vmatpush2.bf16.xpose.msra.mxu0 0
      %764 = vmatprep.subr.bf16.mxu0 0
      %765 = vmatpush2.bf16.xpose.msra.mxu0 0
      %766 = vmatprep.subr.bf16.mxu0 0
      %767 = vmatpush2.bf16.xpose.msra.mxu0 0
      %768 = vmatprep.subr.bf16.mxu0 0
      %769 = vmatpush2.bf16.xpose.msra.mxu0 0
      %770 = vmatprep.subr.bf16.mxu0 0
      %771 = vmatpush2.bf16.xpose.msra.mxu0 0
      %772 = vmatprep.mubr.bf16.mxu0 0
      %773 = vmatmul.mubr.bf16.gmra.mxu0 %v735
      %v774 = vpop.f32.mrf.mxu0
      %v775 = vadd.f32 %v731, %v774
      %v776 = vpop.f32.mrf.mxu0
      %v777 = vpop.f32.mrf.mxu0
      %v778 = vpop.f32.mrf.mxu0
      %779 = vdwg.mxu0
      %v780 = vsel %vm733, %v775, -inf
      %781 = vmax.xlane.f32.xlu0 %v780
      %v782 = vpop.xlane.xlu0 %781
      %v783 = vsub.f32 %v775, %v782
      %v784 = vmul.f32 %v783, 1.442695
      %v785 = vpow.pop %v784
      %v786 = vsel %vm733, %v785, 0.0
      %787 = vadd.xlane.f32.xlu0 %v786
      %v788 = vpop.xlane.xlu0 %787
      %v789 = vrcp.pop %v788
      %v790 = vmul.f32 %v785, %v789
      %v791 = vpack.c.bf16 %v790, %v790
      %793 = vrot.lane.b32.xlu0 %v723, 96
      %v794 = vpop.permute.xlu0 %793
      %v796 = vsel %vm733, %v791, 0
      %vm798 = vcmask 1043456
      %v800 = vsel %vm798, %v794, 0
      %802 = vmatprep.subr.bf16.mxu0 0
      %803 = vmatpush1.bf16.msra.mxu0 0
      %804 = vmatprep.subr.bf16.mxu0 0
      %805 = vmatpush1.bf16.msra.mxu0 0
      %806 = vmatprep.subr.bf16.mxu0 0
      %807 = vmatpush1.bf16.msra.mxu0 0
      %808 = vmatprep.subr.bf16.mxu0 0
      %809 = vmatpush1.bf16.msra.mxu0 0
      %810 = vmatprep.subr.bf16.mxu0 0
      %811 = vmatpush1.bf16.msra.mxu0 0
      %812 = vmatprep.subr.bf16.mxu0 0
      %813 = vmatpush1.bf16.msra.mxu0 0
      %814 = vmatprep.subr.bf16.mxu0 0
      %815 = vmatpush1.bf16.msra.mxu0 0
      %816 = vmatprep.subr.bf16.mxu0 0
      %817 = vmatpush1.bf16.msra.mxu0 %v800
      %818 = vmatprep.subr.bf16.mxu0 0
      %819 = vmatpush2.bf16.msra.mxu0 0
      %820 = vmatprep.subr.bf16.mxu0 0
      %821 = vmatpush2.bf16.msra.mxu0 0
      %822 = vmatprep.subr.bf16.mxu0 0
      %823 = vmatpush2.bf16.msra.mxu0 0
      %824 = vmatprep.subr.bf16.mxu0 0
      %825 = vmatpush2.bf16.msra.mxu0 0
      %826 = vmatprep.subr.bf16.mxu0 0
      %827 = vmatpush2.bf16.msra.mxu0 0
      %828 = vmatprep.subr.bf16.mxu0 0
      %829 = vmatpush2.bf16.msra.mxu0 0
      %830 = vmatprep.subr.bf16.mxu0 0
      %831 = vmatpush2.bf16.msra.mxu0 0
      %832 = vmatprep.subr.bf16.mxu0 0
      %833 = vmatpush2.bf16.msra.mxu0 0
      %834 = vmatprep.mubr.bf16.mxu0 0
      %835 = vmatmul.mubr.bf16.gmra.mxu0 %v796
      %v836 = vpop.f32.mrf.mxu0
      %v837 = vadd.f32 0.0, %v836
      %v838 = vpop.f32.mrf.mxu0
      %v839 = vpop.f32.mrf.mxu0
      %v840 = vpop.f32.mrf.mxu0
      %841 = vdwg.mxu0
      %v842 = vpack.c.bf16 %v837, %v837
      %v843 = vld [vmem:[%s8] sm:$0xf]
      %845 = vrot.lane.b32.xlu0 %v722, 120
      %v846 = vpop.permute.xlu0 %845
      %847 = vrot.lane.b32.xlu0 %v723, 120
      %v848 = vpop.permute.xlu0 %847
      %v850 = vsel %vm733, %v846, 0
      %v853 = vsel %vm733, %v848, 0
      %855 = vmatprep.subr.bf16.mxu0 0
      %856 = vmatpush1.bf16.xpose.msra.mxu0 0
      %857 = vmatprep.subr.bf16.mxu0 0
      %858 = vmatpush1.bf16.xpose.msra.mxu0 0
      %859 = vmatprep.subr.bf16.mxu0 0
      %860 = vmatpush1.bf16.xpose.msra.mxu0 0
      %861 = vmatprep.subr.bf16.mxu0 0
      %862 = vmatpush1.bf16.xpose.msra.mxu0 0
      %863 = vmatprep.subr.bf16.mxu0 0
      %864 = vmatpush1.bf16.xpose.msra.mxu0 0
      %865 = vmatprep.subr.bf16.mxu0 0
      %866 = vmatpush1.bf16.xpose.msra.mxu0 0
      %867 = vmatprep.subr.bf16.mxu0 0
      %868 = vmatpush1.bf16.xpose.msra.mxu0 0
      %869 = vmatprep.subr.bf16.mxu0 0
      %870 = vmatpush1.bf16.xpose.msra.mxu0 %v853
      %871 = vmatprep.subr.bf16.mxu0 0
      %872 = vmatpush2.bf16.xpose.msra.mxu0 0
      %873 = vmatprep.subr.bf16.mxu0 0
      %874 = vmatpush2.bf16.xpose.msra.mxu0 0
      %875 = vmatprep.subr.bf16.mxu0 0
      %876 = vmatpush2.bf16.xpose.msra.mxu0 0
      %877 = vmatprep.subr.bf16.mxu0 0
      %878 = vmatpush2.bf16.xpose.msra.mxu0 0
      %879 = vmatprep.subr.bf16.mxu0 0
      %880 = vmatpush2.bf16.xpose.msra.mxu0 0
      %881 = vmatprep.subr.bf16.mxu0 0
      %882 = vmatpush2.bf16.xpose.msra.mxu0 0
      %883 = vmatprep.subr.bf16.mxu0 0
      %884 = vmatpush2.bf16.xpose.msra.mxu0 0
      %885 = vmatprep.subr.bf16.mxu0 0
      %886 = vmatpush2.bf16.xpose.msra.mxu0 0
      %887 = vmatprep.mubr.bf16.mxu0 0
      %888 = vmatmul.mubr.bf16.gmra.mxu0 %v850
      %v889 = vpop.f32.mrf.mxu0
      %v890 = vadd.f32 %v731, %v889
      %v891 = vpop.f32.mrf.mxu0
      %v892 = vpop.f32.mrf.mxu0
      %v893 = vpop.f32.mrf.mxu0
      %894 = vdwg.mxu0
      %v895 = vsel %vm733, %v890, -inf
      %896 = vmax.xlane.f32.xlu0 %v895
      %v897 = vpop.xlane.xlu0 %896
      %v898 = vsub.f32 %v890, %v897
      %v899 = vmul.f32 %v898, 1.442695
      %v900 = vpow.pop %v899
      %v901 = vsel %vm733, %v900, 0.0
      %902 = vadd.xlane.f32.xlu0 %v901
      %v903 = vpop.xlane.xlu0 %902
      %v904 = vrcp.pop %v903
      %v905 = vmul.f32 %v900, %v904
      %v906 = vpack.c.bf16 %v905, %v905
      %907 = vrot.lane.b32.xlu0 %v723, 88
      %v908 = vpop.permute.xlu0 %907
      %v910 = vsel %vm733, %v906, 0
      %v913 = vsel %vm798, %v908, 0
      %915 = vmatprep.subr.bf16.mxu0 0
      %916 = vmatpush1.bf16.msra.mxu0 0
      %917 = vmatprep.subr.bf16.mxu0 0
      %918 = vmatpush1.bf16.msra.mxu0 0
      %919 = vmatprep.subr.bf16.mxu0 0
      %920 = vmatpush1.bf16.msra.mxu0 0
      %921 = vmatprep.subr.bf16.mxu0 0
      %922 = vmatpush1.bf16.msra.mxu0 0
      %923 = vmatprep.subr.bf16.mxu0 0
      %924 = vmatpush1.bf16.msra.mxu0 0
      %925 = vmatprep.subr.bf16.mxu0 0
      %926 = vmatpush1.bf16.msra.mxu0 0
      %927 = vmatprep.subr.bf16.mxu0 0
      %928 = vmatpush1.bf16.msra.mxu0 0
      %929 = vmatprep.subr.bf16.mxu0 0
      %930 = vmatpush1.bf16.msra.mxu0 %v913
      %931 = vmatprep.subr.bf16.mxu0 0
      %932 = vmatpush2.bf16.msra.mxu0 0
      %933 = vmatprep.subr.bf16.mxu0 0
      %934 = vmatpush2.bf16.msra.mxu0 0
      %935 = vmatprep.subr.bf16.mxu0 0
      %936 = vmatpush2.bf16.msra.mxu0 0
      %937 = vmatprep.subr.bf16.mxu0 0
      %938 = vmatpush2.bf16.msra.mxu0 0
      %939 = vmatprep.subr.bf16.mxu0 0
      %940 = vmatpush2.bf16.msra.mxu0 0
      %941 = vmatprep.subr.bf16.mxu0 0
      %942 = vmatpush2.bf16.msra.mxu0 0
      %943 = vmatprep.subr.bf16.mxu0 0
      %944 = vmatpush2.bf16.msra.mxu0 0
      %945 = vmatprep.subr.bf16.mxu0 0
      %946 = vmatpush2.bf16.msra.mxu0 0
      %947 = vmatprep.mubr.bf16.mxu0 0
      %948 = vmatmul.mubr.bf16.gmra.mxu0 %v910
      %v949 = vpop.f32.mrf.mxu0
      %v950 = vadd.f32 0.0, %v949
      %v951 = vpop.f32.mrf.mxu0
      %v952 = vpop.f32.mrf.mxu0
      %v953 = vpop.f32.mrf.mxu0
      %954 = vdwg.mxu0
      %v955 = vpack.c.bf16 %v950, %v950
      %s956 = scalar_lea.vmem %s8, 4
      %v957 = vld [vmem:[%s956] sm:$0xf]
      %v959 = vsel %vm733, %v955, 0
      %v962 = vsel %vm798, %v957, 0
      %964 = vmatprep.subr.bf16.mxu0 0
      %965 = vmatpush1.bf16.msra.mxu0 0
      %966 = vmatprep.subr.bf16.mxu0 0
      %967 = vmatpush1.bf16.msra.mxu0 0
      %968 = vmatprep.subr.bf16.mxu0 0
      %969 = vmatpush1.bf16.msra.mxu0 0
      %970 = vmatprep.subr.bf16.mxu0 0
      %971 = vmatpush1.bf16.msra.mxu0 0
      %972 = vmatprep.subr.bf16.mxu0 0
      %973 = vmatpush1.bf16.msra.mxu0 0
      %974 = vmatprep.subr.bf16.mxu0 0
      %975 = vmatpush1.bf16.msra.mxu0 0
      %976 = vmatprep.subr.bf16.mxu0 0
      %977 = vmatpush1.bf16.msra.mxu0 0
      %978 = vmatprep.subr.bf16.mxu0 0
      %979 = vmatpush1.bf16.msra.mxu0 %v962
      %980 = vmatprep.subr.bf16.mxu0 0
      %981 = vmatpush2.bf16.msra.mxu0 0
      %982 = vmatprep.subr.bf16.mxu0 0
      %983 = vmatpush2.bf16.msra.mxu0 0
      %984 = vmatprep.subr.bf16.mxu0 0
      %985 = vmatpush2.bf16.msra.mxu0 0
      %986 = vmatprep.subr.bf16.mxu0 0
      %987 = vmatpush2.bf16.msra.mxu0 0
      %988 = vmatprep.subr.bf16.mxu0 0
      %989 = vmatpush2.bf16.msra.mxu0 0
      %990 = vmatprep.subr.bf16.mxu0 0
      %991 = vmatpush2.bf16.msra.mxu0 0
      %992 = vmatprep.subr.bf16.mxu0 0
      %993 = vmatpush2.bf16.msra.mxu0 0
      %994 = vmatprep.subr.bf16.mxu0 0
      %995 = vmatpush2.bf16.msra.mxu0 0
      %996 = vmatprep.mubr.bf16.mxu0 0
      %997 = vmatmul.mubr.bf16.gmra.mxu0 %v959
      %v998 = vpop.f32.mrf.mxu0
      %v999 = vadd.f32 0.0, %v998
      %v1000 = vpop.f32.mrf.mxu0
      %v1001 = vpop.f32.mrf.mxu0
      %v1002 = vpop.f32.mrf.mxu0
      %1003 = vdwg.mxu0
      %v1005 = vsel %vm733, %v842, 0
      %v1008 = vsel %vm798, %v843, 0
      %1010 = vmatprep.subr.bf16.mxu0 0
      %1011 = vmatpush1.bf16.msra.mxu0 0
      %1012 = vmatprep.subr.bf16.mxu0 0
      %1013 = vmatpush1.bf16.msra.mxu0 0
      %1014 = vmatprep.subr.bf16.mxu0 0
      %1015 = vmatpush1.bf16.msra.mxu0 0
      %1016 = vmatprep.subr.bf16.mxu0 0
      %1017 = vmatpush1.bf16.msra.mxu0 0
      %1018 = vmatprep.subr.bf16.mxu0 0
      %1019 = vmatpush1.bf16.msra.mxu0 0
      %1020 = vmatprep.subr.bf16.mxu0 0
      %1021 = vmatpush1.bf16.msra.mxu0 0
      %1022 = vmatprep.subr.bf16.mxu0 0
      %1023 = vmatpush1.bf16.msra.mxu0 0
      %1024 = vmatprep.subr.bf16.mxu0 0
      %1025 = vmatpush1.bf16.msra.mxu0 %v1008
      %1026 = vmatprep.subr.bf16.mxu0 0
      %1027 = vmatpush2.bf16.msra.mxu0 0
      %1028 = vmatprep.subr.bf16.mxu0 0
      %1029 = vmatpush2.bf16.msra.mxu0 0
      %1030 = vmatprep.subr.bf16.mxu0 0
      %1031 = vmatpush2.bf16.msra.mxu0 0
      %1032 = vmatprep.subr.bf16.mxu0 0
      %1033 = vmatpush2.bf16.msra.mxu0 0
      %1034 = vmatprep.subr.bf16.mxu0 0
      %1035 = vmatpush2.bf16.msra.mxu0 0
      %1036 = vmatprep.subr.bf16.mxu0 0
      %1037 = vmatpush2.bf16.msra.mxu0 0
      %1038 = vmatprep.subr.bf16.mxu0 0
      %1039 = vmatpush2.bf16.msra.mxu0 0
      %1040 = vmatprep.subr.bf16.mxu0 0
      %1041 = vmatpush2.bf16.msra.mxu0 0
      %1042 = vmatprep.mubr.bf16.mxu0 0
      %1043 = vmatmul.mubr.bf16.gmra.mxu0 %v1005
      %v1044 = vpop.f32.mrf.mxu0
      %v1045 = vadd.f32 %v999, %v1044
      %v1046 = vpop.f32.mrf.mxu0
      %v1047 = vpop.f32.mrf.mxu0
      %v1048 = vpop.f32.mrf.mxu0
      %1049 = vdwg.mxu0
      %1050 = vrot.lane.b32.xlu0 %v722, 112
      %v1051 = vpop.permute.xlu0 %1050
      %1052 = vrot.lane.b32.xlu0 %v723, 112
      %v1053 = vpop.permute.xlu0 %1052
      %v1055 = vsel %vm733, %v1051, 0
      %v1058 = vsel %vm733, %v1053, 0
      %1060 = vmatprep.subr.bf16.mxu0 0
      %1061 = vmatpush1.bf16.xpose.msra.mxu0 0
      %1062 = vmatprep.subr.bf16.mxu0 0
      %1063 = vmatpush1.bf16.xpose.msra.mxu0 0
      %1064 = vmatprep.subr.bf16.mxu0 0
      %1065 = vmatpush1.bf16.xpose.msra.mxu0 0
      %1066 = vmatprep.subr.bf16.mxu0 0
      %1067 = vmatpush1.bf16.xpose.msra.mxu0 0
      %1068 = vmatprep.subr.bf16.mxu0 0
      %1069 = vmatpush1.bf16.xpose.msra.mxu0 0
      %1070 = vmatprep.subr.bf16.mxu0 0
      %1071 = vmatpush1.bf16.xpose.msra.mxu0 0
      %1072 = vmatprep.subr.bf16.mxu0 0
      %1073 = vmatpush1.bf16.xpose.msra.mxu0 0
      %1074 = vmatprep.subr.bf16.mxu0 0
      %1075 = vmatpush1.bf16.xpose.msra.mxu0 %v1058
      %1076 = vmatprep.subr.bf16.mxu0 0
      %1077 = vmatpush2.bf16.xpose.msra.mxu0 0
      %1078 = vmatprep.subr.bf16.mxu0 0
      %1079 = vmatpush2.bf16.xpose.msra.mxu0 0
      %1080 = vmatprep.subr.bf16.mxu0 0
      %1081 = vmatpush2.bf16.xpose.msra.mxu0 0
      %1082 = vmatprep.subr.bf16.mxu0 0
      %1083 = vmatpush2.bf16.xpose.msra.mxu0 0
      %1084 = vmatprep.subr.bf16.mxu0 0
      %1085 = vmatpush2.bf16.xpose.msra.mxu0 0
      %1086 = vmatprep.subr.bf16.mxu0 0
      %1087 = vmatpush2.bf16.xpose.msra.mxu0 0
      %1088 = vmatprep.subr.bf16.mxu0 0
      %1089 = vmatpush2.bf16.xpose.msra.mxu0 0
      %1090 = vmatprep.subr.bf16.mxu0 0
      %1091 = vmatpush2.bf16.xpose.msra.mxu0 0
      %1092 = vmatprep.mubr.bf16.mxu0 0
      %1093 = vmatmul.mubr.bf16.gmra.mxu0 %v1055
      %v1094 = vpop.f32.mrf.mxu0
      %v1095 = vadd.f32 %v731, %v1094
      %v1096 = vpop.f32.mrf.mxu0
      %v1097 = vpop.f32.mrf.mxu0
      %v1098 = vpop.f32.mrf.mxu0
      %1099 = vdwg.mxu0
      %v1100 = vsel %vm733, %v1095, -inf
      %1101 = vmax.xlane.f32.xlu0 %v1100
      %v1102 = vpop.xlane.xlu0 %1101
      %v1103 = vsub.f32 %v1095, %v1102
      %v1104 = vmul.f32 %v1103, 1.442695
      %v1105 = vpow.pop %v1104
      %v1106 = vsel %vm733, %v1105, 0.0
      %1107 = vadd.xlane.f32.xlu0 %v1106
      %v1108 = vpop.xlane.xlu0 %1107
      %v1109 = vrcp.pop %v1108
      %v1110 = vmul.f32 %v1105, %v1109
      %v1111 = vpack.c.bf16 %v1110, %v1110
      %1112 = vrot.lane.b32.xlu0 %v723, 80
      %v1113 = vpop.permute.xlu0 %1112
      %v1115 = vsel %vm733, %v1111, 0
      %v1118 = vsel %vm798, %v1113, 0
      %1120 = vmatprep.subr.bf16.mxu0 0
      %1121 = vmatpush1.bf16.msra.mxu0 0
      %1122 = vmatprep.subr.bf16.mxu0 0
      %1123 = vmatpush1.bf16.msra.mxu0 0
      %1124 = vmatprep.subr.bf16.mxu0 0
      %1125 = vmatpush1.bf16.msra.mxu0 0
      %1126 = vmatprep.subr.bf16.mxu0 0
      %1127 = vmatpush1.bf16.msra.mxu0 0
      %1128 = vmatprep.subr.bf16.mxu0 0
      %1129 = vmatpush1.bf16.msra.mxu0 0
      %1130 = vmatprep.subr.bf16.mxu0 0
      %1131 = vmatpush1.bf16.msra.mxu0 0
      %1132 = vmatprep.subr.bf16.mxu0 0
      %1133 = vmatpush1.bf16.msra.mxu0 0
      %1134 = vmatprep.subr.bf16.mxu0 0
      %1135 = vmatpush1.bf16.msra.mxu0 %v1118
      %1136 = vmatprep.subr.bf16.mxu0 0
      %1137 = vmatpush2.bf16.msra.mxu0 0
      %1138 = vmatprep.subr.bf16.mxu0 0
      %1139 = vmatpush2.bf16.msra.mxu0 0
      %1140 = vmatprep.subr.bf16.mxu0 0
      %1141 = vmatpush2.bf16.msra.mxu0 0
      %1142 = vmatprep.subr.bf16.mxu0 0
      %1143 = vmatpush2.bf16.msra.mxu0 0
      %1144 = vmatprep.subr.bf16.mxu0 0
      %1145 = vmatpush2.bf16.msra.mxu0 0
      %1146 = vmatprep.subr.bf16.mxu0 0
      %1147 = vmatpush2.bf16.msra.mxu0 0
      %1148 = vmatprep.subr.bf16.mxu0 0
      %1149 = vmatpush2.bf16.msra.mxu0 0
      %1150 = vmatprep.subr.bf16.mxu0 0
      %1151 = vmatpush2.bf16.msra.mxu0 0
      %1152 = vmatprep.mubr.bf16.mxu0 0
      %1153 = vmatmul.mubr.bf16.gmra.mxu0 %v1115
      %v1154 = vpop.f32.mrf.mxu0
      %v1155 = vadd.f32 0.0, %v1154
      %v1156 = vpop.f32.mrf.mxu0
      %v1157 = vpop.f32.mrf.mxu0
      %v1158 = vpop.f32.mrf.mxu0
      %1159 = vdwg.mxu0
      %v1160 = vpack.c.bf16 %v1155, %v1155
      %s1161 = scalar_lea.vmem %s8, 8
      %v1162 = vld [vmem:[%s1161] sm:$0xf]
      %v1164 = vsel %vm733, %v1160, 0
      %v1167 = vsel %vm798, %v1162, 0
      %1169 = vmatprep.subr.bf16.mxu0 0
      %1170 = vmatpush1.bf16.msra.mxu0 0
      %1171 = vmatprep.subr.bf16.mxu0 0
      %1172 = vmatpush1.bf16.msra.mxu0 0
      %1173 = vmatprep.subr.bf16.mxu0 0
      %1174 = vmatpush1.bf16.msra.mxu0 0
      %1175 = vmatprep.subr.bf16.mxu0 0
      %1176 = vmatpush1.bf16.msra.mxu0 0
      %1177 = vmatprep.subr.bf16.mxu0 0
      %1178 = vmatpush1.bf16.msra.mxu0 0
      %1179 = vmatprep.subr.bf16.mxu0 0
      %1180 = vmatpush1.bf16.msra.mxu0 0
      %1181 = vmatprep.subr.bf16.mxu0 0
      %1182 = vmatpush1.bf16.msra.mxu0 0
      %1183 = vmatprep.subr.bf16.mxu0 0
      %1184 = vmatpush1.bf16.msra.mxu0 %v1167
      %1185 = vmatprep.subr.bf16.mxu0 0
      %1186 = vmatpush2.bf16.msra.mxu0 0
      %1187 = vmatprep.subr.bf16.mxu0 0
      %1188 = vmatpush2.bf16.msra.mxu0 0
      %1189 = vmatprep.subr.bf16.mxu0 0
      %1190 = vmatpush2.bf16.msra.mxu0 0
      %1191 = vmatprep.subr.bf16.mxu0 0
      %1192 = vmatpush2.bf16.msra.mxu0 0
      %1193 = vmatprep.subr.bf16.mxu0 0
      %1194 = vmatpush2.bf16.msra.mxu0 0
      %1195 = vmatprep.subr.bf16.mxu0 0
      %1196 = vmatpush2.bf16.msra.mxu0 0
      %1197 = vmatprep.subr.bf16.mxu0 0
      %1198 = vmatpush2.bf16.msra.mxu0 0
      %1199 = vmatprep.subr.bf16.mxu0 0
      %1200 = vmatpush2.bf16.msra.mxu0 0
      %1201 = vmatprep.mubr.bf16.mxu0 0
      %1202 = vmatmul.mubr.bf16.gmra.mxu0 %v1164
      %v1203 = vpop.f32.mrf.mxu0
      %v1204 = vadd.f32 0.0, %v1203
      %v1205 = vpop.f32.mrf.mxu0
      %v1206 = vpop.f32.mrf.mxu0
      %v1207 = vpop.f32.mrf.mxu0
      %1208 = vdwg.mxu0
      %v1209 = vadd.f32 %v1045, %v1204
      %1210 = vrot.lane.b32.xlu0 %v722, 104
      %v1211 = vpop.permute.xlu0 %1210
      %1212 = vrot.lane.b32.xlu0 %v723, 104
      %v1213 = vpop.permute.xlu0 %1212
      %v1215 = vsel %vm733, %v1211, 0
      %v1218 = vsel %vm733, %v1213, 0
      %1220 = vmatprep.subr.bf16.mxu0 0
      %1221 = vmatpush1.bf16.xpose.msra.mxu0 0
      %1222 = vmatprep.subr.bf16.mxu0 0
      %1223 = vmatpush1.bf16.xpose.msra.mxu0 0
      %1224 = vmatprep.subr.bf16.mxu0 0
      %1225 = vmatpush1.bf16.xpose.msra.mxu0 0
      %1226 = vmatprep.subr.bf16.mxu0 0
      %1227 = vmatpush1.bf16.xpose.msra.mxu0 0
      %1228 = vmatprep.subr.bf16.mxu0 0
      %1229 = vmatpush1.bf16.xpose.msra.mxu0 0
      %1230 = vmatprep.subr.bf16.mxu0 0
      %1231 = vmatpush1.bf16.xpose.msra.mxu0 0
      %1232 = vmatprep.subr.bf16.mxu0 0
      %1233 = vmatpush1.bf16.xpose.msra.mxu0 0
      %1234 = vmatprep.subr.bf16.mxu0 0
      %1235 = vmatpush1.bf16.xpose.msra.mxu0 %v1218
      %1236 = vmatprep.subr.bf16.mxu0 0
      %1237 = vmatpush2.bf16.xpose.msra.mxu0 0
      %1238 = vmatprep.subr.bf16.mxu0 0
      %1239 = vmatpush2.bf16.xpose.msra.mxu0 0
      %1240 = vmatprep.subr.bf16.mxu0 0
      %1241 = vmatpush2.bf16.xpose.msra.mxu0 0
      %1242 = vmatprep.subr.bf16.mxu0 0
      %1243 = vmatpush2.bf16.xpose.msra.mxu0 0
      %1244 = vmatprep.subr.bf16.mxu0 0
      %1245 = vmatpush2.bf16.xpose.msra.mxu0 0
      %1246 = vmatprep.subr.bf16.mxu0 0
      %1247 = vmatpush2.bf16.xpose.msra.mxu0 0
      %1248 = vmatprep.subr.bf16.mxu0 0
      %1249 = vmatpush2.bf16.xpose.msra.mxu0 0
      %1250 = vmatprep.subr.bf16.mxu0 0
      %1251 = vmatpush2.bf16.xpose.msra.mxu0 0
      %1252 = vmatprep.mubr.bf16.mxu0 0
      %1253 = vmatmul.mubr.bf16.gmra.mxu0 %v1215
      %v1254 = vpop.f32.mrf.mxu0
      %v1255 = vadd.f32 %v731, %v1254
      %v1256 = vpop.f32.mrf.mxu0
      %v1257 = vpop.f32.mrf.mxu0
      %v1258 = vpop.f32.mrf.mxu0
      %1259 = vdwg.mxu0
      %v1260 = vsel %vm733, %v1255, -inf
      %1261 = vmax.xlane.f32.xlu0 %v1260
      %v1262 = vpop.xlane.xlu0 %1261
      %v1263 = vsub.f32 %v1255, %v1262
      %v1264 = vmul.f32 %v1263, 1.442695
      %v1265 = vpow.pop %v1264
      %v1266 = vsel %vm733, %v1265, 0.0
      %1267 = vadd.xlane.f32.xlu0 %v1266
      %v1268 = vpop.xlane.xlu0 %1267
      %v1269 = vrcp.pop %v1268
      %v1270 = vmul.f32 %v1265, %v1269
      %v1271 = vpack.c.bf16 %v1270, %v1270
      %1272 = vrot.lane.b32.xlu0 %v723, 72
      %v1273 = vpop.permute.xlu0 %1272
      %v1275 = vsel %vm733, %v1271, 0
      %v1278 = vsel %vm798, %v1273, 0
      %1280 = vmatprep.subr.bf16.mxu0 0
      %1281 = vmatpush1.bf16.msra.mxu0 0
      %1282 = vmatprep.subr.bf16.mxu0 0
      %1283 = vmatpush1.bf16.msra.mxu0 0
      %1284 = vmatprep.subr.bf16.mxu0 0
      %1285 = vmatpush1.bf16.msra.mxu0 0
      %1286 = vmatprep.subr.bf16.mxu0 0
      %1287 = vmatpush1.bf16.msra.mxu0 0
      %1288 = vmatprep.subr.bf16.mxu0 0
      %1289 = vmatpush1.bf16.msra.mxu0 0
      %1290 = vmatprep.subr.bf16.mxu0 0
      %1291 = vmatpush1.bf16.msra.mxu0 0
      %1292 = vmatprep.subr.bf16.mxu0 0
      %1293 = vmatpush1.bf16.msra.mxu0 0
      %1294 = vmatprep.subr.bf16.mxu0 0
      %1295 = vmatpush1.bf16.msra.mxu0 %v1278
      %1296 = vmatprep.subr.bf16.mxu0 0
      %1297 = vmatpush2.bf16.msra.mxu0 0
      %1298 = vmatprep.subr.bf16.mxu0 0
      %1299 = vmatpush2.bf16.msra.mxu0 0
      %1300 = vmatprep.subr.bf16.mxu0 0
      %1301 = vmatpush2.bf16.msra.mxu0 0
      %1302 = vmatprep.subr.bf16.mxu0 0
      %1303 = vmatpush2.bf16.msra.mxu0 0
      %1304 = vmatprep.subr.bf16.mxu0 0
      %1305 = vmatpush2.bf16.msra.mxu0 0
      %1306 = vmatprep.subr.bf16.mxu0 0
      %1307 = vmatpush2.bf16.msra.mxu0 0
      %1308 = vmatprep.subr.bf16.mxu0 0
      %1309 = vmatpush2.bf16.msra.mxu0 0
      %1310 = vmatprep.subr.bf16.mxu0 0
      %1311 = vmatpush2.bf16.msra.mxu0 0
      %1312 = vmatprep.mubr.bf16.mxu0 0
      %1313 = vmatmul.mubr.bf16.gmra.mxu0 %v1275
      %v1314 = vpop.f32.mrf.mxu0
      %v1315 = vadd.f32 0.0, %v1314
      %v1316 = vpop.f32.mrf.mxu0
      %v1317 = vpop.f32.mrf.mxu0
      %v1318 = vpop.f32.mrf.mxu0
      %1319 = vdwg.mxu0
      %v1320 = vpack.c.bf16 %v1315, %v1315
      %s1321 = scalar_lea.vmem %s8, 12
      %v1322 = vld [vmem:[%s1321] sm:$0xf]
      %v1324 = vsel %vm733, %v1320, 0
      %v1327 = vsel %vm798, %v1322, 0
      %1329 = vmatprep.subr.bf16.mxu0 0
      %1330 = vmatpush1.bf16.msra.mxu0 0
      %1331 = vmatprep.subr.bf16.mxu0 0
      %1332 = vmatpush1.bf16.msra.mxu0 0
      %1333 = vmatprep.subr.bf16.mxu0 0
      %1334 = vmatpush1.bf16.msra.mxu0 0
      %1335 = vmatprep.subr.bf16.mxu0 0
      %1336 = vmatpush1.bf16.msra.mxu0 0
      %1337 = vmatprep.subr.bf16.mxu0 0
      %1338 = vmatpush1.bf16.msra.mxu0 0
      %1339 = vmatprep.subr.bf16.mxu0 0
      %1340 = vmatpush1.bf16.msra.mxu0 0
      %1341 = vmatprep.subr.bf16.mxu0 0
      %1342 = vmatpush1.bf16.msra.mxu0 0
      %1343 = vmatprep.subr.bf16.mxu0 0
      %1344 = vmatpush1.bf16.msra.mxu0 %v1327
      %1345 = vmatprep.subr.bf16.mxu0 0
      %1346 = vmatpush2.bf16.msra.mxu0 0
      %1347 = vmatprep.subr.bf16.mxu0 0
      %1348 = vmatpush2.bf16.msra.mxu0 0
      %1349 = vmatprep.subr.bf16.mxu0 0
      %1350 = vmatpush2.bf16.msra.mxu0 0
      %1351 = vmatprep.subr.bf16.mxu0 0
      %1352 = vmatpush2.bf16.msra.mxu0 0
      %1353 = vmatprep.subr.bf16.mxu0 0
      %1354 = vmatpush2.bf16.msra.mxu0 0
      %1355 = vmatprep.subr.bf16.mxu0 0
      %1356 = vmatpush2.bf16.msra.mxu0 0
      %1357 = vmatprep.subr.bf16.mxu0 0
      %1358 = vmatpush2.bf16.msra.mxu0 0
      %1359 = vmatprep.subr.bf16.mxu0 0
      %1360 = vmatpush2.bf16.msra.mxu0 0
      %1361 = vmatprep.mubr.bf16.mxu0 0
      %1362 = vmatmul.mubr.bf16.gmra.mxu0 %v1324
      %v1363 = vpop.f32.mrf.mxu0
      %v1364 = vadd.f32 0.0, %v1363
      %v1365 = vpop.f32.mrf.mxu0
      %v1366 = vpop.f32.mrf.mxu0
      %v1367 = vpop.f32.mrf.mxu0
      %1368 = vdwg.mxu0
      %v1369 = vadd.f32 %v1209, %v1364
      %v1370 = vld [vmem:[%s9] sm:$0x1]
      %v1372 = vlaneseq
      %v1373 = vshrl.u32 %v1372, 7
      %v1374 = vsub.s32 0, %v1373
      %v1375 = vrot.slane %v1370, %v1374
      %v1377 = vadd.f32 %v1369, %v1375
      %v1378 = vadd.f32 %v1377, %v555
      %v1379 = vsel %vm558, %v1378, 0.0
      %1380 = vadd.xlane.f32.xlu0 %v1379
      %v1381 = vpop.xlane.xlu0 %1380
      %v1382 = vmul.f32 %v1381, %v562
      %v1383 = vsub.f32 %v1378, %v1382
      %v1384 = vmul.f32 %v1383, %v1383
      %v1385 = vsel %vm558, %v1384, 0.0
      %1386 = vadd.xlane.f32.xlu0 %v1385
      %v1387 = vpop.xlane.xlu0 %1386
      %v1388 = vmul.f32 %v1387, %v562
      %v1389 = vadd.f32 %v1388, 1e-06
      %v1390 = vrsqrt.pop %v1389
      %v1391 = vmul.f32 %v1383, %v1390
      %v1392 = vld [vmem:[%s12] sm:$0x1]
      %v1394 = vlaneseq
      %v1395 = vshrl.u32 %v1394, 7
      %v1396 = vsub.s32 0, %v1395
      %v1397 = vrot.slane %v1392, %v1396
      %v1399 = vmul.f32 %v1391, %v1397
      %v1400 = vld [vmem:[%s13] sm:$0x1]
      %v1402 = vlaneseq
      %v1403 = vshrl.u32 %v1402, 7
      %v1404 = vsub.s32 0, %v1403
      %v1405 = vrot.slane %v1400, %v1404
      %v1407 = vadd.f32 %v1399, %v1405
      %v1408 = vld [vmem:[%s545] sm:$0xff]
      %1410 = vset.pattern.permute.xlu0 0
      %1411 = vperm.xlu0 %1410, %v1408
      %v1412 = vpop.permute.xlu0 %1411
      %v1414 = vmul.f32 %v1407, %v1412
      %v1415 = vpack.c.bf16 %v1414, %v1414
      %vm1416 = vcmask 257024
      %1417 = vst.msk [vmem:[%s552] sm:$0xf] %vm1416, %v1415
      %p1418 = scmp.lt.s32.totalorder %s29, 1
      %s1419 = scalar_select %p1418, %s29, 1
      %p1420 = scmp.lt.s32.totalorder %s30, 0
      %s1421 = scalar_select %p1420, %s30, 0
      %s1422 = sadd.s32 %s1421, %s1419
      %s1423 = smul.addr %s1422, 4
      %s1424 = scalar_lea.vmem %s14, %s1423
      // Predicated region
      $region77: #{_lambda_.16} parent=75 // pred_check
        %p1425 = pneg %p375
      $region78: #{_lambda_.16} parent=75 // pred_check_branch
        %1427 = sbr.rel (%p1425) target = $region80
      $region79: #{_lambda_.16} parent=75 // pred_region
        _
      $region80: #{_lambda_.16} parent=75 // pred_fallthru
        _
    $region76: #{_lambda_.16} parent=5 // pred_fallthru
      _
    %p1428 = scmp.le.s32.totalorder 2, %s20
    // Predicated region
    $region81: #{_lambda_.16} parent=5 // pred_check
      %p1429 = pneg %p1428
    $region82: #{_lambda_.16} parent=5 // pred_check_branch
      %1431 = sbr.rel (%p1429) target = $region84
    $region83: #{_lambda_.16} parent=5 // pred_region
      %s1432 = ssub.s32 %s20, 2
      // Predicated region
      $region85: #{_lambda_.16} parent=83 // pred_check
        %p1433 = pneg %p381
      $region86: #{_lambda_.16} parent=83 // pred_check_branch
        %1435 = sbr.rel (%p1433) target = $region88
      $region87: #{_lambda_.16} parent=83 // pred_region
        %p1436 = scmp.lt.s32.totalorder %s31, 1
        %s1437 = scalar_select %p1436, %s31, 1
        %p1438 = scmp.lt.s32.totalorder %s32, 0
        %s1439 = scalar_select %p1438, %s32, 0
        %s1440 = sadd.s32 %s1439, %s1437
        %s1441 = smul.addr %s1440, 4
        %s1442 = scalar_lea.vmem %s14, %s1441
      $region88: #{_lambda_.16} parent=83 // pred_fallthru
        _
    $region84: #{_lambda_.16} parent=5 // pred_fallthru
      _
  $region6: #{_lambda_.16} parent=0 // loop_footer
    %s24 = sadd.s32 1, %s20
  $region7: #{_lambda_.16} parent=0 // loop_footer_branch
    %19 = sbr.rel target = $region3
  $region8: #{_lambda_.16} parent=0 // loop_exit
    _

</llo_original>
